<compile_context>
chip_gen: v5e
topology: v5e:2x2
jax: 0.10.0
libtpu: 0.0.40
codegen_flags: <defaults>
</compile_context>

<pallas_src>
import functools

import jax
import jax.numpy as jnp
import numpy as np
from jax.experimental import pallas as pl
from jax.experimental.pallas import tpu as pltpu

FREQ_LEN = 64
EPS = 1e-5
VMEM_LIMIT = 32 * 1024 * 1024
MAX_PIX_TILE = 8 * 1024


def _round_up(x, m):
    return (x + m - 1) // m * m


def _pick_tile(p, cap=MAX_PIX_TILE):
    """Largest pixel tile that divides p, is a multiple of 128 and <= cap."""
    if p <= cap:
        return p
    for nt in range(2, p // 128 + 1):
        if p % nt == 0 and (p // nt) % 128 == 0 and (p // nt) <= cap:
            return p // nt
    return p


# --------------------------------- kernels ----------------------------------

def front_kernel(xflat_ref, x_ref, w1_ref, w2_ref, b2_ref,
                 m1_ref, m2_ref, s1s_ref, s1q_ref, s2s_ref, s2q_ref,
                 xpf_s, patch_s, *, data_off):
    """Per batch: m1 = conv7x7(x) (1->16, MXU via im2col), m2 = x @ w2 + b2
    (MXU), plus per-program partial BN sums / sums-of-squares for both."""
    t, f = x_ref.shape
    p = t * f
    pad_len = xpf_s.shape[1]

    # ---- zero-haloed flat plane in VMEM scratch (no HBM padded copy) --------
    xpf_s[0:1, 0:data_off] = jnp.zeros((1, data_off), jnp.float32)
    xpf_s[0:1, data_off:data_off + p] = xflat_ref[...]
    tail = pad_len - (data_off + p)
    xpf_s[0:1, data_off + p:data_off + p + tail] = jnp.zeros((1, tail),
                                                             jnp.float32)
    xpf = xpf_s[...]                                   # (1, pad_len) value

    # ---- im2col: 49 shifted windows -> lane-dense (56, T*F) patch matrix ----
    # window(ky,kx)[t*F+g] = xpf[base + ky*F + kx + t*F + g]; rows of x are
    # flat-adjacent, so frequency-edge taps are zeroed with a per-kx lane mask.
    if f & (f - 1) == 0:
        fidx = jax.lax.broadcasted_iota(jnp.int32, (1, p), 1) & (f - 1)
    else:
        fidx = jax.lax.broadcasted_iota(jnp.int32, (1, p), 1) % f
    base = data_off - 3 * f - 3
    for ky in range(7):
        for kx in range(7):
            start = base + ky * f + kx
            win = xpf[:, start:start + p]              # (1, P) static slice
            lo = 3 - kx                                # zero g < lo
            hi = f + 3 - kx                            # zero g >= hi
            if lo > 0:
                win = jnp.where(fidx >= lo, win, 0.0)
            if hi < f:
                win = jnp.where(fidx < hi, win, 0.0)
            k = ky * 7 + kx
            patch_s[k:k + 1, :] = win
    patch_s[49:56, :] = jnp.zeros((7, p), jnp.float32)   # zero pad rows (K=56)

    # ---- 7x7 conv (1 -> 16) as a single MXU matmul, channel-major output ----
    m1 = jnp.dot(w1_ref[...], patch_s[...],
                 preferred_element_type=jnp.float32,
                 precision=jax.lax.Precision.HIGHEST)    # (16, P) lane-dense
    m1_ref[...] = m1
    s1s_ref[...] = jnp.sum(m1, axis=1, keepdims=True)          # partial sums
    s1q_ref[...] = jnp.sum(m1 * m1, axis=1, keepdims=True)

    # ---- 1x1 conv mixing the frequency axis (F -> F) + bias (MXU) -----------
    m2 = jnp.dot(x_ref[...], w2_ref[...],
                 preferred_element_type=jnp.float32,
                 precision=jax.lax.Precision.HIGHEST) + b2_ref[...]   # (T, F)
    m2_ref[...] = m2
    s2s_ref[...] = jnp.sum(jnp.sum(m2, axis=1, keepdims=True),
                           axis=0, keepdims=True)
    s2q_ref[...] = jnp.sum(jnp.sum(m2 * m2, axis=1, keepdims=True),
                           axis=0, keepdims=True)


def mid_kernel(m1_ref, m2_ref, s1s_ref, s1q_ref, s2s_ref, s2q_ref,
               w3a_ref, w3b_ref, mel_ref, s3s_ref, s3q_ref, *, count):
    """concat([bn(m1), bn(m2)]) -> relu -> 1x1 conv (17 -> 64) on lane-dense
    channel-major (C, tile) blocks; BN affine computed in-kernel from raw sums;
    emits per-program partial output-BN statistics."""
    inv_n = 1.0 / count
    mu1 = s1s_ref[...] * inv_n
    a1 = jax.lax.rsqrt(s1q_ref[...] * inv_n - mu1 * mu1 + EPS)
    b1 = -mu1 * a1
    mu2 = s2s_ref[...] * inv_n
    a2 = jax.lax.rsqrt(s2q_ref[...] * inv_n - mu2 * mu2 + EPS)
    b2 = -mu2 * a2

    h1 = jnp.maximum(m1_ref[...] * a1 + b1, 0.0)       # (16, TP)
    h2 = jnp.maximum(m2_ref[...] * a2 + b2, 0.0)       # (1, TP)
    mel = (jnp.dot(w3a_ref[...], h1,
                   preferred_element_type=jnp.float32,
                   precision=jax.lax.Precision.HIGHEST)
           + w3b_ref[...] * h2)                        # (64, TP)
    mel_ref[...] = mel
    s3s_ref[...] = jnp.sum(mel, axis=1, keepdims=True)
    s3q_ref[...] = jnp.sum(mel * mel, axis=1, keepdims=True)


def tail_kernel(mel_ref, s3s_ref, s3q_ref, out_ref, *, count):
    """Final BN (affine from raw sums) + ReLU, in place (aliased output)."""
    inv_n = 1.0 / count
    mu = s3s_ref[...] * inv_n
    a = jax.lax.rsqrt(s3q_ref[...] * inv_n - mu * mu + EPS)
    b = -mu * a
    out_ref[...] = jnp.maximum(mel_ref[...] * a + b, 0.0)


# ------------------------------ pallas wrappers ------------------------------

def _front(xflat, x, w1_mat, w2_mat, b2_row):
    bsz, t, f = x.shape
    p = t * f
    data_off = _round_up(3 * f + 3, 128)
    pad_len = _round_up(data_off + p + 3 * f + 3, 128)
    kernel = functools.partial(front_kernel, data_off=data_off)
    return pl.pallas_call(
        kernel,
        out_shape=(jax.ShapeDtypeStruct((bsz, 16, p), jnp.float32),
                   jax.ShapeDtypeStruct((bsz, t, f), jnp.float32),
                   jax.ShapeDtypeStruct((bsz, 16, 1), jnp.float32),
                   jax.ShapeDtypeStruct((bsz, 16, 1), jnp.float32),
                   jax.ShapeDtypeStruct((bsz, 1, 1), jnp.float32),
                   jax.ShapeDtypeStruct((bsz, 1, 1), jnp.float32)),
        grid_spec=pltpu.PrefetchScalarGridSpec(
            num_scalar_prefetch=0,
            grid=(bsz,),
            in_specs=[
                pl.BlockSpec((None, 1, p), lambda i: (i, 0, 0)),   # flat view
                pl.BlockSpec((None, t, f), lambda i: (i, 0, 0)),   # (T,F) view
                pl.BlockSpec((16, 56), lambda i: (0, 0)),          # conv taps
                pl.BlockSpec((f, f), lambda i: (0, 0)),
                pl.BlockSpec((1, f), lambda i: (0, 0)),
            ],
            out_specs=(
                pl.BlockSpec((None, 16, p), lambda i: (i, 0, 0)),
                pl.BlockSpec((None, t, f), lambda i: (i, 0, 0)),
                pl.BlockSpec((None, 16, 1), lambda i: (i, 0, 0)),
                pl.BlockSpec((None, 16, 1), lambda i: (i, 0, 0)),
                pl.BlockSpec((None, 1, 1), lambda i: (i, 0, 0)),
                pl.BlockSpec((None, 1, 1), lambda i: (i, 0, 0)),
            ),
            scratch_shapes=[pltpu.VMEM((1, pad_len), jnp.float32),
                            pltpu.VMEM((56, p), jnp.float32)]),
        compiler_params=pltpu.CompilerParams(
            dimension_semantics=("parallel",),
            vmem_limit_bytes=VMEM_LIMIT),
    )(xflat, x, w1_mat, w2_mat, b2_row)


def _mid(m1, m2v, s1s, s1q, s2s, s2q, w3a, w3b, *, count):
    bsz, c1, p = m1.shape
    tp = _pick_tile(p)
    nt = p // tp
    kernel = functools.partial(mid_kernel, count=count)
    return pl.pallas_call(
        kernel,
        out_shape=(jax.ShapeDtypeStruct((bsz, 64, p), jnp.float32),
                   jax.ShapeDtypeStruct((bsz * nt, 64, 1), jnp.float32),
                   jax.ShapeDtypeStruct((bsz * nt, 64, 1), jnp.float32)),
        grid_spec=pltpu.PrefetchScalarGridSpec(
            num_scalar_prefetch=0,
            grid=(bsz, nt),
            in_specs=[
                pl.BlockSpec((None, c1, tp), lambda i, j: (i, 0, j)),
                pl.BlockSpec((None, 1, tp), lambda i, j: (i, 0, j)),
                pl.BlockSpec((c1, 1), lambda i, j: (0, 0)),
                pl.BlockSpec((c1, 1), lambda i, j: (0, 0)),
                pl.BlockSpec((1, 1), lambda i, j: (0, 0)),
                pl.BlockSpec((1, 1), lambda i, j: (0, 0)),
                pl.BlockSpec((64, c1), lambda i, j: (0, 0)),
                pl.BlockSpec((64, 1), lambda i, j: (0, 0)),
            ],
            out_specs=(
                pl.BlockSpec((None, 64, tp), lambda i, j: (i, 0, j)),
                pl.BlockSpec((None, 64, 1), lambda i, j: (i * nt + j, 0, 0)),
                pl.BlockSpec((None, 64, 1), lambda i, j: (i * nt + j, 0, 0)),
            )),
        compiler_params=pltpu.CompilerParams(
            dimension_semantics=("parallel", "parallel"),
            vmem_limit_bytes=VMEM_LIMIT),
    )(m1, m2v, s1s, s1q, s2s, s2q, w3a, w3b)


def _tail(mel, s3s, s3q, *, count):
    bsz, c, p = mel.shape
    tp = _pick_tile(p)
    nt = p // tp
    kernel = functools.partial(tail_kernel, count=count)
    return pl.pallas_call(
        kernel,
        out_shape=jax.ShapeDtypeStruct((bsz, c, p), jnp.float32),
        grid_spec=pltpu.PrefetchScalarGridSpec(
            num_scalar_prefetch=0,
            grid=(bsz, nt),
            in_specs=[pl.BlockSpec((None, c, tp), lambda i, j: (i, 0, j)),
                      pl.BlockSpec((c, 1), lambda i, j: (0, 0)),
                      pl.BlockSpec((c, 1), lambda i, j: (0, 0))],
            out_specs=pl.BlockSpec((None, c, tp), lambda i, j: (i, 0, j))),
        input_output_aliases={0: 0},           # in-place BN + ReLU
        compiler_params=pltpu.CompilerParams(
            dimension_semantics=("parallel", "parallel"),
            vmem_limit_bytes=VMEM_LIMIT),
    )(mel, s3s, s3q)


# ----------------------------- forward (glue) -------------------------------

def input_preprocess_forward(mel_nchw, params):
    b, c_in, t, f = mel_nchw.shape
    assert c_in == 1 and f == FREQ_LEN
    p = t * f
    n = float(b * p)

    x = mel_nchw[:, 0, :, :]                      # [B, T, F]
    xflat = x.reshape(b, 1, p)                    # free row-major view

    # pass 1: conv branches (MXU) + fused per-program partial BN sums
    m1, m2, s1s_p, s1q_p, s2s_p, s2q_p = _front(
        xflat, x, params["w1_mat"], params["w2_mat"], params["b2_row"])

    # tiny cross-batch reductions of the partial sums (raw sums into pass 2)
    s1s = jnp.sum(s1s_p, axis=0)                  # (16, 1)
    s1q = jnp.sum(s1q_p, axis=0)
    s2s = jnp.sum(s2s_p, axis=0)                  # (1, 1)
    s2q = jnp.sum(s2q_p, axis=0)

    # pass 2: bn + cat + relu + 1x1 conv (17 -> 64), lane-dense channel-major,
    # with the output BN partial sums fused in.
    mel_raw, s3s_p, s3q_p = _mid(m1, m2.reshape(b, 1, p),
                                 s1s, s1q, s2s, s2q,
                                 params["w3a"], params["w3b"], count=n)
    s3s = jnp.sum(s3s_p, axis=0)                  # (64, 1)
    s3q = jnp.sum(s3q_p, axis=0)

    # pass 3: final bn + relu in place; NCHW result is a free reshape.
    out = _tail(mel_raw, s3s, s3q, count=n)       # [B, 64, T*F]
    return out.reshape(b, 64, t, f)               # NCHW [B, 64, T, F]


# ----------------------------- params & reference ---------------------------

def init_params(key):
    # kaiming_normal_(mode='fan_out') => std = sqrt(2 / (out_ch*kh*kw)); bias=0
    k1, k2, k3 = jax.random.split(key, 3)
    w1 = jax.random.normal(k1, (16, 1, 7, 7), jnp.float32) * np.sqrt(2.0 / (16 * 7 * 7))
    w2 = jax.random.normal(k2, (FREQ_LEN, FREQ_LEN, 1, 1), jnp.float32) * np.sqrt(2.0 / FREQ_LEN)
    b2 = jnp.zeros((FREQ_LEN,), jnp.float32)
    w3 = jax.random.normal(k3, (64, 17, 1, 1), jnp.float32) * np.sqrt(2.0 / 64)
    w1_tap = w1.reshape(16, 49)
    return dict(
        w1=w1, w2=w2, b2=b2, w3=w3,
        w1_mat=jnp.pad(w1_tap, ((0, 0), (0, 7))),   # [16, 56] taps, zero padded
        w2_mat=w2[:, :, 0, 0].T,                    # [64, 64]: m2 = x @ w2_mat + b2
        b2_row=b2.reshape(1, FREQ_LEN),             # [1, 64]
        w3a=w3[:, :16, 0, 0],                       # [64, 16]
        w3b=w3[:, 16:, 0, 0],                       # [64, 1]
    )


def reference_forward(mel_nchw, params):
    # pure-JAX mirror of the PyTorch forward (training-mode BN), for verification
    hp = jax.lax.Precision.HIGHEST

    def bn_train(v, axis):
        mean = jnp.mean(v, axis=axis, keepdims=True)
        var = jnp.mean(v * v, axis=axis, keepdims=True) - mean * mean
        return (v - mean) * jax.lax.rsqrt(var + EPS)

    m1 = jax.lax.conv_general_dilated(
        mel_nchw, params["w1"], (1, 1), [(3, 3), (3, 3)],
        dimension_numbers=("NCHW", "OIHW", "NCHW"), precision=hp)
    m1 = bn_train(m1, (0, 2, 3))

    m2in = jnp.transpose(mel_nchw, (0, 3, 2, 1))               # [B, F, T, 1]
    m2 = jax.lax.conv_general_dilated(
        m2in, params["w2"], (1, 1), [(0, 0), (0, 0)],
        dimension_numbers=("NCHW", "OIHW", "NCHW"), precision=hp)
    m2 = m2 + params["b2"].reshape(1, -1, 1, 1)
    m2 = jnp.transpose(m2, (0, 3, 2, 1))                       # [B, 1, T, F]
    m2 = bn_train(m2, (0, 2, 3))

    cat = jnp.maximum(jnp.concatenate([m1, m2], axis=1), 0.0)
    out = jax.lax.conv_general_dilated(
        cat, params["w3"], (1, 1), [(0, 0), (0, 0)],
        dimension_numbers=("NCHW", "OIHW", "NCHW"), precision=hp)
    out = bn_train(out, (0, 2, 3))
    return jnp.maximum(out, 0.0)


# ----------------------------------- main ------------------------------------

if __name__ == "__main__":
    key = jax.random.PRNGKey(0)
    kx, kp = jax.random.split(key)
    mel_input = jax.random.normal(kx, (2, 1, 16, FREQ_LEN), jnp.float32)  # NCHW
    params = init_params(kp)

    fwd = jax.jit(input_preprocess_forward)
    out = jax.block_until_ready(fwd(mel_input, params))
    ref = jax.block_until_ready(reference_forward(mel_input, params))

    assert out.shape == (2, 64, 16, FREQ_LEN), out.shape
    max_err = float(jnp.max(jnp.abs(out - ref)))
    assert max_err < 1e-2, f"mismatch vs reference: {max_err}"
    print("KERNEL_OK")
</pallas_src>

<mosaic_0001>
module attributes {stable_mosaic.version = 11 : i64} {
  func.func @front_kernel(%arg0: i32, %arg1: memref<1x1x1024xf32, #tpu.memory_space<vmem>>, %arg2: memref<1x16x64xf32, #tpu.memory_space<vmem>>, %arg3: memref<16x56xf32, #tpu.memory_space<vmem>>, %arg4: memref<64x64xf32, #tpu.memory_space<vmem>>, %arg5: memref<1x64xf32, #tpu.memory_space<vmem>>, %arg6: memref<1x16x1024xf32, #tpu.memory_space<vmem>>, %arg7: memref<1x16x64xf32, #tpu.memory_space<vmem>>, %arg8: memref<1x16x1xf32, #tpu.memory_space<vmem>>, %arg9: memref<1x16x1xf32, #tpu.memory_space<vmem>>, %arg10: memref<1x1x1xf32, #tpu.memory_space<vmem>>, %arg11: memref<1x1x1xf32, #tpu.memory_space<vmem>>, %arg12: memref<1x1536xf32, #tpu.memory_space<vmem>>, %arg13: memref<56x1024xf32, #tpu.memory_space<vmem>>) attributes {dimension_semantics = [#tpu.dimension_semantics<parallel>], iteration_bounds = array<i64: 2>, scalar_prefetch = 0 : i64, scratch_operands = 2 : i64, tpu.core_type = #tpu.core_type<tc>, window_params = [{transform_indices = @transform_0, window_bounds = array<i64: 1, 1, 1024>}, {transform_indices = @transform_1, window_bounds = array<i64: 1, 16, 64>}, {pipeline_mode = #tpu.pipeline_mode<synchronous>, transform_indices = @transform_2, window_bounds = array<i64: 16, 56>}, {pipeline_mode = #tpu.pipeline_mode<synchronous>, transform_indices = @transform_3, window_bounds = array<i64: 64, 64>}, {pipeline_mode = #tpu.pipeline_mode<synchronous>, transform_indices = @transform_4, window_bounds = array<i64: 1, 64>}, {transform_indices = @transform_5, window_bounds = array<i64: 1, 16, 1024>}, {transform_indices = @transform_6, window_bounds = array<i64: 1, 16, 64>}, {transform_indices = @transform_7, window_bounds = array<i64: 1, 16, 1>}, {transform_indices = @transform_8, window_bounds = array<i64: 1, 16, 1>}, {transform_indices = @transform_9, window_bounds = array<i64: 1, 1, 1>}, {transform_indices = @transform_10, window_bounds = array<i64: 1, 1, 1>}]} {
    %cst = arith.constant 0.000000e+00 : f32
    %0 = vector.broadcast %cst : f32 to vector<1x256xf32>
    %c0 = arith.constant 0 : index
    %c0_0 = arith.constant 0 : index
    %1 = vector.load %arg12[%c0, %c0_0] : memref<1x1536xf32, #tpu.memory_space<vmem>>, vector<1x256xf32>
    tpu.vector_store %arg12[%c0, %c0_0], %0 {strides = array<i32>} : memref<1x1536xf32, #tpu.memory_space<vmem>>, vector<1x256xf32>,
    %c0_1 = arith.constant 0 : index
    %c0_2 = arith.constant 0 : index
    %c0_3 = arith.constant 0 : index
    %2 = vector.load %arg1[%c0_1, %c0_2, %c0_3] : memref<1x1x1024xf32, #tpu.memory_space<vmem>>, vector<1x1x1024xf32>
    %3 = vector.shape_cast %2 : vector<1x1x1024xf32> to vector<1x1024xf32>
    %c0_4 = arith.constant 0 : index
    %c256 = arith.constant 256 : index
    %4 = vector.load %arg12[%c0_4, %c256] : memref<1x1536xf32, #tpu.memory_space<vmem>>, vector<1x1024xf32>
    tpu.vector_store %arg12[%c0_4, %c256], %3 {strides = array<i32>} : memref<1x1536xf32, #tpu.memory_space<vmem>>, vector<1x1024xf32>,
    %cst_5 = arith.constant 0.000000e+00 : f32
    %5 = vector.broadcast %cst_5 : f32 to vector<1x256xf32>
    %c0_6 = arith.constant 0 : index
    %c1280 = arith.constant 1280 : index
    %6 = vector.load %arg12[%c0_6, %c1280] : memref<1x1536xf32, #tpu.memory_space<vmem>>, vector<1x256xf32>
    tpu.vector_store %arg12[%c0_6, %c1280], %5 {strides = array<i32>} : memref<1x1536xf32, #tpu.memory_space<vmem>>, vector<1x256xf32>,
    %c0_7 = arith.constant 0 : index
    %c0_8 = arith.constant 0 : index
    %7 = vector.load %arg12[%c0_7, %c0_8] : memref<1x1536xf32, #tpu.memory_space<vmem>>, vector<1x1536xf32>
    %8 = tpu.iota {dimensions = array<i32: 1>} : vector<1x1024xi32>
    %c63_i32 = arith.constant 63 : i32
    %9 = vector.broadcast %c63_i32 : i32 to vector<1x1024xi32>
    %10 = arith.andi %8, %9 : vector<1x1024xi32>
    %11 = vector.extract_strided_slice %7 {offsets = [0, 61], sizes = [1, 1024], strides = [1, 1]} : vector<1x1536xf32> to vector<1x1024xf32>
    %c3_i32 = arith.constant 3 : i32
    %12 = vector.broadcast %c3_i32 : i32 to vector<1x1024xi32>
    %13 = arith.cmpi sge, %10, %12 : vector<1x1024xi32>
    %cst_9 = arith.constant 0.000000e+00 : f32
    %14 = vector.broadcast %cst_9 : f32 to vector<1x1024xf32>
    %15 = arith.select %13, %11, %14 : vector<1x1024xi1>, vector<1x1024xf32>
    %c0_10 = arith.constant 0 : index
    %c0_11 = arith.constant 0 : index
    %16 = vector.load %arg13[%c0_10, %c0_11] : memref<56x1024xf32, #tpu.memory_space<vmem>>, vector<1x1024xf32>
    tpu.vector_store %arg13[%c0_10, %c0_11], %15 {strides = array<i32>} : memref<56x1024xf32, #tpu.memory_space<vmem>>, vector<1x1024xf32>,
    %17 = vector.extract_strided_slice %7 {offsets = [0, 62], sizes = [1, 1024], strides = [1, 1]} : vector<1x1536xf32> to vector<1x1024xf32>
    %c2_i32 = arith.constant 2 : i32
    %18 = vector.broadcast %c2_i32 : i32 to vector<1x1024xi32>
    %19 = arith.cmpi sge, %10, %18 : vector<1x1024xi32>
    %cst_12 = arith.constant 0.000000e+00 : f32
    %20 = vector.broadcast %cst_12 : f32 to vector<1x1024xf32>
    %21 = arith.select %19, %17, %20 : vector<1x1024xi1>, vector<1x1024xf32>
    %c1 = arith.constant 1 : index
    %c0_13 = arith.constant 0 : index
    %22 = vector.load %arg13[%c1, %c0_13] : memref<56x1024xf32, #tpu.memory_space<vmem>>, vector<1x1024xf32>
    tpu.vector_store %arg13[%c1, %c0_13], %21 {strides = array<i32>} : memref<56x1024xf32, #tpu.memory_space<vmem>>, vector<1x1024xf32>,
    %23 = vector.extract_strided_slice %7 {offsets = [0, 63], sizes = [1, 1024], strides = [1, 1]} : vector<1x1536xf32> to vector<1x1024xf32>
    %c1_i32 = arith.constant 1 : i32
    %24 = vector.broadcast %c1_i32 : i32 to vector<1x1024xi32>
    %25 = arith.cmpi sge, %10, %24 : vector<1x1024xi32>
    %cst_14 = arith.constant 0.000000e+00 : f32
    %26 = vector.broadcast %cst_14 : f32 to vector<1x1024xf32>
    %27 = arith.select %25, %23, %26 : vector<1x1024xi1>, vector<1x1024xf32>
    %c2 = arith.constant 2 : index
    %c0_15 = arith.constant 0 : index
    %28 = vector.load %arg13[%c2, %c0_15] : memref<56x1024xf32, #tpu.memory_space<vmem>>, vector<1x1024xf32>
    tpu.vector_store %arg13[%c2, %c0_15], %27 {strides = array<i32>} : memref<56x1024xf32, #tpu.memory_space<vmem>>, vector<1x1024xf32>,
    %29 = vector.extract_strided_slice %7 {offsets = [0, 64], sizes = [1, 1024], strides = [1, 1]} : vector<1x1536xf32> to vector<1x1024xf32>
    %c3 = arith.constant 3 : index
    %c0_16 = arith.constant 0 : index
    %30 = vector.load %arg13[%c3, %c0_16] : memref<56x1024xf32, #tpu.memory_space<vmem>>, vector<1x1024xf32>
    tpu.vector_store %arg13[%c3, %c0_16], %29 {strides = array<i32>} : memref<56x1024xf32, #tpu.memory_space<vmem>>, vector<1x1024xf32>,
    %31 = vector.extract_strided_slice %7 {offsets = [0, 65], sizes = [1, 1024], strides = [1, 1]} : vector<1x1536xf32> to vector<1x1024xf32>
    %c63_i32_17 = arith.constant 63 : i32
    %32 = vector.broadcast %c63_i32_17 : i32 to vector<1x1024xi32>
    %33 = arith.cmpi slt, %10, %32 : vector<1x1024xi32>
    %cst_18 = arith.constant 0.000000e+00 : f32
    %34 = vector.broadcast %cst_18 : f32 to vector<1x1024xf32>
    %35 = arith.select %33, %31, %34 : vector<1x1024xi1>, vector<1x1024xf32>
    %c4 = arith.constant 4 : index
    %c0_19 = arith.constant 0 : index
    %36 = vector.load %arg13[%c4, %c0_19] : memref<56x1024xf32, #tpu.memory_space<vmem>>, vector<1x1024xf32>
    tpu.vector_store %arg13[%c4, %c0_19], %35 {strides = array<i32>} : memref<56x1024xf32, #tpu.memory_space<vmem>>, vector<1x1024xf32>,
    %37 = vector.extract_strided_slice %7 {offsets = [0, 66], sizes = [1, 1024], strides = [1, 1]} : vector<1x1536xf32> to vector<1x1024xf32>
    %c62_i32 = arith.constant 62 : i32
    %38 = vector.broadcast %c62_i32 : i32 to vector<1x1024xi32>
    %39 = arith.cmpi slt, %10, %38 : vector<1x1024xi32>
    %cst_20 = arith.constant 0.000000e+00 : f32
    %40 = vector.broadcast %cst_20 : f32 to vector<1x1024xf32>
    %41 = arith.select %39, %37, %40 : vector<1x1024xi1>, vector<1x1024xf32>
    %c5 = arith.constant 5 : index
    %c0_21 = arith.constant 0 : index
    %42 = vector.load %arg13[%c5, %c0_21] : memref<56x1024xf32, #tpu.memory_space<vmem>>, vector<1x1024xf32>
    tpu.vector_store %arg13[%c5, %c0_21], %41 {strides = array<i32>} : memref<56x1024xf32, #tpu.memory_space<vmem>>, vector<1x1024xf32>,
    %43 = vector.extract_strided_slice %7 {offsets = [0, 67], sizes = [1, 1024], strides = [1, 1]} : vector<1x1536xf32> to vector<1x1024xf32>
    %c61_i32 = arith.constant 61 : i32
    %44 = vector.broadcast %c61_i32 : i32 to vector<1x1024xi32>
    %45 = arith.cmpi slt, %10, %44 : vector<1x1024xi32>
    %cst_22 = arith.constant 0.000000e+00 : f32
    %46 = vector.broadcast %cst_22 : f32 to vector<1x1024xf32>
    %47 = arith.select %45, %43, %46 : vector<1x1024xi1>, vector<1x1024xf32>
    %c6 = arith.constant 6 : index
    %c0_23 = arith.constant 0 : index
    %48 = vector.load %arg13[%c6, %c0_23] : memref<56x1024xf32, #tpu.memory_space<vmem>>, vector<1x1024xf32>
    tpu.vector_store %arg13[%c6, %c0_23], %47 {strides = array<i32>} : memref<56x1024xf32, #tpu.memory_space<vmem>>, vector<1x1024xf32>,
    %49 = vector.extract_strided_slice %7 {offsets = [0, 125], sizes = [1, 1024], strides = [1, 1]} : vector<1x1536xf32> to vector<1x1024xf32>
    %c3_i32_24 = arith.constant 3 : i32
    %50 = vector.broadcast %c3_i32_24 : i32 to vector<1x1024xi32>
    %51 = arith.cmpi sge, %10, %50 : vector<1x1024xi32>
    %cst_25 = arith.constant 0.000000e+00 : f32
    %52 = vector.broadcast %cst_25 : f32 to vector<1x1024xf32>
    %53 = arith.select %51, %49, %52 : vector<1x1024xi1>, vector<1x1024xf32>
    %c7 = arith.constant 7 : index
    %c0_26 = arith.constant 0 : index
    %54 = vector.load %arg13[%c7, %c0_26] : memref<56x1024xf32, #tpu.memory_space<vmem>>, vector<1x1024xf32>
    tpu.vector_store %arg13[%c7, %c0_26], %53 {strides = array<i32>} : memref<56x1024xf32, #tpu.memory_space<vmem>>, vector<1x1024xf32>,
    %55 = vector.extract_strided_slice %7 {offsets = [0, 126], sizes = [1, 1024], strides = [1, 1]} : vector<1x1536xf32> to vector<1x1024xf32>
    %c2_i32_27 = arith.constant 2 : i32
    %56 = vector.broadcast %c2_i32_27 : i32 to vector<1x1024xi32>
    %57 = arith.cmpi sge, %10, %56 : vector<1x1024xi32>
    %cst_28 = arith.constant 0.000000e+00 : f32
    %58 = vector.broadcast %cst_28 : f32 to vector<1x1024xf32>
    %59 = arith.select %57, %55, %58 : vector<1x1024xi1>, vector<1x1024xf32>
    %c8 = arith.constant 8 : index
    %c0_29 = arith.constant 0 : index
    %60 = vector.load %arg13[%c8, %c0_29] : memref<56x1024xf32, #tpu.memory_space<vmem>>, vector<1x1024xf32>
    tpu.vector_store %arg13[%c8, %c0_29], %59 {strides = array<i32>} : memref<56x1024xf32, #tpu.memory_space<vmem>>, vector<1x1024xf32>,
    %61 = vector.extract_strided_slice %7 {offsets = [0, 127], sizes = [1, 1024], strides = [1, 1]} : vector<1x1536xf32> to vector<1x1024xf32>
    %c1_i32_30 = arith.constant 1 : i32
    %62 = vector.broadcast %c1_i32_30 : i32 to vector<1x1024xi32>
    %63 = arith.cmpi sge, %10, %62 : vector<1x1024xi32>
    %cst_31 = arith.constant 0.000000e+00 : f32
    %64 = vector.broadcast %cst_31 : f32 to vector<1x1024xf32>
    %65 = arith.select %63, %61, %64 : vector<1x1024xi1>, vector<1x1024xf32>
    %c9 = arith.constant 9 : index
    %c0_32 = arith.constant 0 : index
    %66 = vector.load %arg13[%c9, %c0_32] : memref<56x1024xf32, #tpu.memory_space<vmem>>, vector<1x1024xf32>
    tpu.vector_store %arg13[%c9, %c0_32], %65 {strides = array<i32>} : memref<56x1024xf32, #tpu.memory_space<vmem>>, vector<1x1024xf32>,
    %67 = vector.extract_strided_slice %7 {offsets = [0, 128], sizes = [1, 1024], strides = [1, 1]} : vector<1x1536xf32> to vector<1x1024xf32>
    %c10 = arith.constant 10 : index
    %c0_33 = arith.constant 0 : index
    %68 = vector.load %arg13[%c10, %c0_33] : memref<56x1024xf32, #tpu.memory_space<vmem>>, vector<1x1024xf32>
    tpu.vector_store %arg13[%c10, %c0_33], %67 {strides = array<i32>} : memref<56x1024xf32, #tpu.memory_space<vmem>>, vector<1x1024xf32>,
    %69 = vector.extract_strided_slice %7 {offsets = [0, 129], sizes = [1, 1024], strides = [1, 1]} : vector<1x1536xf32> to vector<1x1024xf32>
    %c63_i32_34 = arith.constant 63 : i32
    %70 = vector.broadcast %c63_i32_34 : i32 to vector<1x1024xi32>
    %71 = arith.cmpi slt, %10, %70 : vector<1x1024xi32>
    %cst_35 = arith.constant 0.000000e+00 : f32
    %72 = vector.broadcast %cst_35 : f32 to vector<1x1024xf32>
    %73 = arith.select %71, %69, %72 : vector<1x1024xi1>, vector<1x1024xf32>
    %c11 = arith.constant 11 : index
    %c0_36 = arith.constant 0 : index
    %74 = vector.load %arg13[%c11, %c0_36] : memref<56x1024xf32, #tpu.memory_space<vmem>>, vector<1x1024xf32>
    tpu.vector_store %arg13[%c11, %c0_36], %73 {strides = array<i32>} : memref<56x1024xf32, #tpu.memory_space<vmem>>, vector<1x1024xf32>,
    %75 = vector.extract_strided_slice %7 {offsets = [0, 130], sizes = [1, 1024], strides = [1, 1]} : vector<1x1536xf32> to vector<1x1024xf32>
    %c62_i32_37 = arith.constant 62 : i32
    %76 = vector.broadcast %c62_i32_37 : i32 to vector<1x1024xi32>
    %77 = arith.cmpi slt, %10, %76 : vector<1x1024xi32>
    %cst_38 = arith.constant 0.000000e+00 : f32
    %78 = vector.broadcast %cst_38 : f32 to vector<1x1024xf32>
    %79 = arith.select %77, %75, %78 : vector<1x1024xi1>, vector<1x1024xf32>
    %c12 = arith.constant 12 : index
    %c0_39 = arith.constant 0 : index
    %80 = vector.load %arg13[%c12, %c0_39] : memref<56x1024xf32, #tpu.memory_space<vmem>>, vector<1x1024xf32>
    tpu.vector_store %arg13[%c12, %c0_39], %79 {strides = array<i32>} : memref<56x1024xf32, #tpu.memory_space<vmem>>, vector<1x1024xf32>,
    %81 = vector.extract_strided_slice %7 {offsets = [0, 131], sizes = [1, 1024], strides = [1, 1]} : vector<1x1536xf32> to vector<1x1024xf32>
    %c61_i32_40 = arith.constant 61 : i32
    %82 = vector.broadcast %c61_i32_40 : i32 to vector<1x1024xi32>
    %83 = arith.cmpi slt, %10, %82 : vector<1x1024xi32>
    %cst_41 = arith.constant 0.000000e+00 : f32
    %84 = vector.broadcast %cst_41 : f32 to vector<1x1024xf32>
    %85 = arith.select %83, %81, %84 : vector<1x1024xi1>, vector<1x1024xf32>
    %c13 = arith.constant 13 : index
    %c0_42 = arith.constant 0 : index
    %86 = vector.load %arg13[%c13, %c0_42] : memref<56x1024xf32, #tpu.memory_space<vmem>>, vector<1x1024xf32>
    tpu.vector_store %arg13[%c13, %c0_42], %85 {strides = array<i32>} : memref<56x1024xf32, #tpu.memory_space<vmem>>, vector<1x1024xf32>,
    %87 = vector.extract_strided_slice %7 {offsets = [0, 189], sizes = [1, 1024], strides = [1, 1]} : vector<1x1536xf32> to vector<1x1024xf32>
    %c3_i32_43 = arith.constant 3 : i32
    %88 = vector.broadcast %c3_i32_43 : i32 to vector<1x1024xi32>
    %89 = arith.cmpi sge, %10, %88 : vector<1x1024xi32>
    %cst_44 = arith.constant 0.000000e+00 : f32
    %90 = vector.broadcast %cst_44 : f32 to vector<1x1024xf32>
    %91 = arith.select %89, %87, %90 : vector<1x1024xi1>, vector<1x1024xf32>
    %c14 = arith.constant 14 : index
    %c0_45 = arith.constant 0 : index
    %92 = vector.load %arg13[%c14, %c0_45] : memref<56x1024xf32, #tpu.memory_space<vmem>>, vector<1x1024xf32>
    tpu.vector_store %arg13[%c14, %c0_45], %91 {strides = array<i32>} : memref<56x1024xf32, #tpu.memory_space<vmem>>, vector<1x1024xf32>,
    %93 = vector.extract_strided_slice %7 {offsets = [0, 190], sizes = [1, 1024], strides = [1, 1]} : vector<1x1536xf32> to vector<1x1024xf32>
    %c2_i32_46 = arith.constant 2 : i32
    %94 = vector.broadcast %c2_i32_46 : i32 to vector<1x1024xi32>
    %95 = arith.cmpi sge, %10, %94 : vector<1x1024xi32>
    %cst_47 = arith.constant 0.000000e+00 : f32
    %96 = vector.broadcast %cst_47 : f32 to vector<1x1024xf32>
    %97 = arith.select %95, %93, %96 : vector<1x1024xi1>, vector<1x1024xf32>
    %c15 = arith.constant 15 : index
    %c0_48 = arith.constant 0 : index
    %98 = vector.load %arg13[%c15, %c0_48] : memref<56x1024xf32, #tpu.memory_space<vmem>>, vector<1x1024xf32>
    tpu.vector_store %arg13[%c15, %c0_48], %97 {strides = array<i32>} : memref<56x1024xf32, #tpu.memory_space<vmem>>, vector<1x1024xf32>,
    %99 = vector.extract_strided_slice %7 {offsets = [0, 191], sizes = [1, 1024], strides = [1, 1]} : vector<1x1536xf32> to vector<1x1024xf32>
    %c1_i32_49 = arith.constant 1 : i32
    %100 = vector.broadcast %c1_i32_49 : i32 to vector<1x1024xi32>
    %101 = arith.cmpi sge, %10, %100 : vector<1x1024xi32>
    %cst_50 = arith.constant 0.000000e+00 : f32
    %102 = vector.broadcast %cst_50 : f32 to vector<1x1024xf32>
    %103 = arith.select %101, %99, %102 : vector<1x1024xi1>, vector<1x1024xf32>
    %c16 = arith.constant 16 : index
    %c0_51 = arith.constant 0 : index
    %104 = vector.load %arg13[%c16, %c0_51] : memref<56x1024xf32, #tpu.memory_space<vmem>>, vector<1x1024xf32>
    tpu.vector_store %arg13[%c16, %c0_51], %103 {strides = array<i32>} : memref<56x1024xf32, #tpu.memory_space<vmem>>, vector<1x1024xf32>,
    %105 = vector.extract_strided_slice %7 {offsets = [0, 192], sizes = [1, 1024], strides = [1, 1]} : vector<1x1536xf32> to vector<1x1024xf32>
    %c17 = arith.constant 17 : index
    %c0_52 = arith.constant 0 : index
    %106 = vector.load %arg13[%c17, %c0_52] : memref<56x1024xf32, #tpu.memory_space<vmem>>, vector<1x1024xf32>
    tpu.vector_store %arg13[%c17, %c0_52], %105 {strides = array<i32>} : memref<56x1024xf32, #tpu.memory_space<vmem>>, vector<1x1024xf32>,
    %107 = vector.extract_strided_slice %7 {offsets = [0, 193], sizes = [1, 1024], strides = [1, 1]} : vector<1x1536xf32> to vector<1x1024xf32>
    %c63_i32_53 = arith.constant 63 : i32
    %108 = vector.broadcast %c63_i32_53 : i32 to vector<1x1024xi32>
    %109 = arith.cmpi slt, %10, %108 : vector<1x1024xi32>
    %cst_54 = arith.constant 0.000000e+00 : f32
    %110 = vector.broadcast %cst_54 : f32 to vector<1x1024xf32>
    %111 = arith.select %109, %107, %110 : vector<1x1024xi1>, vector<1x1024xf32>
    %c18 = arith.constant 18 : index
    %c0_55 = arith.constant 0 : index
    %112 = vector.load %arg13[%c18, %c0_55] : memref<56x1024xf32, #tpu.memory_space<vmem>>, vector<1x1024xf32>
    tpu.vector_store %arg13[%c18, %c0_55], %111 {strides = array<i32>} : memref<56x1024xf32, #tpu.memory_space<vmem>>, vector<1x1024xf32>,
    %113 = vector.extract_strided_slice %7 {offsets = [0, 194], sizes = [1, 1024], strides = [1, 1]} : vector<1x1536xf32> to vector<1x1024xf32>
    %c62_i32_56 = arith.constant 62 : i32
    %114 = vector.broadcast %c62_i32_56 : i32 to vector<1x1024xi32>
    %115 = arith.cmpi slt, %10, %114 : vector<1x1024xi32>
    %cst_57 = arith.constant 0.000000e+00 : f32
    %116 = vector.broadcast %cst_57 : f32 to vector<1x1024xf32>
    %117 = arith.select %115, %113, %116 : vector<1x1024xi1>, vector<1x1024xf32>
    %c19 = arith.constant 19 : index
    %c0_58 = arith.constant 0 : index
    %118 = vector.load %arg13[%c19, %c0_58] : memref<56x1024xf32, #tpu.memory_space<vmem>>, vector<1x1024xf32>
    tpu.vector_store %arg13[%c19, %c0_58], %117 {strides = array<i32>} : memref<56x1024xf32, #tpu.memory_space<vmem>>, vector<1x1024xf32>,
    %119 = vector.extract_strided_slice %7 {offsets = [0, 195], sizes = [1, 1024], strides = [1, 1]} : vector<1x1536xf32> to vector<1x1024xf32>
    %c61_i32_59 = arith.constant 61 : i32
    %120 = vector.broadcast %c61_i32_59 : i32 to vector<1x1024xi32>
    %121 = arith.cmpi slt, %10, %120 : vector<1x1024xi32>
    %cst_60 = arith.constant 0.000000e+00 : f32
    %122 = vector.broadcast %cst_60 : f32 to vector<1x1024xf32>
    %123 = arith.select %121, %119, %122 : vector<1x1024xi1>, vector<1x1024xf32>
    %c20 = arith.constant 20 : index
    %c0_61 = arith.constant 0 : index
    %124 = vector.load %arg13[%c20, %c0_61] : memref<56x1024xf32, #tpu.memory_space<vmem>>, vector<1x1024xf32>
    tpu.vector_store %arg13[%c20, %c0_61], %123 {strides = array<i32>} : memref<56x1024xf32, #tpu.memory_space<vmem>>, vector<1x1024xf32>,
    %125 = vector.extract_strided_slice %7 {offsets = [0, 253], sizes = [1, 1024], strides = [1, 1]} : vector<1x1536xf32> to vector<1x1024xf32>
    %c3_i32_62 = arith.constant 3 : i32
    %126 = vector.broadcast %c3_i32_62 : i32 to vector<1x1024xi32>
    %127 = arith.cmpi sge, %10, %126 : vector<1x1024xi32>
    %cst_63 = arith.constant 0.000000e+00 : f32
    %128 = vector.broadcast %cst_63 : f32 to vector<1x1024xf32>
    %129 = arith.select %127, %125, %128 : vector<1x1024xi1>, vector<1x1024xf32>
    %c21 = arith.constant 21 : index
    %c0_64 = arith.constant 0 : index
    %130 = vector.load %arg13[%c21, %c0_64] : memref<56x1024xf32, #tpu.memory_space<vmem>>, vector<1x1024xf32>
    tpu.vector_store %arg13[%c21, %c0_64], %129 {strides = array<i32>} : memref<56x1024xf32, #tpu.memory_space<vmem>>, vector<1x1024xf32>,
    %131 = vector.extract_strided_slice %7 {offsets = [0, 254], sizes = [1, 1024], strides = [1, 1]} : vector<1x1536xf32> to vector<1x1024xf32>
    %c2_i32_65 = arith.constant 2 : i32
    %132 = vector.broadcast %c2_i32_65 : i32 to vector<1x1024xi32>
    %133 = arith.cmpi sge, %10, %132 : vector<1x1024xi32>
    %cst_66 = arith.constant 0.000000e+00 : f32
    %134 = vector.broadcast %cst_66 : f32 to vector<1x1024xf32>
    %135 = arith.select %133, %131, %134 : vector<1x1024xi1>, vector<1x1024xf32>
    %c22 = arith.constant 22 : index
    %c0_67 = arith.constant 0 : index
    %136 = vector.load %arg13[%c22, %c0_67] : memref<56x1024xf32, #tpu.memory_space<vmem>>, vector<1x1024xf32>
    tpu.vector_store %arg13[%c22, %c0_67], %135 {strides = array<i32>} : memref<56x1024xf32, #tpu.memory_space<vmem>>, vector<1x1024xf32>,
    %137 = vector.extract_strided_slice %7 {offsets = [0, 255], sizes = [1, 1024], strides = [1, 1]} : vector<1x1536xf32> to vector<1x1024xf32>
    %c1_i32_68 = arith.constant 1 : i32
    %138 = vector.broadcast %c1_i32_68 : i32 to vector<1x1024xi32>
    %139 = arith.cmpi sge, %10, %138 : vector<1x1024xi32>
    %cst_69 = arith.constant 0.000000e+00 : f32
    %140 = vector.broadcast %cst_69 : f32 to vector<1x1024xf32>
    %141 = arith.select %139, %137, %140 : vector<1x1024xi1>, vector<1x1024xf32>
    %c23 = arith.constant 23 : index
    %c0_70 = arith.constant 0 : index
    %142 = vector.load %arg13[%c23, %c0_70] : memref<56x1024xf32, #tpu.memory_space<vmem>>, vector<1x1024xf32>
    tpu.vector_store %arg13[%c23, %c0_70], %141 {strides = array<i32>} : memref<56x1024xf32, #tpu.memory_space<vmem>>, vector<1x1024xf32>,
    %143 = vector.extract_strided_slice %7 {offsets = [0, 256], sizes = [1, 1024], strides = [1, 1]} : vector<1x1536xf32> to vector<1x1024xf32>
    %c24 = arith.constant 24 : index
    %c0_71 = arith.constant 0 : index
    %144 = vector.load %arg13[%c24, %c0_71] : memref<56x1024xf32, #tpu.memory_space<vmem>>, vector<1x1024xf32>
    tpu.vector_store %arg13[%c24, %c0_71], %143 {strides = array<i32>} : memref<56x1024xf32, #tpu.memory_space<vmem>>, vector<1x1024xf32>,
    %145 = vector.extract_strided_slice %7 {offsets = [0, 257], sizes = [1, 1024], strides = [1, 1]} : vector<1x1536xf32> to vector<1x1024xf32>
    %c63_i32_72 = arith.constant 63 : i32
    %146 = vector.broadcast %c63_i32_72 : i32 to vector<1x1024xi32>
    %147 = arith.cmpi slt, %10, %146 : vector<1x1024xi32>
    %cst_73 = arith.constant 0.000000e+00 : f32
    %148 = vector.broadcast %cst_73 : f32 to vector<1x1024xf32>
    %149 = arith.select %147, %145, %148 : vector<1x1024xi1>, vector<1x1024xf32>
    %c25 = arith.constant 25 : index
    %c0_74 = arith.constant 0 : index
    %150 = vector.load %arg13[%c25, %c0_74] : memref<56x1024xf32, #tpu.memory_space<vmem>>, vector<1x1024xf32>
    tpu.vector_store %arg13[%c25, %c0_74], %149 {strides = array<i32>} : memref<56x1024xf32, #tpu.memory_space<vmem>>, vector<1x1024xf32>,
    %151 = vector.extract_strided_slice %7 {offsets = [0, 258], sizes = [1, 1024], strides = [1, 1]} : vector<1x1536xf32> to vector<1x1024xf32>
    %c62_i32_75 = arith.constant 62 : i32
    %152 = vector.broadcast %c62_i32_75 : i32 to vector<1x1024xi32>
    %153 = arith.cmpi slt, %10, %152 : vector<1x1024xi32>
    %cst_76 = arith.constant 0.000000e+00 : f32
    %154 = vector.broadcast %cst_76 : f32 to vector<1x1024xf32>
    %155 = arith.select %153, %151, %154 : vector<1x1024xi1>, vector<1x1024xf32>
    %c26 = arith.constant 26 : index
    %c0_77 = arith.constant 0 : index
    %156 = vector.load %arg13[%c26, %c0_77] : memref<56x1024xf32, #tpu.memory_space<vmem>>, vector<1x1024xf32>
    tpu.vector_store %arg13[%c26, %c0_77], %155 {strides = array<i32>} : memref<56x1024xf32, #tpu.memory_space<vmem>>, vector<1x1024xf32>,
    %157 = vector.extract_strided_slice %7 {offsets = [0, 259], sizes = [1, 1024], strides = [1, 1]} : vector<1x1536xf32> to vector<1x1024xf32>
    %c61_i32_78 = arith.constant 61 : i32
    %158 = vector.broadcast %c61_i32_78 : i32 to vector<1x1024xi32>
    %159 = arith.cmpi slt, %10, %158 : vector<1x1024xi32>
    %cst_79 = arith.constant 0.000000e+00 : f32
    %160 = vector.broadcast %cst_79 : f32 to vector<1x1024xf32>
    %161 = arith.select %159, %157, %160 : vector<1x1024xi1>, vector<1x1024xf32>
    %c27 = arith.constant 27 : index
    %c0_80 = arith.constant 0 : index
    %162 = vector.load %arg13[%c27, %c0_80] : memref<56x1024xf32, #tpu.memory_space<vmem>>, vector<1x1024xf32>
    tpu.vector_store %arg13[%c27, %c0_80], %161 {strides = array<i32>} : memref<56x1024xf32, #tpu.memory_space<vmem>>, vector<1x1024xf32>,
    %163 = vector.extract_strided_slice %7 {offsets = [0, 317], sizes = [1, 1024], strides = [1, 1]} : vector<1x1536xf32> to vector<1x1024xf32>
    %c3_i32_81 = arith.constant 3 : i32
    %164 = vector.broadcast %c3_i32_81 : i32 to vector<1x1024xi32>
    %165 = arith.cmpi sge, %10, %164 : vector<1x1024xi32>
    %cst_82 = arith.constant 0.000000e+00 : f32
    %166 = vector.broadcast %cst_82 : f32 to vector<1x1024xf32>
    %167 = arith.select %165, %163, %166 : vector<1x1024xi1>, vector<1x1024xf32>
    %c28 = arith.constant 28 : index
    %c0_83 = arith.constant 0 : index
    %168 = vector.load %arg13[%c28, %c0_83] : memref<56x1024xf32, #tpu.memory_space<vmem>>, vector<1x1024xf32>
    tpu.vector_store %arg13[%c28, %c0_83], %167 {strides = array<i32>} : memref<56x1024xf32, #tpu.memory_space<vmem>>, vector<1x1024xf32>,
    %169 = vector.extract_strided_slice %7 {offsets = [0, 318], sizes = [1, 1024], strides = [1, 1]} : vector<1x1536xf32> to vector<1x1024xf32>
    %c2_i32_84 = arith.constant 2 : i32
    %170 = vector.broadcast %c2_i32_84 : i32 to vector<1x1024xi32>
    %171 = arith.cmpi sge, %10, %170 : vector<1x1024xi32>
    %cst_85 = arith.constant 0.000000e+00 : f32
    %172 = vector.broadcast %cst_85 : f32 to vector<1x1024xf32>
    %173 = arith.select %171, %169, %172 : vector<1x1024xi1>, vector<1x1024xf32>
    %c29 = arith.constant 29 : index
    %c0_86 = arith.constant 0 : index
    %174 = vector.load %arg13[%c29, %c0_86] : memref<56x1024xf32, #tpu.memory_space<vmem>>, vector<1x1024xf32>
    tpu.vector_store %arg13[%c29, %c0_86], %173 {strides = array<i32>} : memref<56x1024xf32, #tpu.memory_space<vmem>>, vector<1x1024xf32>,
    %175 = vector.extract_strided_slice %7 {offsets = [0, 319], sizes = [1, 1024], strides = [1, 1]} : vector<1x1536xf32> to vector<1x1024xf32>
    %c1_i32_87 = arith.constant 1 : i32
    %176 = vector.broadcast %c1_i32_87 : i32 to vector<1x1024xi32>
    %177 = arith.cmpi sge, %10, %176 : vector<1x1024xi32>
    %cst_88 = arith.constant 0.000000e+00 : f32
    %178 = vector.broadcast %cst_88 : f32 to vector<1x1024xf32>
    %179 = arith.select %177, %175, %178 : vector<1x1024xi1>, vector<1x1024xf32>
    %c30 = arith.constant 30 : index
    %c0_89 = arith.constant 0 : index
    %180 = vector.load %arg13[%c30, %c0_89] : memref<56x1024xf32, #tpu.memory_space<vmem>>, vector<1x1024xf32>
    tpu.vector_store %arg13[%c30, %c0_89], %179 {strides = array<i32>} : memref<56x1024xf32, #tpu.memory_space<vmem>>, vector<1x1024xf32>,
    %181 = vector.extract_strided_slice %7 {offsets = [0, 320], sizes = [1, 1024], strides = [1, 1]} : vector<1x1536xf32> to vector<1x1024xf32>
    %c31 = arith.constant 31 : index
    %c0_90 = arith.constant 0 : index
    %182 = vector.load %arg13[%c31, %c0_90] : memref<56x1024xf32, #tpu.memory_space<vmem>>, vector<1x1024xf32>
    tpu.vector_store %arg13[%c31, %c0_90], %181 {strides = array<i32>} : memref<56x1024xf32, #tpu.memory_space<vmem>>, vector<1x1024xf32>,
    %183 = vector.extract_strided_slice %7 {offsets = [0, 321], sizes = [1, 1024], strides = [1, 1]} : vector<1x1536xf32> to vector<1x1024xf32>
    %c63_i32_91 = arith.constant 63 : i32
    %184 = vector.broadcast %c63_i32_91 : i32 to vector<1x1024xi32>
    %185 = arith.cmpi slt, %10, %184 : vector<1x1024xi32>
    %cst_92 = arith.constant 0.000000e+00 : f32
    %186 = vector.broadcast %cst_92 : f32 to vector<1x1024xf32>
    %187 = arith.select %185, %183, %186 : vector<1x1024xi1>, vector<1x1024xf32>
    %c32 = arith.constant 32 : index
    %c0_93 = arith.constant 0 : index
    %188 = vector.load %arg13[%c32, %c0_93] : memref<56x1024xf32, #tpu.memory_space<vmem>>, vector<1x1024xf32>
    tpu.vector_store %arg13[%c32, %c0_93], %187 {strides = array<i32>} : memref<56x1024xf32, #tpu.memory_space<vmem>>, vector<1x1024xf32>,
    %189 = vector.extract_strided_slice %7 {offsets = [0, 322], sizes = [1, 1024], strides = [1, 1]} : vector<1x1536xf32> to vector<1x1024xf32>
    %c62_i32_94 = arith.constant 62 : i32
    %190 = vector.broadcast %c62_i32_94 : i32 to vector<1x1024xi32>
    %191 = arith.cmpi slt, %10, %190 : vector<1x1024xi32>
    %cst_95 = arith.constant 0.000000e+00 : f32
    %192 = vector.broadcast %cst_95 : f32 to vector<1x1024xf32>
    %193 = arith.select %191, %189, %192 : vector<1x1024xi1>, vector<1x1024xf32>
    %c33 = arith.constant 33 : index
    %c0_96 = arith.constant 0 : index
    %194 = vector.load %arg13[%c33, %c0_96] : memref<56x1024xf32, #tpu.memory_space<vmem>>, vector<1x1024xf32>
    tpu.vector_store %arg13[%c33, %c0_96], %193 {strides = array<i32>} : memref<56x1024xf32, #tpu.memory_space<vmem>>, vector<1x1024xf32>,
    %195 = vector.extract_strided_slice %7 {offsets = [0, 323], sizes = [1, 1024], strides = [1, 1]} : vector<1x1536xf32> to vector<1x1024xf32>
    %c61_i32_97 = arith.constant 61 : i32
    %196 = vector.broadcast %c61_i32_97 : i32 to vector<1x1024xi32>
    %197 = arith.cmpi slt, %10, %196 : vector<1x1024xi32>
    %cst_98 = arith.constant 0.000000e+00 : f32
    %198 = vector.broadcast %cst_98 : f32 to vector<1x1024xf32>
    %199 = arith.select %197, %195, %198 : vector<1x1024xi1>, vector<1x1024xf32>
    %c34 = arith.constant 34 : index
    %c0_99 = arith.constant 0 : index
    %200 = vector.load %arg13[%c34, %c0_99] : memref<56x1024xf32, #tpu.memory_space<vmem>>, vector<1x1024xf32>
    tpu.vector_store %arg13[%c34, %c0_99], %199 {strides = array<i32>} : memref<56x1024xf32, #tpu.memory_space<vmem>>, vector<1x1024xf32>,
    %201 = vector.extract_strided_slice %7 {offsets = [0, 381], sizes = [1, 1024], strides = [1, 1]} : vector<1x1536xf32> to vector<1x1024xf32>
    %c3_i32_100 = arith.constant 3 : i32
    %202 = vector.broadcast %c3_i32_100 : i32 to vector<1x1024xi32>
    %203 = arith.cmpi sge, %10, %202 : vector<1x1024xi32>
    %cst_101 = arith.constant 0.000000e+00 : f32
    %204 = vector.broadcast %cst_101 : f32 to vector<1x1024xf32>
    %205 = arith.select %203, %201, %204 : vector<1x1024xi1>, vector<1x1024xf32>
    %c35 = arith.constant 35 : index
    %c0_102 = arith.constant 0 : index
    %206 = vector.load %arg13[%c35, %c0_102] : memref<56x1024xf32, #tpu.memory_space<vmem>>, vector<1x1024xf32>
    tpu.vector_store %arg13[%c35, %c0_102], %205 {strides = array<i32>} : memref<56x1024xf32, #tpu.memory_space<vmem>>, vector<1x1024xf32>,
    %207 = vector.extract_strided_slice %7 {offsets = [0, 382], sizes = [1, 1024], strides = [1, 1]} : vector<1x1536xf32> to vector<1x1024xf32>
    %c2_i32_103 = arith.constant 2 : i32
    %208 = vector.broadcast %c2_i32_103 : i32 to vector<1x1024xi32>
    %209 = arith.cmpi sge, %10, %208 : vector<1x1024xi32>
    %cst_104 = arith.constant 0.000000e+00 : f32
    %210 = vector.broadcast %cst_104 : f32 to vector<1x1024xf32>
    %211 = arith.select %209, %207, %210 : vector<1x1024xi1>, vector<1x1024xf32>
    %c36 = arith.constant 36 : index
    %c0_105 = arith.constant 0 : index
    %212 = vector.load %arg13[%c36, %c0_105] : memref<56x1024xf32, #tpu.memory_space<vmem>>, vector<1x1024xf32>
    tpu.vector_store %arg13[%c36, %c0_105], %211 {strides = array<i32>} : memref<56x1024xf32, #tpu.memory_space<vmem>>, vector<1x1024xf32>,
    %213 = vector.extract_strided_slice %7 {offsets = [0, 383], sizes = [1, 1024], strides = [1, 1]} : vector<1x1536xf32> to vector<1x1024xf32>
    %c1_i32_106 = arith.constant 1 : i32
    %214 = vector.broadcast %c1_i32_106 : i32 to vector<1x1024xi32>
    %215 = arith.cmpi sge, %10, %214 : vector<1x1024xi32>
    %cst_107 = arith.constant 0.000000e+00 : f32
    %216 = vector.broadcast %cst_107 : f32 to vector<1x1024xf32>
    %217 = arith.select %215, %213, %216 : vector<1x1024xi1>, vector<1x1024xf32>
    %c37 = arith.constant 37 : index
    %c0_108 = arith.constant 0 : index
    %218 = vector.load %arg13[%c37, %c0_108] : memref<56x1024xf32, #tpu.memory_space<vmem>>, vector<1x1024xf32>
    tpu.vector_store %arg13[%c37, %c0_108], %217 {strides = array<i32>} : memref<56x1024xf32, #tpu.memory_space<vmem>>, vector<1x1024xf32>,
    %219 = vector.extract_strided_slice %7 {offsets = [0, 384], sizes = [1, 1024], strides = [1, 1]} : vector<1x1536xf32> to vector<1x1024xf32>
    %c38 = arith.constant 38 : index
    %c0_109 = arith.constant 0 : index
    %220 = vector.load %arg13[%c38, %c0_109] : memref<56x1024xf32, #tpu.memory_space<vmem>>, vector<1x1024xf32>
    tpu.vector_store %arg13[%c38, %c0_109], %219 {strides = array<i32>} : memref<56x1024xf32, #tpu.memory_space<vmem>>, vector<1x1024xf32>,
    %221 = vector.extract_strided_slice %7 {offsets = [0, 385], sizes = [1, 1024], strides = [1, 1]} : vector<1x1536xf32> to vector<1x1024xf32>
    %c63_i32_110 = arith.constant 63 : i32
    %222 = vector.broadcast %c63_i32_110 : i32 to vector<1x1024xi32>
    %223 = arith.cmpi slt, %10, %222 : vector<1x1024xi32>
    %cst_111 = arith.constant 0.000000e+00 : f32
    %224 = vector.broadcast %cst_111 : f32 to vector<1x1024xf32>
    %225 = arith.select %223, %221, %224 : vector<1x1024xi1>, vector<1x1024xf32>
    %c39 = arith.constant 39 : index
    %c0_112 = arith.constant 0 : index
    %226 = vector.load %arg13[%c39, %c0_112] : memref<56x1024xf32, #tpu.memory_space<vmem>>, vector<1x1024xf32>
    tpu.vector_store %arg13[%c39, %c0_112], %225 {strides = array<i32>} : memref<56x1024xf32, #tpu.memory_space<vmem>>, vector<1x1024xf32>,
    %227 = vector.extract_strided_slice %7 {offsets = [0, 386], sizes = [1, 1024], strides = [1, 1]} : vector<1x1536xf32> to vector<1x1024xf32>
    %c62_i32_113 = arith.constant 62 : i32
    %228 = vector.broadcast %c62_i32_113 : i32 to vector<1x1024xi32>
    %229 = arith.cmpi slt, %10, %228 : vector<1x1024xi32>
    %cst_114 = arith.constant 0.000000e+00 : f32
    %230 = vector.broadcast %cst_114 : f32 to vector<1x1024xf32>
    %231 = arith.select %229, %227, %230 : vector<1x1024xi1>, vector<1x1024xf32>
    %c40 = arith.constant 40 : index
    %c0_115 = arith.constant 0 : index
    %232 = vector.load %arg13[%c40, %c0_115] : memref<56x1024xf32, #tpu.memory_space<vmem>>, vector<1x1024xf32>
    tpu.vector_store %arg13[%c40, %c0_115], %231 {strides = array<i32>} : memref<56x1024xf32, #tpu.memory_space<vmem>>, vector<1x1024xf32>,
    %233 = vector.extract_strided_slice %7 {offsets = [0, 387], sizes = [1, 1024], strides = [1, 1]} : vector<1x1536xf32> to vector<1x1024xf32>
    %c61_i32_116 = arith.constant 61 : i32
    %234 = vector.broadcast %c61_i32_116 : i32 to vector<1x1024xi32>
    %235 = arith.cmpi slt, %10, %234 : vector<1x1024xi32>
    %cst_117 = arith.constant 0.000000e+00 : f32
    %236 = vector.broadcast %cst_117 : f32 to vector<1x1024xf32>
    %237 = arith.select %235, %233, %236 : vector<1x1024xi1>, vector<1x1024xf32>
    %c41 = arith.constant 41 : index
    %c0_118 = arith.constant 0 : index
    %238 = vector.load %arg13[%c41, %c0_118] : memref<56x1024xf32, #tpu.memory_space<vmem>>, vector<1x1024xf32>
    tpu.vector_store %arg13[%c41, %c0_118], %237 {strides = array<i32>} : memref<56x1024xf32, #tpu.memory_space<vmem>>, vector<1x1024xf32>,
    %239 = vector.extract_strided_slice %7 {offsets = [0, 445], sizes = [1, 1024], strides = [1, 1]} : vector<1x1536xf32> to vector<1x1024xf32>
    %c3_i32_119 = arith.constant 3 : i32
    %240 = vector.broadcast %c3_i32_119 : i32 to vector<1x1024xi32>
    %241 = arith.cmpi sge, %10, %240 : vector<1x1024xi32>
    %cst_120 = arith.constant 0.000000e+00 : f32
    %242 = vector.broadcast %cst_120 : f32 to vector<1x1024xf32>
    %243 = arith.select %241, %239, %242 : vector<1x1024xi1>, vector<1x1024xf32>
    %c42 = arith.constant 42 : index
    %c0_121 = arith.constant 0 : index
    %244 = vector.load %arg13[%c42, %c0_121] : memref<56x1024xf32, #tpu.memory_space<vmem>>, vector<1x1024xf32>
    tpu.vector_store %arg13[%c42, %c0_121], %243 {strides = array<i32>} : memref<56x1024xf32, #tpu.memory_space<vmem>>, vector<1x1024xf32>,
    %245 = vector.extract_strided_slice %7 {offsets = [0, 446], sizes = [1, 1024], strides = [1, 1]} : vector<1x1536xf32> to vector<1x1024xf32>
    %c2_i32_122 = arith.constant 2 : i32
    %246 = vector.broadcast %c2_i32_122 : i32 to vector<1x1024xi32>
    %247 = arith.cmpi sge, %10, %246 : vector<1x1024xi32>
    %cst_123 = arith.constant 0.000000e+00 : f32
    %248 = vector.broadcast %cst_123 : f32 to vector<1x1024xf32>
    %249 = arith.select %247, %245, %248 : vector<1x1024xi1>, vector<1x1024xf32>
    %c43 = arith.constant 43 : index
    %c0_124 = arith.constant 0 : index
    %250 = vector.load %arg13[%c43, %c0_124] : memref<56x1024xf32, #tpu.memory_space<vmem>>, vector<1x1024xf32>
    tpu.vector_store %arg13[%c43, %c0_124], %249 {strides = array<i32>} : memref<56x1024xf32, #tpu.memory_space<vmem>>, vector<1x1024xf32>,
    %251 = vector.extract_strided_slice %7 {offsets = [0, 447], sizes = [1, 1024], strides = [1, 1]} : vector<1x1536xf32> to vector<1x1024xf32>
    %c1_i32_125 = arith.constant 1 : i32
    %252 = vector.broadcast %c1_i32_125 : i32 to vector<1x1024xi32>
    %253 = arith.cmpi sge, %10, %252 : vector<1x1024xi32>
    %cst_126 = arith.constant 0.000000e+00 : f32
    %254 = vector.broadcast %cst_126 : f32 to vector<1x1024xf32>
    %255 = arith.select %253, %251, %254 : vector<1x1024xi1>, vector<1x1024xf32>
    %c44 = arith.constant 44 : index
    %c0_127 = arith.constant 0 : index
    %256 = vector.load %arg13[%c44, %c0_127] : memref<56x1024xf32, #tpu.memory_space<vmem>>, vector<1x1024xf32>
    tpu.vector_store %arg13[%c44, %c0_127], %255 {strides = array<i32>} : memref<56x1024xf32, #tpu.memory_space<vmem>>, vector<1x1024xf32>,
    %257 = vector.extract_strided_slice %7 {offsets = [0, 448], sizes = [1, 1024], strides = [1, 1]} : vector<1x1536xf32> to vector<1x1024xf32>
    %c45 = arith.constant 45 : index
    %c0_128 = arith.constant 0 : index
    %258 = vector.load %arg13[%c45, %c0_128] : memref<56x1024xf32, #tpu.memory_space<vmem>>, vector<1x1024xf32>
    tpu.vector_store %arg13[%c45, %c0_128], %257 {strides = array<i32>} : memref<56x1024xf32, #tpu.memory_space<vmem>>, vector<1x1024xf32>,
    %259 = vector.extract_strided_slice %7 {offsets = [0, 449], sizes = [1, 1024], strides = [1, 1]} : vector<1x1536xf32> to vector<1x1024xf32>
    %c63_i32_129 = arith.constant 63 : i32
    %260 = vector.broadcast %c63_i32_129 : i32 to vector<1x1024xi32>
    %261 = arith.cmpi slt, %10, %260 : vector<1x1024xi32>
    %cst_130 = arith.constant 0.000000e+00 : f32
    %262 = vector.broadcast %cst_130 : f32 to vector<1x1024xf32>
    %263 = arith.select %261, %259, %262 : vector<1x1024xi1>, vector<1x1024xf32>
    %c46 = arith.constant 46 : index
    %c0_131 = arith.constant 0 : index
    %264 = vector.load %arg13[%c46, %c0_131] : memref<56x1024xf32, #tpu.memory_space<vmem>>, vector<1x1024xf32>
    tpu.vector_store %arg13[%c46, %c0_131], %263 {strides = array<i32>} : memref<56x1024xf32, #tpu.memory_space<vmem>>, vector<1x1024xf32>,
    %265 = vector.extract_strided_slice %7 {offsets = [0, 450], sizes = [1, 1024], strides = [1, 1]} : vector<1x1536xf32> to vector<1x1024xf32>
    %c62_i32_132 = arith.constant 62 : i32
    %266 = vector.broadcast %c62_i32_132 : i32 to vector<1x1024xi32>
    %267 = arith.cmpi slt, %10, %266 : vector<1x1024xi32>
    %cst_133 = arith.constant 0.000000e+00 : f32
    %268 = vector.broadcast %cst_133 : f32 to vector<1x1024xf32>
    %269 = arith.select %267, %265, %268 : vector<1x1024xi1>, vector<1x1024xf32>
    %c47 = arith.constant 47 : index
    %c0_134 = arith.constant 0 : index
    %270 = vector.load %arg13[%c47, %c0_134] : memref<56x1024xf32, #tpu.memory_space<vmem>>, vector<1x1024xf32>
    tpu.vector_store %arg13[%c47, %c0_134], %269 {strides = array<i32>} : memref<56x1024xf32, #tpu.memory_space<vmem>>, vector<1x1024xf32>,
    %271 = vector.extract_strided_slice %7 {offsets = [0, 451], sizes = [1, 1024], strides = [1, 1]} : vector<1x1536xf32> to vector<1x1024xf32>
    %c61_i32_135 = arith.constant 61 : i32
    %272 = vector.broadcast %c61_i32_135 : i32 to vector<1x1024xi32>
    %273 = arith.cmpi slt, %10, %272 : vector<1x1024xi32>
    %cst_136 = arith.constant 0.000000e+00 : f32
    %274 = vector.broadcast %cst_136 : f32 to vector<1x1024xf32>
    %275 = arith.select %273, %271, %274 : vector<1x1024xi1>, vector<1x1024xf32>
    %c48 = arith.constant 48 : index
    %c0_137 = arith.constant 0 : index
    %276 = vector.load %arg13[%c48, %c0_137] : memref<56x1024xf32, #tpu.memory_space<vmem>>, vector<1x1024xf32>
    tpu.vector_store %arg13[%c48, %c0_137], %275 {strides = array<i32>} : memref<56x1024xf32, #tpu.memory_space<vmem>>, vector<1x1024xf32>,
    %cst_138 = arith.constant 0.000000e+00 : f32
    %277 = vector.broadcast %cst_138 : f32 to vector<7x1024xf32>
    %c49 = arith.constant 49 : index
    %c0_139 = arith.constant 0 : index
    %278 = vector.load %arg13[%c49, %c0_139] : memref<56x1024xf32, #tpu.memory_space<vmem>>, vector<7x1024xf32>
    tpu.vector_store %arg13[%c49, %c0_139], %277 {strides = array<i32>} : memref<56x1024xf32, #tpu.memory_space<vmem>>, vector<7x1024xf32>,
    %c0_140 = arith.constant 0 : index
    %c0_141 = arith.constant 0 : index
    %279 = vector.load %arg3[%c0_140, %c0_141] : memref<16x56xf32, #tpu.memory_space<vmem>>, vector<16x56xf32>
    %c0_142 = arith.constant 0 : index
    %c0_143 = arith.constant 0 : index
    %280 = vector.load %arg13[%c0_142, %c0_143] : memref<56x1024xf32, #tpu.memory_space<vmem>>, vector<56x1024xf32>
    %cst_144 = arith.constant dense<0.000000e+00> : vector<16x1024xf32>
    %281 = tpu.matmul %279, %280, %cst_144 {dimension_numbers = #tpu.dot_dimension_numbers<[1], [0], [0], [1], [0, 0, 1, 1], [], []>, precision = #tpu.contract_precision<fp32>} : vector<16x56xf32>, vector<56x1024xf32>, vector<16x1024xf32> -> vector<16x1024xf32>
    %c0_145 = arith.constant 0 : index
    %c0_146 = arith.constant 0 : index
    %c0_147 = arith.constant 0 : index
    %282 = vector.load %arg6[%c0_145, %c0_146, %c0_147] : memref<1x16x1024xf32, #tpu.memory_space<vmem>>, vector<1x16x1024xf32>
    %283 = vector.shape_cast %282 : vector<1x16x1024xf32> to vector<16x1024xf32>
    %284 = vector.shape_cast %281 : vector<16x1024xf32> to vector<1x16x1024xf32>
    tpu.vector_store %arg6[%c0_145, %c0_146, %c0_147], %284 {strides = array<i32>} : memref<1x16x1024xf32, #tpu.memory_space<vmem>>, vector<1x16x1024xf32>,
    %cst_148 = arith.constant dense<0.000000e+00> : vector<16xf32>
    %285 = vector.multi_reduction <add>, %281, %cst_148 [1] : vector<16x1024xf32> to vector<16xf32>
    %286 = vector.shape_cast %285 : vector<16xf32> to vector<16x1xf32>
    %c0_149 = arith.constant 0 : index
    %c0_150 = arith.constant 0 : index
    %c0_151 = arith.constant 0 : index
    %287 = vector.load %arg8[%c0_149, %c0_150, %c0_151] : memref<1x16x1xf32, #tpu.memory_space<vmem>>, vector<1x16x1xf32>
    %288 = vector.shape_cast %287 : vector<1x16x1xf32> to vector<16x1xf32>
    %289 = vector.shape_cast %286 : vector<16x1xf32> to vector<1x16x1xf32>
    tpu.vector_store %arg8[%c0_149, %c0_150, %c0_151], %289 {strides = array<i32>} : memref<1x16x1xf32, #tpu.memory_space<vmem>>, vector<1x16x1xf32>,
    %290 = arith.mulf %281, %281 : vector<16x1024xf32>
    %cst_152 = arith.constant dense<0.000000e+00> : vector<16xf32>
    %291 = vector.multi_reduction <add>, %290, %cst_152 [1] : vector<16x1024xf32> to vector<16xf32>
    %292 = vector.shape_cast %291 : vector<16xf32> to vector<16x1xf32>
    %c0_153 = arith.constant 0 : index
    %c0_154 = arith.constant 0 : index
    %c0_155 = arith.constant 0 : index
    %293 = vector.load %arg9[%c0_153, %c0_154, %c0_155] : memref<1x16x1xf32, #tpu.memory_space<vmem>>, vector<1x16x1xf32>
    %294 = vector.shape_cast %293 : vector<1x16x1xf32> to vector<16x1xf32>
    %295 = vector.shape_cast %292 : vector<16x1xf32> to vector<1x16x1xf32>
    tpu.vector_store %arg9[%c0_153, %c0_154, %c0_155], %295 {strides = array<i32>} : memref<1x16x1xf32, #tpu.memory_space<vmem>>, vector<1x16x1xf32>,
    %c0_156 = arith.constant 0 : index
    %c0_157 = arith.constant 0 : index
    %c0_158 = arith.constant 0 : index
    %296 = vector.load %arg2[%c0_156, %c0_157, %c0_158] : memref<1x16x64xf32, #tpu.memory_space<vmem>>, vector<1x16x64xf32>
    %297 = vector.shape_cast %296 : vector<1x16x64xf32> to vector<16x64xf32>
    %c0_159 = arith.constant 0 : index
    %c0_160 = arith.constant 0 : index
    %298 = vector.load %arg4[%c0_159, %c0_160] : memref<64x64xf32, #tpu.memory_space<vmem>>, vector<64x64xf32>
    %cst_161 = arith.constant dense<0.000000e+00> : vector<16x64xf32>
    %299 = tpu.matmul %297, %298, %cst_161 {dimension_numbers = #tpu.dot_dimension_numbers<[1], [0], [0], [1], [0, 0, 1, 1], [], []>, precision = #tpu.contract_precision<fp32>} : vector<16x64xf32>, vector<64x64xf32>, vector<16x64xf32> -> vector<16x64xf32>
    %c0_162 = arith.constant 0 : index
    %c0_163 = arith.constant 0 : index
    %300 = vector.load %arg5[%c0_162, %c0_163] : memref<1x64xf32, #tpu.memory_space<vmem>>, vector<1x64xf32>
    %301 = vector.broadcast %300 : vector<1x64xf32> to vector<16x64xf32>
    %302 = arith.addf %299, %301 : vector<16x64xf32>
    %c0_164 = arith.constant 0 : index
    %c0_165 = arith.constant 0 : index
    %c0_166 = arith.constant 0 : index
    %303 = vector.load %arg7[%c0_164, %c0_165, %c0_166] : memref<1x16x64xf32, #tpu.memory_space<vmem>>, vector<1x16x64xf32>
    %304 = vector.shape_cast %303 : vector<1x16x64xf32> to vector<16x64xf32>
    %305 = vector.shape_cast %302 : vector<16x64xf32> to vector<1x16x64xf32>
    tpu.vector_store %arg7[%c0_164, %c0_165, %c0_166], %305 {strides = array<i32>} : memref<1x16x64xf32, #tpu.memory_space<vmem>>, vector<1x16x64xf32>,
    %cst_167 = arith.constant dense<0.000000e+00> : vector<16xf32>
    %306 = vector.multi_reduction <add>, %302, %cst_167 [1] : vector<16x64xf32> to vector<16xf32>
    %307 = vector.shape_cast %306 : vector<16xf32> to vector<16x1xf32>
    %cst_168 = arith.constant dense<0.000000e+00> : vector<1xf32>
    %308 = vector.multi_reduction <add>, %307, %cst_168 [0] : vector<16x1xf32> to vector<1xf32>
    %309 = vector.shape_cast %308 : vector<1xf32> to vector<1x1xf32>
    %c0_169 = arith.constant 0 : index
    %c0_170 = arith.constant 0 : index
    %c0_171 = arith.constant 0 : index
    %310 = vector.load %arg10[%c0_169, %c0_170, %c0_171] : memref<1x1x1xf32, #tpu.memory_space<vmem>>, vector<1x1x1xf32>
    %311 = vector.shape_cast %310 : vector<1x1x1xf32> to vector<1x1xf32>
    %312 = vector.shape_cast %309 : vector<1x1xf32> to vector<1x1x1xf32>
    tpu.vector_store %arg10[%c0_169, %c0_170, %c0_171], %312 {strides = array<i32>} : memref<1x1x1xf32, #tpu.memory_space<vmem>>, vector<1x1x1xf32>,
    %313 = arith.mulf %302, %302 : vector<16x64xf32>
    %cst_172 = arith.constant dense<0.000000e+00> : vector<16xf32>
    %314 = vector.multi_reduction <add>, %313, %cst_172 [1] : vector<16x64xf32> to vector<16xf32>
    %315 = vector.shape_cast %314 : vector<16xf32> to vector<16x1xf32>
    %cst_173 = arith.constant dense<0.000000e+00> : vector<1xf32>
    %316 = vector.multi_reduction <add>, %315, %cst_173 [0] : vector<16x1xf32> to vector<1xf32>
    %317 = vector.shape_cast %316 : vector<1xf32> to vector<1x1xf32>
    %c0_174 = arith.constant 0 : index
    %c0_175 = arith.constant 0 : index
    %c0_176 = arith.constant 0 : index
    %318 = vector.load %arg11[%c0_174, %c0_175, %c0_176] : memref<1x1x1xf32, #tpu.memory_space<vmem>>, vector<1x1x1xf32>
    %319 = vector.shape_cast %318 : vector<1x1x1xf32> to vector<1x1xf32>
    %320 = vector.shape_cast %317 : vector<1x1xf32> to vector<1x1x1xf32>
    tpu.vector_store %arg11[%c0_174, %c0_175, %c0_176], %320 {strides = array<i32>} : memref<1x1x1xf32, #tpu.memory_space<vmem>>, vector<1x1x1xf32>,
    return
  }
  func.func @transform_0(%arg0: i32) -> (i32, i32, i32) {
    %c0_i32 = arith.constant 0 : i32
    %c0_i32_0 = arith.constant 0 : i32
    %c0_i32_1 = arith.constant 0 : i32
    return %arg0, %c0_i32, %c0_i32_0 : i32, i32, i32
  }
  func.func @transform_1(%arg0: i32) -> (i32, i32, i32) {
    %c0_i32 = arith.constant 0 : i32
    %c0_i32_0 = arith.constant 0 : i32
    %c0_i32_1 = arith.constant 0 : i32
    return %arg0, %c0_i32, %c0_i32_0 : i32, i32, i32
  }
  func.func @transform_2(%arg0: i32) -> (i32, i32) {
    %c0_i32 = arith.constant 0 : i32
    %c0_i32_0 = arith.constant 0 : i32
    %c0_i32_1 = arith.constant 0 : i32
    return %c0_i32, %c0_i32_0 : i32, i32
  }
  func.func @transform_3(%arg0: i32) -> (i32, i32) {
    %c0_i32 = arith.constant 0 : i32
    %c0_i32_0 = arith.constant 0 : i32
    %c0_i32_1 = arith.constant 0 : i32
    return %c0_i32, %c0_i32_0 : i32, i32
  }
  func.func @transform_4(%arg0: i32) -> (i32, i32) {
    %c0_i32 = arith.constant 0 : i32
    %c0_i32_0 = arith.constant 0 : i32
    %c0_i32_1 = arith.constant 0 : i32
    return %c0_i32, %c0_i32_0 : i32, i32
  }
  func.func @transform_5(%arg0: i32) -> (i32, i32, i32) {
    %c0_i32 = arith.constant 0 : i32
    %c0_i32_0 = arith.constant 0 : i32
    %c0_i32_1 = arith.constant 0 : i32
    return %arg0, %c0_i32, %c0_i32_0 : i32, i32, i32
  }
  func.func @transform_6(%arg0: i32) -> (i32, i32, i32) {
    %c0_i32 = arith.constant 0 : i32
    %c0_i32_0 = arith.constant 0 : i32
    %c0_i32_1 = arith.constant 0 : i32
    return %arg0, %c0_i32, %c0_i32_0 : i32, i32, i32
  }
  func.func @transform_7(%arg0: i32) -> (i32, i32, i32) {
    %c0_i32 = arith.constant 0 : i32
    %c0_i32_0 = arith.constant 0 : i32
    %c0_i32_1 = arith.constant 0 : i32
    return %arg0, %c0_i32, %c0_i32_0 : i32, i32, i32
  }
  func.func @transform_8(%arg0: i32) -> (i32, i32, i32) {
    %c0_i32 = arith.constant 0 : i32
    %c0_i32_0 = arith.constant 0 : i32
    %c0_i32_1 = arith.constant 0 : i32
    return %arg0, %c0_i32, %c0_i32_0 : i32, i32, i32
  }
  func.func @transform_9(%arg0: i32) -> (i32, i32, i32) {
    %c0_i32 = arith.constant 0 : i32
    %c0_i32_0 = arith.constant 0 : i32
    %c0_i32_1 = arith.constant 0 : i32
    return %arg0, %c0_i32, %c0_i32_0 : i32, i32, i32
  }
  func.func @transform_10(%arg0: i32) -> (i32, i32, i32) {
    %c0_i32 = arith.constant 0 : i32
    %c0_i32_0 = arith.constant 0 : i32
    %c0_i32_1 = arith.constant 0 : i32
    return %arg0, %c0_i32, %c0_i32_0 : i32, i32, i32
  }
}

module attributes {stable_mosaic.version = 11 : i64} {
  func.func @tail_kernel(%arg0: i32, %arg1: i32, %arg2: memref<1x64x1024xf32, #tpu.memory_space<vmem>>, %arg3: memref<64x1xf32, #tpu.memory_space<vmem>>, %arg4: memref<64x1xf32, #tpu.memory_space<vmem>>, %arg5: memref<1x64x1024xf32, #tpu.memory_space<vmem>>) attributes {dimension_semantics = [#tpu.dimension_semantics<parallel>, #tpu.dimension_semantics<parallel>], iteration_bounds = array<i64: 2, 1>, scalar_prefetch = 0 : i64, scratch_operands = 0 : i64, tpu.core_type = #tpu.core_type<tc>, window_params = [{transform_indices = @transform_0, window_bounds = array<i64: 1, 64, 1024>}, {pipeline_mode = #tpu.pipeline_mode<synchronous>, transform_indices = @transform_1, window_bounds = array<i64: 64, 1>}, {pipeline_mode = #tpu.pipeline_mode<synchronous>, transform_indices = @transform_2, window_bounds = array<i64: 64, 1>}, {transform_indices = @transform_3, window_bounds = array<i64: 1, 64, 1024>}]} {
    %c0 = arith.constant 0 : index
    %c0_0 = arith.constant 0 : index
    %0 = vector.load %arg3[%c0, %c0_0] : memref<64x1xf32, #tpu.memory_space<vmem>>, vector<64x1xf32>
    %cst = arith.constant 4.8828125E-4 : f32
    %1 = vector.broadcast %cst : f32 to vector<64x1xf32>
    %2 = arith.mulf %0, %1 : vector<64x1xf32>
    %c0_1 = arith.constant 0 : index
    %c0_2 = arith.constant 0 : index
    %3 = vector.load %arg4[%c0_1, %c0_2] : memref<64x1xf32, #tpu.memory_space<vmem>>, vector<64x1xf32>
    %cst_3 = arith.constant 4.8828125E-4 : f32
    %4 = vector.broadcast %cst_3 : f32 to vector<64x1xf32>
    %5 = arith.mulf %3, %4 : vector<64x1xf32>
    %6 = arith.mulf %2, %2 : vector<64x1xf32>
    %7 = arith.subf %5, %6 : vector<64x1xf32>
    %cst_4 = arith.constant 9.99999974E-6 : f32
    %8 = vector.broadcast %cst_4 : f32 to vector<64x1xf32>
    %9 = arith.addf %7, %8 : vector<64x1xf32>
    %10 = math.rsqrt %9 : vector<64x1xf32>
    %cst_5 = arith.constant 0.000000e+00 : f32
    %11 = vector.broadcast %cst_5 : f32 to vector<64x1xf32>
    %12 = arith.subf %11, %2 : vector<64x1xf32>
    %13 = arith.mulf %12, %10 : vector<64x1xf32>
    %c0_6 = arith.constant 0 : index
    %c0_7 = arith.constant 0 : index
    %c0_8 = arith.constant 0 : index
    %14 = vector.load %arg2[%c0_6, %c0_7, %c0_8] : memref<1x64x1024xf32, #tpu.memory_space<vmem>>, vector<1x64x1024xf32>
    %15 = vector.shape_cast %14 : vector<1x64x1024xf32> to vector<64x1024xf32>
    %16 = vector.broadcast %10 : vector<64x1xf32> to vector<64x1024xf32>
    %17 = arith.mulf %15, %16 : vector<64x1024xf32>
    %18 = vector.broadcast %13 : vector<64x1xf32> to vector<64x1024xf32>
    %19 = arith.addf %17, %18 : vector<64x1024xf32>
    %cst_9 = arith.constant 0.000000e+00 : f32
    %20 = vector.broadcast %cst_9 : f32 to vector<64x1024xf32>
    %21 = arith.maximumf %19, %20 : vector<64x1024xf32>
    %c0_10 = arith.constant 0 : index
    %c0_11 = arith.constant 0 : index
    %c0_12 = arith.constant 0 : index
    %22 = vector.load %arg5[%c0_10, %c0_11, %c0_12] : memref<1x64x1024xf32, #tpu.memory_space<vmem>>, vector<1x64x1024xf32>
    %23 = vector.shape_cast %22 : vector<1x64x1024xf32> to vector<64x1024xf32>
    %24 = vector.shape_cast %21 : vector<64x1024xf32> to vector<1x64x1024xf32>
    tpu.vector_store %arg5[%c0_10, %c0_11, %c0_12], %24 {strides = array<i32>} : memref<1x64x1024xf32, #tpu.memory_space<vmem>>, vector<1x64x1024xf32>,
    return
  }
  func.func @transform_0(%arg0: i32, %arg1: i32) -> (i32, i32, i32) {
    %c0_i32 = arith.constant 0 : i32
    %c0_i32_0 = arith.constant 0 : i32
    return %arg0, %c0_i32, %arg1 : i32, i32, i32
  }
  func.func @transform_1(%arg0: i32, %arg1: i32) -> (i32, i32) {
    %c0_i32 = arith.constant 0 : i32
    %c0_i32_0 = arith.constant 0 : i32
    %c0_i32_1 = arith.constant 0 : i32
    return %c0_i32, %c0_i32_0 : i32, i32
  }
  func.func @transform_2(%arg0: i32, %arg1: i32) -> (i32, i32) {
    %c0_i32 = arith.constant 0 : i32
    %c0_i32_0 = arith.constant 0 : i32
    %c0_i32_1 = arith.constant 0 : i32
    return %c0_i32, %c0_i32_0 : i32, i32
  }
  func.func @transform_3(%arg0: i32, %arg1: i32) -> (i32, i32, i32) {
    %c0_i32 = arith.constant 0 : i32
    %c0_i32_0 = arith.constant 0 : i32
    return %arg0, %c0_i32, %arg1 : i32, i32, i32
  }
}

module attributes {stable_mosaic.version = 11 : i64} {
  func.func @mid_kernel(%arg0: i32, %arg1: i32, %arg2: memref<1x16x1024xf32, #tpu.memory_space<vmem>>, %arg3: memref<1x1x1024xf32, #tpu.memory_space<vmem>>, %arg4: memref<16x1xf32, #tpu.memory_space<vmem>>, %arg5: memref<16x1xf32, #tpu.memory_space<vmem>>, %arg6: memref<1x1xf32, #tpu.memory_space<vmem>>, %arg7: memref<1x1xf32, #tpu.memory_space<vmem>>, %arg8: memref<64x16xf32, #tpu.memory_space<vmem>>, %arg9: memref<64x1xf32, #tpu.memory_space<vmem>>, %arg10: memref<1x64x1024xf32, #tpu.memory_space<vmem>>, %arg11: memref<1x64x1xf32, #tpu.memory_space<vmem>>, %arg12: memref<1x64x1xf32, #tpu.memory_space<vmem>>) attributes {dimension_semantics = [#tpu.dimension_semantics<parallel>, #tpu.dimension_semantics<parallel>], iteration_bounds = array<i64: 2, 1>, scalar_prefetch = 0 : i64, scratch_operands = 0 : i64, tpu.core_type = #tpu.core_type<tc>, window_params = [{transform_indices = @transform_0, window_bounds = array<i64: 1, 16, 1024>}, {transform_indices = @transform_1, window_bounds = array<i64: 1, 1, 1024>}, {pipeline_mode = #tpu.pipeline_mode<synchronous>, transform_indices = @transform_2, window_bounds = array<i64: 16, 1>}, {pipeline_mode = #tpu.pipeline_mode<synchronous>, transform_indices = @transform_3, window_bounds = array<i64: 16, 1>}, {pipeline_mode = #tpu.pipeline_mode<synchronous>, transform_indices = @transform_4, window_bounds = array<i64: 1, 1>}, {pipeline_mode = #tpu.pipeline_mode<synchronous>, transform_indices = @transform_5, window_bounds = array<i64: 1, 1>}, {pipeline_mode = #tpu.pipeline_mode<synchronous>, transform_indices = @transform_6, window_bounds = array<i64: 64, 16>}, {pipeline_mode = #tpu.pipeline_mode<synchronous>, transform_indices = @transform_7, window_bounds = array<i64: 64, 1>}, {transform_indices = @transform_8, window_bounds = array<i64: 1, 64, 1024>}, {transform_indices = @transform_9, window_bounds = array<i64: 1, 64, 1>}, {transform_indices = @transform_10, window_bounds = array<i64: 1, 64, 1>}]} {
    %c0 = arith.constant 0 : index
    %c0_0 = arith.constant 0 : index
    %0 = vector.load %arg4[%c0, %c0_0] : memref<16x1xf32, #tpu.memory_space<vmem>>, vector<16x1xf32>
    %cst = arith.constant 4.8828125E-4 : f32
    %1 = vector.broadcast %cst : f32 to vector<16x1xf32>
    %2 = arith.mulf %0, %1 : vector<16x1xf32>
    %c0_1 = arith.constant 0 : index
    %c0_2 = arith.constant 0 : index
    %3 = vector.load %arg5[%c0_1, %c0_2] : memref<16x1xf32, #tpu.memory_space<vmem>>, vector<16x1xf32>
    %cst_3 = arith.constant 4.8828125E-4 : f32
    %4 = vector.broadcast %cst_3 : f32 to vector<16x1xf32>
    %5 = arith.mulf %3, %4 : vector<16x1xf32>
    %6 = arith.mulf %2, %2 : vector<16x1xf32>
    %7 = arith.subf %5, %6 : vector<16x1xf32>
    %cst_4 = arith.constant 9.99999974E-6 : f32
    %8 = vector.broadcast %cst_4 : f32 to vector<16x1xf32>
    %9 = arith.addf %7, %8 : vector<16x1xf32>
    %10 = math.rsqrt %9 : vector<16x1xf32>
    %cst_5 = arith.constant 0.000000e+00 : f32
    %11 = vector.broadcast %cst_5 : f32 to vector<16x1xf32>
    %12 = arith.subf %11, %2 : vector<16x1xf32>
    %13 = arith.mulf %12, %10 : vector<16x1xf32>
    %c0_6 = arith.constant 0 : index
    %c0_7 = arith.constant 0 : index
    %14 = vector.load %arg6[%c0_6, %c0_7] : memref<1x1xf32, #tpu.memory_space<vmem>>, vector<1x1xf32>
    %cst_8 = arith.constant 4.8828125E-4 : f32
    %15 = vector.broadcast %cst_8 : f32 to vector<1x1xf32>
    %16 = arith.mulf %14, %15 : vector<1x1xf32>
    %c0_9 = arith.constant 0 : index
    %c0_10 = arith.constant 0 : index
    %17 = vector.load %arg7[%c0_9, %c0_10] : memref<1x1xf32, #tpu.memory_space<vmem>>, vector<1x1xf32>
    %cst_11 = arith.constant 4.8828125E-4 : f32
    %18 = vector.broadcast %cst_11 : f32 to vector<1x1xf32>
    %19 = arith.mulf %17, %18 : vector<1x1xf32>
    %20 = arith.mulf %16, %16 : vector<1x1xf32>
    %21 = arith.subf %19, %20 : vector<1x1xf32>
    %cst_12 = arith.constant 9.99999974E-6 : f32
    %22 = vector.broadcast %cst_12 : f32 to vector<1x1xf32>
    %23 = arith.addf %21, %22 : vector<1x1xf32>
    %24 = math.rsqrt %23 : vector<1x1xf32>
    %cst_13 = arith.constant 0.000000e+00 : f32
    %25 = vector.broadcast %cst_13 : f32 to vector<1x1xf32>
    %26 = arith.subf %25, %16 : vector<1x1xf32>
    %27 = arith.mulf %26, %24 : vector<1x1xf32>
    %c0_14 = arith.constant 0 : index
    %c0_15 = arith.constant 0 : index
    %c0_16 = arith.constant 0 : index
    %28 = vector.load %arg2[%c0_14, %c0_15, %c0_16] : memref<1x16x1024xf32, #tpu.memory_space<vmem>>, vector<1x16x1024xf32>
    %29 = vector.shape_cast %28 : vector<1x16x1024xf32> to vector<16x1024xf32>
    %30 = vector.broadcast %10 : vector<16x1xf32> to vector<16x1024xf32>
    %31 = arith.mulf %29, %30 : vector<16x1024xf32>
    %32 = vector.broadcast %13 : vector<16x1xf32> to vector<16x1024xf32>
    %33 = arith.addf %31, %32 : vector<16x1024xf32>
    %cst_17 = arith.constant 0.000000e+00 : f32
    %34 = vector.broadcast %cst_17 : f32 to vector<16x1024xf32>
    %35 = arith.maximumf %33, %34 : vector<16x1024xf32>
    %c0_18 = arith.constant 0 : index
    %c0_19 = arith.constant 0 : index
    %c0_20 = arith.constant 0 : index
    %36 = vector.load %arg3[%c0_18, %c0_19, %c0_20] : memref<1x1x1024xf32, #tpu.memory_space<vmem>>, vector<1x1x1024xf32>
    %37 = vector.shape_cast %36 : vector<1x1x1024xf32> to vector<1x1024xf32>
    %38 = vector.broadcast %24 : vector<1x1xf32> to vector<1x1024xf32>
    %39 = arith.mulf %37, %38 : vector<1x1024xf32>
    %40 = vector.broadcast %27 : vector<1x1xf32> to vector<1x1024xf32>
    %41 = arith.addf %39, %40 : vector<1x1024xf32>
    %cst_21 = arith.constant 0.000000e+00 : f32
    %42 = vector.broadcast %cst_21 : f32 to vector<1x1024xf32>
    %43 = arith.maximumf %41, %42 : vector<1x1024xf32>
    %c0_22 = arith.constant 0 : index
    %c0_23 = arith.constant 0 : index
    %44 = vector.load %arg8[%c0_22, %c0_23] : memref<64x16xf32, #tpu.memory_space<vmem>>, vector<64x16xf32>
    %cst_24 = arith.constant dense<0.000000e+00> : vector<64x1024xf32>
    %45 = tpu.matmul %44, %35, %cst_24 {dimension_numbers = #tpu.dot_dimension_numbers<[1], [0], [0], [1], [0, 0, 1, 1], [], []>, precision = #tpu.contract_precision<fp32>} : vector<64x16xf32>, vector<16x1024xf32>, vector<64x1024xf32> -> vector<64x1024xf32>
    %c0_25 = arith.constant 0 : index
    %c0_26 = arith.constant 0 : index
    %46 = vector.load %arg9[%c0_25, %c0_26] : memref<64x1xf32, #tpu.memory_space<vmem>>, vector<64x1xf32>
    %47 = vector.broadcast %46 : vector<64x1xf32> to vector<64x1024xf32>
    %48 = vector.broadcast %43 : vector<1x1024xf32> to vector<64x1024xf32>
    %49 = arith.mulf %47, %48 : vector<64x1024xf32>
    %50 = arith.addf %45, %49 : vector<64x1024xf32>
    %c0_27 = arith.constant 0 : index
    %c0_28 = arith.constant 0 : index
    %c0_29 = arith.constant 0 : index
    %51 = vector.load %arg10[%c0_27, %c0_28, %c0_29] : memref<1x64x1024xf32, #tpu.memory_space<vmem>>, vector<1x64x1024xf32>
    %52 = vector.shape_cast %51 : vector<1x64x1024xf32> to vector<64x1024xf32>
    %53 = vector.shape_cast %50 : vector<64x1024xf32> to vector<1x64x1024xf32>
    tpu.vector_store %arg10[%c0_27, %c0_28, %c0_29], %53 {strides = array<i32>} : memref<1x64x1024xf32, #tpu.memory_space<vmem>>, vector<1x64x1024xf32>,
    %cst_30 = arith.constant dense<0.000000e+00> : vector<64xf32>
    %54 = vector.multi_reduction <add>, %50, %cst_30 [1] : vector<64x1024xf32> to vector<64xf32>
    %55 = vector.shape_cast %54 : vector<64xf32> to vector<64x1xf32>
    %c0_31 = arith.constant 0 : index
    %c0_32 = arith.constant 0 : index
    %c0_33 = arith.constant 0 : index
    %56 = vector.load %arg11[%c0_31, %c0_32, %c0_33] : memref<1x64x1xf32, #tpu.memory_space<vmem>>, vector<1x64x1xf32>
    %57 = vector.shape_cast %56 : vector<1x64x1xf32> to vector<64x1xf32>
    %58 = vector.shape_cast %55 : vector<64x1xf32> to vector<1x64x1xf32>
    tpu.vector_store %arg11[%c0_31, %c0_32, %c0_33], %58 {strides = array<i32>} : memref<1x64x1xf32, #tpu.memory_space<vmem>>, vector<1x64x1xf32>,
    %59 = arith.mulf %50, %50 : vector<64x1024xf32>
    %cst_34 = arith.constant dense<0.000000e+00> : vector<64xf32>
    %60 = vector.multi_reduction <add>, %59, %cst_34 [1] : vector<64x1024xf32> to vector<64xf32>
    %61 = vector.shape_cast %60 : vector<64xf32> to vector<64x1xf32>
    %c0_35 = arith.constant 0 : index
    %c0_36 = arith.constant 0 : index
    %c0_37 = arith.constant 0 : index
    %62 = vector.load %arg12[%c0_35, %c0_36, %c0_37] : memref<1x64x1xf32, #tpu.memory_space<vmem>>, vector<1x64x1xf32>
    %63 = vector.shape_cast %62 : vector<1x64x1xf32> to vector<64x1xf32>
    %64 = vector.shape_cast %61 : vector<64x1xf32> to vector<1x64x1xf32>
    tpu.vector_store %arg12[%c0_35, %c0_36, %c0_37], %64 {strides = array<i32>} : memref<1x64x1xf32, #tpu.memory_space<vmem>>, vector<1x64x1xf32>,
    return
  }
  func.func @transform_0(%arg0: i32, %arg1: i32) -> (i32, i32, i32) {
    %c0_i32 = arith.constant 0 : i32
    %c0_i32_0 = arith.constant 0 : i32
    return %arg0, %c0_i32, %arg1 : i32, i32, i32
  }
  func.func @transform_1(%arg0: i32, %arg1: i32) -> (i32, i32, i32) {
    %c0_i32 = arith.constant 0 : i32
    %c0_i32_0 = arith.constant 0 : i32
    return %arg0, %c0_i32, %arg1 : i32, i32, i32
  }
  func.func @transform_2(%arg0: i32, %arg1: i32) -> (i32, i32) {
    %c0_i32 = arith.constant 0 : i32
    %c0_i32_0 = arith.constant 0 : i32
    %c0_i32_1 = arith.constant 0 : i32
    return %c0_i32, %c0_i32_0 : i32, i32
  }
  func.func @transform_3(%arg0: i32, %arg1: i32) -> (i32, i32) {
    %c0_i32 = arith.constant 0 : i32
    %c0_i32_0 = arith.constant 0 : i32
    %c0_i32_1 = arith.constant 0 : i32
    return %c0_i32, %c0_i32_0 : i32, i32
  }
  func.func @transform_4(%arg0: i32, %arg1: i32) -> (i32, i32) {
    %c0_i32 = arith.constant 0 : i32
    %c0_i32_0 = arith.constant 0 : i32
    %c0_i32_1 = arith.constant 0 : i32
    return %c0_i32, %c0_i32_0 : i32, i32
  }
  func.func @transform_5(%arg0: i32, %arg1: i32) -> (i32, i32) {
    %c0_i32 = arith.constant 0 : i32
    %c0_i32_0 = arith.constant 0 : i32
    %c0_i32_1 = arith.constant 0 : i32
    return %c0_i32, %c0_i32_0 : i32, i32
  }
  func.func @transform_6(%arg0: i32, %arg1: i32) -> (i32, i32) {
    %c0_i32 = arith.constant 0 : i32
    %c0_i32_0 = arith.constant 0 : i32
    %c0_i32_1 = arith.constant 0 : i32
    return %c0_i32, %c0_i32_0 : i32, i32
  }
  func.func @transform_7(%arg0: i32, %arg1: i32) -> (i32, i32) {
    %c0_i32 = arith.constant 0 : i32
    %c0_i32_0 = arith.constant 0 : i32
    %c0_i32_1 = arith.constant 0 : i32
    return %c0_i32, %c0_i32_0 : i32, i32
  }
  func.func @transform_8(%arg0: i32, %arg1: i32) -> (i32, i32, i32) {
    %c0_i32 = arith.constant 0 : i32
    %c0_i32_0 = arith.constant 0 : i32
    return %arg0, %c0_i32, %arg1 : i32, i32, i32
  }
  func.func @transform_9(%arg0: i32, %arg1: i32) -> (i32, i32, i32) {
    %c1_i32 = arith.constant 1 : i32
    %0 = arith.muli %arg0, %c1_i32 : i32
    %1 = arith.addi %0, %arg1 : i32
    %c0_i32 = arith.constant 0 : i32
    %c0_i32_0 = arith.constant 0 : i32
    %c0_i32_1 = arith.constant 0 : i32
    return %1, %c0_i32, %c0_i32_0 : i32, i32, i32
  }
  func.func @transform_10(%arg0: i32, %arg1: i32) -> (i32, i32, i32) {
    %c1_i32 = arith.constant 1 : i32
    %0 = arith.muli %arg0, %c1_i32 : i32
    %1 = arith.addi %0, %arg1 : i32
    %c0_i32 = arith.constant 0 : i32
    %c0_i32_0 = arith.constant 0 : i32
    %c0_i32_1 = arith.constant 0 : i32
    return %1, %c0_i32, %c0_i32_0 : i32, i32, i32
  }
}

</mosaic_0001>

<llo_original>
// kernel: squeeze.3
$region0: #{squeeze.3}
  %s0 = inlined_call_operand.hbm [shape: f32[2,1,16,64], index: 0, kind: input, shape index: {}]
  %s1 = inlined_call_operand.vmem [shape: f32[2,1,1024], index: 1, kind: output, shape index: {}]
  $region1: #{squeeze.3} parent=0
    #allocation0 [shape = 'u8[16384]{0}', space=vmem, size = 0x4000, scoped, tag = 'operand span for operand 0']
    #allocation1 [shape = 's32[1]{0}', space=sflag, size = 0x4, scoped, tag = 'scoped memory for squeeze.3']
    #allocation2 [shape = 'u8[65536]{0}', space=vmem, size = 0x10000, scoped, tag = 'scoped mem for output reshape']
    %2 = vsyncpa [#allocation1], 0
    %4 = vsyncadd [#allocation1], 0
    %s6 = sshll.u32 %s0, 4
    %s7 = int_to_ptr.hbm [resolvable:$true] %s6
    %s8 = sshll.u32 [#allocation0], 4
    %s9 = int_to_ptr.vmem [resolvable:$true] %s8
    %11 = dma.hbm_to_vmem [thread:$0]  %s7, 512, %s9, [#allocation1]
    %13 = dma.done [#allocation1], 512
    %v14 = vld [vmem:[#allocation0] ss:$2 sm:$0xff]
    %vm15 = vcmask 523264
    %16 = vst.msk [vmem:[#allocation2] ss:$8 sm:$0xf] %vm15, %v14
    %17 = vst.msk [vmem:[#allocation2] ss:$8 sm:$0xf0] %vm15, %v14
    %s18 = scalar_lea.vmem [#allocation0], 16
    %v19 = vld [vmem:[%s18] ss:$2 sm:$0xff]
    %vm20 = vcmask 523264
    %s21 = scalar_lea.vmem [#allocation2], 64
    %22 = vst.msk [vmem:[%s21] ss:$8 sm:$0xf] %vm20, %v19
    %s23 = scalar_lea.vmem [#allocation2], 64
    %24 = vst.msk [vmem:[%s23] ss:$8 sm:$0xf0] %vm20, %v19
    %s25 = scalar_lea.vmem [#allocation0], 1
    %v26 = vld [vmem:[%s25] ss:$2 sm:$0xff]
    %27 = vrot.lane.b32.xlu0 %v26, 64
    %v28 = vpop.permute.xlu0 %27
    %vm29 = vcmask 1048064
    %30 = vst.msk [vmem:[#allocation2] ss:$8 sm:$0xf] %vm29, %v28
    %31 = vst.msk [vmem:[#allocation2] ss:$8 sm:$0xf0] %vm29, %v28
    %s32 = scalar_lea.vmem [#allocation0], 17
    %v33 = vld [vmem:[%s32] ss:$2 sm:$0xff]
    %34 = vrot.lane.b32.xlu0 %v33, 64
    %v35 = vpop.permute.xlu0 %34
    %vm36 = vcmask 1048064
    %s37 = scalar_lea.vmem [#allocation2], 64
    %38 = vst.msk [vmem:[%s37] ss:$8 sm:$0xf] %vm36, %v35
    %s39 = scalar_lea.vmem [#allocation2], 64
    %40 = vst.msk [vmem:[%s39] ss:$8 sm:$0xf0] %vm36, %v35
    %s42 = ssub.s32 2, 1
    %v43 = vld [vmem:[#allocation2] sm:%s42]
    %s45 = ssub.s32 2, 1
    %46 = vst [vmem:[%s1] sm:%s45] %v43
    %s47 = scalar_lea.vmem [#allocation2], 8
    %v48 = vld [vmem:[%s47] sm:%s42]
    %s50 = ssub.s32 2, 1
    %s51 = scalar_lea.vmem %s1, 1
    %52 = vst [vmem:[%s51] sm:%s50] %v48
    %s53 = scalar_lea.vmem [#allocation2], 16
    %v54 = vld [vmem:[%s53] sm:%s42]
    %s56 = ssub.s32 2, 1
    %s57 = scalar_lea.vmem %s1, 2
    %58 = vst [vmem:[%s57] sm:%s56] %v54
    %s59 = scalar_lea.vmem [#allocation2], 24
    %v60 = vld [vmem:[%s59] sm:%s42]
    %s62 = ssub.s32 2, 1
    %s63 = scalar_lea.vmem %s1, 3
    %64 = vst [vmem:[%s63] sm:%s62] %v60
    %s65 = scalar_lea.vmem [#allocation2], 32
    %v66 = vld [vmem:[%s65] sm:%s42]
    %s68 = ssub.s32 2, 1
    %s69 = scalar_lea.vmem %s1, 4
    %70 = vst [vmem:[%s69] sm:%s68] %v66
    %s71 = scalar_lea.vmem [#allocation2], 40
    %v72 = vld [vmem:[%s71] sm:%s42]
    %s74 = ssub.s32 2, 1
    %s75 = scalar_lea.vmem %s1, 5
    %76 = vst [vmem:[%s75] sm:%s74] %v72
    %s77 = scalar_lea.vmem [#allocation2], 48
    %v78 = vld [vmem:[%s77] sm:%s42]
    %s80 = ssub.s32 2, 1
    %s81 = scalar_lea.vmem %s1, 6
    %82 = vst [vmem:[%s81] sm:%s80] %v78
    %s83 = scalar_lea.vmem [#allocation2], 56
    %v84 = vld [vmem:[%s83] sm:%s42]
    %s86 = ssub.s32 2, 1
    %s87 = scalar_lea.vmem %s1, 7
    %88 = vst [vmem:[%s87] sm:%s86] %v84
    %s89 = scalar_lea.vmem [#allocation2], 64
    %v90 = vld [vmem:[%s89] sm:%s42]
    %s92 = ssub.s32 2, 1
    %s93 = scalar_lea.vmem %s1, 8
    %94 = vst [vmem:[%s93] sm:%s92] %v90
    %s95 = scalar_lea.vmem [#allocation2], 72
    %v96 = vld [vmem:[%s95] sm:%s42]
    %s98 = ssub.s32 2, 1
    %s99 = scalar_lea.vmem %s1, 9
    %100 = vst [vmem:[%s99] sm:%s98] %v96
    %s101 = scalar_lea.vmem [#allocation2], 80
    %v102 = vld [vmem:[%s101] sm:%s42]
    %s104 = ssub.s32 2, 1
    %s105 = scalar_lea.vmem %s1, 10
    %106 = vst [vmem:[%s105] sm:%s104] %v102
    %s107 = scalar_lea.vmem [#allocation2], 88
    %v108 = vld [vmem:[%s107] sm:%s42]
    %s110 = ssub.s32 2, 1
    %s111 = scalar_lea.vmem %s1, 11
    %112 = vst [vmem:[%s111] sm:%s110] %v108
    %s113 = scalar_lea.vmem [#allocation2], 96
    %v114 = vld [vmem:[%s113] sm:%s42]
    %s116 = ssub.s32 2, 1
    %s117 = scalar_lea.vmem %s1, 12
    %118 = vst [vmem:[%s117] sm:%s116] %v114
    %s119 = scalar_lea.vmem [#allocation2], 104
    %v120 = vld [vmem:[%s119] sm:%s42]
    %s122 = ssub.s32 2, 1
    %s123 = scalar_lea.vmem %s1, 13
    %124 = vst [vmem:[%s123] sm:%s122] %v120
    %s125 = scalar_lea.vmem [#allocation2], 112
    %v126 = vld [vmem:[%s125] sm:%s42]
    %s128 = ssub.s32 2, 1
    %s129 = scalar_lea.vmem %s1, 14
    %130 = vst [vmem:[%s129] sm:%s128] %v126
    %s131 = scalar_lea.vmem [#allocation2], 120
    %v132 = vld [vmem:[%s131] sm:%s42]
    %s134 = ssub.s32 2, 1
    %s135 = scalar_lea.vmem %s1, 15
    %136 = vst [vmem:[%s135] sm:%s134] %v132
    %137 = vsyncpa [#allocation1], 1

// kernel: input_preprocess_forward.5
$region0: #{input_preprocess_forward.5}
  #allocation0 [shape = 'u32[]', space=smem, size = 0x4, offset = 0x4, fixed_abs, tag = 'smem constant byte address 0x4 - core index']
  #allocation1 [shape = 'u32[72,128]{1,0:T(1,128)}', space=vmem, size = 0x9000, scoped, tag = 'internal scratch']
  %s0 = inlined_call_operand.vmem [shape: f32[2,64,1024], index: 0, kind: input, shape index: {}, may-alias: {0,3}]
  %s1 = inlined_call_operand.vmem [shape: f32[64,1], index: 1, kind: input, shape index: {}]
  %s2 = inlined_call_operand.vmem [shape: f32[64,1], index: 2, kind: input, shape index: {}]
  %s3 = inlined_call_operand.vmem [shape: f32[2,64,1024], index: 3, kind: output, shape index: {}, may-alias: {0,3}]
  %s4 = sld [smem:[#allocation0]]
  $region45: #{input_preprocess_forward.5} parent=0
    _
  %s6 = ssub.s32 1, %s4
  %s7 = scalar_select 0, %s6, %s4
  loop: start=0, step=1, limit=4
  $region2: #{input_preprocess_forward.5} parent=0 // loop_pre_header
    _
  $region3: #{input_preprocess_forward.5} parent=0 // loop_header
    %s9 = sphi 0, %s13
    %p10 = scmp.ge.s32.totalorder %s9, 4
    %s16 = sphi 0, %s28
    %s17 = sphi 0, %s24
    %s18 = sphi 0, %s16
    %s19 = sphi 0, %s17
    %s20 = sphi 0, %s18
    %s21 = sphi 0, %s19
    %s33 = sphi 0, %s35
    %s36 = sphi 0, %s33
    %s37 = sphi 0, %s36
    %s53 = sphi 0, %s37
    %s57 = sphi 0, %s57
    %s59 = sphi 0, %s57
    %s60 = sphi 0, %s59
    %s74 = sphi 0, %s60
    %s78 = sphi 0, %s78
    %s80 = sphi 0, %s78
    %s81 = sphi 0, %s80
    %s95 = sphi 0, %s81
    %s103 = sphi 0, %s105
    %s106 = sphi 0, %s103
    %s107 = sphi 0, %s106
    %s123 = sphi 0, %s107
  $region4: #{input_preprocess_forward.5} parent=0 // loop_header_branch
    %12 = sbr.rel (%p10) target = $region8
  $region5: #{input_preprocess_forward.5} parent=0 // loop_body
    %s14 = ssub.s32 %s9, 1
    %s15 = ssub.s32 %s9, 2
    %s22 = sadd.s32 1, %s17
    %p23 = scmp.ge.s32.totalorder %s22, 1
    %s24 = scalar_select %p23, 0, %s22
    %s25 = sadd.s32 1, %s16
    %s26 = scalar_select %p23, %s25, %s16
    %p27 = scmp.ge.s32.totalorder %s26, 2
    %s28 = scalar_select %p27, 0, %s26
    %s29 = ssub.s32 %s16, %s28
    %s30 = ssub.s32 %s17, %s24
    %s31 = sor.u32 %s29, %s30
    %p32 = scmp.eq.s32.totalorder %s31, 0
    %s34 = sadd.s32 %s33, 1
    %s35 = scalar_select %p32, %s33, %s34
    %p38 = pneg %p32
    %p39 = scmp.eq.s32.totalorder %s9, 1
    %p40 = por %p38, %p39
    %p41 = scmp.ne.s32.totalorder %s33, %s36
    %p42 = scmp.eq.s32.totalorder %s9, 0
    %p43 = por %p41, %p42
    %p44 = scmp.ne.s32.totalorder %s33, %s36
    %p45 = scmp.eq.s32.totalorder %s14, 1
    %p46 = por %p44, %p45
    %p47 = scmp.ne.s32.totalorder %s36, %s37
    %p48 = scmp.eq.s32.totalorder %s14, 0
    %p49 = por %p47, %p48
    %p50 = scmp.ne.s32.totalorder %s36, %s37
    %p51 = scmp.eq.s32.totalorder %s15, 1
    %p52 = por %p50, %p51
    %p54 = scmp.ne.s32.totalorder %s37, %s53
    %p55 = scmp.eq.s32.totalorder %s15, 0
    %p56 = por %p54, %p55
    %s58 = sadd.s32 %s57, 1
    %p61 = scmp.eq.s32.totalorder %s9, 1
    %p62 = scmp.ne.s32.totalorder %s57, %s59
    %p63 = scmp.eq.s32.totalorder %s9, 0
    %p64 = por %p62, %p63
    %p65 = scmp.ne.s32.totalorder %s57, %s59
    %p66 = scmp.eq.s32.totalorder %s14, 1
    %p67 = por %p65, %p66
    %p68 = scmp.ne.s32.totalorder %s59, %s60
    %p69 = scmp.eq.s32.totalorder %s14, 0
    %p70 = por %p68, %p69
    %p71 = scmp.ne.s32.totalorder %s59, %s60
    %p72 = scmp.eq.s32.totalorder %s15, 1
    %p73 = por %p71, %p72
    %p75 = scmp.ne.s32.totalorder %s60, %s74
    %p76 = scmp.eq.s32.totalorder %s15, 0
    %p77 = por %p75, %p76
    %s79 = sadd.s32 %s78, 1
    %p82 = scmp.eq.s32.totalorder %s9, 1
    %p83 = scmp.ne.s32.totalorder %s78, %s80
    %p84 = scmp.eq.s32.totalorder %s9, 0
    %p85 = por %p83, %p84
    %p86 = scmp.ne.s32.totalorder %s78, %s80
    %p87 = scmp.eq.s32.totalorder %s14, 1
    %p88 = por %p86, %p87
    %p89 = scmp.ne.s32.totalorder %s80, %s81
    %p90 = scmp.eq.s32.totalorder %s14, 0
    %p91 = por %p89, %p90
    %p92 = scmp.ne.s32.totalorder %s80, %s81
    %p93 = scmp.eq.s32.totalorder %s15, 1
    %p94 = por %p92, %p93
    %p96 = scmp.ne.s32.totalorder %s81, %s95
    %p97 = scmp.eq.s32.totalorder %s15, 0
    %p98 = por %p96, %p97
    %s99 = ssub.s32 %s16, %s28
    %s100 = ssub.s32 %s17, %s24
    %s101 = sor.u32 %s99, %s100
    %p102 = scmp.eq.s32.totalorder %s101, 0
    %s104 = sadd.s32 %s103, 1
    %s105 = scalar_select %p102, %s103, %s104
    %p108 = pneg %p102
    %p109 = scmp.eq.s32.totalorder %s9, 1
    %p110 = por %p108, %p109
    %p111 = scmp.ne.s32.totalorder %s103, %s106
    %p112 = scmp.eq.s32.totalorder %s9, 0
    %p113 = por %p111, %p112
    %p114 = scmp.ne.s32.totalorder %s103, %s106
    %p115 = scmp.eq.s32.totalorder %s14, 1
    %p116 = por %p114, %p115
    %p117 = scmp.ne.s32.totalorder %s106, %s107
    %p118 = scmp.eq.s32.totalorder %s14, 0
    %p119 = por %p117, %p118
    %p120 = scmp.ne.s32.totalorder %s106, %s107
    %p121 = scmp.eq.s32.totalorder %s15, 1
    %p122 = por %p120, %p121
    %p124 = scmp.ne.s32.totalorder %s107, %s123
    %p125 = scmp.eq.s32.totalorder %s15, 0
    %p126 = por %p124, %p125
    %p127 = scmp.le.s32.totalorder 1, %s9
    %p128 = scmp.lt.s32.totalorder %s9, 3
    %p129 = pnand %p127, %p128
    %p130 = pneg %p129
    // Predicated region
    $region9: #{input_preprocess_forward.5} parent=5 // pred_check
      _
    $region10: #{input_preprocess_forward.5} parent=5 // pred_check_branch
      %132 = sbr.rel (%p129) target = $region12
    $region11: #{input_preprocess_forward.5} parent=5 // pred_region
      %s133 = ssub.s32 %s9, 1
      // Predicated region
      $region13: #{input_preprocess_forward.5} parent=11 // pred_check
        %p134 = pneg %p70
      $region14: #{input_preprocess_forward.5} parent=11 // pred_check_branch
        %136 = sbr.rel (%p134) target = $region16
      $region15: #{input_preprocess_forward.5} parent=11 // pred_region
        _
      $region16: #{input_preprocess_forward.5} parent=11 // pred_fallthru
        _
      // Predicated region
      $region17: #{input_preprocess_forward.5} parent=11 // pred_check
        %p137 = pneg %p91
      $region18: #{input_preprocess_forward.5} parent=11 // pred_check_branch
        %139 = sbr.rel (%p137) target = $region20
      $region19: #{input_preprocess_forward.5} parent=11 // pred_region
        _
      $region20: #{input_preprocess_forward.5} parent=11 // pred_fallthru
        _
    $region12: #{input_preprocess_forward.5} parent=5 // pred_fallthru
      _
    %p140 = scmp.lt.s32.totalorder %s9, 2
    // Predicated region
    $region21: #{input_preprocess_forward.5} parent=5 // pred_check
      %p141 = pneg %p140
    $region22: #{input_preprocess_forward.5} parent=5 // pred_check_branch
      %143 = sbr.rel (%p141) target = $region24
    $region23: #{input_preprocess_forward.5} parent=5 // pred_region
      // Predicated region
      $region25: #{input_preprocess_forward.5} parent=23 // pred_check
        %p144 = pneg %p43
      $region26: #{input_preprocess_forward.5} parent=23 // pred_check_branch
        %146 = sbr.rel (%p144) target = $region28
      $region27: #{input_preprocess_forward.5} parent=23 // pred_region
        %s147 = smul.u32 8, %s17
        %p148 = scmp.lt.s32.totalorder %s16, 1
        %s149 = scalar_select %p148, %s16, 1
        %p150 = scmp.lt.s32.totalorder %s147, 7
        %s151 = scalar_select %p150, %s147, 7
        %s152 = smul.addr %s149, 64
        %s153 = sadd.s32 %s151, %s152
        %s154 = smul.addr %s153, 8
        %s155 = scalar_lea.vmem %s0, %s154
        %s156 = smul.u32 8, %s17
      $region28: #{input_preprocess_forward.5} parent=23 // pred_fallthru
        _
    $region24: #{input_preprocess_forward.5} parent=5 // pred_fallthru
      _
    %p157 = scmp.le.s32.totalorder 1, %s9
    %p158 = scmp.lt.s32.totalorder %s9, 3
    %p159 = pnand %p157, %p158
    %p160 = pneg %p159
    // Predicated region
    $region29: #{input_preprocess_forward.5} parent=5 // pred_check
      _
    $region30: #{input_preprocess_forward.5} parent=5 // pred_check_branch
      %162 = sbr.rel (%p159) target = $region32
    $region31: #{input_preprocess_forward.5} parent=5 // pred_region
      %s163 = ssub.s32 %s9, 1
      %s164 = smul.u32 8, %s19
      %p165 = scmp.lt.s32.totalorder %s18, 1
      %s166 = scalar_select %p165, %s18, 1
      %p167 = scmp.lt.s32.totalorder %s164, 7
      %s168 = scalar_select %p167, %s164, 7
      %s169 = smul.addr %s166, 64
      %s170 = sadd.s32 %s168, %s169
      %s171 = smul.addr %s170, 8
      %s172 = scalar_lea.vmem %s0, %s171
      %p173 = pneg %p49
      %p174 = pneg %p46
      %p175 = pneg %p70
      %p176 = pneg %p67
      %p177 = pneg %p91
      %p178 = pneg %p88
      %p179 = pneg %p119
      %p180 = pneg %p116
      %s181 = smul.u32 8, %s19
      %p182 = scmp.lt.s32.totalorder %s18, 1
      %s183 = scalar_select %p182, %s18, 1
      %p184 = scmp.lt.s32.totalorder %s181, 7
      %s185 = scalar_select %p184, %s181, 7
      %s186 = smul.addr %s183, 64
      %s187 = sadd.s32 %s185, %s186
      %s188 = smul.addr %s187, 8
      %s189 = scalar_lea.vmem %s3, %s188
      %s190 = smul.u32 8, %s19
      %p191 = scmp.lt.s32.totalorder %s18, 1
      %s192 = scalar_select %p191, %s18, 1
      %p193 = scmp.lt.s32.totalorder %s190, 7
      %s194 = scalar_select %p193, %s190, 7
      %s195 = smul.addr %s192, 64
      %s196 = sadd.s32 %s194, %s195
      %s197 = smul.addr %s196, 8
      %s198 = scalar_lea.vmem %s0, %s197
      %s199 = smul.u32 8, %s19
      %s200 = smul.u32 8, %s19
      %p201 = scmp.lt.s32.totalorder %s18, 1
      %s202 = scalar_select %p201, %s18, 1
      %p203 = scmp.lt.s32.totalorder %s200, 7
      %s204 = scalar_select %p203, %s200, 7
      %s205 = smul.addr %s202, 64
      %s206 = sadd.s32 %s204, %s205
      %s207 = smul.addr %s206, 8
      %s208 = scalar_lea.vmem %s3, %s207
      %s209 = smul.u32 8, %s19
      %v210 = vld [vmem:[%s1] sm:$0xff]
      %v211 = vld [vmem:[%s1 + $0x8] sm:$0xff]
      %v212 = vld [vmem:[%s1 + $0x10] sm:$0xff]
      %v213 = vld [vmem:[%s1 + $0x18] sm:$0xff]
      %v214 = vld [vmem:[%s1 + $0x20] sm:$0xff]
      %v215 = vld [vmem:[%s1 + $0x28] sm:$0xff]
      %v216 = vld [vmem:[%s1 + $0x30] sm:$0xff]
      %v217 = vld [vmem:[%s1 + $0x38] sm:$0xff]
      %v218 = vmul.f32 %v210, 0.00048828125
      %v219 = vmul.f32 %v211, 0.00048828125
      %v220 = vmul.f32 %v212, 0.00048828125
      %v221 = vmul.f32 %v213, 0.00048828125
      %v222 = vmul.f32 %v214, 0.00048828125
      %v223 = vmul.f32 %v215, 0.00048828125
      %v224 = vmul.f32 %v216, 0.00048828125
      %v225 = vmul.f32 %v217, 0.00048828125
      %v226 = vld [vmem:[%s2] sm:$0xff]
      %v227 = vld [vmem:[%s2 + $0x8] sm:$0xff]
      %v228 = vld [vmem:[%s2 + $0x10] sm:$0xff]
      %v229 = vld [vmem:[%s2 + $0x18] sm:$0xff]
      %v230 = vld [vmem:[%s2 + $0x20] sm:$0xff]
      %v231 = vld [vmem:[%s2 + $0x28] sm:$0xff]
      %v232 = vld [vmem:[%s2 + $0x30] sm:$0xff]
      %v233 = vld [vmem:[%s2 + $0x38] sm:$0xff]
      %v234 = vmul.f32 %v226, 0.00048828125
      %v235 = vmul.f32 %v227, 0.00048828125
      %v236 = vmul.f32 %v228, 0.00048828125
      %v237 = vmul.f32 %v229, 0.00048828125
      %v238 = vmul.f32 %v230, 0.00048828125
      %v239 = vmul.f32 %v231, 0.00048828125
      %v240 = vmul.f32 %v232, 0.00048828125
      %v241 = vmul.f32 %v233, 0.00048828125
      %v242 = vmul.f32 %v218, %v218
      %v243 = vmul.f32 %v219, %v219
      %v244 = vmul.f32 %v220, %v220
      %v245 = vmul.f32 %v221, %v221
      %v246 = vmul.f32 %v222, %v222
      %v247 = vmul.f32 %v223, %v223
      %v248 = vmul.f32 %v224, %v224
      %v249 = vmul.f32 %v225, %v225
      %v250 = vsub.f32 %v234, %v242
      %v251 = vsub.f32 %v235, %v243
      %v252 = vsub.f32 %v236, %v244
      %v253 = vsub.f32 %v237, %v245
      %v254 = vsub.f32 %v238, %v246
      %v255 = vsub.f32 %v239, %v247
      %v256 = vsub.f32 %v240, %v248
      %v257 = vsub.f32 %v241, %v249
      %v258 = vadd.f32 %v250, 1e-05
      %v259 = vadd.f32 %v251, 1e-05
      %v260 = vadd.f32 %v252, 1e-05
      %v261 = vadd.f32 %v253, 1e-05
      %v262 = vadd.f32 %v254, 1e-05
      %v263 = vadd.f32 %v255, 1e-05
      %v264 = vadd.f32 %v256, 1e-05
      %v265 = vadd.f32 %v257, 1e-05
      %v266 = vrsqrt.pop %v258
      %v267 = vmul.f32 %v266, %v258
      %v268 = vmul.f32 %v267, %v266
      %v269 = vmul.f32 0.5, %v268
      %v270 = vsub.f32 1.5, %v269
      %v271 = vmul.f32 %v266, %v270
      %vm272 = vweird.f32 %v258
      %vm273 = vweird.f32 %v266
      %vm274 = vmor %vm272, %vm273
      %v275 = vsel %vm274, %v266, %v271
      %v276 = vrsqrt.pop %v259
      %v277 = vmul.f32 %v276, %v259
      %v278 = vmul.f32 %v277, %v276
      %v279 = vmul.f32 0.5, %v278
      %v280 = vsub.f32 1.5, %v279
      %v281 = vmul.f32 %v276, %v280
      %vm282 = vweird.f32 %v259
      %vm283 = vweird.f32 %v276
      %vm284 = vmor %vm282, %vm283
      %v285 = vsel %vm284, %v276, %v281
      %v286 = vrsqrt.pop %v260
      %v287 = vmul.f32 %v286, %v260
      %v288 = vmul.f32 %v287, %v286
      %v289 = vmul.f32 0.5, %v288
      %v290 = vsub.f32 1.5, %v289
      %v291 = vmul.f32 %v286, %v290
      %vm292 = vweird.f32 %v260
      %vm293 = vweird.f32 %v286
      %vm294 = vmor %vm292, %vm293
      %v295 = vsel %vm294, %v286, %v291
      %v296 = vrsqrt.pop %v261
      %v297 = vmul.f32 %v296, %v261
      %v298 = vmul.f32 %v297, %v296
      %v299 = vmul.f32 0.5, %v298
      %v300 = vsub.f32 1.5, %v299
      %v301 = vmul.f32 %v296, %v300
      %vm302 = vweird.f32 %v261
      %vm303 = vweird.f32 %v296
      %vm304 = vmor %vm302, %vm303
      %v305 = vsel %vm304, %v296, %v301
      %v306 = vrsqrt.pop %v262
      %v307 = vmul.f32 %v306, %v262
      %v308 = vmul.f32 %v307, %v306
      %v309 = vmul.f32 0.5, %v308
      %v310 = vsub.f32 1.5, %v309
      %v311 = vmul.f32 %v306, %v310
      %vm312 = vweird.f32 %v262
      %vm313 = vweird.f32 %v306
      %vm314 = vmor %vm312, %vm313
      %v315 = vsel %vm314, %v306, %v311
      %v316 = vrsqrt.pop %v263
      %v317 = vmul.f32 %v316, %v263
      %v318 = vmul.f32 %v317, %v316
      %v319 = vmul.f32 0.5, %v318
      %v320 = vsub.f32 1.5, %v319
      %v321 = vmul.f32 %v316, %v320
      %vm322 = vweird.f32 %v263
      %vm323 = vweird.f32 %v316
      %vm324 = vmor %vm322, %vm323
      %v325 = vsel %vm324, %v316, %v321
      %v326 = vrsqrt.pop %v264
      %v327 = vmul.f32 %v326, %v264
      %v328 = vmul.f32 %v327, %v326
      %v329 = vmul.f32 0.5, %v328
      %v330 = vsub.f32 1.5, %v329
      %v331 = vmul.f32 %v326, %v330
      %vm332 = vweird.f32 %v264
      %vm333 = vweird.f32 %v326
      %vm334 = vmor %vm332, %vm333
      %v335 = vsel %vm334, %v326, %v331
      %v336 = vrsqrt.pop %v265
      %v337 = vmul.f32 %v336, %v265
      %v338 = vmul.f32 %v337, %v336
      %v339 = vmul.f32 0.5, %v338
      %v340 = vsub.f32 1.5, %v339
      %v341 = vmul.f32 %v336, %v340
      %vm342 = vweird.f32 %v265
      %vm343 = vweird.f32 %v336
      %vm344 = vmor %vm342, %vm343
      %v345 = vsel %vm344, %v336, %v341
      %v346 = vsub.f32 0.0, %v218
      %v347 = vsub.f32 0.0, %v219
      %v348 = vsub.f32 0.0, %v220
      %v349 = vsub.f32 0.0, %v221
      %v350 = vsub.f32 0.0, %v222
      %v351 = vsub.f32 0.0, %v223
      %v352 = vsub.f32 0.0, %v224
      %v353 = vsub.f32 0.0, %v225
      %v354 = vmul.f32 %v346, %v275
      %v355 = vmul.f32 %v347, %v285
      %v356 = vmul.f32 %v348, %v295
      %v357 = vmul.f32 %v349, %v305
      %v358 = vmul.f32 %v350, %v315
      %v359 = vmul.f32 %v351, %v325
      %v360 = vmul.f32 %v352, %v335
      %v361 = vmul.f32 %v353, %v345
      %v362 = vld [vmem:[%s198] sm:$0xff]
      %v363 = vld [vmem:[%s198 + $0x8] sm:$0xff]
      %v364 = vld [vmem:[%s198 + $0x10] sm:$0xff]
      %v365 = vld [vmem:[%s198 + $0x18] sm:$0xff]
      %v366 = vld [vmem:[%s198 + $0x20] sm:$0xff]
      %v367 = vld [vmem:[%s198 + $0x28] sm:$0xff]
      %v368 = vld [vmem:[%s198 + $0x30] sm:$0xff]
      %v369 = vld [vmem:[%s198 + $0x38] sm:$0xff]
      %v370 = vld [vmem:[%s198 + $0x40] sm:$0xff]
      %v371 = vld [vmem:[%s198 + $0x48] sm:$0xff]
      %v372 = vld [vmem:[%s198 + $0x50] sm:$0xff]
      %v373 = vld [vmem:[%s198 + $0x58] sm:$0xff]
      %v374 = vld [vmem:[%s198 + $0x60] sm:$0xff]
      %v375 = vld [vmem:[%s198 + $0x68] sm:$0xff]
      %v376 = vld [vmem:[%s198 + $0x70] sm:$0xff]
      %v377 = vld [vmem:[%s198 + $0x78] sm:$0xff]
      %v378 = vld [vmem:[%s198 + $0x80] sm:$0xff]
      %v379 = vld [vmem:[%s198 + $0x88] sm:$0xff]
      %v380 = vld [vmem:[%s198 + $0x90] sm:$0xff]
      %v381 = vld [vmem:[%s198 + $0x98] sm:$0xff]
      %v382 = vld [vmem:[%s198 + $0xa0] sm:$0xff]
      %v383 = vld [vmem:[%s198 + $0xa8] sm:$0xff]
      %v384 = vld [vmem:[%s198 + $0xb0] sm:$0xff]
      %v385 = vld [vmem:[%s198 + $0xb8] sm:$0xff]
      %v386 = vld [vmem:[%s198 + $0xc0] sm:$0xff]
      %v387 = vld [vmem:[%s198 + $0xc8] sm:$0xff]
      %v388 = vld [vmem:[%s198 + $0xd0] sm:$0xff]
      %v389 = vld [vmem:[%s198 + $0xd8] sm:$0xff]
      %v390 = vld [vmem:[%s198 + $0xe0] sm:$0xff]
      %v391 = vld [vmem:[%s198 + $0xe8] sm:$0xff]
      %v392 = vld [vmem:[%s198 + $0xf0] sm:$0xff]
      %v393 = vld [vmem:[%s198 + $0xf8] sm:$0xff]
      %v394 = vld [vmem:[%s198 + $0x100] sm:$0xff]
      %v395 = vld [vmem:[%s198 + $0x108] sm:$0xff]
      %v396 = vld [vmem:[%s198 + $0x110] sm:$0xff]
      %v397 = vld [vmem:[%s198 + $0x118] sm:$0xff]
      %v398 = vld [vmem:[%s198 + $0x120] sm:$0xff]
      %v399 = vld [vmem:[%s198 + $0x128] sm:$0xff]
      %v400 = vld [vmem:[%s198 + $0x130] sm:$0xff]
      %v401 = vld [vmem:[%s198 + $0x138] sm:$0xff]
      %v402 = vld [vmem:[%s198 + $0x140] sm:$0xff]
      %v403 = vld [vmem:[%s198 + $0x148] sm:$0xff]
      %v404 = vld [vmem:[%s198 + $0x150] sm:$0xff]
      %v405 = vld [vmem:[%s198 + $0x158] sm:$0xff]
      %v406 = vld [vmem:[%s198 + $0x160] sm:$0xff]
      %v407 = vld [vmem:[%s198 + $0x168] sm:$0xff]
      %v408 = vld [vmem:[%s198 + $0x170] sm:$0xff]
      %v409 = vld [vmem:[%s198 + $0x178] sm:$0xff]
      %v410 = vld [vmem:[%s198 + $0x180] sm:$0xff]
      %v411 = vld [vmem:[%s198 + $0x188] sm:$0xff]
      %v412 = vld [vmem:[%s198 + $0x190] sm:$0xff]
      %v413 = vld [vmem:[%s198 + $0x198] sm:$0xff]
      %v414 = vld [vmem:[%s198 + $0x1a0] sm:$0xff]
      %v415 = vld [vmem:[%s198 + $0x1a8] sm:$0xff]
      %v416 = vld [vmem:[%s198 + $0x1b0] sm:$0xff]
      %v417 = vld [vmem:[%s198 + $0x1b8] sm:$0xff]
      %v418 = vld [vmem:[%s198 + $0x1c0] sm:$0xff]
      %v419 = vld [vmem:[%s198 + $0x1c8] sm:$0xff]
      %v420 = vld [vmem:[%s198 + $0x1d0] sm:$0xff]
      %v421 = vld [vmem:[%s198 + $0x1d8] sm:$0xff]
      %v422 = vld [vmem:[%s198 + $0x1e0] sm:$0xff]
      %v423 = vld [vmem:[%s198 + $0x1e8] sm:$0xff]
      %v424 = vld [vmem:[%s198 + $0x1f0] sm:$0xff]
      %v425 = vld [vmem:[%s198 + $0x1f8] sm:$0xff]
      %427 = vset.pattern.permute.xlu0 0
      %428 = vperm.xlu0 %427, %v275
      %v429 = vpop.permute.xlu0 %428
      %432 = vset.pattern.permute.xlu0 0
      %433 = vperm.xlu0 %432, %v285
      %v434 = vpop.permute.xlu0 %433
      %437 = vset.pattern.permute.xlu0 0
      %438 = vperm.xlu0 %437, %v295
      %v439 = vpop.permute.xlu0 %438
      %442 = vset.pattern.permute.xlu0 0
      %443 = vperm.xlu0 %442, %v305
      %v444 = vpop.permute.xlu0 %443
      %447 = vset.pattern.permute.xlu0 0
      %448 = vperm.xlu0 %447, %v315
      %v449 = vpop.permute.xlu0 %448
      %452 = vset.pattern.permute.xlu0 0
      %453 = vperm.xlu0 %452, %v325
      %v454 = vpop.permute.xlu0 %453
      %457 = vset.pattern.permute.xlu0 0
      %458 = vperm.xlu0 %457, %v335
      %v459 = vpop.permute.xlu0 %458
      %462 = vset.pattern.permute.xlu0 0
      %463 = vperm.xlu0 %462, %v345
      %v464 = vpop.permute.xlu0 %463
      %v466 = vmul.f32 %v362, %v429
      %v467 = vmul.f32 %v363, %v429
      %v468 = vmul.f32 %v364, %v429
      %v469 = vmul.f32 %v365, %v429
      %v470 = vmul.f32 %v366, %v429
      %v471 = vmul.f32 %v367, %v429
      %v472 = vmul.f32 %v368, %v429
      %v473 = vmul.f32 %v369, %v429
      %v474 = vmul.f32 %v370, %v434
      %v475 = vmul.f32 %v371, %v434
      %v476 = vmul.f32 %v372, %v434
      %v477 = vmul.f32 %v373, %v434
      %v478 = vmul.f32 %v374, %v434
      %v479 = vmul.f32 %v375, %v434
      %v480 = vmul.f32 %v376, %v434
      %v481 = vmul.f32 %v377, %v434
      %v482 = vmul.f32 %v378, %v439
      %v483 = vmul.f32 %v379, %v439
      %v484 = vmul.f32 %v380, %v439
      %v485 = vmul.f32 %v381, %v439
      %v486 = vmul.f32 %v382, %v439
      %v487 = vmul.f32 %v383, %v439
      %v488 = vmul.f32 %v384, %v439
      %v489 = vmul.f32 %v385, %v439
      %v490 = vmul.f32 %v386, %v444
      %v491 = vmul.f32 %v387, %v444
      %v492 = vmul.f32 %v388, %v444
      %v493 = vmul.f32 %v389, %v444
      %v494 = vmul.f32 %v390, %v444
      %v495 = vmul.f32 %v391, %v444
      %v496 = vmul.f32 %v392, %v444
      %v497 = vmul.f32 %v393, %v444
      %v498 = vmul.f32 %v394, %v449
      %v499 = vmul.f32 %v395, %v449
      %v500 = vmul.f32 %v396, %v449
      %v501 = vmul.f32 %v397, %v449
      %v502 = vmul.f32 %v398, %v449
      %v503 = vmul.f32 %v399, %v449
      %v504 = vmul.f32 %v400, %v449
      %v505 = vmul.f32 %v401, %v449
      %v506 = vmul.f32 %v402, %v454
      %v507 = vmul.f32 %v403, %v454
      %v508 = vmul.f32 %v404, %v454
      %v509 = vmul.f32 %v405, %v454
      %v510 = vmul.f32 %v406, %v454
      %v511 = vmul.f32 %v407, %v454
      %v512 = vmul.f32 %v408, %v454
      %v513 = vmul.f32 %v409, %v454
      %v514 = vmul.f32 %v410, %v459
      %v515 = vmul.f32 %v411, %v459
      %v516 = vmul.f32 %v412, %v459
      %v517 = vmul.f32 %v413, %v459
      %v518 = vmul.f32 %v414, %v459
      %v519 = vmul.f32 %v415, %v459
      %v520 = vmul.f32 %v416, %v459
      %v521 = vmul.f32 %v417, %v459
      %v522 = vmul.f32 %v418, %v464
      %v523 = vmul.f32 %v419, %v464
      %v524 = vmul.f32 %v420, %v464
      %v525 = vmul.f32 %v421, %v464
      %v526 = vmul.f32 %v422, %v464
      %v527 = vmul.f32 %v423, %v464
      %v528 = vmul.f32 %v424, %v464
      %v529 = vmul.f32 %v425, %v464
      %531 = vset.pattern.permute.xlu0 0
      %532 = vperm.xlu0 %531, %v354
      %v533 = vpop.permute.xlu0 %532
      %536 = vset.pattern.permute.xlu0 0
      %537 = vperm.xlu0 %536, %v355
      %v538 = vpop.permute.xlu0 %537
      %541 = vset.pattern.permute.xlu0 0
      %542 = vperm.xlu0 %541, %v356
      %v543 = vpop.permute.xlu0 %542
      %546 = vset.pattern.permute.xlu0 0
      %547 = vperm.xlu0 %546, %v357
      %v548 = vpop.permute.xlu0 %547
      %551 = vset.pattern.permute.xlu0 0
      %552 = vperm.xlu0 %551, %v358
      %v553 = vpop.permute.xlu0 %552
      %556 = vset.pattern.permute.xlu0 0
      %557 = vperm.xlu0 %556, %v359
      %v558 = vpop.permute.xlu0 %557
      %561 = vset.pattern.permute.xlu0 0
      %562 = vperm.xlu0 %561, %v360
      %v563 = vpop.permute.xlu0 %562
      %566 = vset.pattern.permute.xlu0 0
      %567 = vperm.xlu0 %566, %v361
      %v568 = vpop.permute.xlu0 %567
      %v570 = vadd.f32 %v466, %v533
      %v571 = vadd.f32 %v467, %v533
      %v572 = vadd.f32 %v468, %v533
      %v573 = vadd.f32 %v469, %v533
      %v574 = vadd.f32 %v470, %v533
      %v575 = vadd.f32 %v471, %v533
      %v576 = vadd.f32 %v472, %v533
      %v577 = vadd.f32 %v473, %v533
      %v578 = vadd.f32 %v474, %v538
      %v579 = vadd.f32 %v475, %v538
      %v580 = vadd.f32 %v476, %v538
      %v581 = vadd.f32 %v477, %v538
      %v582 = vadd.f32 %v478, %v538
      %v583 = vadd.f32 %v479, %v538
      %v584 = vadd.f32 %v480, %v538
      %v585 = vadd.f32 %v481, %v538
      %v586 = vadd.f32 %v482, %v543
      %v587 = vadd.f32 %v483, %v543
      %v588 = vadd.f32 %v484, %v543
      %v589 = vadd.f32 %v485, %v543
      %v590 = vadd.f32 %v486, %v543
      %v591 = vadd.f32 %v487, %v543
      %v592 = vadd.f32 %v488, %v543
      %v593 = vadd.f32 %v489, %v543
      %v594 = vadd.f32 %v490, %v548
      %v595 = vadd.f32 %v491, %v548
      %v596 = vadd.f32 %v492, %v548
      %v597 = vadd.f32 %v493, %v548
      %v598 = vadd.f32 %v494, %v548
      %v599 = vadd.f32 %v495, %v548
      %v600 = vadd.f32 %v496, %v548
      %v601 = vadd.f32 %v497, %v548
      %v602 = vadd.f32 %v498, %v553
      %v603 = vadd.f32 %v499, %v553
      %v604 = vadd.f32 %v500, %v553
      %v605 = vadd.f32 %v501, %v553
      %v606 = vadd.f32 %v502, %v553
      %v607 = vadd.f32 %v503, %v553
      %v608 = vadd.f32 %v504, %v553
      %v609 = vadd.f32 %v505, %v553
      %v610 = vadd.f32 %v506, %v558
      %v611 = vadd.f32 %v507, %v558
      %v612 = vadd.f32 %v508, %v558
      %v613 = vadd.f32 %v509, %v558
      %v614 = vadd.f32 %v510, %v558
      %v615 = vadd.f32 %v511, %v558
      %v616 = vadd.f32 %v512, %v558
      %v617 = vadd.f32 %v513, %v558
      %v618 = vadd.f32 %v514, %v563
      %v619 = vadd.f32 %v515, %v563
      %v620 = vadd.f32 %v516, %v563
      %v621 = vadd.f32 %v517, %v563
      %v622 = vadd.f32 %v518, %v563
      %v623 = vadd.f32 %v519, %v563
      %v624 = vadd.f32 %v520, %v563
      %v625 = vadd.f32 %v521, %v563
      %v626 = vadd.f32 %v522, %v568
      %v627 = vadd.f32 %v523, %v568
      %v628 = vadd.f32 %v524, %v568
      %v629 = vadd.f32 %v525, %v568
      %v630 = vadd.f32 %v526, %v568
      %v631 = vadd.f32 %v527, %v568
      %v632 = vadd.f32 %v528, %v568
      %v633 = vadd.f32 %v529, %v568
      %v634 = vmax.f32 %v570, 0.0
      %v635 = vmax.f32 %v571, 0.0
      %v636 = vmax.f32 %v572, 0.0
      %v637 = vmax.f32 %v573, 0.0
      %v638 = vmax.f32 %v574, 0.0
      %v639 = vmax.f32 %v575, 0.0
      %v640 = vmax.f32 %v576, 0.0
      %v641 = vmax.f32 %v577, 0.0
      %v642 = vmax.f32 %v578, 0.0
      %v643 = vmax.f32 %v579, 0.0
      %v644 = vmax.f32 %v580, 0.0
      %v645 = vmax.f32 %v581, 0.0
      %v646 = vmax.f32 %v582, 0.0
      %v647 = vmax.f32 %v583, 0.0
      %v648 = vmax.f32 %v584, 0.0
      %v649 = vmax.f32 %v585, 0.0
      %v650 = vmax.f32 %v586, 0.0
      %v651 = vmax.f32 %v587, 0.0
      %v652 = vmax.f32 %v588, 0.0
      %v653 = vmax.f32 %v589, 0.0
      %v654 = vmax.f32 %v590, 0.0
      %v655 = vmax.f32 %v591, 0.0
      %v656 = vmax.f32 %v592, 0.0
      %v657 = vmax.f32 %v593, 0.0
      %v658 = vmax.f32 %v594, 0.0
      %v659 = vmax.f32 %v595, 0.0
      %v660 = vmax.f32 %v596, 0.0
      %v661 = vmax.f32 %v597, 0.0
      %v662 = vmax.f32 %v598, 0.0
      %v663 = vmax.f32 %v599, 0.0
      %v664 = vmax.f32 %v600, 0.0
      %v665 = vmax.f32 %v601, 0.0
      %v666 = vmax.f32 %v602, 0.0
      %v667 = vmax.f32 %v603, 0.0
      %v668 = vmax.f32 %v604, 0.0
      %v669 = vmax.f32 %v605, 0.0
      %v670 = vmax.f32 %v606, 0.0
      %v671 = vmax.f32 %v607, 0.0
      %v672 = vmax.f32 %v608, 0.0
      %v673 = vmax.f32 %v609, 0.0
      %v674 = vmax.f32 %v610, 0.0
      %v675 = vmax.f32 %v611, 0.0
      %v676 = vmax.f32 %v612, 0.0
      %v677 = vmax.f32 %v613, 0.0
      %v678 = vmax.f32 %v614, 0.0
      %v679 = vmax.f32 %v615, 0.0
      %v680 = vmax.f32 %v616, 0.0
      %v681 = vmax.f32 %v617, 0.0
      %v682 = vmax.f32 %v618, 0.0
      %v683 = vmax.f32 %v619, 0.0
      %v684 = vmax.f32 %v620, 0.0
      %v685 = vmax.f32 %v621, 0.0
      %v686 = vmax.f32 %v622, 0.0
      %v687 = vmax.f32 %v623, 0.0
      %v688 = vmax.f32 %v624, 0.0
      %v689 = vmax.f32 %v625, 0.0
      %v690 = vmax.f32 %v626, 0.0
      %v691 = vmax.f32 %v627, 0.0
      %v692 = vmax.f32 %v628, 0.0
      %v693 = vmax.f32 %v629, 0.0
      %v694 = vmax.f32 %v630, 0.0
      %v695 = vmax.f32 %v631, 0.0
      %v696 = vmax.f32 %v632, 0.0
      %v697 = vmax.f32 %v633, 0.0
      %698 = vst [vmem:[%s208] sm:$0xff] %v634
      %699 = vst [vmem:[%s208 + $0x8] sm:$0xff] %v635
      %700 = vst [vmem:[%s208 + $0x10] sm:$0xff] %v636
      %701 = vst [vmem:[%s208 + $0x18] sm:$0xff] %v637
      %702 = vst [vmem:[%s208 + $0x20] sm:$0xff] %v638
      %703 = vst [vmem:[%s208 + $0x28] sm:$0xff] %v639
      %704 = vst [vmem:[%s208 + $0x30] sm:$0xff] %v640
      %705 = vst [vmem:[%s208 + $0x38] sm:$0xff] %v641
      %706 = vst [vmem:[%s208 + $0x40] sm:$0xff] %v642
      %707 = vst [vmem:[%s208 + $0x48] sm:$0xff] %v643
      %708 = vst [vmem:[%s208 + $0x50] sm:$0xff] %v644
      %709 = vst [vmem:[%s208 + $0x58] sm:$0xff] %v645
      %710 = vst [vmem:[%s208 + $0x60] sm:$0xff] %v646
      %711 = vst [vmem:[%s208 + $0x68] sm:$0xff] %v647
      %712 = vst [vmem:[%s208 + $0x70] sm:$0xff] %v648
      %713 = vst [vmem:[%s208 + $0x78] sm:$0xff] %v649
      %714 = vst [vmem:[%s208 + $0x80] sm:$0xff] %v650
      %715 = vst [vmem:[%s208 + $0x88] sm:$0xff] %v651
      %716 = vst [vmem:[%s208 + $0x90] sm:$0xff] %v652
      %717 = vst [vmem:[%s208 + $0x98] sm:$0xff] %v653
      %718 = vst [vmem:[%s208 + $0xa0] sm:$0xff] %v654
      %719 = vst [vmem:[%s208 + $0xa8] sm:$0xff] %v655
      %720 = vst [vmem:[%s208 + $0xb0] sm:$0xff] %v656
      %721 = vst [vmem:[%s208 + $0xb8] sm:$0xff] %v657
      %722 = vst [vmem:[%s208 + $0xc0] sm:$0xff] %v658
      %723 = vst [vmem:[%s208 + $0xc8] sm:$0xff] %v659
      %724 = vst [vmem:[%s208 + $0xd0] sm:$0xff] %v660
      %725 = vst [vmem:[%s208 + $0xd8] sm:$0xff] %v661
      %726 = vst [vmem:[%s208 + $0xe0] sm:$0xff] %v662
      %727 = vst [vmem:[%s208 + $0xe8] sm:$0xff] %v663
      %728 = vst [vmem:[%s208 + $0xf0] sm:$0xff] %v664
      %729 = vst [vmem:[%s208 + $0xf8] sm:$0xff] %v665
      %730 = vst [vmem:[%s208 + $0x100] sm:$0xff] %v666
      %731 = vst [vmem:[%s208 + $0x108] sm:$0xff] %v667
      %732 = vst [vmem:[%s208 + $0x110] sm:$0xff] %v668
      %733 = vst [vmem:[%s208 + $0x118] sm:$0xff] %v669
      %734 = vst [vmem:[%s208 + $0x120] sm:$0xff] %v670
      %735 = vst [vmem:[%s208 + $0x128] sm:$0xff] %v671
      %736 = vst [vmem:[%s208 + $0x130] sm:$0xff] %v672
      %737 = vst [vmem:[%s208 + $0x138] sm:$0xff] %v673
      %738 = vst [vmem:[%s208 + $0x140] sm:$0xff] %v674
      %739 = vst [vmem:[%s208 + $0x148] sm:$0xff] %v675
      %740 = vst [vmem:[%s208 + $0x150] sm:$0xff] %v676
      %741 = vst [vmem:[%s208 + $0x158] sm:$0xff] %v677
      %742 = vst [vmem:[%s208 + $0x160] sm:$0xff] %v678
      %743 = vst [vmem:[%s208 + $0x168] sm:$0xff] %v679
      %744 = vst [vmem:[%s208 + $0x170] sm:$0xff] %v680
      %745 = vst [vmem:[%s208 + $0x178] sm:$0xff] %v681
      %746 = vst [vmem:[%s208 + $0x180] sm:$0xff] %v682
      %747 = vst [vmem:[%s208 + $0x188] sm:$0xff] %v683
      %748 = vst [vmem:[%s208 + $0x190] sm:$0xff] %v684
      %749 = vst [vmem:[%s208 + $0x198] sm:$0xff] %v685
      %750 = vst [vmem:[%s208 + $0x1a0] sm:$0xff] %v686
      %751 = vst [vmem:[%s208 + $0x1a8] sm:$0xff] %v687
      %752 = vst [vmem:[%s208 + $0x1b0] sm:$0xff] %v688
      %753 = vst [vmem:[%s208 + $0x1b8] sm:$0xff] %v689
      %754 = vst [vmem:[%s208 + $0x1c0] sm:$0xff] %v690
      %755 = vst [vmem:[%s208 + $0x1c8] sm:$0xff] %v691
      %756 = vst [vmem:[%s208 + $0x1d0] sm:$0xff] %v692
      %757 = vst [vmem:[%s208 + $0x1d8] sm:$0xff] %v693
      %758 = vst [vmem:[%s208 + $0x1e0] sm:$0xff] %v694
      %759 = vst [vmem:[%s208 + $0x1e8] sm:$0xff] %v695
      %760 = vst [vmem:[%s208 + $0x1f0] sm:$0xff] %v696
      %761 = vst [vmem:[%s208 + $0x1f8] sm:$0xff] %v697
      %s762 = smul.u32 8, %s19
      %p763 = scmp.lt.s32.totalorder %s18, 1
      %s764 = scalar_select %p763, %s18, 1
      %p765 = scmp.lt.s32.totalorder %s762, 7
      %s766 = scalar_select %p765, %s762, 7
      %s767 = smul.addr %s764, 64
      %s768 = sadd.s32 %s766, %s767
      %s769 = smul.addr %s768, 8
      %s770 = scalar_lea.vmem %s3, %s769
      // Predicated region
      $region33: #{input_preprocess_forward.5} parent=31 // pred_check
        %p771 = pneg %p116
      $region34: #{input_preprocess_forward.5} parent=31 // pred_check_branch
        %773 = sbr.rel (%p771) target = $region36
      $region35: #{input_preprocess_forward.5} parent=31 // pred_region
        %s774 = smul.u32 8, %s19
      $region36: #{input_preprocess_forward.5} parent=31 // pred_fallthru
        _
    $region32: #{input_preprocess_forward.5} parent=5 // pred_fallthru
      _
    %p775 = scmp.le.s32.totalorder 2, %s9
    // Predicated region
    $region37: #{input_preprocess_forward.5} parent=5 // pred_check
      %p776 = pneg %p775
    $region38: #{input_preprocess_forward.5} parent=5 // pred_check_branch
      %778 = sbr.rel (%p776) target = $region40
    $region39: #{input_preprocess_forward.5} parent=5 // pred_region
      %s779 = ssub.s32 %s9, 2
      // Predicated region
      $region41: #{input_preprocess_forward.5} parent=39 // pred_check
        %p780 = pneg %p122
      $region42: #{input_preprocess_forward.5} parent=39 // pred_check_branch
        %782 = sbr.rel (%p780) target = $region44
      $region43: #{input_preprocess_forward.5} parent=39 // pred_region
        %s783 = smul.u32 8, %s21
        %p784 = scmp.lt.s32.totalorder %s20, 1
        %s785 = scalar_select %p784, %s20, 1
        %p786 = scmp.lt.s32.totalorder %s783, 7
        %s787 = scalar_select %p786, %s783, 7
        %s788 = smul.addr %s785, 64
        %s789 = sadd.s32 %s787, %s788
        %s790 = smul.addr %s789, 8
        %s791 = scalar_lea.vmem %s3, %s790
      $region44: #{input_preprocess_forward.5} parent=39 // pred_fallthru
        _
    $region40: #{input_preprocess_forward.5} parent=5 // pred_fallthru
      _
  $region6: #{input_preprocess_forward.5} parent=0 // loop_footer
    %s13 = sadd.s32 1, %s9
  $region7: #{input_preprocess_forward.5} parent=0 // loop_footer_branch
    %8 = sbr.rel target = $region3
  $region8: #{input_preprocess_forward.5} parent=0 // loop_exit
    _

// kernel: input_preprocess_forward.4
$region0: #{input_preprocess_forward.4}
  #allocation0 [shape = 'u32[]', space=smem, size = 0x4, offset = 0x4, fixed_abs, tag = 'smem constant byte address 0x4 - core index']
  #allocation1 [shape = 'u32[72,128]{1,0:T(1,128)}', space=vmem, size = 0x9000, scoped, tag = 'internal scratch']
  #allocation2 [shape = 'f32[1,1]{1,0:T(1,128)S(1)}', space=vmem, size = 0x200, scoped, tag = 'scoped memory for input_preprocess_forward.4']
  #allocation3 [shape = 'f32[1,1]{1,0:T(1,128)S(1)}', space=vmem, size = 0x200, scoped, tag = 'scoped memory for input_preprocess_forward.4']
  %s0 = inlined_call_operand.vmem [shape: f32[2,16,1024], index: 0, kind: input, shape index: {}]
  %s1 = inlined_call_operand.vmem [shape: f32[2,1,1024], index: 1, kind: input, shape index: {}]
  %s2 = inlined_call_operand.vmem [shape: f32[16,1], index: 2, kind: input, shape index: {}]
  %s3 = inlined_call_operand.vmem [shape: f32[16,1], index: 3, kind: input, shape index: {}]
  %s4 = inlined_call_operand.<no memory space> [shape: f32[1,1], index: 4, kind: input, shape index: {}]
  %s5 = inlined_call_operand.<no memory space> [shape: f32[1,1], index: 5, kind: input, shape index: {}]
  %s6 = inlined_call_operand.vmem [shape: f32[64,16], index: 6, kind: input, shape index: {}]
  %s7 = inlined_call_operand.vmem [shape: f32[64,1], index: 7, kind: input, shape index: {}]
  %s8 = inlined_call_operand.vmem [shape: f32[2,64,1024], index: 8, kind: output, shape index: {0}]
  %s9 = inlined_call_operand.vmem [shape: f32[2,64,1], index: 9, kind: output, shape index: {1}]
  %s10 = inlined_call_operand.vmem [shape: f32[2,64,1], index: 10, kind: output, shape index: {2}]
  %11 = xla_tuple %s8, %s9, %s10
  %s12 = sld [smem:[#allocation0]]
  $region81: #{input_preprocess_forward.4} parent=0
    _
  %s14 = ssub.s32 1, %s12
  %s15 = scalar_select 0, %s14, %s12
  %v16 = vstv %s4
  %17 = vst [vmem:[#allocation2] sm:$0x1] %v16
  %v18 = vstv %s5
  %19 = vst [vmem:[#allocation3] sm:$0x1] %v18
  loop: start=0, step=1, limit=4
  $region2: #{input_preprocess_forward.4} parent=0 // loop_pre_header
    _
  $region3: #{input_preprocess_forward.4} parent=0 // loop_header
    %s21 = sphi 0, %s25
    %p22 = scmp.ge.s32.totalorder %s21, 4
    %s28 = sphi 0, %s40
    %s29 = sphi 0, %s36
    %s30 = sphi 0, %s28
    %s31 = sphi 0, %s29
    %s32 = sphi 0, %s30
    %s33 = sphi 0, %s31
    %s45 = sphi 0, %s47
    %s48 = sphi 0, %s45
    %s49 = sphi 0, %s48
    %s65 = sphi 0, %s49
    %s73 = sphi 0, %s75
    %s76 = sphi 0, %s73
    %s77 = sphi 0, %s76
    %s93 = sphi 0, %s77
    %s97 = sphi 0, %s97
    %s99 = sphi 0, %s97
    %s100 = sphi 0, %s99
    %s114 = sphi 0, %s100
    %s118 = sphi 0, %s118
    %s120 = sphi 0, %s118
    %s121 = sphi 0, %s120
    %s135 = sphi 0, %s121
    %s139 = sphi 0, %s139
    %s141 = sphi 0, %s139
    %s142 = sphi 0, %s141
    %s156 = sphi 0, %s142
    %s160 = sphi 0, %s160
    %s162 = sphi 0, %s160
    %s163 = sphi 0, %s162
    %s177 = sphi 0, %s163
    %s181 = sphi 0, %s181
    %s183 = sphi 0, %s181
    %s184 = sphi 0, %s183
    %s198 = sphi 0, %s184
    %s202 = sphi 0, %s202
    %s204 = sphi 0, %s202
    %s205 = sphi 0, %s204
    %s219 = sphi 0, %s205
    %s227 = sphi 0, %s229
    %s230 = sphi 0, %s227
    %s231 = sphi 0, %s230
    %s247 = sphi 0, %s231
    %s255 = sphi 0, %s257
    %s258 = sphi 0, %s255
    %s259 = sphi 0, %s258
    %s275 = sphi 0, %s259
    %s283 = sphi 0, %s285
    %s286 = sphi 0, %s283
    %s287 = sphi 0, %s286
    %s303 = sphi 0, %s287
  $region4: #{input_preprocess_forward.4} parent=0 // loop_header_branch
    %24 = sbr.rel (%p22) target = $region8
  $region5: #{input_preprocess_forward.4} parent=0 // loop_body
    %s26 = ssub.s32 %s21, 1
    %s27 = ssub.s32 %s21, 2
    %s34 = sadd.s32 1, %s29
    %p35 = scmp.ge.s32.totalorder %s34, 1
    %s36 = scalar_select %p35, 0, %s34
    %s37 = sadd.s32 1, %s28
    %s38 = scalar_select %p35, %s37, %s28
    %p39 = scmp.ge.s32.totalorder %s38, 2
    %s40 = scalar_select %p39, 0, %s38
    %s41 = ssub.s32 %s28, %s40
    %s42 = ssub.s32 %s29, %s36
    %s43 = sor.u32 %s41, %s42
    %p44 = scmp.eq.s32.totalorder %s43, 0
    %s46 = sadd.s32 %s45, 1
    %s47 = scalar_select %p44, %s45, %s46
    %p50 = pneg %p44
    %p51 = scmp.eq.s32.totalorder %s21, 1
    %p52 = por %p50, %p51
    %p53 = scmp.ne.s32.totalorder %s45, %s48
    %p54 = scmp.eq.s32.totalorder %s21, 0
    %p55 = por %p53, %p54
    %p56 = scmp.ne.s32.totalorder %s45, %s48
    %p57 = scmp.eq.s32.totalorder %s26, 1
    %p58 = por %p56, %p57
    %p59 = scmp.ne.s32.totalorder %s48, %s49
    %p60 = scmp.eq.s32.totalorder %s26, 0
    %p61 = por %p59, %p60
    %p62 = scmp.ne.s32.totalorder %s48, %s49
    %p63 = scmp.eq.s32.totalorder %s27, 1
    %p64 = por %p62, %p63
    %p66 = scmp.ne.s32.totalorder %s49, %s65
    %p67 = scmp.eq.s32.totalorder %s27, 0
    %p68 = por %p66, %p67
    %s69 = ssub.s32 %s28, %s40
    %s70 = ssub.s32 %s29, %s36
    %s71 = sor.u32 %s69, %s70
    %p72 = scmp.eq.s32.totalorder %s71, 0
    %s74 = sadd.s32 %s73, 1
    %s75 = scalar_select %p72, %s73, %s74
    %p78 = pneg %p72
    %p79 = scmp.eq.s32.totalorder %s21, 1
    %p80 = por %p78, %p79
    %p81 = scmp.ne.s32.totalorder %s73, %s76
    %p82 = scmp.eq.s32.totalorder %s21, 0
    %p83 = por %p81, %p82
    %p84 = scmp.ne.s32.totalorder %s73, %s76
    %p85 = scmp.eq.s32.totalorder %s26, 1
    %p86 = por %p84, %p85
    %p87 = scmp.ne.s32.totalorder %s76, %s77
    %p88 = scmp.eq.s32.totalorder %s26, 0
    %p89 = por %p87, %p88
    %p90 = scmp.ne.s32.totalorder %s76, %s77
    %p91 = scmp.eq.s32.totalorder %s27, 1
    %p92 = por %p90, %p91
    %p94 = scmp.ne.s32.totalorder %s77, %s93
    %p95 = scmp.eq.s32.totalorder %s27, 0
    %p96 = por %p94, %p95
    %s98 = sadd.s32 %s97, 1
    %p101 = scmp.eq.s32.totalorder %s21, 1
    %p102 = scmp.ne.s32.totalorder %s97, %s99
    %p103 = scmp.eq.s32.totalorder %s21, 0
    %p104 = por %p102, %p103
    %p105 = scmp.ne.s32.totalorder %s97, %s99
    %p106 = scmp.eq.s32.totalorder %s26, 1
    %p107 = por %p105, %p106
    %p108 = scmp.ne.s32.totalorder %s99, %s100
    %p109 = scmp.eq.s32.totalorder %s26, 0
    %p110 = por %p108, %p109
    %p111 = scmp.ne.s32.totalorder %s99, %s100
    %p112 = scmp.eq.s32.totalorder %s27, 1
    %p113 = por %p111, %p112
    %p115 = scmp.ne.s32.totalorder %s100, %s114
    %p116 = scmp.eq.s32.totalorder %s27, 0
    %p117 = por %p115, %p116
    %s119 = sadd.s32 %s118, 1
    %p122 = scmp.eq.s32.totalorder %s21, 1
    %p123 = scmp.ne.s32.totalorder %s118, %s120
    %p124 = scmp.eq.s32.totalorder %s21, 0
    %p125 = por %p123, %p124
    %p126 = scmp.ne.s32.totalorder %s118, %s120
    %p127 = scmp.eq.s32.totalorder %s26, 1
    %p128 = por %p126, %p127
    %p129 = scmp.ne.s32.totalorder %s120, %s121
    %p130 = scmp.eq.s32.totalorder %s26, 0
    %p131 = por %p129, %p130
    %p132 = scmp.ne.s32.totalorder %s120, %s121
    %p133 = scmp.eq.s32.totalorder %s27, 1
    %p134 = por %p132, %p133
    %p136 = scmp.ne.s32.totalorder %s121, %s135
    %p137 = scmp.eq.s32.totalorder %s27, 0
    %p138 = por %p136, %p137
    %s140 = sadd.s32 %s139, 1
    %p143 = scmp.eq.s32.totalorder %s21, 1
    %p144 = scmp.ne.s32.totalorder %s139, %s141
    %p145 = scmp.eq.s32.totalorder %s21, 0
    %p146 = por %p144, %p145
    %p147 = scmp.ne.s32.totalorder %s139, %s141
    %p148 = scmp.eq.s32.totalorder %s26, 1
    %p149 = por %p147, %p148
    %p150 = scmp.ne.s32.totalorder %s141, %s142
    %p151 = scmp.eq.s32.totalorder %s26, 0
    %p152 = por %p150, %p151
    %p153 = scmp.ne.s32.totalorder %s141, %s142
    %p154 = scmp.eq.s32.totalorder %s27, 1
    %p155 = por %p153, %p154
    %p157 = scmp.ne.s32.totalorder %s142, %s156
    %p158 = scmp.eq.s32.totalorder %s27, 0
    %p159 = por %p157, %p158
    %s161 = sadd.s32 %s160, 1
    %p164 = scmp.eq.s32.totalorder %s21, 1
    %p165 = scmp.ne.s32.totalorder %s160, %s162
    %p166 = scmp.eq.s32.totalorder %s21, 0
    %p167 = por %p165, %p166
    %p168 = scmp.ne.s32.totalorder %s160, %s162
    %p169 = scmp.eq.s32.totalorder %s26, 1
    %p170 = por %p168, %p169
    %p171 = scmp.ne.s32.totalorder %s162, %s163
    %p172 = scmp.eq.s32.totalorder %s26, 0
    %p173 = por %p171, %p172
    %p174 = scmp.ne.s32.totalorder %s162, %s163
    %p175 = scmp.eq.s32.totalorder %s27, 1
    %p176 = por %p174, %p175
    %p178 = scmp.ne.s32.totalorder %s163, %s177
    %p179 = scmp.eq.s32.totalorder %s27, 0
    %p180 = por %p178, %p179
    %s182 = sadd.s32 %s181, 1
    %p185 = scmp.eq.s32.totalorder %s21, 1
    %p186 = scmp.ne.s32.totalorder %s181, %s183
    %p187 = scmp.eq.s32.totalorder %s21, 0
    %p188 = por %p186, %p187
    %p189 = scmp.ne.s32.totalorder %s181, %s183
    %p190 = scmp.eq.s32.totalorder %s26, 1
    %p191 = por %p189, %p190
    %p192 = scmp.ne.s32.totalorder %s183, %s184
    %p193 = scmp.eq.s32.totalorder %s26, 0
    %p194 = por %p192, %p193
    %p195 = scmp.ne.s32.totalorder %s183, %s184
    %p196 = scmp.eq.s32.totalorder %s27, 1
    %p197 = por %p195, %p196
    %p199 = scmp.ne.s32.totalorder %s184, %s198
    %p200 = scmp.eq.s32.totalorder %s27, 0
    %p201 = por %p199, %p200
    %s203 = sadd.s32 %s202, 1
    %p206 = scmp.eq.s32.totalorder %s21, 1
    %p207 = scmp.ne.s32.totalorder %s202, %s204
    %p208 = scmp.eq.s32.totalorder %s21, 0
    %p209 = por %p207, %p208
    %p210 = scmp.ne.s32.totalorder %s202, %s204
    %p211 = scmp.eq.s32.totalorder %s26, 1
    %p212 = por %p210, %p211
    %p213 = scmp.ne.s32.totalorder %s204, %s205
    %p214 = scmp.eq.s32.totalorder %s26, 0
    %p215 = por %p213, %p214
    %p216 = scmp.ne.s32.totalorder %s204, %s205
    %p217 = scmp.eq.s32.totalorder %s27, 1
    %p218 = por %p216, %p217
    %p220 = scmp.ne.s32.totalorder %s205, %s219
    %p221 = scmp.eq.s32.totalorder %s27, 0
    %p222 = por %p220, %p221
    %s223 = ssub.s32 %s28, %s40
    %s224 = ssub.s32 %s29, %s36
    %s225 = sor.u32 %s223, %s224
    %p226 = scmp.eq.s32.totalorder %s225, 0
    %s228 = sadd.s32 %s227, 1
    %s229 = scalar_select %p226, %s227, %s228
    %p232 = pneg %p226
    %p233 = scmp.eq.s32.totalorder %s21, 1
    %p234 = por %p232, %p233
    %p235 = scmp.ne.s32.totalorder %s227, %s230
    %p236 = scmp.eq.s32.totalorder %s21, 0
    %p237 = por %p235, %p236
    %p238 = scmp.ne.s32.totalorder %s227, %s230
    %p239 = scmp.eq.s32.totalorder %s26, 1
    %p240 = por %p238, %p239
    %p241 = scmp.ne.s32.totalorder %s230, %s231
    %p242 = scmp.eq.s32.totalorder %s26, 0
    %p243 = por %p241, %p242
    %p244 = scmp.ne.s32.totalorder %s230, %s231
    %p245 = scmp.eq.s32.totalorder %s27, 1
    %p246 = por %p244, %p245
    %p248 = scmp.ne.s32.totalorder %s231, %s247
    %p249 = scmp.eq.s32.totalorder %s27, 0
    %p250 = por %p248, %p249
    %s251 = sadd.s32 %s28, %s29
    %s252 = sadd.s32 %s40, %s36
    %s253 = ssub.s32 %s251, %s252
    %p254 = scmp.eq.s32.totalorder %s253, 0
    %s256 = sadd.s32 %s255, 1
    %s257 = scalar_select %p254, %s255, %s256
    %p260 = pneg %p254
    %p261 = scmp.eq.s32.totalorder %s21, 1
    %p262 = por %p260, %p261
    %p263 = scmp.ne.s32.totalorder %s255, %s258
    %p264 = scmp.eq.s32.totalorder %s21, 0
    %p265 = por %p263, %p264
    %p266 = scmp.ne.s32.totalorder %s255, %s258
    %p267 = scmp.eq.s32.totalorder %s26, 1
    %p268 = por %p266, %p267
    %p269 = scmp.ne.s32.totalorder %s258, %s259
    %p270 = scmp.eq.s32.totalorder %s26, 0
    %p271 = por %p269, %p270
    %p272 = scmp.ne.s32.totalorder %s258, %s259
    %p273 = scmp.eq.s32.totalorder %s27, 1
    %p274 = por %p272, %p273
    %p276 = scmp.ne.s32.totalorder %s259, %s275
    %p277 = scmp.eq.s32.totalorder %s27, 0
    %p278 = por %p276, %p277
    %s279 = sadd.s32 %s28, %s29
    %s280 = sadd.s32 %s40, %s36
    %s281 = ssub.s32 %s279, %s280
    %p282 = scmp.eq.s32.totalorder %s281, 0
    %s284 = sadd.s32 %s283, 1
    %s285 = scalar_select %p282, %s283, %s284
    %p288 = pneg %p282
    %p289 = scmp.eq.s32.totalorder %s21, 1
    %p290 = por %p288, %p289
    %p291 = scmp.ne.s32.totalorder %s283, %s286
    %p292 = scmp.eq.s32.totalorder %s21, 0
    %p293 = por %p291, %p292
    %p294 = scmp.ne.s32.totalorder %s283, %s286
    %p295 = scmp.eq.s32.totalorder %s26, 1
    %p296 = por %p294, %p295
    %p297 = scmp.ne.s32.totalorder %s286, %s287
    %p298 = scmp.eq.s32.totalorder %s26, 0
    %p299 = por %p297, %p298
    %p300 = scmp.ne.s32.totalorder %s286, %s287
    %p301 = scmp.eq.s32.totalorder %s27, 1
    %p302 = por %p300, %p301
    %p304 = scmp.ne.s32.totalorder %s287, %s303
    %p305 = scmp.eq.s32.totalorder %s27, 0
    %p306 = por %p304, %p305
    %p307 = scmp.le.s32.totalorder 1, %s21
    %p308 = scmp.lt.s32.totalorder %s21, 3
    %p309 = pnand %p307, %p308
    %p310 = pneg %p309
    // Predicated region
    $region9: #{input_preprocess_forward.4} parent=5 // pred_check
      _
    $region10: #{input_preprocess_forward.4} parent=5 // pred_check_branch
      %312 = sbr.rel (%p309) target = $region12
    $region11: #{input_preprocess_forward.4} parent=5 // pred_region
      %s313 = ssub.s32 %s21, 1
      // Predicated region
      $region13: #{input_preprocess_forward.4} parent=11 // pred_check
        %p314 = pneg %p110
      $region14: #{input_preprocess_forward.4} parent=11 // pred_check_branch
        %316 = sbr.rel (%p314) target = $region16
      $region15: #{input_preprocess_forward.4} parent=11 // pred_region
        _
      $region16: #{input_preprocess_forward.4} parent=11 // pred_fallthru
        _
      // Predicated region
      $region17: #{input_preprocess_forward.4} parent=11 // pred_check
        %p317 = pneg %p131
      $region18: #{input_preprocess_forward.4} parent=11 // pred_check_branch
        %319 = sbr.rel (%p317) target = $region20
      $region19: #{input_preprocess_forward.4} parent=11 // pred_region
        _
      $region20: #{input_preprocess_forward.4} parent=11 // pred_fallthru
        _
      // Predicated region
      $region21: #{input_preprocess_forward.4} parent=11 // pred_check
        %p320 = pneg %p152
      $region22: #{input_preprocess_forward.4} parent=11 // pred_check_branch
        %322 = sbr.rel (%p320) target = $region24
      $region23: #{input_preprocess_forward.4} parent=11 // pred_region
        _
      $region24: #{input_preprocess_forward.4} parent=11 // pred_fallthru
        _
      // Predicated region
      $region25: #{input_preprocess_forward.4} parent=11 // pred_check
        %p323 = pneg %p173
      $region26: #{input_preprocess_forward.4} parent=11 // pred_check_branch
        %325 = sbr.rel (%p323) target = $region28
      $region27: #{input_preprocess_forward.4} parent=11 // pred_region
        _
      $region28: #{input_preprocess_forward.4} parent=11 // pred_fallthru
        _
      // Predicated region
      $region29: #{input_preprocess_forward.4} parent=11 // pred_check
        %p326 = pneg %p194
      $region30: #{input_preprocess_forward.4} parent=11 // pred_check_branch
        %328 = sbr.rel (%p326) target = $region32
      $region31: #{input_preprocess_forward.4} parent=11 // pred_region
        _
      $region32: #{input_preprocess_forward.4} parent=11 // pred_fallthru
        _
      // Predicated region
      $region33: #{input_preprocess_forward.4} parent=11 // pred_check
        %p329 = pneg %p215
      $region34: #{input_preprocess_forward.4} parent=11 // pred_check_branch
        %331 = sbr.rel (%p329) target = $region36
      $region35: #{input_preprocess_forward.4} parent=11 // pred_region
        _
      $region36: #{input_preprocess_forward.4} parent=11 // pred_fallthru
        _
    $region12: #{input_preprocess_forward.4} parent=5 // pred_fallthru
      _
    %p332 = scmp.lt.s32.totalorder %s21, 2
    // Predicated region
    $region37: #{input_preprocess_forward.4} parent=5 // pred_check
      %p333 = pneg %p332
    $region38: #{input_preprocess_forward.4} parent=5 // pred_check_branch
      %335 = sbr.rel (%p333) target = $region40
    $region39: #{input_preprocess_forward.4} parent=5 // pred_region
      // Predicated region
      $region41: #{input_preprocess_forward.4} parent=39 // pred_check
        %p336 = pneg %p55
      $region42: #{input_preprocess_forward.4} parent=39 // pred_check_branch
        %338 = sbr.rel (%p336) target = $region44
      $region43: #{input_preprocess_forward.4} parent=39 // pred_region
        %s339 = smul.u32 8, %s29
        %p340 = scmp.lt.s32.totalorder %s28, 1
        %s341 = scalar_select %p340, %s28, 1
        %p342 = scmp.lt.s32.totalorder %s339, 7
        %s343 = scalar_select %p342, %s339, 7
        %s344 = smul.addr %s341, 16
        %s345 = sadd.s32 %s343, %s344
        %s346 = smul.addr %s345, 8
        %s347 = scalar_lea.vmem %s0, %s346
        %s348 = smul.u32 8, %s29
      $region44: #{input_preprocess_forward.4} parent=39 // pred_fallthru
        _
      // Predicated region
      $region45: #{input_preprocess_forward.4} parent=39 // pred_check
        %p349 = pneg %p83
      $region46: #{input_preprocess_forward.4} parent=39 // pred_check_branch
        %351 = sbr.rel (%p349) target = $region48
      $region47: #{input_preprocess_forward.4} parent=39 // pred_region
        %s352 = smul.u32 8, %s29
        %p353 = scmp.lt.s32.totalorder %s28, 1
        %s354 = scalar_select %p353, %s28, 1
        %p355 = scmp.lt.s32.totalorder %s352, 7
        %s356 = scalar_select %p355, %s352, 7
        %s357 = smul.addr %s354, 8
        %s358 = sadd.s32 %s356, %s357
        %s359 = scalar_lea.vmem %s1, %s358
        %s360 = smul.u32 8, %s29
      $region48: #{input_preprocess_forward.4} parent=39 // pred_fallthru
        _
    $region40: #{input_preprocess_forward.4} parent=5 // pred_fallthru
      _
    %p361 = scmp.le.s32.totalorder 1, %s21
    %p362 = scmp.lt.s32.totalorder %s21, 3
    %p363 = pnand %p361, %p362
    %p364 = pneg %p363
    // Predicated region
    $region49: #{input_preprocess_forward.4} parent=5 // pred_check
      _
    $region50: #{input_preprocess_forward.4} parent=5 // pred_check_branch
      %366 = sbr.rel (%p363) target = $region52
    $region51: #{input_preprocess_forward.4} parent=5 // pred_region
      %s367 = ssub.s32 %s21, 1
      %s368 = smul.u32 8, %s31
      %p369 = scmp.lt.s32.totalorder %s30, 1
      %s370 = scalar_select %p369, %s30, 1
      %p371 = scmp.lt.s32.totalorder %s368, 7
      %s372 = scalar_select %p371, %s368, 7
      %s373 = smul.addr %s370, 16
      %s374 = sadd.s32 %s372, %s373
      %s375 = smul.addr %s374, 8
      %s376 = scalar_lea.vmem %s0, %s375
      %p377 = pneg %p61
      %p378 = pneg %p58
      %s379 = smul.u32 8, %s31
      %p380 = scmp.lt.s32.totalorder %s30, 1
      %s381 = scalar_select %p380, %s30, 1
      %p382 = scmp.lt.s32.totalorder %s379, 7
      %s383 = scalar_select %p382, %s379, 7
      %s384 = smul.addr %s381, 8
      %s385 = sadd.s32 %s383, %s384
      %s386 = scalar_lea.vmem %s1, %s385
      %p387 = pneg %p89
      %p388 = pneg %p86
      %p389 = pneg %p110
      %p390 = pneg %p107
      %p391 = pneg %p131
      %p392 = pneg %p128
      %p393 = pneg %p152
      %p394 = pneg %p149
      %p395 = pneg %p173
      %p396 = pneg %p170
      %p397 = pneg %p194
      %p398 = pneg %p191
      %p399 = pneg %p215
      %p400 = pneg %p212
      %p401 = pneg %p243
      %p402 = pneg %p240
      %s403 = smul.u32 8, %s31
      %p404 = scmp.lt.s32.totalorder %s30, 1
      %s405 = scalar_select %p404, %s30, 1
      %p406 = scmp.lt.s32.totalorder %s403, 7
      %s407 = scalar_select %p406, %s403, 7
      %s408 = smul.addr %s405, 64
      %s409 = sadd.s32 %s407, %s408
      %s410 = smul.addr %s409, 8
      %s411 = scalar_lea.vmem %s8, %s410
      %p412 = pneg %p271
      %p413 = pneg %p268
      %s414 = sadd.s32 %s30, %s31
      %p415 = scmp.lt.s32.totalorder %s414, 1
      %s416 = scalar_select %p415, %s414, 1
      %s417 = smul.addr %s416, 8
      %s418 = smul.addr %s417, 8
      %s419 = scalar_lea.vmem %s9, %s418
      %p420 = pneg %p299
      %p421 = pneg %p296
      %s422 = sadd.s32 %s30, %s31
      %p423 = scmp.lt.s32.totalorder %s422, 1
      %s424 = scalar_select %p423, %s422, 1
      %s425 = smul.addr %s424, 8
      %s426 = smul.addr %s425, 8
      %s427 = scalar_lea.vmem %s10, %s426
      %s428 = smul.u32 8, %s31
      %p429 = scmp.lt.s32.totalorder %s30, 1
      %s430 = scalar_select %p429, %s30, 1
      %p431 = scmp.lt.s32.totalorder %s428, 7
      %s432 = scalar_select %p431, %s428, 7
      %s433 = smul.addr %s430, 16
      %s434 = sadd.s32 %s432, %s433
      %s435 = smul.addr %s434, 8
      %s436 = scalar_lea.vmem %s0, %s435
      %s437 = smul.u32 8, %s31
      %s438 = smul.u32 8, %s31
      %p439 = scmp.lt.s32.totalorder %s30, 1
      %s440 = scalar_select %p439, %s30, 1
      %p441 = scmp.lt.s32.totalorder %s438, 7
      %s442 = scalar_select %p441, %s438, 7
      %s443 = smul.addr %s440, 8
      %s444 = sadd.s32 %s442, %s443
      %s445 = scalar_lea.vmem %s1, %s444
      %s446 = smul.u32 8, %s31
      %s447 = smul.u32 8, %s31
      %p448 = scmp.lt.s32.totalorder %s30, 1
      %s449 = scalar_select %p448, %s30, 1
      %p450 = scmp.lt.s32.totalorder %s447, 7
      %s451 = scalar_select %p450, %s447, 7
      %s452 = smul.addr %s449, 64
      %s453 = sadd.s32 %s451, %s452
      %s454 = smul.addr %s453, 8
      %s455 = scalar_lea.vmem %s8, %s454
      %s456 = smul.u32 8, %s31
      %s457 = sadd.s32 %s30, %s31
      %p458 = scmp.lt.s32.totalorder %s457, 1
      %s459 = scalar_select %p458, %s457, 1
      %s460 = smul.addr %s459, 8
      %s461 = smul.addr %s460, 8
      %s462 = scalar_lea.vmem %s9, %s461
      %s463 = sadd.s32 %s30, %s31
      %s464 = sadd.s32 %s30, %s31
      %p465 = scmp.lt.s32.totalorder %s464, 1
      %s466 = scalar_select %p465, %s464, 1
      %s467 = smul.addr %s466, 8
      %s468 = smul.addr %s467, 8
      %s469 = scalar_lea.vmem %s10, %s468
      %s470 = sadd.s32 %s30, %s31
      %v471 = vld [vmem:[%s2] sm:$0xff]
      %v472 = vld [vmem:[%s2 + $0x8] sm:$0xff]
      %v473 = vmul.f32 %v471, 0.00048828125
      %v474 = vmul.f32 %v472, 0.00048828125
      %v475 = vld [vmem:[%s3] sm:$0xff]
      %v476 = vld [vmem:[%s3 + $0x8] sm:$0xff]
      %v477 = vmul.f32 %v475, 0.00048828125
      %v478 = vmul.f32 %v476, 0.00048828125
      %v479 = vmul.f32 %v473, %v473
      %v480 = vmul.f32 %v474, %v474
      %v481 = vsub.f32 %v477, %v479
      %v482 = vsub.f32 %v478, %v480
      %v483 = vadd.f32 %v481, 1e-05
      %v484 = vadd.f32 %v482, 1e-05
      %v485 = vrsqrt.pop %v483
      %v486 = vmul.f32 %v485, %v483
      %v487 = vmul.f32 %v486, %v485
      %v488 = vmul.f32 0.5, %v487
      %v489 = vsub.f32 1.5, %v488
      %v490 = vmul.f32 %v485, %v489
      %vm491 = vweird.f32 %v483
      %vm492 = vweird.f32 %v485
      %vm493 = vmor %vm491, %vm492
      %v494 = vsel %vm493, %v485, %v490
      %v495 = vrsqrt.pop %v484
      %v496 = vmul.f32 %v495, %v484
      %v497 = vmul.f32 %v496, %v495
      %v498 = vmul.f32 0.5, %v497
      %v499 = vsub.f32 1.5, %v498
      %v500 = vmul.f32 %v495, %v499
      %vm501 = vweird.f32 %v484
      %vm502 = vweird.f32 %v495
      %vm503 = vmor %vm501, %vm502
      %v504 = vsel %vm503, %v495, %v500
      %v505 = vsub.f32 0.0, %v473
      %v506 = vsub.f32 0.0, %v474
      %v507 = vmul.f32 %v505, %v494
      %v508 = vmul.f32 %v506, %v504
      %v509 = vld [vmem:[#allocation2] sm:$0x1]
      %v510 = vmul.f32 %v509, 0.00048828125
      %v511 = vld [vmem:[#allocation3] sm:$0x1]
      %v512 = vmul.f32 %v511, 0.00048828125
      %v513 = vmul.f32 %v510, %v510
      %v514 = vsub.f32 %v512, %v513
      %v515 = vadd.f32 %v514, 1e-05
      %v516 = vrsqrt.pop %v515
      %v517 = vmul.f32 %v516, %v515
      %v518 = vmul.f32 %v517, %v516
      %v519 = vmul.f32 0.5, %v518
      %v520 = vsub.f32 1.5, %v519
      %v521 = vmul.f32 %v516, %v520
      %vm522 = vweird.f32 %v515
      %vm523 = vweird.f32 %v516
      %vm524 = vmor %vm522, %vm523
      %v525 = vsel %vm524, %v516, %v521
      %v526 = vsub.f32 0.0, %v510
      %v527 = vmul.f32 %v526, %v525
      %v528 = vld [vmem:[%s436] sm:$0xff]
      %v529 = vld [vmem:[%s436 + $0x8] sm:$0xff]
      %v530 = vld [vmem:[%s436 + $0x10] sm:$0xff]
      %v531 = vld [vmem:[%s436 + $0x18] sm:$0xff]
      %v532 = vld [vmem:[%s436 + $0x20] sm:$0xff]
      %v533 = vld [vmem:[%s436 + $0x28] sm:$0xff]
      %v534 = vld [vmem:[%s436 + $0x30] sm:$0xff]
      %v535 = vld [vmem:[%s436 + $0x38] sm:$0xff]
      %v536 = vld [vmem:[%s436 + $0x40] sm:$0xff]
      %v537 = vld [vmem:[%s436 + $0x48] sm:$0xff]
      %v538 = vld [vmem:[%s436 + $0x50] sm:$0xff]
      %v539 = vld [vmem:[%s436 + $0x58] sm:$0xff]
      %v540 = vld [vmem:[%s436 + $0x60] sm:$0xff]
      %v541 = vld [vmem:[%s436 + $0x68] sm:$0xff]
      %v542 = vld [vmem:[%s436 + $0x70] sm:$0xff]
      %v543 = vld [vmem:[%s436 + $0x78] sm:$0xff]
      %545 = vset.pattern.permute.xlu0 0
      %546 = vperm.xlu0 %545, %v494
      %v547 = vpop.permute.xlu0 %546
      %550 = vset.pattern.permute.xlu0 0
      %551 = vperm.xlu0 %550, %v504
      %v552 = vpop.permute.xlu0 %551
      %v554 = vmul.f32 %v528, %v547
      %v555 = vmul.f32 %v529, %v547
      %v556 = vmul.f32 %v530, %v547
      %v557 = vmul.f32 %v531, %v547
      %v558 = vmul.f32 %v532, %v547
      %v559 = vmul.f32 %v533, %v547
      %v560 = vmul.f32 %v534, %v547
      %v561 = vmul.f32 %v535, %v547
      %v562 = vmul.f32 %v536, %v552
      %v563 = vmul.f32 %v537, %v552
      %v564 = vmul.f32 %v538, %v552
      %v565 = vmul.f32 %v539, %v552
      %v566 = vmul.f32 %v540, %v552
      %v567 = vmul.f32 %v541, %v552
      %v568 = vmul.f32 %v542, %v552
      %v569 = vmul.f32 %v543, %v552
      %571 = vset.pattern.permute.xlu0 0
      %572 = vperm.xlu0 %571, %v507
      %v573 = vpop.permute.xlu0 %572
      %576 = vset.pattern.permute.xlu0 0
      %577 = vperm.xlu0 %576, %v508
      %v578 = vpop.permute.xlu0 %577
      %v580 = vadd.f32 %v554, %v573
      %v581 = vadd.f32 %v555, %v573
      %v582 = vadd.f32 %v556, %v573
      %v583 = vadd.f32 %v557, %v573
      %v584 = vadd.f32 %v558, %v573
      %v585 = vadd.f32 %v559, %v573
      %v586 = vadd.f32 %v560, %v573
      %v587 = vadd.f32 %v561, %v573
      %v588 = vadd.f32 %v562, %v578
      %v589 = vadd.f32 %v563, %v578
      %v590 = vadd.f32 %v564, %v578
      %v591 = vadd.f32 %v565, %v578
      %v592 = vadd.f32 %v566, %v578
      %v593 = vadd.f32 %v567, %v578
      %v594 = vadd.f32 %v568, %v578
      %v595 = vadd.f32 %v569, %v578
      %v596 = vmax.f32 %v580, 0.0
      %v597 = vmax.f32 %v581, 0.0
      %v598 = vmax.f32 %v582, 0.0
      %v599 = vmax.f32 %v583, 0.0
      %v600 = vmax.f32 %v584, 0.0
      %v601 = vmax.f32 %v585, 0.0
      %v602 = vmax.f32 %v586, 0.0
      %v603 = vmax.f32 %v587, 0.0
      %v604 = vmax.f32 %v588, 0.0
      %v605 = vmax.f32 %v589, 0.0
      %v606 = vmax.f32 %v590, 0.0
      %v607 = vmax.f32 %v591, 0.0
      %v608 = vmax.f32 %v592, 0.0
      %v609 = vmax.f32 %v593, 0.0
      %v610 = vmax.f32 %v594, 0.0
      %v611 = vmax.f32 %v595, 0.0
      %v612 = vld [vmem:[%s445] sm:$0xff]
      %614 = vset.pattern.permute.xlu0 0
      %615 = vperm.xlu0 %614, %v525
      %v616 = vpop.permute.xlu0 %615
      %v618 = vperm.slane %v616, 0
      %v619 = vmul.f32 %v612, %v618
      %621 = vset.pattern.permute.xlu0 0
      %622 = vperm.xlu0 %621, %v527
      %v623 = vpop.permute.xlu0 %622
      %v625 = vperm.slane %v623, 0
      %v626 = vadd.f32 %v619, %v625
      %v627 = vmax.f32 %v626, 0.0
      %v628 = vld [vmem:[%s6] sm:$0xff]
      %v629 = vld [vmem:[%s6 + $0x8] sm:$0xff]
      %v630 = vld [vmem:[%s6 + $0x10] sm:$0xff]
      %v631 = vld [vmem:[%s6 + $0x18] sm:$0xff]
      %v632 = vld [vmem:[%s6 + $0x20] sm:$0xff]
      %v633 = vld [vmem:[%s6 + $0x28] sm:$0xff]
      %v634 = vld [vmem:[%s6 + $0x30] sm:$0xff]
      %v635 = vld [vmem:[%s6 + $0x38] sm:$0xff]
      %v636 = vld [vmem:[%s7] sm:$0xff]
      %v637 = vld [vmem:[%s7 + $0x8] sm:$0xff]
      %v638 = vld [vmem:[%s7 + $0x10] sm:$0xff]
      %v639 = vld [vmem:[%s7 + $0x18] sm:$0xff]
      %v640 = vld [vmem:[%s7 + $0x20] sm:$0xff]
      %v641 = vld [vmem:[%s7 + $0x28] sm:$0xff]
      %v642 = vld [vmem:[%s7 + $0x30] sm:$0xff]
      %v643 = vld [vmem:[%s7 + $0x38] sm:$0xff]
      %645 = vset.pattern.permute.xlu0 0
      %646 = vperm.xlu0 %645, %v636
      %v647 = vpop.permute.xlu0 %646
      %650 = vset.pattern.permute.xlu0 0
      %651 = vperm.xlu0 %650, %v637
      %v652 = vpop.permute.xlu0 %651
      %655 = vset.pattern.permute.xlu0 0
      %656 = vperm.xlu0 %655, %v638
      %v657 = vpop.permute.xlu0 %656
      %660 = vset.pattern.permute.xlu0 0
      %661 = vperm.xlu0 %660, %v639
      %v662 = vpop.permute.xlu0 %661
      %665 = vset.pattern.permute.xlu0 0
      %666 = vperm.xlu0 %665, %v640
      %v667 = vpop.permute.xlu0 %666
      %670 = vset.pattern.permute.xlu0 0
      %671 = vperm.xlu0 %670, %v641
      %v672 = vpop.permute.xlu0 %671
      %675 = vset.pattern.permute.xlu0 0
      %676 = vperm.xlu0 %675, %v642
      %v677 = vpop.permute.xlu0 %676
      %680 = vset.pattern.permute.xlu0 0
      %681 = vperm.xlu0 %680, %v643
      %v682 = vpop.permute.xlu0 %681
      %v685 = vperm.slane %v627, 0
      %v686 = vperm.slane %v627, 1
      %v687 = vperm.slane %v627, 2
      %v688 = vperm.slane %v627, 3
      %v689 = vperm.slane %v627, 4
      %v690 = vperm.slane %v627, 5
      %v691 = vperm.slane %v627, 6
      %v692 = vperm.slane %v627, 7
      %v701 = vmul.f32 %v647, %v685
      %v702 = vmul.f32 %v647, %v686
      %v703 = vmul.f32 %v647, %v687
      %v704 = vmul.f32 %v647, %v688
      %v705 = vmul.f32 %v647, %v689
      %v706 = vmul.f32 %v647, %v690
      %v707 = vmul.f32 %v647, %v691
      %v708 = vmul.f32 %v647, %v692
      %v709 = vmul.f32 %v652, %v685
      %v710 = vmul.f32 %v652, %v686
      %v711 = vmul.f32 %v652, %v687
      %v712 = vmul.f32 %v652, %v688
      %v713 = vmul.f32 %v652, %v689
      %v714 = vmul.f32 %v652, %v690
      %v715 = vmul.f32 %v652, %v691
      %v716 = vmul.f32 %v652, %v692
      %v717 = vmul.f32 %v657, %v685
      %v718 = vmul.f32 %v657, %v686
      %v719 = vmul.f32 %v657, %v687
      %v720 = vmul.f32 %v657, %v688
      %v721 = vmul.f32 %v657, %v689
      %v722 = vmul.f32 %v657, %v690
      %v723 = vmul.f32 %v657, %v691
      %v724 = vmul.f32 %v657, %v692
      %v725 = vmul.f32 %v662, %v685
      %v726 = vmul.f32 %v662, %v686
      %v727 = vmul.f32 %v662, %v687
      %v728 = vmul.f32 %v662, %v688
      %v729 = vmul.f32 %v662, %v689
      %v730 = vmul.f32 %v662, %v690
      %v731 = vmul.f32 %v662, %v691
      %v732 = vmul.f32 %v662, %v692
      %v733 = vmul.f32 %v667, %v685
      %v734 = vmul.f32 %v667, %v686
      %v735 = vmul.f32 %v667, %v687
      %v736 = vmul.f32 %v667, %v688
      %v737 = vmul.f32 %v667, %v689
      %v738 = vmul.f32 %v667, %v690
      %v739 = vmul.f32 %v667, %v691
      %v740 = vmul.f32 %v667, %v692
      %v741 = vmul.f32 %v672, %v685
      %v742 = vmul.f32 %v672, %v686
      %v743 = vmul.f32 %v672, %v687
      %v744 = vmul.f32 %v672, %v688
      %v745 = vmul.f32 %v672, %v689
      %v746 = vmul.f32 %v672, %v690
      %v747 = vmul.f32 %v672, %v691
      %v748 = vmul.f32 %v672, %v692
      %v749 = vmul.f32 %v677, %v685
      %v750 = vmul.f32 %v677, %v686
      %v751 = vmul.f32 %v677, %v687
      %v752 = vmul.f32 %v677, %v688
      %v753 = vmul.f32 %v677, %v689
      %v754 = vmul.f32 %v677, %v690
      %v755 = vmul.f32 %v677, %v691
      %v756 = vmul.f32 %v677, %v692
      %v757 = vmul.f32 %v682, %v685
      %v758 = vmul.f32 %v682, %v686
      %v759 = vmul.f32 %v682, %v687
      %v760 = vmul.f32 %v682, %v688
      %v761 = vmul.f32 %v682, %v689
      %v762 = vmul.f32 %v682, %v690
      %v763 = vmul.f32 %v682, %v691
      %v764 = vmul.f32 %v682, %v692
      %vm765 = vcmask 130048
      %v767 = vsel %vm765, %v628, 0
      %v770 = vsel %vm765, %v629, 0
      %v773 = vsel %vm765, %v630, 0
      %v776 = vsel %vm765, %v631, 0
      %v779 = vsel %vm765, %v632, 0
      %v782 = vsel %vm765, %v633, 0
      %v785 = vsel %vm765, %v634, 0
      %v788 = vsel %vm765, %v635, 0
      %790 = vmatpush.msra.mxu0 0.0
      %791 = vmatpush.msra.mxu0 0.0
      %792 = vmatpush.msra.mxu0 0.0
      %793 = vmatpush.msra.mxu0 0.0
      %794 = vmatpush.msra.mxu0 0.0
      %795 = vmatpush.msra.mxu0 0.0
      %796 = vmatpush.msra.mxu0 0.0
      %797 = vmatpush.msra.mxu0 0.0
      %798 = vmatpush.msra.mxu0 0.0
      %799 = vmatpush.msra.mxu0 0.0
      %800 = vmatpush.msra.mxu0 0.0
      %801 = vmatpush.msra.mxu0 0.0
      %802 = vmatpush.msra.mxu0 0.0
      %803 = vmatpush.msra.mxu0 0.0
      %v804 = vand.u32 %v604, 4294901760
      %805 = vmatpush.msra.mxu0 %v804
      %v806 = vand.u32 %v596, 4294901760
      %807 = vmatpush.msra.mxu0 %v806
      %v808 = vand.u32 %v767, 4294901760
      %v809 = vsub.f32 %v767, %v808
      %v810 = vand.u32 %v809, 4294901760
      %v811 = vsub.f32 %v809, %v810
      %v812 = vand.u32 %v811, 4294901760
      %813 = vmatmul.f32.gmra.mxu0 %v812
      %v814 = vpop.f32.mrf.mxu0
      %v815 = vadd.f32 %v701, %v814
      %v816 = vand.u32 %v770, 4294901760
      %v817 = vsub.f32 %v770, %v816
      %v818 = vand.u32 %v817, 4294901760
      %v819 = vsub.f32 %v817, %v818
      %v820 = vand.u32 %v819, 4294901760
      %821 = vmatmul.f32.gmra.mxu0 %v820
      %v822 = vpop.f32.mrf.mxu0
      %v823 = vadd.f32 %v709, %v822
      %v824 = vand.u32 %v773, 4294901760
      %v825 = vsub.f32 %v773, %v824
      %v826 = vand.u32 %v825, 4294901760
      %v827 = vsub.f32 %v825, %v826
      %v828 = vand.u32 %v827, 4294901760
      %829 = vmatmul.f32.gmra.mxu0 %v828
      %v830 = vpop.f32.mrf.mxu0
      %v831 = vadd.f32 %v717, %v830
      %v832 = vand.u32 %v776, 4294901760
      %v833 = vsub.f32 %v776, %v832
      %v834 = vand.u32 %v833, 4294901760
      %v835 = vsub.f32 %v833, %v834
      %v836 = vand.u32 %v835, 4294901760
      %837 = vmatmul.f32.gmra.mxu0 %v836
      %v838 = vpop.f32.mrf.mxu0
      %v839 = vadd.f32 %v725, %v838
      %v840 = vand.u32 %v779, 4294901760
      %v841 = vsub.f32 %v779, %v840
      %v842 = vand.u32 %v841, 4294901760
      %v843 = vsub.f32 %v841, %v842
      %v844 = vand.u32 %v843, 4294901760
      %845 = vmatmul.f32.gmra.mxu0 %v844
      %v846 = vpop.f32.mrf.mxu0
      %v847 = vadd.f32 %v733, %v846
      %v848 = vand.u32 %v782, 4294901760
      %v849 = vsub.f32 %v782, %v848
      %v850 = vand.u32 %v849, 4294901760
      %v851 = vsub.f32 %v849, %v850
      %v852 = vand.u32 %v851, 4294901760
      %853 = vmatmul.f32.gmra.mxu0 %v852
      %v854 = vpop.f32.mrf.mxu0
      %v855 = vadd.f32 %v741, %v854
      %v856 = vand.u32 %v785, 4294901760
      %v857 = vsub.f32 %v785, %v856
      %v858 = vand.u32 %v857, 4294901760
      %v859 = vsub.f32 %v857, %v858
      %v860 = vand.u32 %v859, 4294901760
      %861 = vmatmul.f32.gmra.mxu0 %v860
      %v862 = vpop.f32.mrf.mxu0
      %v863 = vadd.f32 %v749, %v862
      %v864 = vand.u32 %v788, 4294901760
      %v865 = vsub.f32 %v788, %v864
      %v866 = vand.u32 %v865, 4294901760
      %v867 = vsub.f32 %v865, %v866
      %v868 = vand.u32 %v867, 4294901760
      %869 = vmatmul.f32.gmra.mxu0 %v868
      %v870 = vpop.f32.mrf.mxu0
      %v871 = vadd.f32 %v757, %v870
      %872 = vdwg.mxu0
      %873 = vmatpush.msra.mxu0 0.0
      %874 = vmatpush.msra.mxu0 0.0
      %875 = vmatpush.msra.mxu0 0.0
      %876 = vmatpush.msra.mxu0 0.0
      %877 = vmatpush.msra.mxu0 0.0
      %878 = vmatpush.msra.mxu0 0.0
      %879 = vmatpush.msra.mxu0 0.0
      %880 = vmatpush.msra.mxu0 0.0
      %881 = vmatpush.msra.mxu0 0.0
      %882 = vmatpush.msra.mxu0 0.0
      %883 = vmatpush.msra.mxu0 0.0
      %884 = vmatpush.msra.mxu0 0.0
      %885 = vmatpush.msra.mxu0 0.0
      %886 = vmatpush.msra.mxu0 0.0
      %v887 = vand.u32 %v604, 4294901760
      %v888 = vsub.f32 %v604, %v887
      %v889 = vand.u32 %v888, 4294901760
      %v890 = vsub.f32 %v888, %v889
      %v891 = vand.u32 %v890, 4294901760
      %892 = vmatpush.msra.mxu0 %v891
      %v893 = vand.u32 %v596, 4294901760
      %v894 = vsub.f32 %v596, %v893
      %v895 = vand.u32 %v894, 4294901760
      %v896 = vsub.f32 %v894, %v895
      %v897 = vand.u32 %v896, 4294901760
      %898 = vmatpush.msra.mxu0 %v897
      %v899 = vand.u32 %v767, 4294901760
      %900 = vmatmul.f32.gmra.mxu0 %v899
      %v901 = vpop.f32.mrf.mxu0
      %v902 = vadd.f32 %v815, %v901
      %v903 = vand.u32 %v770, 4294901760
      %904 = vmatmul.f32.gmra.mxu0 %v903
      %v905 = vpop.f32.mrf.mxu0
      %v906 = vadd.f32 %v823, %v905
      %v907 = vand.u32 %v773, 4294901760
      %908 = vmatmul.f32.gmra.mxu0 %v907
      %v909 = vpop.f32.mrf.mxu0
      %v910 = vadd.f32 %v831, %v909
      %v911 = vand.u32 %v776, 4294901760
      %912 = vmatmul.f32.gmra.mxu0 %v911
      %v913 = vpop.f32.mrf.mxu0
      %v914 = vadd.f32 %v839, %v913
      %v915 = vand.u32 %v779, 4294901760
      %916 = vmatmul.f32.gmra.mxu0 %v915
      %v917 = vpop.f32.mrf.mxu0
      %v918 = vadd.f32 %v847, %v917
      %v919 = vand.u32 %v782, 4294901760
      %920 = vmatmul.f32.gmra.mxu0 %v919
      %v921 = vpop.f32.mrf.mxu0
      %v922 = vadd.f32 %v855, %v921
      %v923 = vand.u32 %v785, 4294901760
      %924 = vmatmul.f32.gmra.mxu0 %v923
      %v925 = vpop.f32.mrf.mxu0
      %v926 = vadd.f32 %v863, %v925
      %v927 = vand.u32 %v788, 4294901760
      %928 = vmatmul.f32.gmra.mxu0 %v927
      %v929 = vpop.f32.mrf.mxu0
      %v930 = vadd.f32 %v871, %v929
      %931 = vdwg.mxu0
      %932 = vmatpush.msra.mxu0 0.0
      %933 = vmatpush.msra.mxu0 0.0
      %934 = vmatpush.msra.mxu0 0.0
      %935 = vmatpush.msra.mxu0 0.0
      %936 = vmatpush.msra.mxu0 0.0
      %937 = vmatpush.msra.mxu0 0.0
      %938 = vmatpush.msra.mxu0 0.0
      %939 = vmatpush.msra.mxu0 0.0
      %940 = vmatpush.msra.mxu0 0.0
      %941 = vmatpush.msra.mxu0 0.0
      %942 = vmatpush.msra.mxu0 0.0
      %943 = vmatpush.msra.mxu0 0.0
      %944 = vmatpush.msra.mxu0 0.0
      %945 = vmatpush.msra.mxu0 0.0
      %v946 = vand.u32 %v604, 4294901760
      %v947 = vsub.f32 %v604, %v946
      %948 = vmatpush.msra.mxu0 %v947
      %v949 = vand.u32 %v596, 4294901760
      %v950 = vsub.f32 %v596, %v949
      %951 = vmatpush.msra.mxu0 %v950
      %v952 = vand.u32 %v767, 4294901760
      %v953 = vsub.f32 %v767, %v952
      %954 = vmatmul.f32.gmra.mxu0 %v953
      %v955 = vpop.f32.mrf.mxu0
      %v956 = vadd.f32 %v902, %v955
      %v957 = vand.u32 %v770, 4294901760
      %v958 = vsub.f32 %v770, %v957
      %959 = vmatmul.f32.gmra.mxu0 %v958
      %v960 = vpop.f32.mrf.mxu0
      %v961 = vadd.f32 %v906, %v960
      %v962 = vand.u32 %v773, 4294901760
      %v963 = vsub.f32 %v773, %v962
      %964 = vmatmul.f32.gmra.mxu0 %v963
      %v965 = vpop.f32.mrf.mxu0
      %v966 = vadd.f32 %v910, %v965
      %v967 = vand.u32 %v776, 4294901760
      %v968 = vsub.f32 %v776, %v967
      %969 = vmatmul.f32.gmra.mxu0 %v968
      %v970 = vpop.f32.mrf.mxu0
      %v971 = vadd.f32 %v914, %v970
      %v972 = vand.u32 %v779, 4294901760
      %v973 = vsub.f32 %v779, %v972
      %974 = vmatmul.f32.gmra.mxu0 %v973
      %v975 = vpop.f32.mrf.mxu0
      %v976 = vadd.f32 %v918, %v975
      %v977 = vand.u32 %v782, 4294901760
      %v978 = vsub.f32 %v782, %v977
      %979 = vmatmul.f32.gmra.mxu0 %v978
      %v980 = vpop.f32.mrf.mxu0
      %v981 = vadd.f32 %v922, %v980
      %v982 = vand.u32 %v785, 4294901760
      %v983 = vsub.f32 %v785, %v982
      %984 = vmatmul.f32.gmra.mxu0 %v983
      %v985 = vpop.f32.mrf.mxu0
      %v986 = vadd.f32 %v926, %v985
      %v987 = vand.u32 %v788, 4294901760
      %v988 = vsub.f32 %v788, %v987
      %989 = vmatmul.f32.gmra.mxu0 %v988
      %v990 = vpop.f32.mrf.mxu0
      %v991 = vadd.f32 %v930, %v990
      %992 = vdwg.mxu0
      %993 = vmatpush.msra.mxu0 0.0
      %994 = vmatpush.msra.mxu0 0.0
      %995 = vmatpush.msra.mxu0 0.0
      %996 = vmatpush.msra.mxu0 0.0
      %997 = vmatpush.msra.mxu0 0.0
      %998 = vmatpush.msra.mxu0 0.0
      %999 = vmatpush.msra.mxu0 0.0
      %1000 = vmatpush.msra.mxu0 0.0
      %1001 = vmatpush.msra.mxu0 0.0
      %1002 = vmatpush.msra.mxu0 0.0
      %1003 = vmatpush.msra.mxu0 0.0
      %1004 = vmatpush.msra.mxu0 0.0
      %1005 = vmatpush.msra.mxu0 0.0
      %1006 = vmatpush.msra.mxu0 0.0
      %v1007 = vand.u32 %v604, 4294901760
      %1008 = vmatpush.msra.mxu0 %v1007
      %v1009 = vand.u32 %v596, 4294901760
      %1010 = vmatpush.msra.mxu0 %v1009
      %v1011 = vand.u32 %v767, 4294901760
      %v1012 = vsub.f32 %v767, %v1011
      %v1013 = vand.u32 %v1012, 4294901760
      %1014 = vmatmul.f32.gmra.mxu0 %v1013
      %v1015 = vpop.f32.mrf.mxu0
      %v1016 = vadd.f32 %v956, %v1015
      %v1017 = vand.u32 %v770, 4294901760
      %v1018 = vsub.f32 %v770, %v1017
      %v1019 = vand.u32 %v1018, 4294901760
      %1020 = vmatmul.f32.gmra.mxu0 %v1019
      %v1021 = vpop.f32.mrf.mxu0
      %v1022 = vadd.f32 %v961, %v1021
      %v1023 = vand.u32 %v773, 4294901760
      %v1024 = vsub.f32 %v773, %v1023
      %v1025 = vand.u32 %v1024, 4294901760
      %1026 = vmatmul.f32.gmra.mxu0 %v1025
      %v1027 = vpop.f32.mrf.mxu0
      %v1028 = vadd.f32 %v966, %v1027
      %v1029 = vand.u32 %v776, 4294901760
      %v1030 = vsub.f32 %v776, %v1029
      %v1031 = vand.u32 %v1030, 4294901760
      %1032 = vmatmul.f32.gmra.mxu0 %v1031
      %v1033 = vpop.f32.mrf.mxu0
      %v1034 = vadd.f32 %v971, %v1033
      %v1035 = vand.u32 %v779, 4294901760
      %v1036 = vsub.f32 %v779, %v1035
      %v1037 = vand.u32 %v1036, 4294901760
      %1038 = vmatmul.f32.gmra.mxu0 %v1037
      %v1039 = vpop.f32.mrf.mxu0
      %v1040 = vadd.f32 %v976, %v1039
      %v1041 = vand.u32 %v782, 4294901760
      %v1042 = vsub.f32 %v782, %v1041
      %v1043 = vand.u32 %v1042, 4294901760
      %1044 = vmatmul.f32.gmra.mxu0 %v1043
      %v1045 = vpop.f32.mrf.mxu0
      %v1046 = vadd.f32 %v981, %v1045
      %v1047 = vand.u32 %v785, 4294901760
      %v1048 = vsub.f32 %v785, %v1047
      %v1049 = vand.u32 %v1048, 4294901760
      %1050 = vmatmul.f32.gmra.mxu0 %v1049
      %v1051 = vpop.f32.mrf.mxu0
      %v1052 = vadd.f32 %v986, %v1051
      %v1053 = vand.u32 %v788, 4294901760
      %v1054 = vsub.f32 %v788, %v1053
      %v1055 = vand.u32 %v1054, 4294901760
      %1056 = vmatmul.f32.gmra.mxu0 %v1055
      %v1057 = vpop.f32.mrf.mxu0
      %v1058 = vadd.f32 %v991, %v1057
      %1059 = vdwg.mxu0
      %1060 = vmatpush.msra.mxu0 0.0
      %1061 = vmatpush.msra.mxu0 0.0
      %1062 = vmatpush.msra.mxu0 0.0
      %1063 = vmatpush.msra.mxu0 0.0
      %1064 = vmatpush.msra.mxu0 0.0
      %1065 = vmatpush.msra.mxu0 0.0
      %1066 = vmatpush.msra.mxu0 0.0
      %1067 = vmatpush.msra.mxu0 0.0
      %1068 = vmatpush.msra.mxu0 0.0
      %1069 = vmatpush.msra.mxu0 0.0
      %1070 = vmatpush.msra.mxu0 0.0
      %1071 = vmatpush.msra.mxu0 0.0
      %1072 = vmatpush.msra.mxu0 0.0
      %1073 = vmatpush.msra.mxu0 0.0
      %v1074 = vand.u32 %v604, 4294901760
      %v1075 = vsub.f32 %v604, %v1074
      %v1076 = vand.u32 %v1075, 4294901760
      %1077 = vmatpush.msra.mxu0 %v1076
      %v1078 = vand.u32 %v596, 4294901760
      %v1079 = vsub.f32 %v596, %v1078
      %v1080 = vand.u32 %v1079, 4294901760
      %1081 = vmatpush.msra.mxu0 %v1080
      %v1082 = vand.u32 %v767, 4294901760
      %1083 = vmatmul.f32.gmra.mxu0 %v1082
      %v1084 = vpop.f32.mrf.mxu0
      %v1085 = vadd.f32 %v1016, %v1084
      %v1086 = vand.u32 %v770, 4294901760
      %1087 = vmatmul.f32.gmra.mxu0 %v1086
      %v1088 = vpop.f32.mrf.mxu0
      %v1089 = vadd.f32 %v1022, %v1088
      %v1090 = vand.u32 %v773, 4294901760
      %1091 = vmatmul.f32.gmra.mxu0 %v1090
      %v1092 = vpop.f32.mrf.mxu0
      %v1093 = vadd.f32 %v1028, %v1092
      %v1094 = vand.u32 %v776, 4294901760
      %1095 = vmatmul.f32.gmra.mxu0 %v1094
      %v1096 = vpop.f32.mrf.mxu0
      %v1097 = vadd.f32 %v1034, %v1096
      %v1098 = vand.u32 %v779, 4294901760
      %1099 = vmatmul.f32.gmra.mxu0 %v1098
      %v1100 = vpop.f32.mrf.mxu0
      %v1101 = vadd.f32 %v1040, %v1100
      %v1102 = vand.u32 %v782, 4294901760
      %1103 = vmatmul.f32.gmra.mxu0 %v1102
      %v1104 = vpop.f32.mrf.mxu0
      %v1105 = vadd.f32 %v1046, %v1104
      %v1106 = vand.u32 %v785, 4294901760
      %1107 = vmatmul.f32.gmra.mxu0 %v1106
      %v1108 = vpop.f32.mrf.mxu0
      %v1109 = vadd.f32 %v1052, %v1108
      %v1110 = vand.u32 %v788, 4294901760
      %1111 = vmatmul.f32.gmra.mxu0 %v1110
      %v1112 = vpop.f32.mrf.mxu0
      %v1113 = vadd.f32 %v1058, %v1112
      %1114 = vdwg.mxu0
      %1115 = vmatpush.msra.mxu0 0.0
      %1116 = vmatpush.msra.mxu0 0.0
      %1117 = vmatpush.msra.mxu0 0.0
      %1118 = vmatpush.msra.mxu0 0.0
      %1119 = vmatpush.msra.mxu0 0.0
      %1120 = vmatpush.msra.mxu0 0.0
      %1121 = vmatpush.msra.mxu0 0.0
      %1122 = vmatpush.msra.mxu0 0.0
      %1123 = vmatpush.msra.mxu0 0.0
      %1124 = vmatpush.msra.mxu0 0.0
      %1125 = vmatpush.msra.mxu0 0.0
      %1126 = vmatpush.msra.mxu0 0.0
      %1127 = vmatpush.msra.mxu0 0.0
      %1128 = vmatpush.msra.mxu0 0.0
      %v1129 = vand.u32 %v604, 4294901760
      %1130 = vmatpush.msra.mxu0 %v1129
      %v1131 = vand.u32 %v596, 4294901760
      %1132 = vmatpush.msra.mxu0 %v1131
      %v1133 = vand.u32 %v767, 4294901760
      %1134 = vmatmul.f32.gmra.mxu0 %v1133
      %v1135 = vpop.f32.mrf.mxu0
      %v1136 = vadd.f32 %v1085, %v1135
      %v1137 = vand.u32 %v770, 4294901760
      %1138 = vmatmul.f32.gmra.mxu0 %v1137
      %v1139 = vpop.f32.mrf.mxu0
      %v1140 = vadd.f32 %v1089, %v1139
      %v1141 = vand.u32 %v773, 4294901760
      %1142 = vmatmul.f32.gmra.mxu0 %v1141
      %v1143 = vpop.f32.mrf.mxu0
      %v1144 = vadd.f32 %v1093, %v1143
      %v1145 = vand.u32 %v776, 4294901760
      %1146 = vmatmul.f32.gmra.mxu0 %v1145
      %v1147 = vpop.f32.mrf.mxu0
      %v1148 = vadd.f32 %v1097, %v1147
      %v1149 = vand.u32 %v779, 4294901760
      %1150 = vmatmul.f32.gmra.mxu0 %v1149
      %v1151 = vpop.f32.mrf.mxu0
      %v1152 = vadd.f32 %v1101, %v1151
      %v1153 = vand.u32 %v782, 4294901760
      %1154 = vmatmul.f32.gmra.mxu0 %v1153
      %v1155 = vpop.f32.mrf.mxu0
      %v1156 = vadd.f32 %v1105, %v1155
      %v1157 = vand.u32 %v785, 4294901760
      %1158 = vmatmul.f32.gmra.mxu0 %v1157
      %v1159 = vpop.f32.mrf.mxu0
      %v1160 = vadd.f32 %v1109, %v1159
      %v1161 = vand.u32 %v788, 4294901760
      %1162 = vmatmul.f32.gmra.mxu0 %v1161
      %v1163 = vpop.f32.mrf.mxu0
      %v1164 = vadd.f32 %v1113, %v1163
      %1165 = vdwg.mxu0
      %1166 = vmatpush.msra.mxu0 0.0
      %1167 = vmatpush.msra.mxu0 0.0
      %1168 = vmatpush.msra.mxu0 0.0
      %1169 = vmatpush.msra.mxu0 0.0
      %1170 = vmatpush.msra.mxu0 0.0
      %1171 = vmatpush.msra.mxu0 0.0
      %1172 = vmatpush.msra.mxu0 0.0
      %1173 = vmatpush.msra.mxu0 0.0
      %1174 = vmatpush.msra.mxu0 0.0
      %1175 = vmatpush.msra.mxu0 0.0
      %1176 = vmatpush.msra.mxu0 0.0
      %1177 = vmatpush.msra.mxu0 0.0
      %1178 = vmatpush.msra.mxu0 0.0
      %1179 = vmatpush.msra.mxu0 0.0
      %v1180 = vand.u32 %v605, 4294901760
      %1181 = vmatpush.msra.mxu0 %v1180
      %v1182 = vand.u32 %v597, 4294901760
      %1183 = vmatpush.msra.mxu0 %v1182
      %v1184 = vand.u32 %v767, 4294901760
      %v1185 = vsub.f32 %v767, %v1184
      %v1186 = vand.u32 %v1185, 4294901760
      %v1187 = vsub.f32 %v1185, %v1186
      %v1188 = vand.u32 %v1187, 4294901760
      %1189 = vmatmul.f32.gmra.mxu0 %v1188
      %v1190 = vpop.f32.mrf.mxu0
      %v1191 = vadd.f32 %v702, %v1190
      %v1192 = vand.u32 %v770, 4294901760
      %v1193 = vsub.f32 %v770, %v1192
      %v1194 = vand.u32 %v1193, 4294901760
      %v1195 = vsub.f32 %v1193, %v1194
      %v1196 = vand.u32 %v1195, 4294901760
      %1197 = vmatmul.f32.gmra.mxu0 %v1196
      %v1198 = vpop.f32.mrf.mxu0
      %v1199 = vadd.f32 %v710, %v1198
      %v1200 = vand.u32 %v773, 4294901760
      %v1201 = vsub.f32 %v773, %v1200
      %v1202 = vand.u32 %v1201, 4294901760
      %v1203 = vsub.f32 %v1201, %v1202
      %v1204 = vand.u32 %v1203, 4294901760
      %1205 = vmatmul.f32.gmra.mxu0 %v1204
      %v1206 = vpop.f32.mrf.mxu0
      %v1207 = vadd.f32 %v718, %v1206
      %v1208 = vand.u32 %v776, 4294901760
      %v1209 = vsub.f32 %v776, %v1208
      %v1210 = vand.u32 %v1209, 4294901760
      %v1211 = vsub.f32 %v1209, %v1210
      %v1212 = vand.u32 %v1211, 4294901760
      %1213 = vmatmul.f32.gmra.mxu0 %v1212
      %v1214 = vpop.f32.mrf.mxu0
      %v1215 = vadd.f32 %v726, %v1214
      %v1216 = vand.u32 %v779, 4294901760
      %v1217 = vsub.f32 %v779, %v1216
      %v1218 = vand.u32 %v1217, 4294901760
      %v1219 = vsub.f32 %v1217, %v1218
      %v1220 = vand.u32 %v1219, 4294901760
      %1221 = vmatmul.f32.gmra.mxu0 %v1220
      %v1222 = vpop.f32.mrf.mxu0
      %v1223 = vadd.f32 %v734, %v1222
      %v1224 = vand.u32 %v782, 4294901760
      %v1225 = vsub.f32 %v782, %v1224
      %v1226 = vand.u32 %v1225, 4294901760
      %v1227 = vsub.f32 %v1225, %v1226
      %v1228 = vand.u32 %v1227, 4294901760
      %1229 = vmatmul.f32.gmra.mxu0 %v1228
      %v1230 = vpop.f32.mrf.mxu0
      %v1231 = vadd.f32 %v742, %v1230
      %v1232 = vand.u32 %v785, 4294901760
      %v1233 = vsub.f32 %v785, %v1232
      %v1234 = vand.u32 %v1233, 4294901760
      %v1235 = vsub.f32 %v1233, %v1234
      %v1236 = vand.u32 %v1235, 4294901760
      %1237 = vmatmul.f32.gmra.mxu0 %v1236
      %v1238 = vpop.f32.mrf.mxu0
      %v1239 = vadd.f32 %v750, %v1238
      %v1240 = vand.u32 %v788, 4294901760
      %v1241 = vsub.f32 %v788, %v1240
      %v1242 = vand.u32 %v1241, 4294901760
      %v1243 = vsub.f32 %v1241, %v1242
      %v1244 = vand.u32 %v1243, 4294901760
      %1245 = vmatmul.f32.gmra.mxu0 %v1244
      %v1246 = vpop.f32.mrf.mxu0
      %v1247 = vadd.f32 %v758, %v1246
      %1248 = vdwg.mxu0
      %1249 = vmatpush.msra.mxu0 0.0
      %1250 = vmatpush.msra.mxu0 0.0
      %1251 = vmatpush.msra.mxu0 0.0
      %1252 = vmatpush.msra.mxu0 0.0
      %1253 = vmatpush.msra.mxu0 0.0
      %1254 = vmatpush.msra.mxu0 0.0
      %1255 = vmatpush.msra.mxu0 0.0
      %1256 = vmatpush.msra.mxu0 0.0
      %1257 = vmatpush.msra.mxu0 0.0
      %1258 = vmatpush.msra.mxu0 0.0
      %1259 = vmatpush.msra.mxu0 0.0
      %1260 = vmatpush.msra.mxu0 0.0
      %1261 = vmatpush.msra.mxu0 0.0
      %1262 = vmatpush.msra.mxu0 0.0
      %v1263 = vand.u32 %v605, 4294901760
      %v1264 = vsub.f32 %v605, %v1263
      %v1265 = vand.u32 %v1264, 4294901760
      %v1266 = vsub.f32 %v1264, %v1265
      %v1267 = vand.u32 %v1266, 4294901760
      %1268 = vmatpush.msra.mxu0 %v1267
      %v1269 = vand.u32 %v597, 4294901760
      %v1270 = vsub.f32 %v597, %v1269
      %v1271 = vand.u32 %v1270, 4294901760
      %v1272 = vsub.f32 %v1270, %v1271
      %v1273 = vand.u32 %v1272, 4294901760
      %1274 = vmatpush.msra.mxu0 %v1273
      %v1275 = vand.u32 %v767, 4294901760
      %1276 = vmatmul.f32.gmra.mxu0 %v1275
      %v1277 = vpop.f32.mrf.mxu0
      %v1278 = vadd.f32 %v1191, %v1277
      %v1279 = vand.u32 %v770, 4294901760
      %1280 = vmatmul.f32.gmra.mxu0 %v1279
      %v1281 = vpop.f32.mrf.mxu0
      %v1282 = vadd.f32 %v1199, %v1281
      %v1283 = vand.u32 %v773, 4294901760
      %1284 = vmatmul.f32.gmra.mxu0 %v1283
      %v1285 = vpop.f32.mrf.mxu0
      %v1286 = vadd.f32 %v1207, %v1285
      %v1287 = vand.u32 %v776, 4294901760
      %1288 = vmatmul.f32.gmra.mxu0 %v1287
      %v1289 = vpop.f32.mrf.mxu0
      %v1290 = vadd.f32 %v1215, %v1289
      %v1291 = vand.u32 %v779, 4294901760
      %1292 = vmatmul.f32.gmra.mxu0 %v1291
      %v1293 = vpop.f32.mrf.mxu0
      %v1294 = vadd.f32 %v1223, %v1293
      %v1295 = vand.u32 %v782, 4294901760
      %1296 = vmatmul.f32.gmra.mxu0 %v1295
      %v1297 = vpop.f32.mrf.mxu0
      %v1298 = vadd.f32 %v1231, %v1297
      %v1299 = vand.u32 %v785, 4294901760
      %1300 = vmatmul.f32.gmra.mxu0 %v1299
      %v1301 = vpop.f32.mrf.mxu0
      %v1302 = vadd.f32 %v1239, %v1301
      %v1303 = vand.u32 %v788, 4294901760
      %1304 = vmatmul.f32.gmra.mxu0 %v1303
      %v1305 = vpop.f32.mrf.mxu0
      %v1306 = vadd.f32 %v1247, %v1305
      %1307 = vdwg.mxu0
      %1308 = vmatpush.msra.mxu0 0.0
      %1309 = vmatpush.msra.mxu0 0.0
      %1310 = vmatpush.msra.mxu0 0.0
      %1311 = vmatpush.msra.mxu0 0.0
      %1312 = vmatpush.msra.mxu0 0.0
      %1313 = vmatpush.msra.mxu0 0.0
      %1314 = vmatpush.msra.mxu0 0.0
      %1315 = vmatpush.msra.mxu0 0.0
      %1316 = vmatpush.msra.mxu0 0.0
      %1317 = vmatpush.msra.mxu0 0.0
      %1318 = vmatpush.msra.mxu0 0.0
      %1319 = vmatpush.msra.mxu0 0.0
      %1320 = vmatpush.msra.mxu0 0.0
      %1321 = vmatpush.msra.mxu0 0.0
      %v1322 = vand.u32 %v605, 4294901760
      %v1323 = vsub.f32 %v605, %v1322
      %1324 = vmatpush.msra.mxu0 %v1323
      %v1325 = vand.u32 %v597, 4294901760
      %v1326 = vsub.f32 %v597, %v1325
      %1327 = vmatpush.msra.mxu0 %v1326
      %v1328 = vand.u32 %v767, 4294901760
      %v1329 = vsub.f32 %v767, %v1328
      %1330 = vmatmul.f32.gmra.mxu0 %v1329
      %v1331 = vpop.f32.mrf.mxu0
      %v1332 = vadd.f32 %v1278, %v1331
      %v1333 = vand.u32 %v770, 4294901760
      %v1334 = vsub.f32 %v770, %v1333
      %1335 = vmatmul.f32.gmra.mxu0 %v1334
      %v1336 = vpop.f32.mrf.mxu0
      %v1337 = vadd.f32 %v1282, %v1336
      %v1338 = vand.u32 %v773, 4294901760
      %v1339 = vsub.f32 %v773, %v1338
      %1340 = vmatmul.f32.gmra.mxu0 %v1339
      %v1341 = vpop.f32.mrf.mxu0
      %v1342 = vadd.f32 %v1286, %v1341
      %v1343 = vand.u32 %v776, 4294901760
      %v1344 = vsub.f32 %v776, %v1343
      %1345 = vmatmul.f32.gmra.mxu0 %v1344
      %v1346 = vpop.f32.mrf.mxu0
      %v1347 = vadd.f32 %v1290, %v1346
      %v1348 = vand.u32 %v779, 4294901760
      %v1349 = vsub.f32 %v779, %v1348
      %1350 = vmatmul.f32.gmra.mxu0 %v1349
      %v1351 = vpop.f32.mrf.mxu0
      %v1352 = vadd.f32 %v1294, %v1351
      %v1353 = vand.u32 %v782, 4294901760
      %v1354 = vsub.f32 %v782, %v1353
      %1355 = vmatmul.f32.gmra.mxu0 %v1354
      %v1356 = vpop.f32.mrf.mxu0
      %v1357 = vadd.f32 %v1298, %v1356
      %v1358 = vand.u32 %v785, 4294901760
      %v1359 = vsub.f32 %v785, %v1358
      %1360 = vmatmul.f32.gmra.mxu0 %v1359
      %v1361 = vpop.f32.mrf.mxu0
      %v1362 = vadd.f32 %v1302, %v1361
      %v1363 = vand.u32 %v788, 4294901760
      %v1364 = vsub.f32 %v788, %v1363
      %1365 = vmatmul.f32.gmra.mxu0 %v1364
      %v1366 = vpop.f32.mrf.mxu0
      %v1367 = vadd.f32 %v1306, %v1366
      %1368 = vdwg.mxu0
      %1369 = vmatpush.msra.mxu0 0.0
      %1370 = vmatpush.msra.mxu0 0.0
      %1371 = vmatpush.msra.mxu0 0.0
      %1372 = vmatpush.msra.mxu0 0.0
      %1373 = vmatpush.msra.mxu0 0.0
      %1374 = vmatpush.msra.mxu0 0.0
      %1375 = vmatpush.msra.mxu0 0.0
      %1376 = vmatpush.msra.mxu0 0.0
      %1377 = vmatpush.msra.mxu0 0.0
      %1378 = vmatpush.msra.mxu0 0.0
      %1379 = vmatpush.msra.mxu0 0.0
      %1380 = vmatpush.msra.mxu0 0.0
      %1381 = vmatpush.msra.mxu0 0.0
      %1382 = vmatpush.msra.mxu0 0.0
      %v1383 = vand.u32 %v605, 4294901760
      %1384 = vmatpush.msra.mxu0 %v1383
      %v1385 = vand.u32 %v597, 4294901760
      %1386 = vmatpush.msra.mxu0 %v1385
      %v1387 = vand.u32 %v767, 4294901760
      %v1388 = vsub.f32 %v767, %v1387
      %v1389 = vand.u32 %v1388, 4294901760
      %1390 = vmatmul.f32.gmra.mxu0 %v1389
      %v1391 = vpop.f32.mrf.mxu0
      %v1392 = vadd.f32 %v1332, %v1391
      %v1393 = vand.u32 %v770, 4294901760
      %v1394 = vsub.f32 %v770, %v1393
      %v1395 = vand.u32 %v1394, 4294901760
      %1396 = vmatmul.f32.gmra.mxu0 %v1395
      %v1397 = vpop.f32.mrf.mxu0
      %v1398 = vadd.f32 %v1337, %v1397
      %v1399 = vand.u32 %v773, 4294901760
      %v1400 = vsub.f32 %v773, %v1399
      %v1401 = vand.u32 %v1400, 4294901760
      %1402 = vmatmul.f32.gmra.mxu0 %v1401
      %v1403 = vpop.f32.mrf.mxu0
      %v1404 = vadd.f32 %v1342, %v1403
      %v1405 = vand.u32 %v776, 4294901760
      %v1406 = vsub.f32 %v776, %v1405
      %v1407 = vand.u32 %v1406, 4294901760
      %1408 = vmatmul.f32.gmra.mxu0 %v1407
      %v1409 = vpop.f32.mrf.mxu0
      %v1410 = vadd.f32 %v1347, %v1409
      %v1411 = vand.u32 %v779, 4294901760
      %v1412 = vsub.f32 %v779, %v1411
      %v1413 = vand.u32 %v1412, 4294901760
      %1414 = vmatmul.f32.gmra.mxu0 %v1413
      %v1415 = vpop.f32.mrf.mxu0
      %v1416 = vadd.f32 %v1352, %v1415
      %v1417 = vand.u32 %v782, 4294901760
      %v1418 = vsub.f32 %v782, %v1417
      %v1419 = vand.u32 %v1418, 4294901760
      %1420 = vmatmul.f32.gmra.mxu0 %v1419
      %v1421 = vpop.f32.mrf.mxu0
      %v1422 = vadd.f32 %v1357, %v1421
      %v1423 = vand.u32 %v785, 4294901760
      %v1424 = vsub.f32 %v785, %v1423
      %v1425 = vand.u32 %v1424, 4294901760
      %1426 = vmatmul.f32.gmra.mxu0 %v1425
      %v1427 = vpop.f32.mrf.mxu0
      %v1428 = vadd.f32 %v1362, %v1427
      %v1429 = vand.u32 %v788, 4294901760
      %v1430 = vsub.f32 %v788, %v1429
      %v1431 = vand.u32 %v1430, 4294901760
      %1432 = vmatmul.f32.gmra.mxu0 %v1431
      %v1433 = vpop.f32.mrf.mxu0
      %v1434 = vadd.f32 %v1367, %v1433
      %1435 = vdwg.mxu0
      %1436 = vmatpush.msra.mxu0 0.0
      %1437 = vmatpush.msra.mxu0 0.0
      %1438 = vmatpush.msra.mxu0 0.0
      %1439 = vmatpush.msra.mxu0 0.0
      %1440 = vmatpush.msra.mxu0 0.0
      %1441 = vmatpush.msra.mxu0 0.0
      %1442 = vmatpush.msra.mxu0 0.0
      %1443 = vmatpush.msra.mxu0 0.0
      %1444 = vmatpush.msra.mxu0 0.0
      %1445 = vmatpush.msra.mxu0 0.0
      %1446 = vmatpush.msra.mxu0 0.0
      %1447 = vmatpush.msra.mxu0 0.0
      %1448 = vmatpush.msra.mxu0 0.0
      %1449 = vmatpush.msra.mxu0 0.0
      %v1450 = vand.u32 %v605, 4294901760
      %v1451 = vsub.f32 %v605, %v1450
      %v1452 = vand.u32 %v1451, 4294901760
      %1453 = vmatpush.msra.mxu0 %v1452
      %v1454 = vand.u32 %v597, 4294901760
      %v1455 = vsub.f32 %v597, %v1454
      %v1456 = vand.u32 %v1455, 4294901760
      %1457 = vmatpush.msra.mxu0 %v1456
      %v1458 = vand.u32 %v767, 4294901760
      %1459 = vmatmul.f32.gmra.mxu0 %v1458
      %v1460 = vpop.f32.mrf.mxu0
      %v1461 = vadd.f32 %v1392, %v1460
      %v1462 = vand.u32 %v770, 4294901760
      %1463 = vmatmul.f32.gmra.mxu0 %v1462
      %v1464 = vpop.f32.mrf.mxu0
      %v1465 = vadd.f32 %v1398, %v1464
      %v1466 = vand.u32 %v773, 4294901760
      %1467 = vmatmul.f32.gmra.mxu0 %v1466
      %v1468 = vpop.f32.mrf.mxu0
      %v1469 = vadd.f32 %v1404, %v1468
      %v1470 = vand.u32 %v776, 4294901760
      %1471 = vmatmul.f32.gmra.mxu0 %v1470
      %v1472 = vpop.f32.mrf.mxu0
      %v1473 = vadd.f32 %v1410, %v1472
      %v1474 = vand.u32 %v779, 4294901760
      %1475 = vmatmul.f32.gmra.mxu0 %v1474
      %v1476 = vpop.f32.mrf.mxu0
      %v1477 = vadd.f32 %v1416, %v1476
      %v1478 = vand.u32 %v782, 4294901760
      %1479 = vmatmul.f32.gmra.mxu0 %v1478
      %v1480 = vpop.f32.mrf.mxu0
      %v1481 = vadd.f32 %v1422, %v1480
      %v1482 = vand.u32 %v785, 4294901760
      %1483 = vmatmul.f32.gmra.mxu0 %v1482
      %v1484 = vpop.f32.mrf.mxu0
      %v1485 = vadd.f32 %v1428, %v1484
      %v1486 = vand.u32 %v788, 4294901760
      %1487 = vmatmul.f32.gmra.mxu0 %v1486
      %v1488 = vpop.f32.mrf.mxu0
      %v1489 = vadd.f32 %v1434, %v1488
      %1490 = vdwg.mxu0
      %1491 = vmatpush.msra.mxu0 0.0
      %1492 = vmatpush.msra.mxu0 0.0
      %1493 = vmatpush.msra.mxu0 0.0
      %1494 = vmatpush.msra.mxu0 0.0
      %1495 = vmatpush.msra.mxu0 0.0
      %1496 = vmatpush.msra.mxu0 0.0
      %1497 = vmatpush.msra.mxu0 0.0
      %1498 = vmatpush.msra.mxu0 0.0
      %1499 = vmatpush.msra.mxu0 0.0
      %1500 = vmatpush.msra.mxu0 0.0
      %1501 = vmatpush.msra.mxu0 0.0
      %1502 = vmatpush.msra.mxu0 0.0
      %1503 = vmatpush.msra.mxu0 0.0
      %1504 = vmatpush.msra.mxu0 0.0
      %v1505 = vand.u32 %v605, 4294901760
      %1506 = vmatpush.msra.mxu0 %v1505
      %v1507 = vand.u32 %v597, 4294901760
      %1508 = vmatpush.msra.mxu0 %v1507
      %v1509 = vand.u32 %v767, 4294901760
      %1510 = vmatmul.f32.gmra.mxu0 %v1509
      %v1511 = vpop.f32.mrf.mxu0
      %v1512 = vadd.f32 %v1461, %v1511
      %v1513 = vand.u32 %v770, 4294901760
      %1514 = vmatmul.f32.gmra.mxu0 %v1513
      %v1515 = vpop.f32.mrf.mxu0
      %v1516 = vadd.f32 %v1465, %v1515
      %v1517 = vand.u32 %v773, 4294901760
      %1518 = vmatmul.f32.gmra.mxu0 %v1517
      %v1519 = vpop.f32.mrf.mxu0
      %v1520 = vadd.f32 %v1469, %v1519
      %v1521 = vand.u32 %v776, 4294901760
      %1522 = vmatmul.f32.gmra.mxu0 %v1521
      %v1523 = vpop.f32.mrf.mxu0
      %v1524 = vadd.f32 %v1473, %v1523
      %v1525 = vand.u32 %v779, 4294901760
      %1526 = vmatmul.f32.gmra.mxu0 %v1525
      %v1527 = vpop.f32.mrf.mxu0
      %v1528 = vadd.f32 %v1477, %v1527
      %v1529 = vand.u32 %v782, 4294901760
      %1530 = vmatmul.f32.gmra.mxu0 %v1529
      %v1531 = vpop.f32.mrf.mxu0
      %v1532 = vadd.f32 %v1481, %v1531
      %v1533 = vand.u32 %v785, 4294901760
      %1534 = vmatmul.f32.gmra.mxu0 %v1533
      %v1535 = vpop.f32.mrf.mxu0
      %v1536 = vadd.f32 %v1485, %v1535
      %v1537 = vand.u32 %v788, 4294901760
      %1538 = vmatmul.f32.gmra.mxu0 %v1537
      %v1539 = vpop.f32.mrf.mxu0
      %v1540 = vadd.f32 %v1489, %v1539
      %1541 = vdwg.mxu0
      %1542 = vmatpush.msra.mxu0 0.0
      %1543 = vmatpush.msra.mxu0 0.0
      %1544 = vmatpush.msra.mxu0 0.0
      %1545 = vmatpush.msra.mxu0 0.0
      %1546 = vmatpush.msra.mxu0 0.0
      %1547 = vmatpush.msra.mxu0 0.0
      %1548 = vmatpush.msra.mxu0 0.0
      %1549 = vmatpush.msra.mxu0 0.0
      %1550 = vmatpush.msra.mxu0 0.0
      %1551 = vmatpush.msra.mxu0 0.0
      %1552 = vmatpush.msra.mxu0 0.0
      %1553 = vmatpush.msra.mxu0 0.0
      %1554 = vmatpush.msra.mxu0 0.0
      %1555 = vmatpush.msra.mxu0 0.0
      %v1556 = vand.u32 %v606, 4294901760
      %1557 = vmatpush.msra.mxu0 %v1556
      %v1558 = vand.u32 %v598, 4294901760
      %1559 = vmatpush.msra.mxu0 %v1558
      %v1560 = vand.u32 %v767, 4294901760
      %v1561 = vsub.f32 %v767, %v1560
      %v1562 = vand.u32 %v1561, 4294901760
      %v1563 = vsub.f32 %v1561, %v1562
      %v1564 = vand.u32 %v1563, 4294901760
      %1565 = vmatmul.f32.gmra.mxu0 %v1564
      %v1566 = vpop.f32.mrf.mxu0
      %v1567 = vadd.f32 %v703, %v1566
      %v1568 = vand.u32 %v770, 4294901760
      %v1569 = vsub.f32 %v770, %v1568
      %v1570 = vand.u32 %v1569, 4294901760
      %v1571 = vsub.f32 %v1569, %v1570
      %v1572 = vand.u32 %v1571, 4294901760
      %1573 = vmatmul.f32.gmra.mxu0 %v1572
      %v1574 = vpop.f32.mrf.mxu0
      %v1575 = vadd.f32 %v711, %v1574
      %v1576 = vand.u32 %v773, 4294901760
      %v1577 = vsub.f32 %v773, %v1576
      %v1578 = vand.u32 %v1577, 4294901760
      %v1579 = vsub.f32 %v1577, %v1578
      %v1580 = vand.u32 %v1579, 4294901760
      %1581 = vmatmul.f32.gmra.mxu0 %v1580
      %v1582 = vpop.f32.mrf.mxu0
      %v1583 = vadd.f32 %v719, %v1582
      %v1584 = vand.u32 %v776, 4294901760
      %v1585 = vsub.f32 %v776, %v1584
      %v1586 = vand.u32 %v1585, 4294901760
      %v1587 = vsub.f32 %v1585, %v1586
      %v1588 = vand.u32 %v1587, 4294901760
      %1589 = vmatmul.f32.gmra.mxu0 %v1588
      %v1590 = vpop.f32.mrf.mxu0
      %v1591 = vadd.f32 %v727, %v1590
      %v1592 = vand.u32 %v779, 4294901760
      %v1593 = vsub.f32 %v779, %v1592
      %v1594 = vand.u32 %v1593, 4294901760
      %v1595 = vsub.f32 %v1593, %v1594
      %v1596 = vand.u32 %v1595, 4294901760
      %1597 = vmatmul.f32.gmra.mxu0 %v1596
      %v1598 = vpop.f32.mrf.mxu0
      %v1599 = vadd.f32 %v735, %v1598
      %v1600 = vand.u32 %v782, 4294901760
      %v1601 = vsub.f32 %v782, %v1600
      %v1602 = vand.u32 %v1601, 4294901760
      %v1603 = vsub.f32 %v1601, %v1602
      %v1604 = vand.u32 %v1603, 4294901760
      %1605 = vmatmul.f32.gmra.mxu0 %v1604
      %v1606 = vpop.f32.mrf.mxu0
      %v1607 = vadd.f32 %v743, %v1606
      %v1608 = vand.u32 %v785, 4294901760
      %v1609 = vsub.f32 %v785, %v1608
      %v1610 = vand.u32 %v1609, 4294901760
      %v1611 = vsub.f32 %v1609, %v1610
      %v1612 = vand.u32 %v1611, 4294901760
      %1613 = vmatmul.f32.gmra.mxu0 %v1612
      %v1614 = vpop.f32.mrf.mxu0
      %v1615 = vadd.f32 %v751, %v1614
      %v1616 = vand.u32 %v788, 4294901760
      %v1617 = vsub.f32 %v788, %v1616
      %v1618 = vand.u32 %v1617, 4294901760
      %v1619 = vsub.f32 %v1617, %v1618
      %v1620 = vand.u32 %v1619, 4294901760
      %1621 = vmatmul.f32.gmra.mxu0 %v1620
      %v1622 = vpop.f32.mrf.mxu0
      %v1623 = vadd.f32 %v759, %v1622
      %1624 = vdwg.mxu0
      %1625 = vmatpush.msra.mxu0 0.0
      %1626 = vmatpush.msra.mxu0 0.0
      %1627 = vmatpush.msra.mxu0 0.0
      %1628 = vmatpush.msra.mxu0 0.0
      %1629 = vmatpush.msra.mxu0 0.0
      %1630 = vmatpush.msra.mxu0 0.0
      %1631 = vmatpush.msra.mxu0 0.0
      %1632 = vmatpush.msra.mxu0 0.0
      %1633 = vmatpush.msra.mxu0 0.0
      %1634 = vmatpush.msra.mxu0 0.0
      %1635 = vmatpush.msra.mxu0 0.0
      %1636 = vmatpush.msra.mxu0 0.0
      %1637 = vmatpush.msra.mxu0 0.0
      %1638 = vmatpush.msra.mxu0 0.0
      %v1639 = vand.u32 %v606, 4294901760
      %v1640 = vsub.f32 %v606, %v1639
      %v1641 = vand.u32 %v1640, 4294901760
      %v1642 = vsub.f32 %v1640, %v1641
      %v1643 = vand.u32 %v1642, 4294901760
      %1644 = vmatpush.msra.mxu0 %v1643
      %v1645 = vand.u32 %v598, 4294901760
      %v1646 = vsub.f32 %v598, %v1645
      %v1647 = vand.u32 %v1646, 4294901760
      %v1648 = vsub.f32 %v1646, %v1647
      %v1649 = vand.u32 %v1648, 4294901760
      %1650 = vmatpush.msra.mxu0 %v1649
      %v1651 = vand.u32 %v767, 4294901760
      %1652 = vmatmul.f32.gmra.mxu0 %v1651
      %v1653 = vpop.f32.mrf.mxu0
      %v1654 = vadd.f32 %v1567, %v1653
      %v1655 = vand.u32 %v770, 4294901760
      %1656 = vmatmul.f32.gmra.mxu0 %v1655
      %v1657 = vpop.f32.mrf.mxu0
      %v1658 = vadd.f32 %v1575, %v1657
      %v1659 = vand.u32 %v773, 4294901760
      %1660 = vmatmul.f32.gmra.mxu0 %v1659
      %v1661 = vpop.f32.mrf.mxu0
      %v1662 = vadd.f32 %v1583, %v1661
      %v1663 = vand.u32 %v776, 4294901760
      %1664 = vmatmul.f32.gmra.mxu0 %v1663
      %v1665 = vpop.f32.mrf.mxu0
      %v1666 = vadd.f32 %v1591, %v1665
      %v1667 = vand.u32 %v779, 4294901760
      %1668 = vmatmul.f32.gmra.mxu0 %v1667
      %v1669 = vpop.f32.mrf.mxu0
      %v1670 = vadd.f32 %v1599, %v1669
      %v1671 = vand.u32 %v782, 4294901760
      %1672 = vmatmul.f32.gmra.mxu0 %v1671
      %v1673 = vpop.f32.mrf.mxu0
      %v1674 = vadd.f32 %v1607, %v1673
      %v1675 = vand.u32 %v785, 4294901760
      %1676 = vmatmul.f32.gmra.mxu0 %v1675
      %v1677 = vpop.f32.mrf.mxu0
      %v1678 = vadd.f32 %v1615, %v1677
      %v1679 = vand.u32 %v788, 4294901760
      %1680 = vmatmul.f32.gmra.mxu0 %v1679
      %v1681 = vpop.f32.mrf.mxu0
      %v1682 = vadd.f32 %v1623, %v1681
      %1683 = vdwg.mxu0
      %1684 = vmatpush.msra.mxu0 0.0
      %1685 = vmatpush.msra.mxu0 0.0
      %1686 = vmatpush.msra.mxu0 0.0
      %1687 = vmatpush.msra.mxu0 0.0
      %1688 = vmatpush.msra.mxu0 0.0
      %1689 = vmatpush.msra.mxu0 0.0
      %1690 = vmatpush.msra.mxu0 0.0
      %1691 = vmatpush.msra.mxu0 0.0
      %1692 = vmatpush.msra.mxu0 0.0
      %1693 = vmatpush.msra.mxu0 0.0
      %1694 = vmatpush.msra.mxu0 0.0
      %1695 = vmatpush.msra.mxu0 0.0
      %1696 = vmatpush.msra.mxu0 0.0
      %1697 = vmatpush.msra.mxu0 0.0
      %v1698 = vand.u32 %v606, 4294901760
      %v1699 = vsub.f32 %v606, %v1698
      %1700 = vmatpush.msra.mxu0 %v1699
      %v1701 = vand.u32 %v598, 4294901760
      %v1702 = vsub.f32 %v598, %v1701
      %1703 = vmatpush.msra.mxu0 %v1702
      %v1704 = vand.u32 %v767, 4294901760
      %v1705 = vsub.f32 %v767, %v1704
      %1706 = vmatmul.f32.gmra.mxu0 %v1705
      %v1707 = vpop.f32.mrf.mxu0
      %v1708 = vadd.f32 %v1654, %v1707
      %v1709 = vand.u32 %v770, 4294901760
      %v1710 = vsub.f32 %v770, %v1709
      %1711 = vmatmul.f32.gmra.mxu0 %v1710
      %v1712 = vpop.f32.mrf.mxu0
      %v1713 = vadd.f32 %v1658, %v1712
      %v1714 = vand.u32 %v773, 4294901760
      %v1715 = vsub.f32 %v773, %v1714
      %1716 = vmatmul.f32.gmra.mxu0 %v1715
      %v1717 = vpop.f32.mrf.mxu0
      %v1718 = vadd.f32 %v1662, %v1717
      %v1719 = vand.u32 %v776, 4294901760
      %v1720 = vsub.f32 %v776, %v1719
      %1721 = vmatmul.f32.gmra.mxu0 %v1720
      %v1722 = vpop.f32.mrf.mxu0
      %v1723 = vadd.f32 %v1666, %v1722
      %v1724 = vand.u32 %v779, 4294901760
      %v1725 = vsub.f32 %v779, %v1724
      %1726 = vmatmul.f32.gmra.mxu0 %v1725
      %v1727 = vpop.f32.mrf.mxu0
      %v1728 = vadd.f32 %v1670, %v1727
      %v1729 = vand.u32 %v782, 4294901760
      %v1730 = vsub.f32 %v782, %v1729
      %1731 = vmatmul.f32.gmra.mxu0 %v1730
      %v1732 = vpop.f32.mrf.mxu0
      %v1733 = vadd.f32 %v1674, %v1732
      %v1734 = vand.u32 %v785, 4294901760
      %v1735 = vsub.f32 %v785, %v1734
      %1736 = vmatmul.f32.gmra.mxu0 %v1735
      %v1737 = vpop.f32.mrf.mxu0
      %v1738 = vadd.f32 %v1678, %v1737
      %v1739 = vand.u32 %v788, 4294901760
      %v1740 = vsub.f32 %v788, %v1739
      %1741 = vmatmul.f32.gmra.mxu0 %v1740
      %v1742 = vpop.f32.mrf.mxu0
      %v1743 = vadd.f32 %v1682, %v1742
      %1744 = vdwg.mxu0
      %1745 = vmatpush.msra.mxu0 0.0
      %1746 = vmatpush.msra.mxu0 0.0
      %1747 = vmatpush.msra.mxu0 0.0
      %1748 = vmatpush.msra.mxu0 0.0
      %1749 = vmatpush.msra.mxu0 0.0
      %1750 = vmatpush.msra.mxu0 0.0
      %1751 = vmatpush.msra.mxu0 0.0
      %1752 = vmatpush.msra.mxu0 0.0
      %1753 = vmatpush.msra.mxu0 0.0
      %1754 = vmatpush.msra.mxu0 0.0
      %1755 = vmatpush.msra.mxu0 0.0
      %1756 = vmatpush.msra.mxu0 0.0
      %1757 = vmatpush.msra.mxu0 0.0
      %1758 = vmatpush.msra.mxu0 0.0
      %v1759 = vand.u32 %v606, 4294901760
      %1760 = vmatpush.msra.mxu0 %v1759
      %v1761 = vand.u32 %v598, 4294901760
      %1762 = vmatpush.msra.mxu0 %v1761
      %v1763 = vand.u32 %v767, 4294901760
      %v1764 = vsub.f32 %v767, %v1763
      %v1765 = vand.u32 %v1764, 4294901760
      %1766 = vmatmul.f32.gmra.mxu0 %v1765
      %v1767 = vpop.f32.mrf.mxu0
      %v1768 = vadd.f32 %v1708, %v1767
      %v1769 = vand.u32 %v770, 4294901760
      %v1770 = vsub.f32 %v770, %v1769
      %v1771 = vand.u32 %v1770, 4294901760
      %1772 = vmatmul.f32.gmra.mxu0 %v1771
      %v1773 = vpop.f32.mrf.mxu0
      %v1774 = vadd.f32 %v1713, %v1773
      %v1775 = vand.u32 %v773, 4294901760
      %v1776 = vsub.f32 %v773, %v1775
      %v1777 = vand.u32 %v1776, 4294901760
      %1778 = vmatmul.f32.gmra.mxu0 %v1777
      %v1779 = vpop.f32.mrf.mxu0
      %v1780 = vadd.f32 %v1718, %v1779
      %v1781 = vand.u32 %v776, 4294901760
      %v1782 = vsub.f32 %v776, %v1781
      %v1783 = vand.u32 %v1782, 4294901760
      %1784 = vmatmul.f32.gmra.mxu0 %v1783
      %v1785 = vpop.f32.mrf.mxu0
      %v1786 = vadd.f32 %v1723, %v1785
      %v1787 = vand.u32 %v779, 4294901760
      %v1788 = vsub.f32 %v779, %v1787
      %v1789 = vand.u32 %v1788, 4294901760
      %1790 = vmatmul.f32.gmra.mxu0 %v1789
      %v1791 = vpop.f32.mrf.mxu0
      %v1792 = vadd.f32 %v1728, %v1791
      %v1793 = vand.u32 %v782, 4294901760
      %v1794 = vsub.f32 %v782, %v1793
      %v1795 = vand.u32 %v1794, 4294901760
      %1796 = vmatmul.f32.gmra.mxu0 %v1795
      %v1797 = vpop.f32.mrf.mxu0
      %v1798 = vadd.f32 %v1733, %v1797
      %v1799 = vand.u32 %v785, 4294901760
      %v1800 = vsub.f32 %v785, %v1799
      %v1801 = vand.u32 %v1800, 4294901760
      %1802 = vmatmul.f32.gmra.mxu0 %v1801
      %v1803 = vpop.f32.mrf.mxu0
      %v1804 = vadd.f32 %v1738, %v1803
      %v1805 = vand.u32 %v788, 4294901760
      %v1806 = vsub.f32 %v788, %v1805
      %v1807 = vand.u32 %v1806, 4294901760
      %1808 = vmatmul.f32.gmra.mxu0 %v1807
      %v1809 = vpop.f32.mrf.mxu0
      %v1810 = vadd.f32 %v1743, %v1809
      %1811 = vdwg.mxu0
      %1812 = vmatpush.msra.mxu0 0.0
      %1813 = vmatpush.msra.mxu0 0.0
      %1814 = vmatpush.msra.mxu0 0.0
      %1815 = vmatpush.msra.mxu0 0.0
      %1816 = vmatpush.msra.mxu0 0.0
      %1817 = vmatpush.msra.mxu0 0.0
      %1818 = vmatpush.msra.mxu0 0.0
      %1819 = vmatpush.msra.mxu0 0.0
      %1820 = vmatpush.msra.mxu0 0.0
      %1821 = vmatpush.msra.mxu0 0.0
      %1822 = vmatpush.msra.mxu0 0.0
      %1823 = vmatpush.msra.mxu0 0.0
      %1824 = vmatpush.msra.mxu0 0.0
      %1825 = vmatpush.msra.mxu0 0.0
      %v1826 = vand.u32 %v606, 4294901760
      %v1827 = vsub.f32 %v606, %v1826
      %v1828 = vand.u32 %v1827, 4294901760
      %1829 = vmatpush.msra.mxu0 %v1828
      %v1830 = vand.u32 %v598, 4294901760
      %v1831 = vsub.f32 %v598, %v1830
      %v1832 = vand.u32 %v1831, 4294901760
      %1833 = vmatpush.msra.mxu0 %v1832
      %v1834 = vand.u32 %v767, 4294901760
      %1835 = vmatmul.f32.gmra.mxu0 %v1834
      %v1836 = vpop.f32.mrf.mxu0
      %v1837 = vadd.f32 %v1768, %v1836
      %v1838 = vand.u32 %v770, 4294901760
      %1839 = vmatmul.f32.gmra.mxu0 %v1838
      %v1840 = vpop.f32.mrf.mxu0
      %v1841 = vadd.f32 %v1774, %v1840
      %v1842 = vand.u32 %v773, 4294901760
      %1843 = vmatmul.f32.gmra.mxu0 %v1842
      %v1844 = vpop.f32.mrf.mxu0
      %v1845 = vadd.f32 %v1780, %v1844
      %v1846 = vand.u32 %v776, 4294901760
      %1847 = vmatmul.f32.gmra.mxu0 %v1846
      %v1848 = vpop.f32.mrf.mxu0
      %v1849 = vadd.f32 %v1786, %v1848
      %v1850 = vand.u32 %v779, 4294901760
      %1851 = vmatmul.f32.gmra.mxu0 %v1850
      %v1852 = vpop.f32.mrf.mxu0
      %v1853 = vadd.f32 %v1792, %v1852
      %v1854 = vand.u32 %v782, 4294901760
      %1855 = vmatmul.f32.gmra.mxu0 %v1854
      %v1856 = vpop.f32.mrf.mxu0
      %v1857 = vadd.f32 %v1798, %v1856
      %v1858 = vand.u32 %v785, 4294901760
      %1859 = vmatmul.f32.gmra.mxu0 %v1858
      %v1860 = vpop.f32.mrf.mxu0
      %v1861 = vadd.f32 %v1804, %v1860
      %v1862 = vand.u32 %v788, 4294901760
      %1863 = vmatmul.f32.gmra.mxu0 %v1862
      %v1864 = vpop.f32.mrf.mxu0
      %v1865 = vadd.f32 %v1810, %v1864
      %1866 = vdwg.mxu0
      %1867 = vmatpush.msra.mxu0 0.0
      %1868 = vmatpush.msra.mxu0 0.0
      %1869 = vmatpush.msra.mxu0 0.0
      %1870 = vmatpush.msra.mxu0 0.0
      %1871 = vmatpush.msra.mxu0 0.0
      %1872 = vmatpush.msra.mxu0 0.0
      %1873 = vmatpush.msra.mxu0 0.0
      %1874 = vmatpush.msra.mxu0 0.0
      %1875 = vmatpush.msra.mxu0 0.0
      %1876 = vmatpush.msra.mxu0 0.0
      %1877 = vmatpush.msra.mxu0 0.0
      %1878 = vmatpush.msra.mxu0 0.0
      %1879 = vmatpush.msra.mxu0 0.0
      %1880 = vmatpush.msra.mxu0 0.0
      %v1881 = vand.u32 %v606, 4294901760
      %1882 = vmatpush.msra.mxu0 %v1881
      %v1883 = vand.u32 %v598, 4294901760
      %1884 = vmatpush.msra.mxu0 %v1883
      %v1885 = vand.u32 %v767, 4294901760
      %1886 = vmatmul.f32.gmra.mxu0 %v1885
      %v1887 = vpop.f32.mrf.mxu0
      %v1888 = vadd.f32 %v1837, %v1887
      %v1889 = vand.u32 %v770, 4294901760
      %1890 = vmatmul.f32.gmra.mxu0 %v1889
      %v1891 = vpop.f32.mrf.mxu0
      %v1892 = vadd.f32 %v1841, %v1891
      %v1893 = vand.u32 %v773, 4294901760
      %1894 = vmatmul.f32.gmra.mxu0 %v1893
      %v1895 = vpop.f32.mrf.mxu0
      %v1896 = vadd.f32 %v1845, %v1895
      %v1897 = vand.u32 %v776, 4294901760
      %1898 = vmatmul.f32.gmra.mxu0 %v1897
      %v1899 = vpop.f32.mrf.mxu0
      %v1900 = vadd.f32 %v1849, %v1899
      %v1901 = vand.u32 %v779, 4294901760
      %1902 = vmatmul.f32.gmra.mxu0 %v1901
      %v1903 = vpop.f32.mrf.mxu0
      %v1904 = vadd.f32 %v1853, %v1903
      %v1905 = vand.u32 %v782, 4294901760
      %1906 = vmatmul.f32.gmra.mxu0 %v1905
      %v1907 = vpop.f32.mrf.mxu0
      %v1908 = vadd.f32 %v1857, %v1907
      %v1909 = vand.u32 %v785, 4294901760
      %1910 = vmatmul.f32.gmra.mxu0 %v1909
      %v1911 = vpop.f32.mrf.mxu0
      %v1912 = vadd.f32 %v1861, %v1911
      %v1913 = vand.u32 %v788, 4294901760
      %1914 = vmatmul.f32.gmra.mxu0 %v1913
      %v1915 = vpop.f32.mrf.mxu0
      %v1916 = vadd.f32 %v1865, %v1915
      %1917 = vdwg.mxu0
      %1918 = vmatpush.msra.mxu0 0.0
      %1919 = vmatpush.msra.mxu0 0.0
      %1920 = vmatpush.msra.mxu0 0.0
      %1921 = vmatpush.msra.mxu0 0.0
      %1922 = vmatpush.msra.mxu0 0.0
      %1923 = vmatpush.msra.mxu0 0.0
      %1924 = vmatpush.msra.mxu0 0.0
      %1925 = vmatpush.msra.mxu0 0.0
      %1926 = vmatpush.msra.mxu0 0.0
      %1927 = vmatpush.msra.mxu0 0.0
      %1928 = vmatpush.msra.mxu0 0.0
      %1929 = vmatpush.msra.mxu0 0.0
      %1930 = vmatpush.msra.mxu0 0.0
      %1931 = vmatpush.msra.mxu0 0.0
      %v1932 = vand.u32 %v607, 4294901760
      %1933 = vmatpush.msra.mxu0 %v1932
      %v1934 = vand.u32 %v599, 4294901760
      %1935 = vmatpush.msra.mxu0 %v1934
      %v1936 = vand.u32 %v767, 4294901760
      %v1937 = vsub.f32 %v767, %v1936
      %v1938 = vand.u32 %v1937, 4294901760
      %v1939 = vsub.f32 %v1937, %v1938
      %v1940 = vand.u32 %v1939, 4294901760
      %1941 = vmatmul.f32.gmra.mxu0 %v1940
      %v1942 = vpop.f32.mrf.mxu0
      %v1943 = vadd.f32 %v704, %v1942
      %v1944 = vand.u32 %v770, 4294901760
      %v1945 = vsub.f32 %v770, %v1944
      %v1946 = vand.u32 %v1945, 4294901760
      %v1947 = vsub.f32 %v1945, %v1946
      %v1948 = vand.u32 %v1947, 4294901760
      %1949 = vmatmul.f32.gmra.mxu0 %v1948
      %v1950 = vpop.f32.mrf.mxu0
      %v1951 = vadd.f32 %v712, %v1950
      %v1952 = vand.u32 %v773, 4294901760
      %v1953 = vsub.f32 %v773, %v1952
      %v1954 = vand.u32 %v1953, 4294901760
      %v1955 = vsub.f32 %v1953, %v1954
      %v1956 = vand.u32 %v1955, 4294901760
      %1957 = vmatmul.f32.gmra.mxu0 %v1956
      %v1958 = vpop.f32.mrf.mxu0
      %v1959 = vadd.f32 %v720, %v1958
      %v1960 = vand.u32 %v776, 4294901760
      %v1961 = vsub.f32 %v776, %v1960
      %v1962 = vand.u32 %v1961, 4294901760
      %v1963 = vsub.f32 %v1961, %v1962
      %v1964 = vand.u32 %v1963, 4294901760
      %1965 = vmatmul.f32.gmra.mxu0 %v1964
      %v1966 = vpop.f32.mrf.mxu0
      %v1967 = vadd.f32 %v728, %v1966
      %v1968 = vand.u32 %v779, 4294901760
      %v1969 = vsub.f32 %v779, %v1968
      %v1970 = vand.u32 %v1969, 4294901760
      %v1971 = vsub.f32 %v1969, %v1970
      %v1972 = vand.u32 %v1971, 4294901760
      %1973 = vmatmul.f32.gmra.mxu0 %v1972
      %v1974 = vpop.f32.mrf.mxu0
      %v1975 = vadd.f32 %v736, %v1974
      %v1976 = vand.u32 %v782, 4294901760
      %v1977 = vsub.f32 %v782, %v1976
      %v1978 = vand.u32 %v1977, 4294901760
      %v1979 = vsub.f32 %v1977, %v1978
      %v1980 = vand.u32 %v1979, 4294901760
      %1981 = vmatmul.f32.gmra.mxu0 %v1980
      %v1982 = vpop.f32.mrf.mxu0
      %v1983 = vadd.f32 %v744, %v1982
      %v1984 = vand.u32 %v785, 4294901760
      %v1985 = vsub.f32 %v785, %v1984
      %v1986 = vand.u32 %v1985, 4294901760
      %v1987 = vsub.f32 %v1985, %v1986
      %v1988 = vand.u32 %v1987, 4294901760
      %1989 = vmatmul.f32.gmra.mxu0 %v1988
      %v1990 = vpop.f32.mrf.mxu0
      %v1991 = vadd.f32 %v752, %v1990
      %v1992 = vand.u32 %v788, 4294901760
      %v1993 = vsub.f32 %v788, %v1992
      %v1994 = vand.u32 %v1993, 4294901760
      %v1995 = vsub.f32 %v1993, %v1994
      %v1996 = vand.u32 %v1995, 4294901760
      %1997 = vmatmul.f32.gmra.mxu0 %v1996
      %v1998 = vpop.f32.mrf.mxu0
      %v1999 = vadd.f32 %v760, %v1998
      %2000 = vdwg.mxu0
      %2001 = vmatpush.msra.mxu0 0.0
      %2002 = vmatpush.msra.mxu0 0.0
      %2003 = vmatpush.msra.mxu0 0.0
      %2004 = vmatpush.msra.mxu0 0.0
      %2005 = vmatpush.msra.mxu0 0.0
      %2006 = vmatpush.msra.mxu0 0.0
      %2007 = vmatpush.msra.mxu0 0.0
      %2008 = vmatpush.msra.mxu0 0.0
      %2009 = vmatpush.msra.mxu0 0.0
      %2010 = vmatpush.msra.mxu0 0.0
      %2011 = vmatpush.msra.mxu0 0.0
      %2012 = vmatpush.msra.mxu0 0.0
      %2013 = vmatpush.msra.mxu0 0.0
      %2014 = vmatpush.msra.mxu0 0.0
      %v2015 = vand.u32 %v607, 4294901760
      %v2016 = vsub.f32 %v607, %v2015
      %v2017 = vand.u32 %v2016, 4294901760
      %v2018 = vsub.f32 %v2016, %v2017
      %v2019 = vand.u32 %v2018, 4294901760
      %2020 = vmatpush.msra.mxu0 %v2019
      %v2021 = vand.u32 %v599, 4294901760
      %v2022 = vsub.f32 %v599, %v2021
      %v2023 = vand.u32 %v2022, 4294901760
      %v2024 = vsub.f32 %v2022, %v2023
      %v2025 = vand.u32 %v2024, 4294901760
      %2026 = vmatpush.msra.mxu0 %v2025
      %v2027 = vand.u32 %v767, 4294901760
      %2028 = vmatmul.f32.gmra.mxu0 %v2027
      %v2029 = vpop.f32.mrf.mxu0
      %v2030 = vadd.f32 %v1943, %v2029
      %v2031 = vand.u32 %v770, 4294901760
      %2032 = vmatmul.f32.gmra.mxu0 %v2031
      %v2033 = vpop.f32.mrf.mxu0
      %v2034 = vadd.f32 %v1951, %v2033
      %v2035 = vand.u32 %v773, 4294901760
      %2036 = vmatmul.f32.gmra.mxu0 %v2035
      %v2037 = vpop.f32.mrf.mxu0
      %v2038 = vadd.f32 %v1959, %v2037
      %v2039 = vand.u32 %v776, 4294901760
      %2040 = vmatmul.f32.gmra.mxu0 %v2039
      %v2041 = vpop.f32.mrf.mxu0
      %v2042 = vadd.f32 %v1967, %v2041
      %v2043 = vand.u32 %v779, 4294901760
      %2044 = vmatmul.f32.gmra.mxu0 %v2043
      %v2045 = vpop.f32.mrf.mxu0
      %v2046 = vadd.f32 %v1975, %v2045
      %v2047 = vand.u32 %v782, 4294901760
      %2048 = vmatmul.f32.gmra.mxu0 %v2047
      %v2049 = vpop.f32.mrf.mxu0
      %v2050 = vadd.f32 %v1983, %v2049
      %v2051 = vand.u32 %v785, 4294901760
      %2052 = vmatmul.f32.gmra.mxu0 %v2051
      %v2053 = vpop.f32.mrf.mxu0
      %v2054 = vadd.f32 %v1991, %v2053
      %v2055 = vand.u32 %v788, 4294901760
      %2056 = vmatmul.f32.gmra.mxu0 %v2055
      %v2057 = vpop.f32.mrf.mxu0
      %v2058 = vadd.f32 %v1999, %v2057
      %2059 = vdwg.mxu0
      %2060 = vmatpush.msra.mxu0 0.0
      %2061 = vmatpush.msra.mxu0 0.0
      %2062 = vmatpush.msra.mxu0 0.0
      %2063 = vmatpush.msra.mxu0 0.0
      %2064 = vmatpush.msra.mxu0 0.0
      %2065 = vmatpush.msra.mxu0 0.0
      %2066 = vmatpush.msra.mxu0 0.0
      %2067 = vmatpush.msra.mxu0 0.0
      %2068 = vmatpush.msra.mxu0 0.0
      %2069 = vmatpush.msra.mxu0 0.0
      %2070 = vmatpush.msra.mxu0 0.0
      %2071 = vmatpush.msra.mxu0 0.0
      %2072 = vmatpush.msra.mxu0 0.0
      %2073 = vmatpush.msra.mxu0 0.0
      %v2074 = vand.u32 %v607, 4294901760
      %v2075 = vsub.f32 %v607, %v2074
      %2076 = vmatpush.msra.mxu0 %v2075
      %v2077 = vand.u32 %v599, 4294901760
      %v2078 = vsub.f32 %v599, %v2077
      %2079 = vmatpush.msra.mxu0 %v2078
      %v2080 = vand.u32 %v767, 4294901760
      %v2081 = vsub.f32 %v767, %v2080
      %2082 = vmatmul.f32.gmra.mxu0 %v2081
      %v2083 = vpop.f32.mrf.mxu0
      %v2084 = vadd.f32 %v2030, %v2083
      %v2085 = vand.u32 %v770, 4294901760
      %v2086 = vsub.f32 %v770, %v2085
      %2087 = vmatmul.f32.gmra.mxu0 %v2086
      %v2088 = vpop.f32.mrf.mxu0
      %v2089 = vadd.f32 %v2034, %v2088
      %v2090 = vand.u32 %v773, 4294901760
      %v2091 = vsub.f32 %v773, %v2090
      %2092 = vmatmul.f32.gmra.mxu0 %v2091
      %v2093 = vpop.f32.mrf.mxu0
      %v2094 = vadd.f32 %v2038, %v2093
      %v2095 = vand.u32 %v776, 4294901760
      %v2096 = vsub.f32 %v776, %v2095
      %2097 = vmatmul.f32.gmra.mxu0 %v2096
      %v2098 = vpop.f32.mrf.mxu0
      %v2099 = vadd.f32 %v2042, %v2098
      %v2100 = vand.u32 %v779, 4294901760
      %v2101 = vsub.f32 %v779, %v2100
      %2102 = vmatmul.f32.gmra.mxu0 %v2101
      %v2103 = vpop.f32.mrf.mxu0
      %v2104 = vadd.f32 %v2046, %v2103
      %v2105 = vand.u32 %v782, 4294901760
      %v2106 = vsub.f32 %v782, %v2105
      %2107 = vmatmul.f32.gmra.mxu0 %v2106
      %v2108 = vpop.f32.mrf.mxu0
      %v2109 = vadd.f32 %v2050, %v2108
      %v2110 = vand.u32 %v785, 4294901760
      %v2111 = vsub.f32 %v785, %v2110
      %2112 = vmatmul.f32.gmra.mxu0 %v2111
      %v2113 = vpop.f32.mrf.mxu0
      %v2114 = vadd.f32 %v2054, %v2113
      %v2115 = vand.u32 %v788, 4294901760
      %v2116 = vsub.f32 %v788, %v2115
      %2117 = vmatmul.f32.gmra.mxu0 %v2116
      %v2118 = vpop.f32.mrf.mxu0
      %v2119 = vadd.f32 %v2058, %v2118
      %2120 = vdwg.mxu0
      %2121 = vmatpush.msra.mxu0 0.0
      %2122 = vmatpush.msra.mxu0 0.0
      %2123 = vmatpush.msra.mxu0 0.0
      %2124 = vmatpush.msra.mxu0 0.0
      %2125 = vmatpush.msra.mxu0 0.0
      %2126 = vmatpush.msra.mxu0 0.0
      %2127 = vmatpush.msra.mxu0 0.0
      %2128 = vmatpush.msra.mxu0 0.0
      %2129 = vmatpush.msra.mxu0 0.0
      %2130 = vmatpush.msra.mxu0 0.0
      %2131 = vmatpush.msra.mxu0 0.0
      %2132 = vmatpush.msra.mxu0 0.0
      %2133 = vmatpush.msra.mxu0 0.0
      %2134 = vmatpush.msra.mxu0 0.0
      %v2135 = vand.u32 %v607, 4294901760
      %2136 = vmatpush.msra.mxu0 %v2135
      %v2137 = vand.u32 %v599, 4294901760
      %2138 = vmatpush.msra.mxu0 %v2137
      %v2139 = vand.u32 %v767, 4294901760
      %v2140 = vsub.f32 %v767, %v2139
      %v2141 = vand.u32 %v2140, 4294901760
      %2142 = vmatmul.f32.gmra.mxu0 %v2141
      %v2143 = vpop.f32.mrf.mxu0
      %v2144 = vadd.f32 %v2084, %v2143
      %v2145 = vand.u32 %v770, 4294901760
      %v2146 = vsub.f32 %v770, %v2145
      %v2147 = vand.u32 %v2146, 4294901760
      %2148 = vmatmul.f32.gmra.mxu0 %v2147
      %v2149 = vpop.f32.mrf.mxu0
      %v2150 = vadd.f32 %v2089, %v2149
      %v2151 = vand.u32 %v773, 4294901760
      %v2152 = vsub.f32 %v773, %v2151
      %v2153 = vand.u32 %v2152, 4294901760
      %2154 = vmatmul.f32.gmra.mxu0 %v2153
      %v2155 = vpop.f32.mrf.mxu0
      %v2156 = vadd.f32 %v2094, %v2155
      %v2157 = vand.u32 %v776, 4294901760
      %v2158 = vsub.f32 %v776, %v2157
      %v2159 = vand.u32 %v2158, 4294901760
      %2160 = vmatmul.f32.gmra.mxu0 %v2159
      %v2161 = vpop.f32.mrf.mxu0
      %v2162 = vadd.f32 %v2099, %v2161
      %v2163 = vand.u32 %v779, 4294901760
      %v2164 = vsub.f32 %v779, %v2163
      %v2165 = vand.u32 %v2164, 4294901760
      %2166 = vmatmul.f32.gmra.mxu0 %v2165
      %v2167 = vpop.f32.mrf.mxu0
      %v2168 = vadd.f32 %v2104, %v2167
      %v2169 = vand.u32 %v782, 4294901760
      %v2170 = vsub.f32 %v782, %v2169
      %v2171 = vand.u32 %v2170, 4294901760
      %2172 = vmatmul.f32.gmra.mxu0 %v2171
      %v2173 = vpop.f32.mrf.mxu0
      %v2174 = vadd.f32 %v2109, %v2173
      %v2175 = vand.u32 %v785, 4294901760
      %v2176 = vsub.f32 %v785, %v2175
      %v2177 = vand.u32 %v2176, 4294901760
      %2178 = vmatmul.f32.gmra.mxu0 %v2177
      %v2179 = vpop.f32.mrf.mxu0
      %v2180 = vadd.f32 %v2114, %v2179
      %v2181 = vand.u32 %v788, 4294901760
      %v2182 = vsub.f32 %v788, %v2181
      %v2183 = vand.u32 %v2182, 4294901760
      %2184 = vmatmul.f32.gmra.mxu0 %v2183
      %v2185 = vpop.f32.mrf.mxu0
      %v2186 = vadd.f32 %v2119, %v2185
      %2187 = vdwg.mxu0
      %2188 = vmatpush.msra.mxu0 0.0
      %2189 = vmatpush.msra.mxu0 0.0
      %2190 = vmatpush.msra.mxu0 0.0
      %2191 = vmatpush.msra.mxu0 0.0
      %2192 = vmatpush.msra.mxu0 0.0
      %2193 = vmatpush.msra.mxu0 0.0
      %2194 = vmatpush.msra.mxu0 0.0
      %2195 = vmatpush.msra.mxu0 0.0
      %2196 = vmatpush.msra.mxu0 0.0
      %2197 = vmatpush.msra.mxu0 0.0
      %2198 = vmatpush.msra.mxu0 0.0
      %2199 = vmatpush.msra.mxu0 0.0
      %2200 = vmatpush.msra.mxu0 0.0
      %2201 = vmatpush.msra.mxu0 0.0
      %v2202 = vand.u32 %v607, 4294901760
      %v2203 = vsub.f32 %v607, %v2202
      %v2204 = vand.u32 %v2203, 4294901760
      %2205 = vmatpush.msra.mxu0 %v2204
      %v2206 = vand.u32 %v599, 4294901760
      %v2207 = vsub.f32 %v599, %v2206
      %v2208 = vand.u32 %v2207, 4294901760
      %2209 = vmatpush.msra.mxu0 %v2208
      %v2210 = vand.u32 %v767, 4294901760
      %2211 = vmatmul.f32.gmra.mxu0 %v2210
      %v2212 = vpop.f32.mrf.mxu0
      %v2213 = vadd.f32 %v2144, %v2212
      %v2214 = vand.u32 %v770, 4294901760
      %2215 = vmatmul.f32.gmra.mxu0 %v2214
      %v2216 = vpop.f32.mrf.mxu0
      %v2217 = vadd.f32 %v2150, %v2216
      %v2218 = vand.u32 %v773, 4294901760
      %2219 = vmatmul.f32.gmra.mxu0 %v2218
      %v2220 = vpop.f32.mrf.mxu0
      %v2221 = vadd.f32 %v2156, %v2220
      %v2222 = vand.u32 %v776, 4294901760
      %2223 = vmatmul.f32.gmra.mxu0 %v2222
      %v2224 = vpop.f32.mrf.mxu0
      %v2225 = vadd.f32 %v2162, %v2224
      %v2226 = vand.u32 %v779, 4294901760
      %2227 = vmatmul.f32.gmra.mxu0 %v2226
      %v2228 = vpop.f32.mrf.mxu0
      %v2229 = vadd.f32 %v2168, %v2228
      %v2230 = vand.u32 %v782, 4294901760
      %2231 = vmatmul.f32.gmra.mxu0 %v2230
      %v2232 = vpop.f32.mrf.mxu0
      %v2233 = vadd.f32 %v2174, %v2232
      %v2234 = vand.u32 %v785, 4294901760
      %2235 = vmatmul.f32.gmra.mxu0 %v2234
      %v2236 = vpop.f32.mrf.mxu0
      %v2237 = vadd.f32 %v2180, %v2236
      %v2238 = vand.u32 %v788, 4294901760
      %2239 = vmatmul.f32.gmra.mxu0 %v2238
      %v2240 = vpop.f32.mrf.mxu0
      %v2241 = vadd.f32 %v2186, %v2240
      %2242 = vdwg.mxu0
      %2243 = vmatpush.msra.mxu0 0.0
      %2244 = vmatpush.msra.mxu0 0.0
      %2245 = vmatpush.msra.mxu0 0.0
      %2246 = vmatpush.msra.mxu0 0.0
      %2247 = vmatpush.msra.mxu0 0.0
      %2248 = vmatpush.msra.mxu0 0.0
      %2249 = vmatpush.msra.mxu0 0.0
      %2250 = vmatpush.msra.mxu0 0.0
      %2251 = vmatpush.msra.mxu0 0.0
      %2252 = vmatpush.msra.mxu0 0.0
      %2253 = vmatpush.msra.mxu0 0.0
      %2254 = vmatpush.msra.mxu0 0.0
      %2255 = vmatpush.msra.mxu0 0.0
      %2256 = vmatpush.msra.mxu0 0.0
      %v2257 = vand.u32 %v607, 4294901760
      %2258 = vmatpush.msra.mxu0 %v2257
      %v2259 = vand.u32 %v599, 4294901760
      %2260 = vmatpush.msra.mxu0 %v2259
      %v2261 = vand.u32 %v767, 4294901760
      %2262 = vmatmul.f32.gmra.mxu0 %v2261
      %v2263 = vpop.f32.mrf.mxu0
      %v2264 = vadd.f32 %v2213, %v2263
      %v2265 = vand.u32 %v770, 4294901760
      %2266 = vmatmul.f32.gmra.mxu0 %v2265
      %v2267 = vpop.f32.mrf.mxu0
      %v2268 = vadd.f32 %v2217, %v2267
      %v2269 = vand.u32 %v773, 4294901760
      %2270 = vmatmul.f32.gmra.mxu0 %v2269
      %v2271 = vpop.f32.mrf.mxu0
      %v2272 = vadd.f32 %v2221, %v2271
      %v2273 = vand.u32 %v776, 4294901760
      %2274 = vmatmul.f32.gmra.mxu0 %v2273
      %v2275 = vpop.f32.mrf.mxu0
      %v2276 = vadd.f32 %v2225, %v2275
      %v2277 = vand.u32 %v779, 4294901760
      %2278 = vmatmul.f32.gmra.mxu0 %v2277
      %v2279 = vpop.f32.mrf.mxu0
      %v2280 = vadd.f32 %v2229, %v2279
      %v2281 = vand.u32 %v782, 4294901760
      %2282 = vmatmul.f32.gmra.mxu0 %v2281
      %v2283 = vpop.f32.mrf.mxu0
      %v2284 = vadd.f32 %v2233, %v2283
      %v2285 = vand.u32 %v785, 4294901760
      %2286 = vmatmul.f32.gmra.mxu0 %v2285
      %v2287 = vpop.f32.mrf.mxu0
      %v2288 = vadd.f32 %v2237, %v2287
      %v2289 = vand.u32 %v788, 4294901760
      %2290 = vmatmul.f32.gmra.mxu0 %v2289
      %v2291 = vpop.f32.mrf.mxu0
      %v2292 = vadd.f32 %v2241, %v2291
      %2293 = vdwg.mxu0
      %2294 = vmatpush.msra.mxu0 0.0
      %2295 = vmatpush.msra.mxu0 0.0
      %2296 = vmatpush.msra.mxu0 0.0
      %2297 = vmatpush.msra.mxu0 0.0
      %2298 = vmatpush.msra.mxu0 0.0
      %2299 = vmatpush.msra.mxu0 0.0
      %2300 = vmatpush.msra.mxu0 0.0
      %2301 = vmatpush.msra.mxu0 0.0
      %2302 = vmatpush.msra.mxu0 0.0
      %2303 = vmatpush.msra.mxu0 0.0
      %2304 = vmatpush.msra.mxu0 0.0
      %2305 = vmatpush.msra.mxu0 0.0
      %2306 = vmatpush.msra.mxu0 0.0
      %2307 = vmatpush.msra.mxu0 0.0
      %v2308 = vand.u32 %v608, 4294901760
      %2309 = vmatpush.msra.mxu0 %v2308
      %v2310 = vand.u32 %v600, 4294901760
      %2311 = vmatpush.msra.mxu0 %v2310
      %v2312 = vand.u32 %v767, 4294901760
      %v2313 = vsub.f32 %v767, %v2312
      %v2314 = vand.u32 %v2313, 4294901760
      %v2315 = vsub.f32 %v2313, %v2314
      %v2316 = vand.u32 %v2315, 4294901760
      %2317 = vmatmul.f32.gmra.mxu0 %v2316
      %v2318 = vpop.f32.mrf.mxu0
      %v2319 = vadd.f32 %v705, %v2318
      %v2320 = vand.u32 %v770, 4294901760
      %v2321 = vsub.f32 %v770, %v2320
      %v2322 = vand.u32 %v2321, 4294901760
      %v2323 = vsub.f32 %v2321, %v2322
      %v2324 = vand.u32 %v2323, 4294901760
      %2325 = vmatmul.f32.gmra.mxu0 %v2324
      %v2326 = vpop.f32.mrf.mxu0
      %v2327 = vadd.f32 %v713, %v2326
      %v2328 = vand.u32 %v773, 4294901760
      %v2329 = vsub.f32 %v773, %v2328
      %v2330 = vand.u32 %v2329, 4294901760
      %v2331 = vsub.f32 %v2329, %v2330
      %v2332 = vand.u32 %v2331, 4294901760
      %2333 = vmatmul.f32.gmra.mxu0 %v2332
      %v2334 = vpop.f32.mrf.mxu0
      %v2335 = vadd.f32 %v721, %v2334
      %v2336 = vand.u32 %v776, 4294901760
      %v2337 = vsub.f32 %v776, %v2336
      %v2338 = vand.u32 %v2337, 4294901760
      %v2339 = vsub.f32 %v2337, %v2338
      %v2340 = vand.u32 %v2339, 4294901760
      %2341 = vmatmul.f32.gmra.mxu0 %v2340
      %v2342 = vpop.f32.mrf.mxu0
      %v2343 = vadd.f32 %v729, %v2342
      %v2344 = vand.u32 %v779, 4294901760
      %v2345 = vsub.f32 %v779, %v2344
      %v2346 = vand.u32 %v2345, 4294901760
      %v2347 = vsub.f32 %v2345, %v2346
      %v2348 = vand.u32 %v2347, 4294901760
      %2349 = vmatmul.f32.gmra.mxu0 %v2348
      %v2350 = vpop.f32.mrf.mxu0
      %v2351 = vadd.f32 %v737, %v2350
      %v2352 = vand.u32 %v782, 4294901760
      %v2353 = vsub.f32 %v782, %v2352
      %v2354 = vand.u32 %v2353, 4294901760
      %v2355 = vsub.f32 %v2353, %v2354
      %v2356 = vand.u32 %v2355, 4294901760
      %2357 = vmatmul.f32.gmra.mxu0 %v2356
      %v2358 = vpop.f32.mrf.mxu0
      %v2359 = vadd.f32 %v745, %v2358
      %v2360 = vand.u32 %v785, 4294901760
      %v2361 = vsub.f32 %v785, %v2360
      %v2362 = vand.u32 %v2361, 4294901760
      %v2363 = vsub.f32 %v2361, %v2362
      %v2364 = vand.u32 %v2363, 4294901760
      %2365 = vmatmul.f32.gmra.mxu0 %v2364
      %v2366 = vpop.f32.mrf.mxu0
      %v2367 = vadd.f32 %v753, %v2366
      %v2368 = vand.u32 %v788, 4294901760
      %v2369 = vsub.f32 %v788, %v2368
      %v2370 = vand.u32 %v2369, 4294901760
      %v2371 = vsub.f32 %v2369, %v2370
      %v2372 = vand.u32 %v2371, 4294901760
      %2373 = vmatmul.f32.gmra.mxu0 %v2372
      %v2374 = vpop.f32.mrf.mxu0
      %v2375 = vadd.f32 %v761, %v2374
      %2376 = vdwg.mxu0
      %2377 = vmatpush.msra.mxu0 0.0
      %2378 = vmatpush.msra.mxu0 0.0
      %2379 = vmatpush.msra.mxu0 0.0
      %2380 = vmatpush.msra.mxu0 0.0
      %2381 = vmatpush.msra.mxu0 0.0
      %2382 = vmatpush.msra.mxu0 0.0
      %2383 = vmatpush.msra.mxu0 0.0
      %2384 = vmatpush.msra.mxu0 0.0
      %2385 = vmatpush.msra.mxu0 0.0
      %2386 = vmatpush.msra.mxu0 0.0
      %2387 = vmatpush.msra.mxu0 0.0
      %2388 = vmatpush.msra.mxu0 0.0
      %2389 = vmatpush.msra.mxu0 0.0
      %2390 = vmatpush.msra.mxu0 0.0
      %v2391 = vand.u32 %v608, 4294901760
      %v2392 = vsub.f32 %v608, %v2391
      %v2393 = vand.u32 %v2392, 4294901760
      %v2394 = vsub.f32 %v2392, %v2393
      %v2395 = vand.u32 %v2394, 4294901760
      %2396 = vmatpush.msra.mxu0 %v2395
      %v2397 = vand.u32 %v600, 4294901760
      %v2398 = vsub.f32 %v600, %v2397
      %v2399 = vand.u32 %v2398, 4294901760
      %v2400 = vsub.f32 %v2398, %v2399
      %v2401 = vand.u32 %v2400, 4294901760
      %2402 = vmatpush.msra.mxu0 %v2401
      %v2403 = vand.u32 %v767, 4294901760
      %2404 = vmatmul.f32.gmra.mxu0 %v2403
      %v2405 = vpop.f32.mrf.mxu0
      %v2406 = vadd.f32 %v2319, %v2405
      %v2407 = vand.u32 %v770, 4294901760
      %2408 = vmatmul.f32.gmra.mxu0 %v2407
      %v2409 = vpop.f32.mrf.mxu0
      %v2410 = vadd.f32 %v2327, %v2409
      %v2411 = vand.u32 %v773, 4294901760
      %2412 = vmatmul.f32.gmra.mxu0 %v2411
      %v2413 = vpop.f32.mrf.mxu0
      %v2414 = vadd.f32 %v2335, %v2413
      %v2415 = vand.u32 %v776, 4294901760
      %2416 = vmatmul.f32.gmra.mxu0 %v2415
      %v2417 = vpop.f32.mrf.mxu0
      %v2418 = vadd.f32 %v2343, %v2417
      %v2419 = vand.u32 %v779, 4294901760
      %2420 = vmatmul.f32.gmra.mxu0 %v2419
      %v2421 = vpop.f32.mrf.mxu0
      %v2422 = vadd.f32 %v2351, %v2421
      %v2423 = vand.u32 %v782, 4294901760
      %2424 = vmatmul.f32.gmra.mxu0 %v2423
      %v2425 = vpop.f32.mrf.mxu0
      %v2426 = vadd.f32 %v2359, %v2425
      %v2427 = vand.u32 %v785, 4294901760
      %2428 = vmatmul.f32.gmra.mxu0 %v2427
      %v2429 = vpop.f32.mrf.mxu0
      %v2430 = vadd.f32 %v2367, %v2429
      %v2431 = vand.u32 %v788, 4294901760
      %2432 = vmatmul.f32.gmra.mxu0 %v2431
      %v2433 = vpop.f32.mrf.mxu0
      %v2434 = vadd.f32 %v2375, %v2433
      %2435 = vdwg.mxu0
      %2436 = vmatpush.msra.mxu0 0.0
      %2437 = vmatpush.msra.mxu0 0.0
      %2438 = vmatpush.msra.mxu0 0.0
      %2439 = vmatpush.msra.mxu0 0.0
      %2440 = vmatpush.msra.mxu0 0.0
      %2441 = vmatpush.msra.mxu0 0.0
      %2442 = vmatpush.msra.mxu0 0.0
      %2443 = vmatpush.msra.mxu0 0.0
      %2444 = vmatpush.msra.mxu0 0.0
      %2445 = vmatpush.msra.mxu0 0.0
      %2446 = vmatpush.msra.mxu0 0.0
      %2447 = vmatpush.msra.mxu0 0.0
      %2448 = vmatpush.msra.mxu0 0.0
      %2449 = vmatpush.msra.mxu0 0.0
      %v2450 = vand.u32 %v608, 4294901760
      %v2451 = vsub.f32 %v608, %v2450
      %2452 = vmatpush.msra.mxu0 %v2451
      %v2453 = vand.u32 %v600, 4294901760
      %v2454 = vsub.f32 %v600, %v2453
      %2455 = vmatpush.msra.mxu0 %v2454
      %v2456 = vand.u32 %v767, 4294901760
      %v2457 = vsub.f32 %v767, %v2456
      %2458 = vmatmul.f32.gmra.mxu0 %v2457
      %v2459 = vpop.f32.mrf.mxu0
      %v2460 = vadd.f32 %v2406, %v2459
      %v2461 = vand.u32 %v770, 4294901760
      %v2462 = vsub.f32 %v770, %v2461
      %2463 = vmatmul.f32.gmra.mxu0 %v2462
      %v2464 = vpop.f32.mrf.mxu0
      %v2465 = vadd.f32 %v2410, %v2464
      %v2466 = vand.u32 %v773, 4294901760
      %v2467 = vsub.f32 %v773, %v2466
      %2468 = vmatmul.f32.gmra.mxu0 %v2467
      %v2469 = vpop.f32.mrf.mxu0
      %v2470 = vadd.f32 %v2414, %v2469
      %v2471 = vand.u32 %v776, 4294901760
      %v2472 = vsub.f32 %v776, %v2471
      %2473 = vmatmul.f32.gmra.mxu0 %v2472
      %v2474 = vpop.f32.mrf.mxu0
      %v2475 = vadd.f32 %v2418, %v2474
      %v2476 = vand.u32 %v779, 4294901760
      %v2477 = vsub.f32 %v779, %v2476
      %2478 = vmatmul.f32.gmra.mxu0 %v2477
      %v2479 = vpop.f32.mrf.mxu0
      %v2480 = vadd.f32 %v2422, %v2479
      %v2481 = vand.u32 %v782, 4294901760
      %v2482 = vsub.f32 %v782, %v2481
      %2483 = vmatmul.f32.gmra.mxu0 %v2482
      %v2484 = vpop.f32.mrf.mxu0
      %v2485 = vadd.f32 %v2426, %v2484
      %v2486 = vand.u32 %v785, 4294901760
      %v2487 = vsub.f32 %v785, %v2486
      %2488 = vmatmul.f32.gmra.mxu0 %v2487
      %v2489 = vpop.f32.mrf.mxu0
      %v2490 = vadd.f32 %v2430, %v2489
      %v2491 = vand.u32 %v788, 4294901760
      %v2492 = vsub.f32 %v788, %v2491
      %2493 = vmatmul.f32.gmra.mxu0 %v2492
      %v2494 = vpop.f32.mrf.mxu0
      %v2495 = vadd.f32 %v2434, %v2494
      %2496 = vdwg.mxu0
      %2497 = vmatpush.msra.mxu0 0.0
      %2498 = vmatpush.msra.mxu0 0.0
      %2499 = vmatpush.msra.mxu0 0.0
      %2500 = vmatpush.msra.mxu0 0.0
      %2501 = vmatpush.msra.mxu0 0.0
      %2502 = vmatpush.msra.mxu0 0.0
      %2503 = vmatpush.msra.mxu0 0.0
      %2504 = vmatpush.msra.mxu0 0.0
      %2505 = vmatpush.msra.mxu0 0.0
      %2506 = vmatpush.msra.mxu0 0.0
      %2507 = vmatpush.msra.mxu0 0.0
      %2508 = vmatpush.msra.mxu0 0.0
      %2509 = vmatpush.msra.mxu0 0.0
      %2510 = vmatpush.msra.mxu0 0.0
      %v2511 = vand.u32 %v608, 4294901760
      %2512 = vmatpush.msra.mxu0 %v2511
      %v2513 = vand.u32 %v600, 4294901760
      %2514 = vmatpush.msra.mxu0 %v2513
      %v2515 = vand.u32 %v767, 4294901760
      %v2516 = vsub.f32 %v767, %v2515
      %v2517 = vand.u32 %v2516, 4294901760
      %2518 = vmatmul.f32.gmra.mxu0 %v2517
      %v2519 = vpop.f32.mrf.mxu0
      %v2520 = vadd.f32 %v2460, %v2519
      %v2521 = vand.u32 %v770, 4294901760
      %v2522 = vsub.f32 %v770, %v2521
      %v2523 = vand.u32 %v2522, 4294901760
      %2524 = vmatmul.f32.gmra.mxu0 %v2523
      %v2525 = vpop.f32.mrf.mxu0
      %v2526 = vadd.f32 %v2465, %v2525
      %v2527 = vand.u32 %v773, 4294901760
      %v2528 = vsub.f32 %v773, %v2527
      %v2529 = vand.u32 %v2528, 4294901760
      %2530 = vmatmul.f32.gmra.mxu0 %v2529
      %v2531 = vpop.f32.mrf.mxu0
      %v2532 = vadd.f32 %v2470, %v2531
      %v2533 = vand.u32 %v776, 4294901760
      %v2534 = vsub.f32 %v776, %v2533
      %v2535 = vand.u32 %v2534, 4294901760
      %2536 = vmatmul.f32.gmra.mxu0 %v2535
      %v2537 = vpop.f32.mrf.mxu0
      %v2538 = vadd.f32 %v2475, %v2537
      %v2539 = vand.u32 %v779, 4294901760
      %v2540 = vsub.f32 %v779, %v2539
      %v2541 = vand.u32 %v2540, 4294901760
      %2542 = vmatmul.f32.gmra.mxu0 %v2541
      %v2543 = vpop.f32.mrf.mxu0
      %v2544 = vadd.f32 %v2480, %v2543
      %v2545 = vand.u32 %v782, 4294901760
      %v2546 = vsub.f32 %v782, %v2545
      %v2547 = vand.u32 %v2546, 4294901760
      %2548 = vmatmul.f32.gmra.mxu0 %v2547
      %v2549 = vpop.f32.mrf.mxu0
      %v2550 = vadd.f32 %v2485, %v2549
      %v2551 = vand.u32 %v785, 4294901760
      %v2552 = vsub.f32 %v785, %v2551
      %v2553 = vand.u32 %v2552, 4294901760
      %2554 = vmatmul.f32.gmra.mxu0 %v2553
      %v2555 = vpop.f32.mrf.mxu0
      %v2556 = vadd.f32 %v2490, %v2555
      %v2557 = vand.u32 %v788, 4294901760
      %v2558 = vsub.f32 %v788, %v2557
      %v2559 = vand.u32 %v2558, 4294901760
      %2560 = vmatmul.f32.gmra.mxu0 %v2559
      %v2561 = vpop.f32.mrf.mxu0
      %v2562 = vadd.f32 %v2495, %v2561
      %2563 = vdwg.mxu0
      %2564 = vmatpush.msra.mxu0 0.0
      %2565 = vmatpush.msra.mxu0 0.0
      %2566 = vmatpush.msra.mxu0 0.0
      %2567 = vmatpush.msra.mxu0 0.0
      %2568 = vmatpush.msra.mxu0 0.0
      %2569 = vmatpush.msra.mxu0 0.0
      %2570 = vmatpush.msra.mxu0 0.0
      %2571 = vmatpush.msra.mxu0 0.0
      %2572 = vmatpush.msra.mxu0 0.0
      %2573 = vmatpush.msra.mxu0 0.0
      %2574 = vmatpush.msra.mxu0 0.0
      %2575 = vmatpush.msra.mxu0 0.0
      %2576 = vmatpush.msra.mxu0 0.0
      %2577 = vmatpush.msra.mxu0 0.0
      %v2578 = vand.u32 %v608, 4294901760
      %v2579 = vsub.f32 %v608, %v2578
      %v2580 = vand.u32 %v2579, 4294901760
      %2581 = vmatpush.msra.mxu0 %v2580
      %v2582 = vand.u32 %v600, 4294901760
      %v2583 = vsub.f32 %v600, %v2582
      %v2584 = vand.u32 %v2583, 4294901760
      %2585 = vmatpush.msra.mxu0 %v2584
      %v2586 = vand.u32 %v767, 4294901760
      %2587 = vmatmul.f32.gmra.mxu0 %v2586
      %v2588 = vpop.f32.mrf.mxu0
      %v2589 = vadd.f32 %v2520, %v2588
      %v2590 = vand.u32 %v770, 4294901760
      %2591 = vmatmul.f32.gmra.mxu0 %v2590
      %v2592 = vpop.f32.mrf.mxu0
      %v2593 = vadd.f32 %v2526, %v2592
      %v2594 = vand.u32 %v773, 4294901760
      %2595 = vmatmul.f32.gmra.mxu0 %v2594
      %v2596 = vpop.f32.mrf.mxu0
      %v2597 = vadd.f32 %v2532, %v2596
      %v2598 = vand.u32 %v776, 4294901760
      %2599 = vmatmul.f32.gmra.mxu0 %v2598
      %v2600 = vpop.f32.mrf.mxu0
      %v2601 = vadd.f32 %v2538, %v2600
      %v2602 = vand.u32 %v779, 4294901760
      %2603 = vmatmul.f32.gmra.mxu0 %v2602
      %v2604 = vpop.f32.mrf.mxu0
      %v2605 = vadd.f32 %v2544, %v2604
      %v2606 = vand.u32 %v782, 4294901760
      %2607 = vmatmul.f32.gmra.mxu0 %v2606
      %v2608 = vpop.f32.mrf.mxu0
      %v2609 = vadd.f32 %v2550, %v2608
      %v2610 = vand.u32 %v785, 4294901760
      %2611 = vmatmul.f32.gmra.mxu0 %v2610
      %v2612 = vpop.f32.mrf.mxu0
      %v2613 = vadd.f32 %v2556, %v2612
      %v2614 = vand.u32 %v788, 4294901760
      %2615 = vmatmul.f32.gmra.mxu0 %v2614
      %v2616 = vpop.f32.mrf.mxu0
      %v2617 = vadd.f32 %v2562, %v2616
      %2618 = vdwg.mxu0
      %2619 = vmatpush.msra.mxu0 0.0
      %2620 = vmatpush.msra.mxu0 0.0
      %2621 = vmatpush.msra.mxu0 0.0
      %2622 = vmatpush.msra.mxu0 0.0
      %2623 = vmatpush.msra.mxu0 0.0
      %2624 = vmatpush.msra.mxu0 0.0
      %2625 = vmatpush.msra.mxu0 0.0
      %2626 = vmatpush.msra.mxu0 0.0
      %2627 = vmatpush.msra.mxu0 0.0
      %2628 = vmatpush.msra.mxu0 0.0
      %2629 = vmatpush.msra.mxu0 0.0
      %2630 = vmatpush.msra.mxu0 0.0
      %2631 = vmatpush.msra.mxu0 0.0
      %2632 = vmatpush.msra.mxu0 0.0
      %v2633 = vand.u32 %v608, 4294901760
      %2634 = vmatpush.msra.mxu0 %v2633
      %v2635 = vand.u32 %v600, 4294901760
      %2636 = vmatpush.msra.mxu0 %v2635
      %v2637 = vand.u32 %v767, 4294901760
      %2638 = vmatmul.f32.gmra.mxu0 %v2637
      %v2639 = vpop.f32.mrf.mxu0
      %v2640 = vadd.f32 %v2589, %v2639
      %v2641 = vand.u32 %v770, 4294901760
      %2642 = vmatmul.f32.gmra.mxu0 %v2641
      %v2643 = vpop.f32.mrf.mxu0
      %v2644 = vadd.f32 %v2593, %v2643
      %v2645 = vand.u32 %v773, 4294901760
      %2646 = vmatmul.f32.gmra.mxu0 %v2645
      %v2647 = vpop.f32.mrf.mxu0
      %v2648 = vadd.f32 %v2597, %v2647
      %v2649 = vand.u32 %v776, 4294901760
      %2650 = vmatmul.f32.gmra.mxu0 %v2649
      %v2651 = vpop.f32.mrf.mxu0
      %v2652 = vadd.f32 %v2601, %v2651
      %v2653 = vand.u32 %v779, 4294901760
      %2654 = vmatmul.f32.gmra.mxu0 %v2653
      %v2655 = vpop.f32.mrf.mxu0
      %v2656 = vadd.f32 %v2605, %v2655
      %v2657 = vand.u32 %v782, 4294901760
      %2658 = vmatmul.f32.gmra.mxu0 %v2657
      %v2659 = vpop.f32.mrf.mxu0
      %v2660 = vadd.f32 %v2609, %v2659
      %v2661 = vand.u32 %v785, 4294901760
      %2662 = vmatmul.f32.gmra.mxu0 %v2661
      %v2663 = vpop.f32.mrf.mxu0
      %v2664 = vadd.f32 %v2613, %v2663
      %v2665 = vand.u32 %v788, 4294901760
      %2666 = vmatmul.f32.gmra.mxu0 %v2665
      %v2667 = vpop.f32.mrf.mxu0
      %v2668 = vadd.f32 %v2617, %v2667
      %2669 = vdwg.mxu0
      %2670 = vmatpush.msra.mxu0 0.0
      %2671 = vmatpush.msra.mxu0 0.0
      %2672 = vmatpush.msra.mxu0 0.0
      %2673 = vmatpush.msra.mxu0 0.0
      %2674 = vmatpush.msra.mxu0 0.0
      %2675 = vmatpush.msra.mxu0 0.0
      %2676 = vmatpush.msra.mxu0 0.0
      %2677 = vmatpush.msra.mxu0 0.0
      %2678 = vmatpush.msra.mxu0 0.0
      %2679 = vmatpush.msra.mxu0 0.0
      %2680 = vmatpush.msra.mxu0 0.0
      %2681 = vmatpush.msra.mxu0 0.0
      %2682 = vmatpush.msra.mxu0 0.0
      %2683 = vmatpush.msra.mxu0 0.0
      %v2684 = vand.u32 %v609, 4294901760
      %2685 = vmatpush.msra.mxu0 %v2684
      %v2686 = vand.u32 %v601, 4294901760
      %2687 = vmatpush.msra.mxu0 %v2686
      %v2688 = vand.u32 %v767, 4294901760
      %v2689 = vsub.f32 %v767, %v2688
      %v2690 = vand.u32 %v2689, 4294901760
      %v2691 = vsub.f32 %v2689, %v2690
      %v2692 = vand.u32 %v2691, 4294901760
      %2693 = vmatmul.f32.gmra.mxu0 %v2692
      %v2694 = vpop.f32.mrf.mxu0
      %v2695 = vadd.f32 %v706, %v2694
      %v2696 = vand.u32 %v770, 4294901760
      %v2697 = vsub.f32 %v770, %v2696
      %v2698 = vand.u32 %v2697, 4294901760
      %v2699 = vsub.f32 %v2697, %v2698
      %v2700 = vand.u32 %v2699, 4294901760
      %2701 = vmatmul.f32.gmra.mxu0 %v2700
      %v2702 = vpop.f32.mrf.mxu0
      %v2703 = vadd.f32 %v714, %v2702
      %v2704 = vand.u32 %v773, 4294901760
      %v2705 = vsub.f32 %v773, %v2704
      %v2706 = vand.u32 %v2705, 4294901760
      %v2707 = vsub.f32 %v2705, %v2706
      %v2708 = vand.u32 %v2707, 4294901760
      %2709 = vmatmul.f32.gmra.mxu0 %v2708
      %v2710 = vpop.f32.mrf.mxu0
      %v2711 = vadd.f32 %v722, %v2710
      %v2712 = vand.u32 %v776, 4294901760
      %v2713 = vsub.f32 %v776, %v2712
      %v2714 = vand.u32 %v2713, 4294901760
      %v2715 = vsub.f32 %v2713, %v2714
      %v2716 = vand.u32 %v2715, 4294901760
      %2717 = vmatmul.f32.gmra.mxu0 %v2716
      %v2718 = vpop.f32.mrf.mxu0
      %v2719 = vadd.f32 %v730, %v2718
      %v2720 = vand.u32 %v779, 4294901760
      %v2721 = vsub.f32 %v779, %v2720
      %v2722 = vand.u32 %v2721, 4294901760
      %v2723 = vsub.f32 %v2721, %v2722
      %v2724 = vand.u32 %v2723, 4294901760
      %2725 = vmatmul.f32.gmra.mxu0 %v2724
      %v2726 = vpop.f32.mrf.mxu0
      %v2727 = vadd.f32 %v738, %v2726
      %v2728 = vand.u32 %v782, 4294901760
      %v2729 = vsub.f32 %v782, %v2728
      %v2730 = vand.u32 %v2729, 4294901760
      %v2731 = vsub.f32 %v2729, %v2730
      %v2732 = vand.u32 %v2731, 4294901760
      %2733 = vmatmul.f32.gmra.mxu0 %v2732
      %v2734 = vpop.f32.mrf.mxu0
      %v2735 = vadd.f32 %v746, %v2734
      %v2736 = vand.u32 %v785, 4294901760
      %v2737 = vsub.f32 %v785, %v2736
      %v2738 = vand.u32 %v2737, 4294901760
      %v2739 = vsub.f32 %v2737, %v2738
      %v2740 = vand.u32 %v2739, 4294901760
      %2741 = vmatmul.f32.gmra.mxu0 %v2740
      %v2742 = vpop.f32.mrf.mxu0
      %v2743 = vadd.f32 %v754, %v2742
      %v2744 = vand.u32 %v788, 4294901760
      %v2745 = vsub.f32 %v788, %v2744
      %v2746 = vand.u32 %v2745, 4294901760
      %v2747 = vsub.f32 %v2745, %v2746
      %v2748 = vand.u32 %v2747, 4294901760
      %2749 = vmatmul.f32.gmra.mxu0 %v2748
      %v2750 = vpop.f32.mrf.mxu0
      %v2751 = vadd.f32 %v762, %v2750
      %2752 = vdwg.mxu0
      %2753 = vmatpush.msra.mxu0 0.0
      %2754 = vmatpush.msra.mxu0 0.0
      %2755 = vmatpush.msra.mxu0 0.0
      %2756 = vmatpush.msra.mxu0 0.0
      %2757 = vmatpush.msra.mxu0 0.0
      %2758 = vmatpush.msra.mxu0 0.0
      %2759 = vmatpush.msra.mxu0 0.0
      %2760 = vmatpush.msra.mxu0 0.0
      %2761 = vmatpush.msra.mxu0 0.0
      %2762 = vmatpush.msra.mxu0 0.0
      %2763 = vmatpush.msra.mxu0 0.0
      %2764 = vmatpush.msra.mxu0 0.0
      %2765 = vmatpush.msra.mxu0 0.0
      %2766 = vmatpush.msra.mxu0 0.0
      %v2767 = vand.u32 %v609, 4294901760
      %v2768 = vsub.f32 %v609, %v2767
      %v2769 = vand.u32 %v2768, 4294901760
      %v2770 = vsub.f32 %v2768, %v2769
      %v2771 = vand.u32 %v2770, 4294901760
      %2772 = vmatpush.msra.mxu0 %v2771
      %v2773 = vand.u32 %v601, 4294901760
      %v2774 = vsub.f32 %v601, %v2773
      %v2775 = vand.u32 %v2774, 4294901760
      %v2776 = vsub.f32 %v2774, %v2775
      %v2777 = vand.u32 %v2776, 4294901760
      %2778 = vmatpush.msra.mxu0 %v2777
      %v2779 = vand.u32 %v767, 4294901760
      %2780 = vmatmul.f32.gmra.mxu0 %v2779
      %v2781 = vpop.f32.mrf.mxu0
      %v2782 = vadd.f32 %v2695, %v2781
      %v2783 = vand.u32 %v770, 4294901760
      %2784 = vmatmul.f32.gmra.mxu0 %v2783
      %v2785 = vpop.f32.mrf.mxu0
      %v2786 = vadd.f32 %v2703, %v2785
      %v2787 = vand.u32 %v773, 4294901760
      %2788 = vmatmul.f32.gmra.mxu0 %v2787
      %v2789 = vpop.f32.mrf.mxu0
      %v2790 = vadd.f32 %v2711, %v2789
      %v2791 = vand.u32 %v776, 4294901760
      %2792 = vmatmul.f32.gmra.mxu0 %v2791
      %v2793 = vpop.f32.mrf.mxu0
      %v2794 = vadd.f32 %v2719, %v2793
      %v2795 = vand.u32 %v779, 4294901760
      %2796 = vmatmul.f32.gmra.mxu0 %v2795
      %v2797 = vpop.f32.mrf.mxu0
      %v2798 = vadd.f32 %v2727, %v2797
      %v2799 = vand.u32 %v782, 4294901760
      %2800 = vmatmul.f32.gmra.mxu0 %v2799
      %v2801 = vpop.f32.mrf.mxu0
      %v2802 = vadd.f32 %v2735, %v2801
      %v2803 = vand.u32 %v785, 4294901760
      %2804 = vmatmul.f32.gmra.mxu0 %v2803
      %v2805 = vpop.f32.mrf.mxu0
      %v2806 = vadd.f32 %v2743, %v2805
      %v2807 = vand.u32 %v788, 4294901760
      %2808 = vmatmul.f32.gmra.mxu0 %v2807
      %v2809 = vpop.f32.mrf.mxu0
      %v2810 = vadd.f32 %v2751, %v2809
      %2811 = vdwg.mxu0
      %2812 = vmatpush.msra.mxu0 0.0
      %2813 = vmatpush.msra.mxu0 0.0
      %2814 = vmatpush.msra.mxu0 0.0
      %2815 = vmatpush.msra.mxu0 0.0
      %2816 = vmatpush.msra.mxu0 0.0
      %2817 = vmatpush.msra.mxu0 0.0
      %2818 = vmatpush.msra.mxu0 0.0
      %2819 = vmatpush.msra.mxu0 0.0
      %2820 = vmatpush.msra.mxu0 0.0
      %2821 = vmatpush.msra.mxu0 0.0
      %2822 = vmatpush.msra.mxu0 0.0
      %2823 = vmatpush.msra.mxu0 0.0
      %2824 = vmatpush.msra.mxu0 0.0
      %2825 = vmatpush.msra.mxu0 0.0
      %v2826 = vand.u32 %v609, 4294901760
      %v2827 = vsub.f32 %v609, %v2826
      %2828 = vmatpush.msra.mxu0 %v2827
      %v2829 = vand.u32 %v601, 4294901760
      %v2830 = vsub.f32 %v601, %v2829
      %2831 = vmatpush.msra.mxu0 %v2830
      %v2832 = vand.u32 %v767, 4294901760
      %v2833 = vsub.f32 %v767, %v2832
      %2834 = vmatmul.f32.gmra.mxu0 %v2833
      %v2835 = vpop.f32.mrf.mxu0
      %v2836 = vadd.f32 %v2782, %v2835
      %v2837 = vand.u32 %v770, 4294901760
      %v2838 = vsub.f32 %v770, %v2837
      %2839 = vmatmul.f32.gmra.mxu0 %v2838
      %v2840 = vpop.f32.mrf.mxu0
      %v2841 = vadd.f32 %v2786, %v2840
      %v2842 = vand.u32 %v773, 4294901760
      %v2843 = vsub.f32 %v773, %v2842
      %2844 = vmatmul.f32.gmra.mxu0 %v2843
      %v2845 = vpop.f32.mrf.mxu0
      %v2846 = vadd.f32 %v2790, %v2845
      %v2847 = vand.u32 %v776, 4294901760
      %v2848 = vsub.f32 %v776, %v2847
      %2849 = vmatmul.f32.gmra.mxu0 %v2848
      %v2850 = vpop.f32.mrf.mxu0
      %v2851 = vadd.f32 %v2794, %v2850
      %v2852 = vand.u32 %v779, 4294901760
      %v2853 = vsub.f32 %v779, %v2852
      %2854 = vmatmul.f32.gmra.mxu0 %v2853
      %v2855 = vpop.f32.mrf.mxu0
      %v2856 = vadd.f32 %v2798, %v2855
      %v2857 = vand.u32 %v782, 4294901760
      %v2858 = vsub.f32 %v782, %v2857
      %2859 = vmatmul.f32.gmra.mxu0 %v2858
      %v2860 = vpop.f32.mrf.mxu0
      %v2861 = vadd.f32 %v2802, %v2860
      %v2862 = vand.u32 %v785, 4294901760
      %v2863 = vsub.f32 %v785, %v2862
      %2864 = vmatmul.f32.gmra.mxu0 %v2863
      %v2865 = vpop.f32.mrf.mxu0
      %v2866 = vadd.f32 %v2806, %v2865
      %v2867 = vand.u32 %v788, 4294901760
      %v2868 = vsub.f32 %v788, %v2867
      %2869 = vmatmul.f32.gmra.mxu0 %v2868
      %v2870 = vpop.f32.mrf.mxu0
      %v2871 = vadd.f32 %v2810, %v2870
      %2872 = vdwg.mxu0
      %2873 = vmatpush.msra.mxu0 0.0
      %2874 = vmatpush.msra.mxu0 0.0
      %2875 = vmatpush.msra.mxu0 0.0
      %2876 = vmatpush.msra.mxu0 0.0
      %2877 = vmatpush.msra.mxu0 0.0
      %2878 = vmatpush.msra.mxu0 0.0
      %2879 = vmatpush.msra.mxu0 0.0
      %2880 = vmatpush.msra.mxu0 0.0
      %2881 = vmatpush.msra.mxu0 0.0
      %2882 = vmatpush.msra.mxu0 0.0
      %2883 = vmatpush.msra.mxu0 0.0
      %2884 = vmatpush.msra.mxu0 0.0
      %2885 = vmatpush.msra.mxu0 0.0
      %2886 = vmatpush.msra.mxu0 0.0
      %v2887 = vand.u32 %v609, 4294901760
      %2888 = vmatpush.msra.mxu0 %v2887
      %v2889 = vand.u32 %v601, 4294901760
      %2890 = vmatpush.msra.mxu0 %v2889
      %v2891 = vand.u32 %v767, 4294901760
      %v2892 = vsub.f32 %v767, %v2891
      %v2893 = vand.u32 %v2892, 4294901760
      %2894 = vmatmul.f32.gmra.mxu0 %v2893
      %v2895 = vpop.f32.mrf.mxu0
      %v2896 = vadd.f32 %v2836, %v2895
      %v2897 = vand.u32 %v770, 4294901760
      %v2898 = vsub.f32 %v770, %v2897
      %v2899 = vand.u32 %v2898, 4294901760
      %2900 = vmatmul.f32.gmra.mxu0 %v2899
      %v2901 = vpop.f32.mrf.mxu0
      %v2902 = vadd.f32 %v2841, %v2901
      %v2903 = vand.u32 %v773, 4294901760
      %v2904 = vsub.f32 %v773, %v2903
      %v2905 = vand.u32 %v2904, 4294901760
      %2906 = vmatmul.f32.gmra.mxu0 %v2905
      %v2907 = vpop.f32.mrf.mxu0
      %v2908 = vadd.f32 %v2846, %v2907
      %v2909 = vand.u32 %v776, 4294901760
      %v2910 = vsub.f32 %v776, %v2909
      %v2911 = vand.u32 %v2910, 4294901760
      %2912 = vmatmul.f32.gmra.mxu0 %v2911
      %v2913 = vpop.f32.mrf.mxu0
      %v2914 = vadd.f32 %v2851, %v2913
      %v2915 = vand.u32 %v779, 4294901760
      %v2916 = vsub.f32 %v779, %v2915
      %v2917 = vand.u32 %v2916, 4294901760
      %2918 = vmatmul.f32.gmra.mxu0 %v2917
      %v2919 = vpop.f32.mrf.mxu0
      %v2920 = vadd.f32 %v2856, %v2919
      %v2921 = vand.u32 %v782, 4294901760
      %v2922 = vsub.f32 %v782, %v2921
      %v2923 = vand.u32 %v2922, 4294901760
      %2924 = vmatmul.f32.gmra.mxu0 %v2923
      %v2925 = vpop.f32.mrf.mxu0
      %v2926 = vadd.f32 %v2861, %v2925
      %v2927 = vand.u32 %v785, 4294901760
      %v2928 = vsub.f32 %v785, %v2927
      %v2929 = vand.u32 %v2928, 4294901760
      %2930 = vmatmul.f32.gmra.mxu0 %v2929
      %v2931 = vpop.f32.mrf.mxu0
      %v2932 = vadd.f32 %v2866, %v2931
      %v2933 = vand.u32 %v788, 4294901760
      %v2934 = vsub.f32 %v788, %v2933
      %v2935 = vand.u32 %v2934, 4294901760
      %2936 = vmatmul.f32.gmra.mxu0 %v2935
      %v2937 = vpop.f32.mrf.mxu0
      %v2938 = vadd.f32 %v2871, %v2937
      %2939 = vdwg.mxu0
      %2940 = vmatpush.msra.mxu0 0.0
      %2941 = vmatpush.msra.mxu0 0.0
      %2942 = vmatpush.msra.mxu0 0.0
      %2943 = vmatpush.msra.mxu0 0.0
      %2944 = vmatpush.msra.mxu0 0.0
      %2945 = vmatpush.msra.mxu0 0.0
      %2946 = vmatpush.msra.mxu0 0.0
      %2947 = vmatpush.msra.mxu0 0.0
      %2948 = vmatpush.msra.mxu0 0.0
      %2949 = vmatpush.msra.mxu0 0.0
      %2950 = vmatpush.msra.mxu0 0.0
      %2951 = vmatpush.msra.mxu0 0.0
      %2952 = vmatpush.msra.mxu0 0.0
      %2953 = vmatpush.msra.mxu0 0.0
      %v2954 = vand.u32 %v609, 4294901760
      %v2955 = vsub.f32 %v609, %v2954
      %v2956 = vand.u32 %v2955, 4294901760
      %2957 = vmatpush.msra.mxu0 %v2956
      %v2958 = vand.u32 %v601, 4294901760
      %v2959 = vsub.f32 %v601, %v2958
      %v2960 = vand.u32 %v2959, 4294901760
      %2961 = vmatpush.msra.mxu0 %v2960
      %v2962 = vand.u32 %v767, 4294901760
      %2963 = vmatmul.f32.gmra.mxu0 %v2962
      %v2964 = vpop.f32.mrf.mxu0
      %v2965 = vadd.f32 %v2896, %v2964
      %v2966 = vand.u32 %v770, 4294901760
      %2967 = vmatmul.f32.gmra.mxu0 %v2966
      %v2968 = vpop.f32.mrf.mxu0
      %v2969 = vadd.f32 %v2902, %v2968
      %v2970 = vand.u32 %v773, 4294901760
      %2971 = vmatmul.f32.gmra.mxu0 %v2970
      %v2972 = vpop.f32.mrf.mxu0
      %v2973 = vadd.f32 %v2908, %v2972
      %v2974 = vand.u32 %v776, 4294901760
      %2975 = vmatmul.f32.gmra.mxu0 %v2974
      %v2976 = vpop.f32.mrf.mxu0
      %v2977 = vadd.f32 %v2914, %v2976
      %v2978 = vand.u32 %v779, 4294901760
      %2979 = vmatmul.f32.gmra.mxu0 %v2978
      %v2980 = vpop.f32.mrf.mxu0
      %v2981 = vadd.f32 %v2920, %v2980
      %v2982 = vand.u32 %v782, 4294901760
      %2983 = vmatmul.f32.gmra.mxu0 %v2982
      %v2984 = vpop.f32.mrf.mxu0
      %v2985 = vadd.f32 %v2926, %v2984
      %v2986 = vand.u32 %v785, 4294901760
      %2987 = vmatmul.f32.gmra.mxu0 %v2986
      %v2988 = vpop.f32.mrf.mxu0
      %v2989 = vadd.f32 %v2932, %v2988
      %v2990 = vand.u32 %v788, 4294901760
      %2991 = vmatmul.f32.gmra.mxu0 %v2990
      %v2992 = vpop.f32.mrf.mxu0
      %v2993 = vadd.f32 %v2938, %v2992
      %2994 = vdwg.mxu0
      %2995 = vmatpush.msra.mxu0 0.0
      %2996 = vmatpush.msra.mxu0 0.0
      %2997 = vmatpush.msra.mxu0 0.0
      %2998 = vmatpush.msra.mxu0 0.0
      %2999 = vmatpush.msra.mxu0 0.0
      %3000 = vmatpush.msra.mxu0 0.0
      %3001 = vmatpush.msra.mxu0 0.0
      %3002 = vmatpush.msra.mxu0 0.0
      %3003 = vmatpush.msra.mxu0 0.0
      %3004 = vmatpush.msra.mxu0 0.0
      %3005 = vmatpush.msra.mxu0 0.0
      %3006 = vmatpush.msra.mxu0 0.0
      %3007 = vmatpush.msra.mxu0 0.0
      %3008 = vmatpush.msra.mxu0 0.0
      %v3009 = vand.u32 %v609, 4294901760
      %3010 = vmatpush.msra.mxu0 %v3009
      %v3011 = vand.u32 %v601, 4294901760
      %3012 = vmatpush.msra.mxu0 %v3011
      %v3013 = vand.u32 %v767, 4294901760
      %3014 = vmatmul.f32.gmra.mxu0 %v3013
      %v3015 = vpop.f32.mrf.mxu0
      %v3016 = vadd.f32 %v2965, %v3015
      %v3017 = vand.u32 %v770, 4294901760
      %3018 = vmatmul.f32.gmra.mxu0 %v3017
      %v3019 = vpop.f32.mrf.mxu0
      %v3020 = vadd.f32 %v2969, %v3019
      %v3021 = vand.u32 %v773, 4294901760
      %3022 = vmatmul.f32.gmra.mxu0 %v3021
      %v3023 = vpop.f32.mrf.mxu0
      %v3024 = vadd.f32 %v2973, %v3023
      %v3025 = vand.u32 %v776, 4294901760
      %3026 = vmatmul.f32.gmra.mxu0 %v3025
      %v3027 = vpop.f32.mrf.mxu0
      %v3028 = vadd.f32 %v2977, %v3027
      %v3029 = vand.u32 %v779, 4294901760
      %3030 = vmatmul.f32.gmra.mxu0 %v3029
      %v3031 = vpop.f32.mrf.mxu0
      %v3032 = vadd.f32 %v2981, %v3031
      %v3033 = vand.u32 %v782, 4294901760
      %3034 = vmatmul.f32.gmra.mxu0 %v3033
      %v3035 = vpop.f32.mrf.mxu0
      %v3036 = vadd.f32 %v2985, %v3035
      %v3037 = vand.u32 %v785, 4294901760
      %3038 = vmatmul.f32.gmra.mxu0 %v3037
      %v3039 = vpop.f32.mrf.mxu0
      %v3040 = vadd.f32 %v2989, %v3039
      %v3041 = vand.u32 %v788, 4294901760
      %3042 = vmatmul.f32.gmra.mxu0 %v3041
      %v3043 = vpop.f32.mrf.mxu0
      %v3044 = vadd.f32 %v2993, %v3043
      %3045 = vdwg.mxu0
      %3046 = vmatpush.msra.mxu0 0.0
      %3047 = vmatpush.msra.mxu0 0.0
      %3048 = vmatpush.msra.mxu0 0.0
      %3049 = vmatpush.msra.mxu0 0.0
      %3050 = vmatpush.msra.mxu0 0.0
      %3051 = vmatpush.msra.mxu0 0.0
      %3052 = vmatpush.msra.mxu0 0.0
      %3053 = vmatpush.msra.mxu0 0.0
      %3054 = vmatpush.msra.mxu0 0.0
      %3055 = vmatpush.msra.mxu0 0.0
      %3056 = vmatpush.msra.mxu0 0.0
      %3057 = vmatpush.msra.mxu0 0.0
      %3058 = vmatpush.msra.mxu0 0.0
      %3059 = vmatpush.msra.mxu0 0.0
      %v3060 = vand.u32 %v610, 4294901760
      %3061 = vmatpush.msra.mxu0 %v3060
      %v3062 = vand.u32 %v602, 4294901760
      %3063 = vmatpush.msra.mxu0 %v3062
      %v3064 = vand.u32 %v767, 4294901760
      %v3065 = vsub.f32 %v767, %v3064
      %v3066 = vand.u32 %v3065, 4294901760
      %v3067 = vsub.f32 %v3065, %v3066
      %v3068 = vand.u32 %v3067, 4294901760
      %3069 = vmatmul.f32.gmra.mxu0 %v3068
      %v3070 = vpop.f32.mrf.mxu0
      %v3071 = vadd.f32 %v707, %v3070
      %v3072 = vand.u32 %v770, 4294901760
      %v3073 = vsub.f32 %v770, %v3072
      %v3074 = vand.u32 %v3073, 4294901760
      %v3075 = vsub.f32 %v3073, %v3074
      %v3076 = vand.u32 %v3075, 4294901760
      %3077 = vmatmul.f32.gmra.mxu0 %v3076
      %v3078 = vpop.f32.mrf.mxu0
      %v3079 = vadd.f32 %v715, %v3078
      %v3080 = vand.u32 %v773, 4294901760
      %v3081 = vsub.f32 %v773, %v3080
      %v3082 = vand.u32 %v3081, 4294901760
      %v3083 = vsub.f32 %v3081, %v3082
      %v3084 = vand.u32 %v3083, 4294901760
      %3085 = vmatmul.f32.gmra.mxu0 %v3084
      %v3086 = vpop.f32.mrf.mxu0
      %v3087 = vadd.f32 %v723, %v3086
      %v3088 = vand.u32 %v776, 4294901760
      %v3089 = vsub.f32 %v776, %v3088
      %v3090 = vand.u32 %v3089, 4294901760
      %v3091 = vsub.f32 %v3089, %v3090
      %v3092 = vand.u32 %v3091, 4294901760
      %3093 = vmatmul.f32.gmra.mxu0 %v3092
      %v3094 = vpop.f32.mrf.mxu0
      %v3095 = vadd.f32 %v731, %v3094
      %v3096 = vand.u32 %v779, 4294901760
      %v3097 = vsub.f32 %v779, %v3096
      %v3098 = vand.u32 %v3097, 4294901760
      %v3099 = vsub.f32 %v3097, %v3098
      %v3100 = vand.u32 %v3099, 4294901760
      %3101 = vmatmul.f32.gmra.mxu0 %v3100
      %v3102 = vpop.f32.mrf.mxu0
      %v3103 = vadd.f32 %v739, %v3102
      %v3104 = vand.u32 %v782, 4294901760
      %v3105 = vsub.f32 %v782, %v3104
      %v3106 = vand.u32 %v3105, 4294901760
      %v3107 = vsub.f32 %v3105, %v3106
      %v3108 = vand.u32 %v3107, 4294901760
      %3109 = vmatmul.f32.gmra.mxu0 %v3108
      %v3110 = vpop.f32.mrf.mxu0
      %v3111 = vadd.f32 %v747, %v3110
      %v3112 = vand.u32 %v785, 4294901760
      %v3113 = vsub.f32 %v785, %v3112
      %v3114 = vand.u32 %v3113, 4294901760
      %v3115 = vsub.f32 %v3113, %v3114
      %v3116 = vand.u32 %v3115, 4294901760
      %3117 = vmatmul.f32.gmra.mxu0 %v3116
      %v3118 = vpop.f32.mrf.mxu0
      %v3119 = vadd.f32 %v755, %v3118
      %v3120 = vand.u32 %v788, 4294901760
      %v3121 = vsub.f32 %v788, %v3120
      %v3122 = vand.u32 %v3121, 4294901760
      %v3123 = vsub.f32 %v3121, %v3122
      %v3124 = vand.u32 %v3123, 4294901760
      %3125 = vmatmul.f32.gmra.mxu0 %v3124
      %v3126 = vpop.f32.mrf.mxu0
      %v3127 = vadd.f32 %v763, %v3126
      %3128 = vdwg.mxu0
      %3129 = vmatpush.msra.mxu0 0.0
      %3130 = vmatpush.msra.mxu0 0.0
      %3131 = vmatpush.msra.mxu0 0.0
      %3132 = vmatpush.msra.mxu0 0.0
      %3133 = vmatpush.msra.mxu0 0.0
      %3134 = vmatpush.msra.mxu0 0.0
      %3135 = vmatpush.msra.mxu0 0.0
      %3136 = vmatpush.msra.mxu0 0.0
      %3137 = vmatpush.msra.mxu0 0.0
      %3138 = vmatpush.msra.mxu0 0.0
      %3139 = vmatpush.msra.mxu0 0.0
      %3140 = vmatpush.msra.mxu0 0.0
      %3141 = vmatpush.msra.mxu0 0.0
      %3142 = vmatpush.msra.mxu0 0.0
      %v3143 = vand.u32 %v610, 4294901760
      %v3144 = vsub.f32 %v610, %v3143
      %v3145 = vand.u32 %v3144, 4294901760
      %v3146 = vsub.f32 %v3144, %v3145
      %v3147 = vand.u32 %v3146, 4294901760
      %3148 = vmatpush.msra.mxu0 %v3147
      %v3149 = vand.u32 %v602, 4294901760
      %v3150 = vsub.f32 %v602, %v3149
      %v3151 = vand.u32 %v3150, 4294901760
      %v3152 = vsub.f32 %v3150, %v3151
      %v3153 = vand.u32 %v3152, 4294901760
      %3154 = vmatpush.msra.mxu0 %v3153
      %v3155 = vand.u32 %v767, 4294901760
      %3156 = vmatmul.f32.gmra.mxu0 %v3155
      %v3157 = vpop.f32.mrf.mxu0
      %v3158 = vadd.f32 %v3071, %v3157
      %v3159 = vand.u32 %v770, 4294901760
      %3160 = vmatmul.f32.gmra.mxu0 %v3159
      %v3161 = vpop.f32.mrf.mxu0
      %v3162 = vadd.f32 %v3079, %v3161
      %v3163 = vand.u32 %v773, 4294901760
      %3164 = vmatmul.f32.gmra.mxu0 %v3163
      %v3165 = vpop.f32.mrf.mxu0
      %v3166 = vadd.f32 %v3087, %v3165
      %v3167 = vand.u32 %v776, 4294901760
      %3168 = vmatmul.f32.gmra.mxu0 %v3167
      %v3169 = vpop.f32.mrf.mxu0
      %v3170 = vadd.f32 %v3095, %v3169
      %v3171 = vand.u32 %v779, 4294901760
      %3172 = vmatmul.f32.gmra.mxu0 %v3171
      %v3173 = vpop.f32.mrf.mxu0
      %v3174 = vadd.f32 %v3103, %v3173
      %v3175 = vand.u32 %v782, 4294901760
      %3176 = vmatmul.f32.gmra.mxu0 %v3175
      %v3177 = vpop.f32.mrf.mxu0
      %v3178 = vadd.f32 %v3111, %v3177
      %v3179 = vand.u32 %v785, 4294901760
      %3180 = vmatmul.f32.gmra.mxu0 %v3179
      %v3181 = vpop.f32.mrf.mxu0
      %v3182 = vadd.f32 %v3119, %v3181
      %v3183 = vand.u32 %v788, 4294901760
      %3184 = vmatmul.f32.gmra.mxu0 %v3183
      %v3185 = vpop.f32.mrf.mxu0
      %v3186 = vadd.f32 %v3127, %v3185
      %3187 = vdwg.mxu0
      %3188 = vmatpush.msra.mxu0 0.0
      %3189 = vmatpush.msra.mxu0 0.0
      %3190 = vmatpush.msra.mxu0 0.0
      %3191 = vmatpush.msra.mxu0 0.0
      %3192 = vmatpush.msra.mxu0 0.0
      %3193 = vmatpush.msra.mxu0 0.0
      %3194 = vmatpush.msra.mxu0 0.0
      %3195 = vmatpush.msra.mxu0 0.0
      %3196 = vmatpush.msra.mxu0 0.0
      %3197 = vmatpush.msra.mxu0 0.0
      %3198 = vmatpush.msra.mxu0 0.0
      %3199 = vmatpush.msra.mxu0 0.0
      %3200 = vmatpush.msra.mxu0 0.0
      %3201 = vmatpush.msra.mxu0 0.0
      %v3202 = vand.u32 %v610, 4294901760
      %v3203 = vsub.f32 %v610, %v3202
      %3204 = vmatpush.msra.mxu0 %v3203
      %v3205 = vand.u32 %v602, 4294901760
      %v3206 = vsub.f32 %v602, %v3205
      %3207 = vmatpush.msra.mxu0 %v3206
      %v3208 = vand.u32 %v767, 4294901760
      %v3209 = vsub.f32 %v767, %v3208
      %3210 = vmatmul.f32.gmra.mxu0 %v3209
      %v3211 = vpop.f32.mrf.mxu0
      %v3212 = vadd.f32 %v3158, %v3211
      %v3213 = vand.u32 %v770, 4294901760
      %v3214 = vsub.f32 %v770, %v3213
      %3215 = vmatmul.f32.gmra.mxu0 %v3214
      %v3216 = vpop.f32.mrf.mxu0
      %v3217 = vadd.f32 %v3162, %v3216
      %v3218 = vand.u32 %v773, 4294901760
      %v3219 = vsub.f32 %v773, %v3218
      %3220 = vmatmul.f32.gmra.mxu0 %v3219
      %v3221 = vpop.f32.mrf.mxu0
      %v3222 = vadd.f32 %v3166, %v3221
      %v3223 = vand.u32 %v776, 4294901760
      %v3224 = vsub.f32 %v776, %v3223
      %3225 = vmatmul.f32.gmra.mxu0 %v3224
      %v3226 = vpop.f32.mrf.mxu0
      %v3227 = vadd.f32 %v3170, %v3226
      %v3228 = vand.u32 %v779, 4294901760
      %v3229 = vsub.f32 %v779, %v3228
      %3230 = vmatmul.f32.gmra.mxu0 %v3229
      %v3231 = vpop.f32.mrf.mxu0
      %v3232 = vadd.f32 %v3174, %v3231
      %v3233 = vand.u32 %v782, 4294901760
      %v3234 = vsub.f32 %v782, %v3233
      %3235 = vmatmul.f32.gmra.mxu0 %v3234
      %v3236 = vpop.f32.mrf.mxu0
      %v3237 = vadd.f32 %v3178, %v3236
      %v3238 = vand.u32 %v785, 4294901760
      %v3239 = vsub.f32 %v785, %v3238
      %3240 = vmatmul.f32.gmra.mxu0 %v3239
      %v3241 = vpop.f32.mrf.mxu0
      %v3242 = vadd.f32 %v3182, %v3241
      %v3243 = vand.u32 %v788, 4294901760
      %v3244 = vsub.f32 %v788, %v3243
      %3245 = vmatmul.f32.gmra.mxu0 %v3244
      %v3246 = vpop.f32.mrf.mxu0
      %v3247 = vadd.f32 %v3186, %v3246
      %3248 = vdwg.mxu0
      %3249 = vmatpush.msra.mxu0 0.0
      %3250 = vmatpush.msra.mxu0 0.0
      %3251 = vmatpush.msra.mxu0 0.0
      %3252 = vmatpush.msra.mxu0 0.0
      %3253 = vmatpush.msra.mxu0 0.0
      %3254 = vmatpush.msra.mxu0 0.0
      %3255 = vmatpush.msra.mxu0 0.0
      %3256 = vmatpush.msra.mxu0 0.0
      %3257 = vmatpush.msra.mxu0 0.0
      %3258 = vmatpush.msra.mxu0 0.0
      %3259 = vmatpush.msra.mxu0 0.0
      %3260 = vmatpush.msra.mxu0 0.0
      %3261 = vmatpush.msra.mxu0 0.0
      %3262 = vmatpush.msra.mxu0 0.0
      %v3263 = vand.u32 %v610, 4294901760
      %3264 = vmatpush.msra.mxu0 %v3263
      %v3265 = vand.u32 %v602, 4294901760
      %3266 = vmatpush.msra.mxu0 %v3265
      %v3267 = vand.u32 %v767, 4294901760
      %v3268 = vsub.f32 %v767, %v3267
      %v3269 = vand.u32 %v3268, 4294901760
      %3270 = vmatmul.f32.gmra.mxu0 %v3269
      %v3271 = vpop.f32.mrf.mxu0
      %v3272 = vadd.f32 %v3212, %v3271
      %v3273 = vand.u32 %v770, 4294901760
      %v3274 = vsub.f32 %v770, %v3273
      %v3275 = vand.u32 %v3274, 4294901760
      %3276 = vmatmul.f32.gmra.mxu0 %v3275
      %v3277 = vpop.f32.mrf.mxu0
      %v3278 = vadd.f32 %v3217, %v3277
      %v3279 = vand.u32 %v773, 4294901760
      %v3280 = vsub.f32 %v773, %v3279
      %v3281 = vand.u32 %v3280, 4294901760
      %3282 = vmatmul.f32.gmra.mxu0 %v3281
      %v3283 = vpop.f32.mrf.mxu0
      %v3284 = vadd.f32 %v3222, %v3283
      %v3285 = vand.u32 %v776, 4294901760
      %v3286 = vsub.f32 %v776, %v3285
      %v3287 = vand.u32 %v3286, 4294901760
      %3288 = vmatmul.f32.gmra.mxu0 %v3287
      %v3289 = vpop.f32.mrf.mxu0
      %v3290 = vadd.f32 %v3227, %v3289
      %v3291 = vand.u32 %v779, 4294901760
      %v3292 = vsub.f32 %v779, %v3291
      %v3293 = vand.u32 %v3292, 4294901760
      %3294 = vmatmul.f32.gmra.mxu0 %v3293
      %v3295 = vpop.f32.mrf.mxu0
      %v3296 = vadd.f32 %v3232, %v3295
      %v3297 = vand.u32 %v782, 4294901760
      %v3298 = vsub.f32 %v782, %v3297
      %v3299 = vand.u32 %v3298, 4294901760
      %3300 = vmatmul.f32.gmra.mxu0 %v3299
      %v3301 = vpop.f32.mrf.mxu0
      %v3302 = vadd.f32 %v3237, %v3301
      %v3303 = vand.u32 %v785, 4294901760
      %v3304 = vsub.f32 %v785, %v3303
      %v3305 = vand.u32 %v3304, 4294901760
      %3306 = vmatmul.f32.gmra.mxu0 %v3305
      %v3307 = vpop.f32.mrf.mxu0
      %v3308 = vadd.f32 %v3242, %v3307
      %v3309 = vand.u32 %v788, 4294901760
      %v3310 = vsub.f32 %v788, %v3309
      %v3311 = vand.u32 %v3310, 4294901760
      %3312 = vmatmul.f32.gmra.mxu0 %v3311
      %v3313 = vpop.f32.mrf.mxu0
      %v3314 = vadd.f32 %v3247, %v3313
      %3315 = vdwg.mxu0
      %3316 = vmatpush.msra.mxu0 0.0
      %3317 = vmatpush.msra.mxu0 0.0
      %3318 = vmatpush.msra.mxu0 0.0
      %3319 = vmatpush.msra.mxu0 0.0
      %3320 = vmatpush.msra.mxu0 0.0
      %3321 = vmatpush.msra.mxu0 0.0
      %3322 = vmatpush.msra.mxu0 0.0
      %3323 = vmatpush.msra.mxu0 0.0
      %3324 = vmatpush.msra.mxu0 0.0
      %3325 = vmatpush.msra.mxu0 0.0
      %3326 = vmatpush.msra.mxu0 0.0
      %3327 = vmatpush.msra.mxu0 0.0
      %3328 = vmatpush.msra.mxu0 0.0
      %3329 = vmatpush.msra.mxu0 0.0
      %v3330 = vand.u32 %v610, 4294901760
      %v3331 = vsub.f32 %v610, %v3330
      %v3332 = vand.u32 %v3331, 4294901760
      %3333 = vmatpush.msra.mxu0 %v3332
      %v3334 = vand.u32 %v602, 4294901760
      %v3335 = vsub.f32 %v602, %v3334
      %v3336 = vand.u32 %v3335, 4294901760
      %3337 = vmatpush.msra.mxu0 %v3336
      %v3338 = vand.u32 %v767, 4294901760
      %3339 = vmatmul.f32.gmra.mxu0 %v3338
      %v3340 = vpop.f32.mrf.mxu0
      %v3341 = vadd.f32 %v3272, %v3340
      %v3342 = vand.u32 %v770, 4294901760
      %3343 = vmatmul.f32.gmra.mxu0 %v3342
      %v3344 = vpop.f32.mrf.mxu0
      %v3345 = vadd.f32 %v3278, %v3344
      %v3346 = vand.u32 %v773, 4294901760
      %3347 = vmatmul.f32.gmra.mxu0 %v3346
      %v3348 = vpop.f32.mrf.mxu0
      %v3349 = vadd.f32 %v3284, %v3348
      %v3350 = vand.u32 %v776, 4294901760
      %3351 = vmatmul.f32.gmra.mxu0 %v3350
      %v3352 = vpop.f32.mrf.mxu0
      %v3353 = vadd.f32 %v3290, %v3352
      %v3354 = vand.u32 %v779, 4294901760
      %3355 = vmatmul.f32.gmra.mxu0 %v3354
      %v3356 = vpop.f32.mrf.mxu0
      %v3357 = vadd.f32 %v3296, %v3356
      %v3358 = vand.u32 %v782, 4294901760
      %3359 = vmatmul.f32.gmra.mxu0 %v3358
      %v3360 = vpop.f32.mrf.mxu0
      %v3361 = vadd.f32 %v3302, %v3360
      %v3362 = vand.u32 %v785, 4294901760
      %3363 = vmatmul.f32.gmra.mxu0 %v3362
      %v3364 = vpop.f32.mrf.mxu0
      %v3365 = vadd.f32 %v3308, %v3364
      %v3366 = vand.u32 %v788, 4294901760
      %3367 = vmatmul.f32.gmra.mxu0 %v3366
      %v3368 = vpop.f32.mrf.mxu0
      %v3369 = vadd.f32 %v3314, %v3368
      %3370 = vdwg.mxu0
      %3371 = vmatpush.msra.mxu0 0.0
      %3372 = vmatpush.msra.mxu0 0.0
      %3373 = vmatpush.msra.mxu0 0.0
      %3374 = vmatpush.msra.mxu0 0.0
      %3375 = vmatpush.msra.mxu0 0.0
      %3376 = vmatpush.msra.mxu0 0.0
      %3377 = vmatpush.msra.mxu0 0.0
      %3378 = vmatpush.msra.mxu0 0.0
      %3379 = vmatpush.msra.mxu0 0.0
      %3380 = vmatpush.msra.mxu0 0.0
      %3381 = vmatpush.msra.mxu0 0.0
      %3382 = vmatpush.msra.mxu0 0.0
      %3383 = vmatpush.msra.mxu0 0.0
      %3384 = vmatpush.msra.mxu0 0.0
      %v3385 = vand.u32 %v610, 4294901760
      %3386 = vmatpush.msra.mxu0 %v3385
      %v3387 = vand.u32 %v602, 4294901760
      %3388 = vmatpush.msra.mxu0 %v3387
      %v3389 = vand.u32 %v767, 4294901760
      %3390 = vmatmul.f32.gmra.mxu0 %v3389
      %v3391 = vpop.f32.mrf.mxu0
      %v3392 = vadd.f32 %v3341, %v3391
      %v3393 = vand.u32 %v770, 4294901760
      %3394 = vmatmul.f32.gmra.mxu0 %v3393
      %v3395 = vpop.f32.mrf.mxu0
      %v3396 = vadd.f32 %v3345, %v3395
      %v3397 = vand.u32 %v773, 4294901760
      %3398 = vmatmul.f32.gmra.mxu0 %v3397
      %v3399 = vpop.f32.mrf.mxu0
      %v3400 = vadd.f32 %v3349, %v3399
      %v3401 = vand.u32 %v776, 4294901760
      %3402 = vmatmul.f32.gmra.mxu0 %v3401
      %v3403 = vpop.f32.mrf.mxu0
      %v3404 = vadd.f32 %v3353, %v3403
      %v3405 = vand.u32 %v779, 4294901760
      %3406 = vmatmul.f32.gmra.mxu0 %v3405
      %v3407 = vpop.f32.mrf.mxu0
      %v3408 = vadd.f32 %v3357, %v3407
      %v3409 = vand.u32 %v782, 4294901760
      %3410 = vmatmul.f32.gmra.mxu0 %v3409
      %v3411 = vpop.f32.mrf.mxu0
      %v3412 = vadd.f32 %v3361, %v3411
      %v3413 = vand.u32 %v785, 4294901760
      %3414 = vmatmul.f32.gmra.mxu0 %v3413
      %v3415 = vpop.f32.mrf.mxu0
      %v3416 = vadd.f32 %v3365, %v3415
      %v3417 = vand.u32 %v788, 4294901760
      %3418 = vmatmul.f32.gmra.mxu0 %v3417
      %v3419 = vpop.f32.mrf.mxu0
      %v3420 = vadd.f32 %v3369, %v3419
      %3421 = vdwg.mxu0
      %3422 = vmatpush.msra.mxu0 0.0
      %3423 = vmatpush.msra.mxu0 0.0
      %3424 = vmatpush.msra.mxu0 0.0
      %3425 = vmatpush.msra.mxu0 0.0
      %3426 = vmatpush.msra.mxu0 0.0
      %3427 = vmatpush.msra.mxu0 0.0
      %3428 = vmatpush.msra.mxu0 0.0
      %3429 = vmatpush.msra.mxu0 0.0
      %3430 = vmatpush.msra.mxu0 0.0
      %3431 = vmatpush.msra.mxu0 0.0
      %3432 = vmatpush.msra.mxu0 0.0
      %3433 = vmatpush.msra.mxu0 0.0
      %3434 = vmatpush.msra.mxu0 0.0
      %3435 = vmatpush.msra.mxu0 0.0
      %v3436 = vand.u32 %v611, 4294901760
      %3437 = vmatpush.msra.mxu0 %v3436
      %v3438 = vand.u32 %v603, 4294901760
      %3439 = vmatpush.msra.mxu0 %v3438
      %v3440 = vand.u32 %v767, 4294901760
      %v3441 = vsub.f32 %v767, %v3440
      %v3442 = vand.u32 %v3441, 4294901760
      %v3443 = vsub.f32 %v3441, %v3442
      %v3444 = vand.u32 %v3443, 4294901760
      %3445 = vmatmul.f32.gmra.mxu0 %v3444
      %v3446 = vpop.f32.mrf.mxu0
      %v3447 = vadd.f32 %v708, %v3446
      %v3448 = vand.u32 %v770, 4294901760
      %v3449 = vsub.f32 %v770, %v3448
      %v3450 = vand.u32 %v3449, 4294901760
      %v3451 = vsub.f32 %v3449, %v3450
      %v3452 = vand.u32 %v3451, 4294901760
      %3453 = vmatmul.f32.gmra.mxu0 %v3452
      %v3454 = vpop.f32.mrf.mxu0
      %v3455 = vadd.f32 %v716, %v3454
      %v3456 = vand.u32 %v773, 4294901760
      %v3457 = vsub.f32 %v773, %v3456
      %v3458 = vand.u32 %v3457, 4294901760
      %v3459 = vsub.f32 %v3457, %v3458
      %v3460 = vand.u32 %v3459, 4294901760
      %3461 = vmatmul.f32.gmra.mxu0 %v3460
      %v3462 = vpop.f32.mrf.mxu0
      %v3463 = vadd.f32 %v724, %v3462
      %v3464 = vand.u32 %v776, 4294901760
      %v3465 = vsub.f32 %v776, %v3464
      %v3466 = vand.u32 %v3465, 4294901760
      %v3467 = vsub.f32 %v3465, %v3466
      %v3468 = vand.u32 %v3467, 4294901760
      %3469 = vmatmul.f32.gmra.mxu0 %v3468
      %v3470 = vpop.f32.mrf.mxu0
      %v3471 = vadd.f32 %v732, %v3470
      %v3472 = vand.u32 %v779, 4294901760
      %v3473 = vsub.f32 %v779, %v3472
      %v3474 = vand.u32 %v3473, 4294901760
      %v3475 = vsub.f32 %v3473, %v3474
      %v3476 = vand.u32 %v3475, 4294901760
      %3477 = vmatmul.f32.gmra.mxu0 %v3476
      %v3478 = vpop.f32.mrf.mxu0
      %v3479 = vadd.f32 %v740, %v3478
      %v3480 = vand.u32 %v782, 4294901760
      %v3481 = vsub.f32 %v782, %v3480
      %v3482 = vand.u32 %v3481, 4294901760
      %v3483 = vsub.f32 %v3481, %v3482
      %v3484 = vand.u32 %v3483, 4294901760
      %3485 = vmatmul.f32.gmra.mxu0 %v3484
      %v3486 = vpop.f32.mrf.mxu0
      %v3487 = vadd.f32 %v748, %v3486
      %v3488 = vand.u32 %v785, 4294901760
      %v3489 = vsub.f32 %v785, %v3488
      %v3490 = vand.u32 %v3489, 4294901760
      %v3491 = vsub.f32 %v3489, %v3490
      %v3492 = vand.u32 %v3491, 4294901760
      %3493 = vmatmul.f32.gmra.mxu0 %v3492
      %v3494 = vpop.f32.mrf.mxu0
      %v3495 = vadd.f32 %v756, %v3494
      %v3496 = vand.u32 %v788, 4294901760
      %v3497 = vsub.f32 %v788, %v3496
      %v3498 = vand.u32 %v3497, 4294901760
      %v3499 = vsub.f32 %v3497, %v3498
      %v3500 = vand.u32 %v3499, 4294901760
      %3501 = vmatmul.f32.gmra.mxu0 %v3500
      %v3502 = vpop.f32.mrf.mxu0
      %v3503 = vadd.f32 %v764, %v3502
      %3504 = vdwg.mxu0
      %3505 = vmatpush.msra.mxu0 0.0
      %3506 = vmatpush.msra.mxu0 0.0
      %3507 = vmatpush.msra.mxu0 0.0
      %3508 = vmatpush.msra.mxu0 0.0
      %3509 = vmatpush.msra.mxu0 0.0
      %3510 = vmatpush.msra.mxu0 0.0
      %3511 = vmatpush.msra.mxu0 0.0
      %3512 = vmatpush.msra.mxu0 0.0
      %3513 = vmatpush.msra.mxu0 0.0
      %3514 = vmatpush.msra.mxu0 0.0
      %3515 = vmatpush.msra.mxu0 0.0
      %3516 = vmatpush.msra.mxu0 0.0
      %3517 = vmatpush.msra.mxu0 0.0
      %3518 = vmatpush.msra.mxu0 0.0
      %v3519 = vand.u32 %v611, 4294901760
      %v3520 = vsub.f32 %v611, %v3519
      %v3521 = vand.u32 %v3520, 4294901760
      %v3522 = vsub.f32 %v3520, %v3521
      %v3523 = vand.u32 %v3522, 4294901760
      %3524 = vmatpush.msra.mxu0 %v3523
      %v3525 = vand.u32 %v603, 4294901760
      %v3526 = vsub.f32 %v603, %v3525
      %v3527 = vand.u32 %v3526, 4294901760
      %v3528 = vsub.f32 %v3526, %v3527
      %v3529 = vand.u32 %v3528, 4294901760
      %3530 = vmatpush.msra.mxu0 %v3529
      %v3531 = vand.u32 %v767, 4294901760
      %3532 = vmatmul.f32.gmra.mxu0 %v3531
      %v3533 = vpop.f32.mrf.mxu0
      %v3534 = vadd.f32 %v3447, %v3533
      %v3535 = vand.u32 %v770, 4294901760
      %3536 = vmatmul.f32.gmra.mxu0 %v3535
      %v3537 = vpop.f32.mrf.mxu0
      %v3538 = vadd.f32 %v3455, %v3537
      %v3539 = vand.u32 %v773, 4294901760
      %3540 = vmatmul.f32.gmra.mxu0 %v3539
      %v3541 = vpop.f32.mrf.mxu0
      %v3542 = vadd.f32 %v3463, %v3541
      %v3543 = vand.u32 %v776, 4294901760
      %3544 = vmatmul.f32.gmra.mxu0 %v3543
      %v3545 = vpop.f32.mrf.mxu0
      %v3546 = vadd.f32 %v3471, %v3545
      %v3547 = vand.u32 %v779, 4294901760
      %3548 = vmatmul.f32.gmra.mxu0 %v3547
      %v3549 = vpop.f32.mrf.mxu0
      %v3550 = vadd.f32 %v3479, %v3549
      %v3551 = vand.u32 %v782, 4294901760
      %3552 = vmatmul.f32.gmra.mxu0 %v3551
      %v3553 = vpop.f32.mrf.mxu0
      %v3554 = vadd.f32 %v3487, %v3553
      %v3555 = vand.u32 %v785, 4294901760
      %3556 = vmatmul.f32.gmra.mxu0 %v3555
      %v3557 = vpop.f32.mrf.mxu0
      %v3558 = vadd.f32 %v3495, %v3557
      %v3559 = vand.u32 %v788, 4294901760
      %3560 = vmatmul.f32.gmra.mxu0 %v3559
      %v3561 = vpop.f32.mrf.mxu0
      %v3562 = vadd.f32 %v3503, %v3561
      %3563 = vdwg.mxu0
      %3564 = vmatpush.msra.mxu0 0.0
      %3565 = vmatpush.msra.mxu0 0.0
      %3566 = vmatpush.msra.mxu0 0.0
      %3567 = vmatpush.msra.mxu0 0.0
      %3568 = vmatpush.msra.mxu0 0.0
      %3569 = vmatpush.msra.mxu0 0.0
      %3570 = vmatpush.msra.mxu0 0.0
      %3571 = vmatpush.msra.mxu0 0.0
      %3572 = vmatpush.msra.mxu0 0.0
      %3573 = vmatpush.msra.mxu0 0.0
      %3574 = vmatpush.msra.mxu0 0.0
      %3575 = vmatpush.msra.mxu0 0.0
      %3576 = vmatpush.msra.mxu0 0.0
      %3577 = vmatpush.msra.mxu0 0.0
      %v3578 = vand.u32 %v611, 4294901760
      %v3579 = vsub.f32 %v611, %v3578
      %3580 = vmatpush.msra.mxu0 %v3579
      %v3581 = vand.u32 %v603, 4294901760
      %v3582 = vsub.f32 %v603, %v3581
      %3583 = vmatpush.msra.mxu0 %v3582
      %v3584 = vand.u32 %v767, 4294901760
      %v3585 = vsub.f32 %v767, %v3584
      %3586 = vmatmul.f32.gmra.mxu0 %v3585
      %v3587 = vpop.f32.mrf.mxu0
      %v3588 = vadd.f32 %v3534, %v3587
      %v3589 = vand.u32 %v770, 4294901760
      %v3590 = vsub.f32 %v770, %v3589
      %3591 = vmatmul.f32.gmra.mxu0 %v3590
      %v3592 = vpop.f32.mrf.mxu0
      %v3593 = vadd.f32 %v3538, %v3592
      %v3594 = vand.u32 %v773, 4294901760
      %v3595 = vsub.f32 %v773, %v3594
      %3596 = vmatmul.f32.gmra.mxu0 %v3595
      %v3597 = vpop.f32.mrf.mxu0
      %v3598 = vadd.f32 %v3542, %v3597
      %v3599 = vand.u32 %v776, 4294901760
      %v3600 = vsub.f32 %v776, %v3599
      %3601 = vmatmul.f32.gmra.mxu0 %v3600
      %v3602 = vpop.f32.mrf.mxu0
      %v3603 = vadd.f32 %v3546, %v3602
      %v3604 = vand.u32 %v779, 4294901760
      %v3605 = vsub.f32 %v779, %v3604
      %3606 = vmatmul.f32.gmra.mxu0 %v3605
      %v3607 = vpop.f32.mrf.mxu0
      %v3608 = vadd.f32 %v3550, %v3607
      %v3609 = vand.u32 %v782, 4294901760
      %v3610 = vsub.f32 %v782, %v3609
      %3611 = vmatmul.f32.gmra.mxu0 %v3610
      %v3612 = vpop.f32.mrf.mxu0
      %v3613 = vadd.f32 %v3554, %v3612
      %v3614 = vand.u32 %v785, 4294901760
      %v3615 = vsub.f32 %v785, %v3614
      %3616 = vmatmul.f32.gmra.mxu0 %v3615
      %v3617 = vpop.f32.mrf.mxu0
      %v3618 = vadd.f32 %v3558, %v3617
      %v3619 = vand.u32 %v788, 4294901760
      %v3620 = vsub.f32 %v788, %v3619
      %3621 = vmatmul.f32.gmra.mxu0 %v3620
      %v3622 = vpop.f32.mrf.mxu0
      %v3623 = vadd.f32 %v3562, %v3622
      %3624 = vdwg.mxu0
      %3625 = vmatpush.msra.mxu0 0.0
      %3626 = vmatpush.msra.mxu0 0.0
      %3627 = vmatpush.msra.mxu0 0.0
      %3628 = vmatpush.msra.mxu0 0.0
      %3629 = vmatpush.msra.mxu0 0.0
      %3630 = vmatpush.msra.mxu0 0.0
      %3631 = vmatpush.msra.mxu0 0.0
      %3632 = vmatpush.msra.mxu0 0.0
      %3633 = vmatpush.msra.mxu0 0.0
      %3634 = vmatpush.msra.mxu0 0.0
      %3635 = vmatpush.msra.mxu0 0.0
      %3636 = vmatpush.msra.mxu0 0.0
      %3637 = vmatpush.msra.mxu0 0.0
      %3638 = vmatpush.msra.mxu0 0.0
      %v3639 = vand.u32 %v611, 4294901760
      %3640 = vmatpush.msra.mxu0 %v3639
      %v3641 = vand.u32 %v603, 4294901760
      %3642 = vmatpush.msra.mxu0 %v3641
      %v3643 = vand.u32 %v767, 4294901760
      %v3644 = vsub.f32 %v767, %v3643
      %v3645 = vand.u32 %v3644, 4294901760
      %3646 = vmatmul.f32.gmra.mxu0 %v3645
      %v3647 = vpop.f32.mrf.mxu0
      %v3648 = vadd.f32 %v3588, %v3647
      %v3649 = vand.u32 %v770, 4294901760
      %v3650 = vsub.f32 %v770, %v3649
      %v3651 = vand.u32 %v3650, 4294901760
      %3652 = vmatmul.f32.gmra.mxu0 %v3651
      %v3653 = vpop.f32.mrf.mxu0
      %v3654 = vadd.f32 %v3593, %v3653
      %v3655 = vand.u32 %v773, 4294901760
      %v3656 = vsub.f32 %v773, %v3655
      %v3657 = vand.u32 %v3656, 4294901760
      %3658 = vmatmul.f32.gmra.mxu0 %v3657
      %v3659 = vpop.f32.mrf.mxu0
      %v3660 = vadd.f32 %v3598, %v3659
      %v3661 = vand.u32 %v776, 4294901760
      %v3662 = vsub.f32 %v776, %v3661
      %v3663 = vand.u32 %v3662, 4294901760
      %3664 = vmatmul.f32.gmra.mxu0 %v3663
      %v3665 = vpop.f32.mrf.mxu0
      %v3666 = vadd.f32 %v3603, %v3665
      %v3667 = vand.u32 %v779, 4294901760
      %v3668 = vsub.f32 %v779, %v3667
      %v3669 = vand.u32 %v3668, 4294901760
      %3670 = vmatmul.f32.gmra.mxu0 %v3669
      %v3671 = vpop.f32.mrf.mxu0
      %v3672 = vadd.f32 %v3608, %v3671
      %v3673 = vand.u32 %v782, 4294901760
      %v3674 = vsub.f32 %v782, %v3673
      %v3675 = vand.u32 %v3674, 4294901760
      %3676 = vmatmul.f32.gmra.mxu0 %v3675
      %v3677 = vpop.f32.mrf.mxu0
      %v3678 = vadd.f32 %v3613, %v3677
      %v3679 = vand.u32 %v785, 4294901760
      %v3680 = vsub.f32 %v785, %v3679
      %v3681 = vand.u32 %v3680, 4294901760
      %3682 = vmatmul.f32.gmra.mxu0 %v3681
      %v3683 = vpop.f32.mrf.mxu0
      %v3684 = vadd.f32 %v3618, %v3683
      %v3685 = vand.u32 %v788, 4294901760
      %v3686 = vsub.f32 %v788, %v3685
      %v3687 = vand.u32 %v3686, 4294901760
      %3688 = vmatmul.f32.gmra.mxu0 %v3687
      %v3689 = vpop.f32.mrf.mxu0
      %v3690 = vadd.f32 %v3623, %v3689
      %3691 = vdwg.mxu0
      %3692 = vmatpush.msra.mxu0 0.0
      %3693 = vmatpush.msra.mxu0 0.0
      %3694 = vmatpush.msra.mxu0 0.0
      %3695 = vmatpush.msra.mxu0 0.0
      %3696 = vmatpush.msra.mxu0 0.0
      %3697 = vmatpush.msra.mxu0 0.0
      %3698 = vmatpush.msra.mxu0 0.0
      %3699 = vmatpush.msra.mxu0 0.0
      %3700 = vmatpush.msra.mxu0 0.0
      %3701 = vmatpush.msra.mxu0 0.0
      %3702 = vmatpush.msra.mxu0 0.0
      %3703 = vmatpush.msra.mxu0 0.0
      %3704 = vmatpush.msra.mxu0 0.0
      %3705 = vmatpush.msra.mxu0 0.0
      %v3706 = vand.u32 %v611, 4294901760
      %v3707 = vsub.f32 %v611, %v3706
      %v3708 = vand.u32 %v3707, 4294901760
      %3709 = vmatpush.msra.mxu0 %v3708
      %v3710 = vand.u32 %v603, 4294901760
      %v3711 = vsub.f32 %v603, %v3710
      %v3712 = vand.u32 %v3711, 4294901760
      %3713 = vmatpush.msra.mxu0 %v3712
      %v3714 = vand.u32 %v767, 4294901760
      %3715 = vmatmul.f32.gmra.mxu0 %v3714
      %v3716 = vpop.f32.mrf.mxu0
      %v3717 = vadd.f32 %v3648, %v3716
      %v3718 = vand.u32 %v770, 4294901760
      %3719 = vmatmul.f32.gmra.mxu0 %v3718
      %v3720 = vpop.f32.mrf.mxu0
      %v3721 = vadd.f32 %v3654, %v3720
      %v3722 = vand.u32 %v773, 4294901760
      %3723 = vmatmul.f32.gmra.mxu0 %v3722
      %v3724 = vpop.f32.mrf.mxu0
      %v3725 = vadd.f32 %v3660, %v3724
      %v3726 = vand.u32 %v776, 4294901760
      %3727 = vmatmul.f32.gmra.mxu0 %v3726
      %v3728 = vpop.f32.mrf.mxu0
      %v3729 = vadd.f32 %v3666, %v3728
      %v3730 = vand.u32 %v779, 4294901760
      %3731 = vmatmul.f32.gmra.mxu0 %v3730
      %v3732 = vpop.f32.mrf.mxu0
      %v3733 = vadd.f32 %v3672, %v3732
      %v3734 = vand.u32 %v782, 4294901760
      %3735 = vmatmul.f32.gmra.mxu0 %v3734
      %v3736 = vpop.f32.mrf.mxu0
      %v3737 = vadd.f32 %v3678, %v3736
      %v3738 = vand.u32 %v785, 4294901760
      %3739 = vmatmul.f32.gmra.mxu0 %v3738
      %v3740 = vpop.f32.mrf.mxu0
      %v3741 = vadd.f32 %v3684, %v3740
      %v3742 = vand.u32 %v788, 4294901760
      %3743 = vmatmul.f32.gmra.mxu0 %v3742
      %v3744 = vpop.f32.mrf.mxu0
      %v3745 = vadd.f32 %v3690, %v3744
      %3746 = vdwg.mxu0
      %3747 = vmatpush.msra.mxu0 0.0
      %3748 = vmatpush.msra.mxu0 0.0
      %3749 = vmatpush.msra.mxu0 0.0
      %3750 = vmatpush.msra.mxu0 0.0
      %3751 = vmatpush.msra.mxu0 0.0
      %3752 = vmatpush.msra.mxu0 0.0
      %3753 = vmatpush.msra.mxu0 0.0
      %3754 = vmatpush.msra.mxu0 0.0
      %3755 = vmatpush.msra.mxu0 0.0
      %3756 = vmatpush.msra.mxu0 0.0
      %3757 = vmatpush.msra.mxu0 0.0
      %3758 = vmatpush.msra.mxu0 0.0
      %3759 = vmatpush.msra.mxu0 0.0
      %3760 = vmatpush.msra.mxu0 0.0
      %v3761 = vand.u32 %v611, 4294901760
      %3762 = vmatpush.msra.mxu0 %v3761
      %v3763 = vand.u32 %v603, 4294901760
      %3764 = vmatpush.msra.mxu0 %v3763
      %v3765 = vand.u32 %v767, 4294901760
      %3766 = vmatmul.f32.gmra.mxu0 %v3765
      %v3767 = vpop.f32.mrf.mxu0
      %v3768 = vadd.f32 %v3717, %v3767
      %v3769 = vand.u32 %v770, 4294901760
      %3770 = vmatmul.f32.gmra.mxu0 %v3769
      %v3771 = vpop.f32.mrf.mxu0
      %v3772 = vadd.f32 %v3721, %v3771
      %v3773 = vand.u32 %v773, 4294901760
      %3774 = vmatmul.f32.gmra.mxu0 %v3773
      %v3775 = vpop.f32.mrf.mxu0
      %v3776 = vadd.f32 %v3725, %v3775
      %v3777 = vand.u32 %v776, 4294901760
      %3778 = vmatmul.f32.gmra.mxu0 %v3777
      %v3779 = vpop.f32.mrf.mxu0
      %v3780 = vadd.f32 %v3729, %v3779
      %v3781 = vand.u32 %v779, 4294901760
      %3782 = vmatmul.f32.gmra.mxu0 %v3781
      %v3783 = vpop.f32.mrf.mxu0
      %v3784 = vadd.f32 %v3733, %v3783
      %v3785 = vand.u32 %v782, 4294901760
      %3786 = vmatmul.f32.gmra.mxu0 %v3785
      %v3787 = vpop.f32.mrf.mxu0
      %v3788 = vadd.f32 %v3737, %v3787
      %v3789 = vand.u32 %v785, 4294901760
      %3790 = vmatmul.f32.gmra.mxu0 %v3789
      %v3791 = vpop.f32.mrf.mxu0
      %v3792 = vadd.f32 %v3741, %v3791
      %v3793 = vand.u32 %v788, 4294901760
      %3794 = vmatmul.f32.gmra.mxu0 %v3793
      %v3795 = vpop.f32.mrf.mxu0
      %v3796 = vadd.f32 %v3745, %v3795
      %3797 = vdwg.mxu0
      %3798 = vst [vmem:[%s455] sm:$0xff] %v1136
      %3799 = vst [vmem:[%s455 + $0x8] sm:$0xff] %v1512
      %3800 = vst [vmem:[%s455 + $0x10] sm:$0xff] %v1888
      %3801 = vst [vmem:[%s455 + $0x18] sm:$0xff] %v2264
      %3802 = vst [vmem:[%s455 + $0x20] sm:$0xff] %v2640
      %3803 = vst [vmem:[%s455 + $0x28] sm:$0xff] %v3016
      %3804 = vst [vmem:[%s455 + $0x30] sm:$0xff] %v3392
      %3805 = vst [vmem:[%s455 + $0x38] sm:$0xff] %v3768
      %3806 = vst [vmem:[%s455 + $0x40] sm:$0xff] %v1140
      %3807 = vst [vmem:[%s455 + $0x48] sm:$0xff] %v1516
      %3808 = vst [vmem:[%s455 + $0x50] sm:$0xff] %v1892
      %3809 = vst [vmem:[%s455 + $0x58] sm:$0xff] %v2268
      %3810 = vst [vmem:[%s455 + $0x60] sm:$0xff] %v2644
      %3811 = vst [vmem:[%s455 + $0x68] sm:$0xff] %v3020
      %3812 = vst [vmem:[%s455 + $0x70] sm:$0xff] %v3396
      %3813 = vst [vmem:[%s455 + $0x78] sm:$0xff] %v3772
      %3814 = vst [vmem:[%s455 + $0x80] sm:$0xff] %v1144
      %3815 = vst [vmem:[%s455 + $0x88] sm:$0xff] %v1520
      %3816 = vst [vmem:[%s455 + $0x90] sm:$0xff] %v1896
      %3817 = vst [vmem:[%s455 + $0x98] sm:$0xff] %v2272
      %3818 = vst [vmem:[%s455 + $0xa0] sm:$0xff] %v2648
      %3819 = vst [vmem:[%s455 + $0xa8] sm:$0xff] %v3024
      %3820 = vst [vmem:[%s455 + $0xb0] sm:$0xff] %v3400
      %3821 = vst [vmem:[%s455 + $0xb8] sm:$0xff] %v3776
      %3822 = vst [vmem:[%s455 + $0xc0] sm:$0xff] %v1148
      %3823 = vst [vmem:[%s455 + $0xc8] sm:$0xff] %v1524
      %3824 = vst [vmem:[%s455 + $0xd0] sm:$0xff] %v1900
      %3825 = vst [vmem:[%s455 + $0xd8] sm:$0xff] %v2276
      %3826 = vst [vmem:[%s455 + $0xe0] sm:$0xff] %v2652
      %3827 = vst [vmem:[%s455 + $0xe8] sm:$0xff] %v3028
      %3828 = vst [vmem:[%s455 + $0xf0] sm:$0xff] %v3404
      %3829 = vst [vmem:[%s455 + $0xf8] sm:$0xff] %v3780
      %3830 = vst [vmem:[%s455 + $0x100] sm:$0xff] %v1152
      %3831 = vst [vmem:[%s455 + $0x108] sm:$0xff] %v1528
      %3832 = vst [vmem:[%s455 + $0x110] sm:$0xff] %v1904
      %3833 = vst [vmem:[%s455 + $0x118] sm:$0xff] %v2280
      %3834 = vst [vmem:[%s455 + $0x120] sm:$0xff] %v2656
      %3835 = vst [vmem:[%s455 + $0x128] sm:$0xff] %v3032
      %3836 = vst [vmem:[%s455 + $0x130] sm:$0xff] %v3408
      %3837 = vst [vmem:[%s455 + $0x138] sm:$0xff] %v3784
      %3838 = vst [vmem:[%s455 + $0x140] sm:$0xff] %v1156
      %3839 = vst [vmem:[%s455 + $0x148] sm:$0xff] %v1532
      %3840 = vst [vmem:[%s455 + $0x150] sm:$0xff] %v1908
      %3841 = vst [vmem:[%s455 + $0x158] sm:$0xff] %v2284
      %3842 = vst [vmem:[%s455 + $0x160] sm:$0xff] %v2660
      %3843 = vst [vmem:[%s455 + $0x168] sm:$0xff] %v3036
      %3844 = vst [vmem:[%s455 + $0x170] sm:$0xff] %v3412
      %3845 = vst [vmem:[%s455 + $0x178] sm:$0xff] %v3788
      %3846 = vst [vmem:[%s455 + $0x180] sm:$0xff] %v1160
      %3847 = vst [vmem:[%s455 + $0x188] sm:$0xff] %v1536
      %3848 = vst [vmem:[%s455 + $0x190] sm:$0xff] %v1912
      %3849 = vst [vmem:[%s455 + $0x198] sm:$0xff] %v2288
      %3850 = vst [vmem:[%s455 + $0x1a0] sm:$0xff] %v2664
      %3851 = vst [vmem:[%s455 + $0x1a8] sm:$0xff] %v3040
      %3852 = vst [vmem:[%s455 + $0x1b0] sm:$0xff] %v3416
      %3853 = vst [vmem:[%s455 + $0x1b8] sm:$0xff] %v3792
      %3854 = vst [vmem:[%s455 + $0x1c0] sm:$0xff] %v1164
      %3855 = vst [vmem:[%s455 + $0x1c8] sm:$0xff] %v1540
      %3856 = vst [vmem:[%s455 + $0x1d0] sm:$0xff] %v1916
      %3857 = vst [vmem:[%s455 + $0x1d8] sm:$0xff] %v2292
      %3858 = vst [vmem:[%s455 + $0x1e0] sm:$0xff] %v2668
      %3859 = vst [vmem:[%s455 + $0x1e8] sm:$0xff] %v3044
      %3860 = vst [vmem:[%s455 + $0x1f0] sm:$0xff] %v3420
      %3861 = vst [vmem:[%s455 + $0x1f8] sm:$0xff] %v3796
      %v3862 = vadd.f32 %v1136, %v1512
      %v3863 = vadd.f32 %v3862, %v1888
      %v3864 = vadd.f32 %v3863, %v2264
      %v3865 = vadd.f32 %v3864, %v2640
      %v3866 = vadd.f32 %v3865, %v3016
      %v3867 = vadd.f32 %v3866, %v3392
      %v3868 = vadd.f32 %v3867, %v3768
      %3869 = vadd.xlane.f32.xlu0 %v3868
      %v3870 = vpop.xlane.xlu0 %3869
      %v3871 = vadd.f32 %v1140, %v1516
      %v3872 = vadd.f32 %v3871, %v1892
      %v3873 = vadd.f32 %v3872, %v2268
      %v3874 = vadd.f32 %v3873, %v2644
      %v3875 = vadd.f32 %v3874, %v3020
      %v3876 = vadd.f32 %v3875, %v3396
      %v3877 = vadd.f32 %v3876, %v3772
      %3878 = vadd.xlane.f32.xlu0 %v3877
      %v3879 = vpop.xlane.xlu0 %3878
      %v3880 = vadd.f32 %v1144, %v1520
      %v3881 = vadd.f32 %v3880, %v1896
      %v3882 = vadd.f32 %v3881, %v2272
      %v3883 = vadd.f32 %v3882, %v2648
      %v3884 = vadd.f32 %v3883, %v3024
      %v3885 = vadd.f32 %v3884, %v3400
      %v3886 = vadd.f32 %v3885, %v3776
      %3887 = vadd.xlane.f32.xlu0 %v3886
      %v3888 = vpop.xlane.xlu0 %3887
      %v3889 = vadd.f32 %v1148, %v1524
      %v3890 = vadd.f32 %v3889, %v1900
      %v3891 = vadd.f32 %v3890, %v2276
      %v3892 = vadd.f32 %v3891, %v2652
      %v3893 = vadd.f32 %v3892, %v3028
      %v3894 = vadd.f32 %v3893, %v3404
      %v3895 = vadd.f32 %v3894, %v3780
      %3896 = vadd.xlane.f32.xlu0 %v3895
      %v3897 = vpop.xlane.xlu0 %3896
      %v3898 = vadd.f32 %v1152, %v1528
      %v3899 = vadd.f32 %v3898, %v1904
      %v3900 = vadd.f32 %v3899, %v2280
      %v3901 = vadd.f32 %v3900, %v2656
      %v3902 = vadd.f32 %v3901, %v3032
      %v3903 = vadd.f32 %v3902, %v3408
      %v3904 = vadd.f32 %v3903, %v3784
      %3905 = vadd.xlane.f32.xlu0 %v3904
      %v3906 = vpop.xlane.xlu0 %3905
      %v3907 = vadd.f32 %v1156, %v1532
      %v3908 = vadd.f32 %v3907, %v1908
      %v3909 = vadd.f32 %v3908, %v2284
      %v3910 = vadd.f32 %v3909, %v2660
      %v3911 = vadd.f32 %v3910, %v3036
      %v3912 = vadd.f32 %v3911, %v3412
      %v3913 = vadd.f32 %v3912, %v3788
      %3914 = vadd.xlane.f32.xlu0 %v3913
      %v3915 = vpop.xlane.xlu0 %3914
      %v3916 = vadd.f32 %v1160, %v1536
      %v3917 = vadd.f32 %v3916, %v1912
      %v3918 = vadd.f32 %v3917, %v2288
      %v3919 = vadd.f32 %v3918, %v2664
      %v3920 = vadd.f32 %v3919, %v3040
      %v3921 = vadd.f32 %v3920, %v3416
      %v3922 = vadd.f32 %v3921, %v3792
      %3923 = vadd.xlane.f32.xlu0 %v3922
      %v3924 = vpop.xlane.xlu0 %3923
      %v3925 = vadd.f32 %v1164, %v1540
      %v3926 = vadd.f32 %v3925, %v1916
      %v3927 = vadd.f32 %v3926, %v2292
      %v3928 = vadd.f32 %v3927, %v2668
      %v3929 = vadd.f32 %v3928, %v3044
      %v3930 = vadd.f32 %v3929, %v3420
      %v3931 = vadd.f32 %v3930, %v3796
      %3932 = vadd.xlane.f32.xlu0 %v3931
      %v3933 = vpop.xlane.xlu0 %3932
      %vm3934 = vcmask 7168
      %3935 = vst.msk [vmem:[%s462] sm:$0xff] %vm3934, %v3870
      %3936 = vst.msk [vmem:[%s462 + $0x8] sm:$0xff] %vm3934, %v3879
      %3937 = vst.msk [vmem:[%s462 + $0x10] sm:$0xff] %vm3934, %v3888
      %3938 = vst.msk [vmem:[%s462 + $0x18] sm:$0xff] %vm3934, %v3897
      %3939 = vst.msk [vmem:[%s462 + $0x20] sm:$0xff] %vm3934, %v3906
      %3940 = vst.msk [vmem:[%s462 + $0x28] sm:$0xff] %vm3934, %v3915
      %3941 = vst.msk [vmem:[%s462 + $0x30] sm:$0xff] %vm3934, %v3924
      %3942 = vst.msk [vmem:[%s462 + $0x38] sm:$0xff] %vm3934, %v3933
      %v3943 = vmul.f32 %v1136, %v1136
      %v3944 = vmul.f32 %v1512, %v1512
      %v3945 = vmul.f32 %v1888, %v1888
      %v3946 = vmul.f32 %v2264, %v2264
      %v3947 = vmul.f32 %v2640, %v2640
      %v3948 = vmul.f32 %v3016, %v3016
      %v3949 = vmul.f32 %v3392, %v3392
      %v3950 = vmul.f32 %v3768, %v3768
      %v3951 = vmul.f32 %v1140, %v1140
      %v3952 = vmul.f32 %v1516, %v1516
      %v3953 = vmul.f32 %v1892, %v1892
      %v3954 = vmul.f32 %v2268, %v2268
      %v3955 = vmul.f32 %v2644, %v2644
      %v3956 = vmul.f32 %v3020, %v3020
      %v3957 = vmul.f32 %v3396, %v3396
      %v3958 = vmul.f32 %v3772, %v3772
      %v3959 = vmul.f32 %v1144, %v1144
      %v3960 = vmul.f32 %v1520, %v1520
      %v3961 = vmul.f32 %v1896, %v1896
      %v3962 = vmul.f32 %v2272, %v2272
      %v3963 = vmul.f32 %v2648, %v2648
      %v3964 = vmul.f32 %v3024, %v3024
      %v3965 = vmul.f32 %v3400, %v3400
      %v3966 = vmul.f32 %v3776, %v3776
      %v3967 = vmul.f32 %v1148, %v1148
      %v3968 = vmul.f32 %v1524, %v1524
      %v3969 = vmul.f32 %v1900, %v1900
      %v3970 = vmul.f32 %v2276, %v2276
      %v3971 = vmul.f32 %v2652, %v2652
      %v3972 = vmul.f32 %v3028, %v3028
      %v3973 = vmul.f32 %v3404, %v3404
      %v3974 = vmul.f32 %v3780, %v3780
      %v3975 = vmul.f32 %v1152, %v1152
      %v3976 = vmul.f32 %v1528, %v1528
      %v3977 = vmul.f32 %v1904, %v1904
      %v3978 = vmul.f32 %v2280, %v2280
      %v3979 = vmul.f32 %v2656, %v2656
      %v3980 = vmul.f32 %v3032, %v3032
      %v3981 = vmul.f32 %v3408, %v3408
      %v3982 = vmul.f32 %v3784, %v3784
      %v3983 = vmul.f32 %v1156, %v1156
      %v3984 = vmul.f32 %v1532, %v1532
      %v3985 = vmul.f32 %v1908, %v1908
      %v3986 = vmul.f32 %v2284, %v2284
      %v3987 = vmul.f32 %v2660, %v2660
      %v3988 = vmul.f32 %v3036, %v3036
      %v3989 = vmul.f32 %v3412, %v3412
      %v3990 = vmul.f32 %v3788, %v3788
      %v3991 = vmul.f32 %v1160, %v1160
      %v3992 = vmul.f32 %v1536, %v1536
      %v3993 = vmul.f32 %v1912, %v1912
      %v3994 = vmul.f32 %v2288, %v2288
      %v3995 = vmul.f32 %v2664, %v2664
      %v3996 = vmul.f32 %v3040, %v3040
      %v3997 = vmul.f32 %v3416, %v3416
      %v3998 = vmul.f32 %v3792, %v3792
      %v3999 = vmul.f32 %v1164, %v1164
      %v4000 = vmul.f32 %v1540, %v1540
      %v4001 = vmul.f32 %v1916, %v1916
      %v4002 = vmul.f32 %v2292, %v2292
      %v4003 = vmul.f32 %v2668, %v2668
      %v4004 = vmul.f32 %v3044, %v3044
      %v4005 = vmul.f32 %v3420, %v3420
      %v4006 = vmul.f32 %v3796, %v3796
      %v4007 = vadd.f32 %v3943, %v3944
      %v4008 = vadd.f32 %v4007, %v3945
      %v4009 = vadd.f32 %v4008, %v3946
      %v4010 = vadd.f32 %v4009, %v3947
      %v4011 = vadd.f32 %v4010, %v3948
      %v4012 = vadd.f32 %v4011, %v3949
      %v4013 = vadd.f32 %v4012, %v3950
      %4014 = vadd.xlane.f32.xlu0 %v4013
      %v4015 = vpop.xlane.xlu0 %4014
      %v4016 = vadd.f32 %v3951, %v3952
      %v4017 = vadd.f32 %v4016, %v3953
      %v4018 = vadd.f32 %v4017, %v3954
      %v4019 = vadd.f32 %v4018, %v3955
      %v4020 = vadd.f32 %v4019, %v3956
      %v4021 = vadd.f32 %v4020, %v3957
      %v4022 = vadd.f32 %v4021, %v3958
      %4023 = vadd.xlane.f32.xlu0 %v4022
      %v4024 = vpop.xlane.xlu0 %4023
      %v4025 = vadd.f32 %v3959, %v3960
      %v4026 = vadd.f32 %v4025, %v3961
      %v4027 = vadd.f32 %v4026, %v3962
      %v4028 = vadd.f32 %v4027, %v3963
      %v4029 = vadd.f32 %v4028, %v3964
      %v4030 = vadd.f32 %v4029, %v3965
      %v4031 = vadd.f32 %v4030, %v3966
      %4032 = vadd.xlane.f32.xlu0 %v4031
      %v4033 = vpop.xlane.xlu0 %4032
      %v4034 = vadd.f32 %v3967, %v3968
      %v4035 = vadd.f32 %v4034, %v3969
      %v4036 = vadd.f32 %v4035, %v3970
      %v4037 = vadd.f32 %v4036, %v3971
      %v4038 = vadd.f32 %v4037, %v3972
      %v4039 = vadd.f32 %v4038, %v3973
      %v4040 = vadd.f32 %v4039, %v3974
      %4041 = vadd.xlane.f32.xlu0 %v4040
      %v4042 = vpop.xlane.xlu0 %4041
      %v4043 = vadd.f32 %v3975, %v3976
      %v4044 = vadd.f32 %v4043, %v3977
      %v4045 = vadd.f32 %v4044, %v3978
      %v4046 = vadd.f32 %v4045, %v3979
      %v4047 = vadd.f32 %v4046, %v3980
      %v4048 = vadd.f32 %v4047, %v3981
      %v4049 = vadd.f32 %v4048, %v3982
      %4050 = vadd.xlane.f32.xlu0 %v4049
      %v4051 = vpop.xlane.xlu0 %4050
      %v4052 = vadd.f32 %v3983, %v3984
      %v4053 = vadd.f32 %v4052, %v3985
      %v4054 = vadd.f32 %v4053, %v3986
      %v4055 = vadd.f32 %v4054, %v3987
      %v4056 = vadd.f32 %v4055, %v3988
      %v4057 = vadd.f32 %v4056, %v3989
      %v4058 = vadd.f32 %v4057, %v3990
      %4059 = vadd.xlane.f32.xlu0 %v4058
      %v4060 = vpop.xlane.xlu0 %4059
      %v4061 = vadd.f32 %v3991, %v3992
      %v4062 = vadd.f32 %v4061, %v3993
      %v4063 = vadd.f32 %v4062, %v3994
      %v4064 = vadd.f32 %v4063, %v3995
      %v4065 = vadd.f32 %v4064, %v3996
      %v4066 = vadd.f32 %v4065, %v3997
      %v4067 = vadd.f32 %v4066, %v3998
      %4068 = vadd.xlane.f32.xlu0 %v4067
      %v4069 = vpop.xlane.xlu0 %4068
      %v4070 = vadd.f32 %v3999, %v4000
      %v4071 = vadd.f32 %v4070, %v4001
      %v4072 = vadd.f32 %v4071, %v4002
      %v4073 = vadd.f32 %v4072, %v4003
      %v4074 = vadd.f32 %v4073, %v4004
      %v4075 = vadd.f32 %v4074, %v4005
      %v4076 = vadd.f32 %v4075, %v4006
      %4077 = vadd.xlane.f32.xlu0 %v4076
      %v4078 = vpop.xlane.xlu0 %4077
      %4079 = vst.msk [vmem:[%s469] sm:$0xff] %vm3934, %v4015
      %4080 = vst.msk [vmem:[%s469 + $0x8] sm:$0xff] %vm3934, %v4024
      %4081 = vst.msk [vmem:[%s469 + $0x10] sm:$0xff] %vm3934, %v4033
      %4082 = vst.msk [vmem:[%s469 + $0x18] sm:$0xff] %vm3934, %v4042
      %4083 = vst.msk [vmem:[%s469 + $0x20] sm:$0xff] %vm3934, %v4051
      %4084 = vst.msk [vmem:[%s469 + $0x28] sm:$0xff] %vm3934, %v4060
      %4085 = vst.msk [vmem:[%s469 + $0x30] sm:$0xff] %vm3934, %v4069
      %4086 = vst.msk [vmem:[%s469 + $0x38] sm:$0xff] %vm3934, %v4078
      %s4087 = smul.u32 8, %s31
      %p4088 = scmp.lt.s32.totalorder %s30, 1
      %s4089 = scalar_select %p4088, %s30, 1
      %p4090 = scmp.lt.s32.totalorder %s4087, 7
      %s4091 = scalar_select %p4090, %s4087, 7
      %s4092 = smul.addr %s4089, 64
      %s4093 = sadd.s32 %s4091, %s4092
      %s4094 = smul.addr %s4093, 8
      %s4095 = scalar_lea.vmem %s8, %s4094
      %s4096 = sadd.s32 %s30, %s31
      %p4097 = scmp.lt.s32.totalorder %s4096, 1
      %s4098 = scalar_select %p4097, %s4096, 1
      %s4099 = smul.addr %s4098, 8
      %s4100 = smul.addr %s4099, 8
      %s4101 = scalar_lea.vmem %s9, %s4100
      %s4102 = sadd.s32 %s30, %s31
      %p4103 = scmp.lt.s32.totalorder %s4102, 1
      %s4104 = scalar_select %p4103, %s4102, 1
      %s4105 = smul.addr %s4104, 8
      %s4106 = smul.addr %s4105, 8
      %s4107 = scalar_lea.vmem %s10, %s4106
      // Predicated region
      $region53: #{input_preprocess_forward.4} parent=51 // pred_check
        %p4108 = pneg %p240
      $region54: #{input_preprocess_forward.4} parent=51 // pred_check_branch
        %4110 = sbr.rel (%p4108) target = $region56
      $region55: #{input_preprocess_forward.4} parent=51 // pred_region
        %s4111 = smul.u32 8, %s31
      $region56: #{input_preprocess_forward.4} parent=51 // pred_fallthru
        _
      // Predicated region
      $region57: #{input_preprocess_forward.4} parent=51 // pred_check
        %p4112 = pneg %p268
      $region58: #{input_preprocess_forward.4} parent=51 // pred_check_branch
        %4114 = sbr.rel (%p4112) target = $region60
      $region59: #{input_preprocess_forward.4} parent=51 // pred_region
        %s4115 = sadd.s32 %s30, %s31
      $region60: #{input_preprocess_forward.4} parent=51 // pred_fallthru
        _
      // Predicated region
      $region61: #{input_preprocess_forward.4} parent=51 // pred_check
        %p4116 = pneg %p296
      $region62: #{input_preprocess_forward.4} parent=51 // pred_check_branch
        %4118 = sbr.rel (%p4116) target = $region64
      $region63: #{input_preprocess_forward.4} parent=51 // pred_region
        %s4119 = sadd.s32 %s30, %s31
      $region64: #{input_preprocess_forward.4} parent=51 // pred_fallthru
        _
    $region52: #{input_preprocess_forward.4} parent=5 // pred_fallthru
      _
    %p4120 = scmp.le.s32.totalorder 2, %s21
    // Predicated region
    $region65: #{input_preprocess_forward.4} parent=5 // pred_check
      %p4121 = pneg %p4120
    $region66: #{input_preprocess_forward.4} parent=5 // pred_check_branch
      %4123 = sbr.rel (%p4121) target = $region68
    $region67: #{input_preprocess_forward.4} parent=5 // pred_region
      %s4124 = ssub.s32 %s21, 2
      // Predicated region
      $region69: #{input_preprocess_forward.4} parent=67 // pred_check
        %p4125 = pneg %p246
      $region70: #{input_preprocess_forward.4} parent=67 // pred_check_branch
        %4127 = sbr.rel (%p4125) target = $region72
      $region71: #{input_preprocess_forward.4} parent=67 // pred_region
        %s4128 = smul.u32 8, %s33
        %p4129 = scmp.lt.s32.totalorder %s32, 1
        %s4130 = scalar_select %p4129, %s32, 1
        %p4131 = scmp.lt.s32.totalorder %s4128, 7
        %s4132 = scalar_select %p4131, %s4128, 7
        %s4133 = smul.addr %s4130, 64
        %s4134 = sadd.s32 %s4132, %s4133
        %s4135 = smul.addr %s4134, 8
        %s4136 = scalar_lea.vmem %s8, %s4135
      $region72: #{input_preprocess_forward.4} parent=67 // pred_fallthru
        _
      // Predicated region
      $region73: #{input_preprocess_forward.4} parent=67 // pred_check
        %p4137 = pneg %p274
      $region74: #{input_preprocess_forward.4} parent=67 // pred_check_branch
        %4139 = sbr.rel (%p4137) target = $region76
      $region75: #{input_preprocess_forward.4} parent=67 // pred_region
        %s4140 = sadd.s32 %s32, %s33
        %p4141 = scmp.lt.s32.totalorder %s4140, 1
        %s4142 = scalar_select %p4141, %s4140, 1
        %s4143 = smul.addr %s4142, 8
        %s4144 = smul.addr %s4143, 8
        %s4145 = scalar_lea.vmem %s9, %s4144
      $region76: #{input_preprocess_forward.4} parent=67 // pred_fallthru
        _
      // Predicated region
      $region77: #{input_preprocess_forward.4} parent=67 // pred_check
        %p4146 = pneg %p302
      $region78: #{input_preprocess_forward.4} parent=67 // pred_check_branch
        %4148 = sbr.rel (%p4146) target = $region80
      $region79: #{input_preprocess_forward.4} parent=67 // pred_region
        %s4149 = sadd.s32 %s32, %s33
        %p4150 = scmp.lt.s32.totalorder %s4149, 1
        %s4151 = scalar_select %p4150, %s4149, 1
        %s4152 = smul.addr %s4151, 8
        %s4153 = smul.addr %s4152, 8
        %s4154 = scalar_lea.vmem %s10, %s4153
      $region80: #{input_preprocess_forward.4} parent=67 // pred_fallthru
        _
    $region68: #{input_preprocess_forward.4} parent=5 // pred_fallthru
      _
  $region6: #{input_preprocess_forward.4} parent=0 // loop_footer
    %s25 = sadd.s32 1, %s21
  $region7: #{input_preprocess_forward.4} parent=0 // loop_footer_branch
    %20 = sbr.rel target = $region3
  $region8: #{input_preprocess_forward.4} parent=0 // loop_exit
    _

// kernel: input_preprocess_forward.3
$region0: #{input_preprocess_forward.3}
  #allocation0 [shape = 'u32[]', space=smem, size = 0x4, offset = 0x4, fixed_abs, tag = 'smem constant byte address 0x4 - core index']
  #allocation1 [shape = 'u32[72,128]{1,0:T(1,128)}', space=vmem, size = 0x9000, scoped, tag = 'internal scratch']
  #allocation2 [shape = 'f32[1,1536]{1,0:T(1,128)}', space=vmem, size = 0x1800, scoped, tag = 'scratch operand']
  #allocation3 [shape = 'f32[56,1024]{1,0:T(8,128)}', space=vmem, size = 0x38000, scoped, tag = 'scratch operand']
  %s0 = inlined_call_operand.vmem [shape: f32[2,1,1024], index: 0, kind: input, shape index: {}]
  %s1 = inlined_call_operand.vmem [shape: f32[2,16,64], index: 1, kind: input, shape index: {}]
  %s2 = inlined_call_operand.vmem [shape: f32[16,56], index: 2, kind: input, shape index: {}]
  %s3 = inlined_call_operand.vmem [shape: f32[64,64], index: 3, kind: input, shape index: {}]
  %s4 = inlined_call_operand.vmem [shape: f32[1,64], index: 4, kind: input, shape index: {}]
  %s5 = inlined_call_operand.vmem [shape: f32[2,16,1024], index: 5, kind: output, shape index: {0}]
  %s6 = inlined_call_operand.vmem [shape: f32[2,16,64], index: 6, kind: output, shape index: {1}]
  %s7 = inlined_call_operand.vmem [shape: f32[2,16,1], index: 7, kind: output, shape index: {2}]
  %s8 = inlined_call_operand.vmem [shape: f32[2,16,1], index: 8, kind: output, shape index: {3}]
  %s9 = inlined_call_operand.vmem [shape: f32[2,1,1], index: 9, kind: output, shape index: {4}]
  %s10 = inlined_call_operand.vmem [shape: f32[2,1,1], index: 10, kind: output, shape index: {5}]
  %11 = xla_tuple %s5, %s6, %s7, %s8, %s9, %s10
  %s12 = sld [smem:[#allocation0]]
  $region93: #{input_preprocess_forward.3} parent=0
    _
  %s14 = ssub.s32 1, %s12
  %s15 = scalar_select 0, %s14, %s12
  loop: start=0, step=1, limit=4
  $region2: #{input_preprocess_forward.3} parent=0 // loop_pre_header
    _
  $region3: #{input_preprocess_forward.3} parent=0 // loop_header
    %s17 = sphi 0, %s21
    %p18 = scmp.ge.s32.totalorder %s17, 4
    %s27 = sphi 0, %s29
    %s30 = sphi 0, %s27
    %s31 = sphi 0, %s30
    %s47 = sphi 0, %s31
    %s53 = sphi 0, %s55
    %s56 = sphi 0, %s53
    %s57 = sphi 0, %s56
    %s73 = sphi 0, %s57
    %s77 = sphi 0, %s77
    %s79 = sphi 0, %s77
    %s80 = sphi 0, %s79
    %s94 = sphi 0, %s80
    %s98 = sphi 0, %s98
    %s100 = sphi 0, %s98
    %s101 = sphi 0, %s100
    %s115 = sphi 0, %s101
    %s119 = sphi 0, %s119
    %s121 = sphi 0, %s119
    %s122 = sphi 0, %s121
    %s136 = sphi 0, %s122
    %s142 = sphi 0, %s144
    %s145 = sphi 0, %s142
    %s146 = sphi 0, %s145
    %s162 = sphi 0, %s146
    %s168 = sphi 0, %s170
    %s171 = sphi 0, %s168
    %s172 = sphi 0, %s171
    %s188 = sphi 0, %s172
    %s194 = sphi 0, %s196
    %s197 = sphi 0, %s194
    %s198 = sphi 0, %s197
    %s214 = sphi 0, %s198
    %s220 = sphi 0, %s222
    %s223 = sphi 0, %s220
    %s224 = sphi 0, %s223
    %s240 = sphi 0, %s224
    %s246 = sphi 0, %s248
    %s249 = sphi 0, %s246
    %s250 = sphi 0, %s249
    %s266 = sphi 0, %s250
    %s272 = sphi 0, %s274
    %s275 = sphi 0, %s272
    %s276 = sphi 0, %s275
    %s292 = sphi 0, %s276
  $region4: #{input_preprocess_forward.3} parent=0 // loop_header_branch
    %20 = sbr.rel (%p18) target = $region8
  $region5: #{input_preprocess_forward.3} parent=0 // loop_body
    %s22 = ssub.s32 %s17, 1
    %s23 = ssub.s32 %s17, 2
    %s24 = sadd.s32 %s17, 1
    %s25 = ssub.s32 %s17, %s24
    %p26 = scmp.eq.s32.totalorder %s25, 0
    %s28 = sadd.s32 %s27, 1
    %s29 = scalar_select %p26, %s27, %s28
    %p32 = pneg %p26
    %p33 = scmp.eq.s32.totalorder %s17, 1
    %p34 = por %p32, %p33
    %p35 = scmp.ne.s32.totalorder %s27, %s30
    %p36 = scmp.eq.s32.totalorder %s17, 0
    %p37 = por %p35, %p36
    %p38 = scmp.ne.s32.totalorder %s27, %s30
    %p39 = scmp.eq.s32.totalorder %s22, 1
    %p40 = por %p38, %p39
    %p41 = scmp.ne.s32.totalorder %s30, %s31
    %p42 = scmp.eq.s32.totalorder %s22, 0
    %p43 = por %p41, %p42
    %p44 = scmp.ne.s32.totalorder %s30, %s31
    %p45 = scmp.eq.s32.totalorder %s23, 1
    %p46 = por %p44, %p45
    %p48 = scmp.ne.s32.totalorder %s31, %s47
    %p49 = scmp.eq.s32.totalorder %s23, 0
    %p50 = por %p48, %p49
    %s51 = ssub.s32 %s17, %s24
    %p52 = scmp.eq.s32.totalorder %s51, 0
    %s54 = sadd.s32 %s53, 1
    %s55 = scalar_select %p52, %s53, %s54
    %p58 = pneg %p52
    %p59 = scmp.eq.s32.totalorder %s17, 1
    %p60 = por %p58, %p59
    %p61 = scmp.ne.s32.totalorder %s53, %s56
    %p62 = scmp.eq.s32.totalorder %s17, 0
    %p63 = por %p61, %p62
    %p64 = scmp.ne.s32.totalorder %s53, %s56
    %p65 = scmp.eq.s32.totalorder %s22, 1
    %p66 = por %p64, %p65
    %p67 = scmp.ne.s32.totalorder %s56, %s57
    %p68 = scmp.eq.s32.totalorder %s22, 0
    %p69 = por %p67, %p68
    %p70 = scmp.ne.s32.totalorder %s56, %s57
    %p71 = scmp.eq.s32.totalorder %s23, 1
    %p72 = por %p70, %p71
    %p74 = scmp.ne.s32.totalorder %s57, %s73
    %p75 = scmp.eq.s32.totalorder %s23, 0
    %p76 = por %p74, %p75
    %s78 = sadd.s32 %s77, 1
    %p81 = scmp.eq.s32.totalorder %s17, 1
    %p82 = scmp.ne.s32.totalorder %s77, %s79
    %p83 = scmp.eq.s32.totalorder %s17, 0
    %p84 = por %p82, %p83
    %p85 = scmp.ne.s32.totalorder %s77, %s79
    %p86 = scmp.eq.s32.totalorder %s22, 1
    %p87 = por %p85, %p86
    %p88 = scmp.ne.s32.totalorder %s79, %s80
    %p89 = scmp.eq.s32.totalorder %s22, 0
    %p90 = por %p88, %p89
    %p91 = scmp.ne.s32.totalorder %s79, %s80
    %p92 = scmp.eq.s32.totalorder %s23, 1
    %p93 = por %p91, %p92
    %p95 = scmp.ne.s32.totalorder %s80, %s94
    %p96 = scmp.eq.s32.totalorder %s23, 0
    %p97 = por %p95, %p96
    %s99 = sadd.s32 %s98, 1
    %p102 = scmp.eq.s32.totalorder %s17, 1
    %p103 = scmp.ne.s32.totalorder %s98, %s100
    %p104 = scmp.eq.s32.totalorder %s17, 0
    %p105 = por %p103, %p104
    %p106 = scmp.ne.s32.totalorder %s98, %s100
    %p107 = scmp.eq.s32.totalorder %s22, 1
    %p108 = por %p106, %p107
    %p109 = scmp.ne.s32.totalorder %s100, %s101
    %p110 = scmp.eq.s32.totalorder %s22, 0
    %p111 = por %p109, %p110
    %p112 = scmp.ne.s32.totalorder %s100, %s101
    %p113 = scmp.eq.s32.totalorder %s23, 1
    %p114 = por %p112, %p113
    %p116 = scmp.ne.s32.totalorder %s101, %s115
    %p117 = scmp.eq.s32.totalorder %s23, 0
    %p118 = por %p116, %p117
    %s120 = sadd.s32 %s119, 1
    %p123 = scmp.eq.s32.totalorder %s17, 1
    %p124 = scmp.ne.s32.totalorder %s119, %s121
    %p125 = scmp.eq.s32.totalorder %s17, 0
    %p126 = por %p124, %p125
    %p127 = scmp.ne.s32.totalorder %s119, %s121
    %p128 = scmp.eq.s32.totalorder %s22, 1
    %p129 = por %p127, %p128
    %p130 = scmp.ne.s32.totalorder %s121, %s122
    %p131 = scmp.eq.s32.totalorder %s22, 0
    %p132 = por %p130, %p131
    %p133 = scmp.ne.s32.totalorder %s121, %s122
    %p134 = scmp.eq.s32.totalorder %s23, 1
    %p135 = por %p133, %p134
    %p137 = scmp.ne.s32.totalorder %s122, %s136
    %p138 = scmp.eq.s32.totalorder %s23, 0
    %p139 = por %p137, %p138
    %s140 = ssub.s32 %s17, %s24
    %p141 = scmp.eq.s32.totalorder %s140, 0
    %s143 = sadd.s32 %s142, 1
    %s144 = scalar_select %p141, %s142, %s143
    %p147 = pneg %p141
    %p148 = scmp.eq.s32.totalorder %s17, 1
    %p149 = por %p147, %p148
    %p150 = scmp.ne.s32.totalorder %s142, %s145
    %p151 = scmp.eq.s32.totalorder %s17, 0
    %p152 = por %p150, %p151
    %p153 = scmp.ne.s32.totalorder %s142, %s145
    %p154 = scmp.eq.s32.totalorder %s22, 1
    %p155 = por %p153, %p154
    %p156 = scmp.ne.s32.totalorder %s145, %s146
    %p157 = scmp.eq.s32.totalorder %s22, 0
    %p158 = por %p156, %p157
    %p159 = scmp.ne.s32.totalorder %s145, %s146
    %p160 = scmp.eq.s32.totalorder %s23, 1
    %p161 = por %p159, %p160
    %p163 = scmp.ne.s32.totalorder %s146, %s162
    %p164 = scmp.eq.s32.totalorder %s23, 0
    %p165 = por %p163, %p164
    %s166 = ssub.s32 %s17, %s24
    %p167 = scmp.eq.s32.totalorder %s166, 0
    %s169 = sadd.s32 %s168, 1
    %s170 = scalar_select %p167, %s168, %s169
    %p173 = pneg %p167
    %p174 = scmp.eq.s32.totalorder %s17, 1
    %p175 = por %p173, %p174
    %p176 = scmp.ne.s32.totalorder %s168, %s171
    %p177 = scmp.eq.s32.totalorder %s17, 0
    %p178 = por %p176, %p177
    %p179 = scmp.ne.s32.totalorder %s168, %s171
    %p180 = scmp.eq.s32.totalorder %s22, 1
    %p181 = por %p179, %p180
    %p182 = scmp.ne.s32.totalorder %s171, %s172
    %p183 = scmp.eq.s32.totalorder %s22, 0
    %p184 = por %p182, %p183
    %p185 = scmp.ne.s32.totalorder %s171, %s172
    %p186 = scmp.eq.s32.totalorder %s23, 1
    %p187 = por %p185, %p186
    %p189 = scmp.ne.s32.totalorder %s172, %s188
    %p190 = scmp.eq.s32.totalorder %s23, 0
    %p191 = por %p189, %p190
    %s192 = ssub.s32 %s17, %s24
    %p193 = scmp.eq.s32.totalorder %s192, 0
    %s195 = sadd.s32 %s194, 1
    %s196 = scalar_select %p193, %s194, %s195
    %p199 = pneg %p193
    %p200 = scmp.eq.s32.totalorder %s17, 1
    %p201 = por %p199, %p200
    %p202 = scmp.ne.s32.totalorder %s194, %s197
    %p203 = scmp.eq.s32.totalorder %s17, 0
    %p204 = por %p202, %p203
    %p205 = scmp.ne.s32.totalorder %s194, %s197
    %p206 = scmp.eq.s32.totalorder %s22, 1
    %p207 = por %p205, %p206
    %p208 = scmp.ne.s32.totalorder %s197, %s198
    %p209 = scmp.eq.s32.totalorder %s22, 0
    %p210 = por %p208, %p209
    %p211 = scmp.ne.s32.totalorder %s197, %s198
    %p212 = scmp.eq.s32.totalorder %s23, 1
    %p213 = por %p211, %p212
    %p215 = scmp.ne.s32.totalorder %s198, %s214
    %p216 = scmp.eq.s32.totalorder %s23, 0
    %p217 = por %p215, %p216
    %s218 = ssub.s32 %s17, %s24
    %p219 = scmp.eq.s32.totalorder %s218, 0
    %s221 = sadd.s32 %s220, 1
    %s222 = scalar_select %p219, %s220, %s221
    %p225 = pneg %p219
    %p226 = scmp.eq.s32.totalorder %s17, 1
    %p227 = por %p225, %p226
    %p228 = scmp.ne.s32.totalorder %s220, %s223
    %p229 = scmp.eq.s32.totalorder %s17, 0
    %p230 = por %p228, %p229
    %p231 = scmp.ne.s32.totalorder %s220, %s223
    %p232 = scmp.eq.s32.totalorder %s22, 1
    %p233 = por %p231, %p232
    %p234 = scmp.ne.s32.totalorder %s223, %s224
    %p235 = scmp.eq.s32.totalorder %s22, 0
    %p236 = por %p234, %p235
    %p237 = scmp.ne.s32.totalorder %s223, %s224
    %p238 = scmp.eq.s32.totalorder %s23, 1
    %p239 = por %p237, %p238
    %p241 = scmp.ne.s32.totalorder %s224, %s240
    %p242 = scmp.eq.s32.totalorder %s23, 0
    %p243 = por %p241, %p242
    %s244 = ssub.s32 %s17, %s24
    %p245 = scmp.eq.s32.totalorder %s244, 0
    %s247 = sadd.s32 %s246, 1
    %s248 = scalar_select %p245, %s246, %s247
    %p251 = pneg %p245
    %p252 = scmp.eq.s32.totalorder %s17, 1
    %p253 = por %p251, %p252
    %p254 = scmp.ne.s32.totalorder %s246, %s249
    %p255 = scmp.eq.s32.totalorder %s17, 0
    %p256 = por %p254, %p255
    %p257 = scmp.ne.s32.totalorder %s246, %s249
    %p258 = scmp.eq.s32.totalorder %s22, 1
    %p259 = por %p257, %p258
    %p260 = scmp.ne.s32.totalorder %s249, %s250
    %p261 = scmp.eq.s32.totalorder %s22, 0
    %p262 = por %p260, %p261
    %p263 = scmp.ne.s32.totalorder %s249, %s250
    %p264 = scmp.eq.s32.totalorder %s23, 1
    %p265 = por %p263, %p264
    %p267 = scmp.ne.s32.totalorder %s250, %s266
    %p268 = scmp.eq.s32.totalorder %s23, 0
    %p269 = por %p267, %p268
    %s270 = ssub.s32 %s17, %s24
    %p271 = scmp.eq.s32.totalorder %s270, 0
    %s273 = sadd.s32 %s272, 1
    %s274 = scalar_select %p271, %s272, %s273
    %p277 = pneg %p271
    %p278 = scmp.eq.s32.totalorder %s17, 1
    %p279 = por %p277, %p278
    %p280 = scmp.ne.s32.totalorder %s272, %s275
    %p281 = scmp.eq.s32.totalorder %s17, 0
    %p282 = por %p280, %p281
    %p283 = scmp.ne.s32.totalorder %s272, %s275
    %p284 = scmp.eq.s32.totalorder %s22, 1
    %p285 = por %p283, %p284
    %p286 = scmp.ne.s32.totalorder %s275, %s276
    %p287 = scmp.eq.s32.totalorder %s22, 0
    %p288 = por %p286, %p287
    %p289 = scmp.ne.s32.totalorder %s275, %s276
    %p290 = scmp.eq.s32.totalorder %s23, 1
    %p291 = por %p289, %p290
    %p293 = scmp.ne.s32.totalorder %s276, %s292
    %p294 = scmp.eq.s32.totalorder %s23, 0
    %p295 = por %p293, %p294
    %p296 = scmp.le.s32.totalorder 1, %s17
    %p297 = scmp.lt.s32.totalorder %s17, 3
    %p298 = pnand %p296, %p297
    %p299 = pneg %p298
    // Predicated region
    $region9: #{input_preprocess_forward.3} parent=5 // pred_check
      _
    $region10: #{input_preprocess_forward.3} parent=5 // pred_check_branch
      %301 = sbr.rel (%p298) target = $region12
    $region11: #{input_preprocess_forward.3} parent=5 // pred_region
      %s302 = ssub.s32 %s17, 1
      // Predicated region
      $region13: #{input_preprocess_forward.3} parent=11 // pred_check
        %p303 = pneg %p90
      $region14: #{input_preprocess_forward.3} parent=11 // pred_check_branch
        %305 = sbr.rel (%p303) target = $region16
      $region15: #{input_preprocess_forward.3} parent=11 // pred_region
        _
      $region16: #{input_preprocess_forward.3} parent=11 // pred_fallthru
        _
      // Predicated region
      $region17: #{input_preprocess_forward.3} parent=11 // pred_check
        %p306 = pneg %p111
      $region18: #{input_preprocess_forward.3} parent=11 // pred_check_branch
        %308 = sbr.rel (%p306) target = $region20
      $region19: #{input_preprocess_forward.3} parent=11 // pred_region
        _
      $region20: #{input_preprocess_forward.3} parent=11 // pred_fallthru
        _
      // Predicated region
      $region21: #{input_preprocess_forward.3} parent=11 // pred_check
        %p309 = pneg %p132
      $region22: #{input_preprocess_forward.3} parent=11 // pred_check_branch
        %311 = sbr.rel (%p309) target = $region24
      $region23: #{input_preprocess_forward.3} parent=11 // pred_region
        _
      $region24: #{input_preprocess_forward.3} parent=11 // pred_fallthru
        _
    $region12: #{input_preprocess_forward.3} parent=5 // pred_fallthru
      _
    %p312 = scmp.lt.s32.totalorder %s17, 2
    // Predicated region
    $region25: #{input_preprocess_forward.3} parent=5 // pred_check
      %p313 = pneg %p312
    $region26: #{input_preprocess_forward.3} parent=5 // pred_check_branch
      %315 = sbr.rel (%p313) target = $region28
    $region27: #{input_preprocess_forward.3} parent=5 // pred_region
      // Predicated region
      $region29: #{input_preprocess_forward.3} parent=27 // pred_check
        %p316 = pneg %p37
      $region30: #{input_preprocess_forward.3} parent=27 // pred_check_branch
        %318 = sbr.rel (%p316) target = $region32
      $region31: #{input_preprocess_forward.3} parent=27 // pred_region
        %p319 = scmp.lt.s32.totalorder %s17, 1
        %s320 = scalar_select %p319, %s17, 1
        %s321 = smul.addr %s320, 8
        %s322 = scalar_lea.vmem %s0, %s321
      $region32: #{input_preprocess_forward.3} parent=27 // pred_fallthru
        _
      // Predicated region
      $region33: #{input_preprocess_forward.3} parent=27 // pred_check
        %p323 = pneg %p63
      $region34: #{input_preprocess_forward.3} parent=27 // pred_check_branch
        %325 = sbr.rel (%p323) target = $region36
      $region35: #{input_preprocess_forward.3} parent=27 // pred_region
        %p326 = scmp.lt.s32.totalorder %s17, 1
        %s327 = scalar_select %p326, %s17, 1
        %s328 = smul.addr %s327, 2
        %s329 = smul.addr %s328, 8
        %s330 = scalar_lea.vmem %s1, %s329
      $region36: #{input_preprocess_forward.3} parent=27 // pred_fallthru
        _
    $region28: #{input_preprocess_forward.3} parent=5 // pred_fallthru
      _
    %p331 = scmp.le.s32.totalorder 1, %s17
    %p332 = scmp.lt.s32.totalorder %s17, 3
    %p333 = pnand %p331, %p332
    %p334 = pneg %p333
    // Predicated region
    $region37: #{input_preprocess_forward.3} parent=5 // pred_check
      _
    $region38: #{input_preprocess_forward.3} parent=5 // pred_check_branch
      %336 = sbr.rel (%p333) target = $region40
    $region39: #{input_preprocess_forward.3} parent=5 // pred_region
      %s337 = ssub.s32 %s17, 1
      %p338 = scmp.lt.s32.totalorder %s22, 1
      %s339 = scalar_select %p338, %s22, 1
      %s340 = smul.addr %s339, 8
      %s341 = scalar_lea.vmem %s0, %s340
      %p342 = pneg %p43
      %p343 = pneg %p40
      %p344 = scmp.lt.s32.totalorder %s22, 1
      %s345 = scalar_select %p344, %s22, 1
      %s346 = smul.addr %s345, 2
      %s347 = smul.addr %s346, 8
      %s348 = scalar_lea.vmem %s1, %s347
      %p349 = pneg %p69
      %p350 = pneg %p66
      %p351 = pneg %p90
      %p352 = pneg %p87
      %p353 = pneg %p111
      %p354 = pneg %p108
      %p355 = pneg %p132
      %p356 = pneg %p129
      %p357 = pneg %p158
      %p358 = pneg %p155
      %p359 = scmp.lt.s32.totalorder %s22, 1
      %s360 = scalar_select %p359, %s22, 1
      %s361 = smul.addr %s360, 16
      %s362 = smul.addr %s361, 8
      %s363 = scalar_lea.vmem %s5, %s362
      %p364 = pneg %p184
      %p365 = pneg %p181
      %p366 = scmp.lt.s32.totalorder %s22, 1
      %s367 = scalar_select %p366, %s22, 1
      %s368 = smul.addr %s367, 2
      %s369 = smul.addr %s368, 8
      %s370 = scalar_lea.vmem %s6, %s369
      %p371 = pneg %p210
      %p372 = pneg %p207
      %p373 = scmp.lt.s32.totalorder %s22, 1
      %s374 = scalar_select %p373, %s22, 1
      %s375 = smul.addr %s374, 2
      %s376 = smul.addr %s375, 8
      %s377 = scalar_lea.vmem %s7, %s376
      %p378 = pneg %p236
      %p379 = pneg %p233
      %p380 = scmp.lt.s32.totalorder %s22, 1
      %s381 = scalar_select %p380, %s22, 1
      %s382 = smul.addr %s381, 2
      %s383 = smul.addr %s382, 8
      %s384 = scalar_lea.vmem %s8, %s383
      %p385 = pneg %p262
      %p386 = pneg %p259
      %p387 = scmp.lt.s32.totalorder %s22, 1
      %s388 = scalar_select %p387, %s22, 1
      %s389 = scalar_lea.vmem %s9, %s388
      %p390 = pneg %p288
      %p391 = pneg %p285
      %p392 = scmp.lt.s32.totalorder %s22, 1
      %s393 = scalar_select %p392, %s22, 1
      %s394 = scalar_lea.vmem %s10, %s393
      %p395 = scmp.lt.s32.totalorder %s22, 1
      %s396 = scalar_select %p395, %s22, 1
      %s397 = smul.addr %s396, 8
      %s398 = scalar_lea.vmem %s0, %s397
      %p399 = scmp.lt.s32.totalorder %s22, 1
      %s400 = scalar_select %p399, %s22, 1
      %s401 = smul.addr %s400, 2
      %s402 = smul.addr %s401, 8
      %s403 = scalar_lea.vmem %s1, %s402
      %p404 = scmp.lt.s32.totalorder %s22, 1
      %s405 = scalar_select %p404, %s22, 1
      %s406 = smul.addr %s405, 16
      %s407 = smul.addr %s406, 8
      %s408 = scalar_lea.vmem %s5, %s407
      %p409 = scmp.lt.s32.totalorder %s22, 1
      %s410 = scalar_select %p409, %s22, 1
      %s411 = smul.addr %s410, 2
      %s412 = smul.addr %s411, 8
      %s413 = scalar_lea.vmem %s6, %s412
      %p414 = scmp.lt.s32.totalorder %s22, 1
      %s415 = scalar_select %p414, %s22, 1
      %s416 = smul.addr %s415, 2
      %s417 = smul.addr %s416, 8
      %s418 = scalar_lea.vmem %s7, %s417
      %p419 = scmp.lt.s32.totalorder %s22, 1
      %s420 = scalar_select %p419, %s22, 1
      %s421 = smul.addr %s420, 2
      %s422 = smul.addr %s421, 8
      %s423 = scalar_lea.vmem %s8, %s422
      %p424 = scmp.lt.s32.totalorder %s22, 1
      %s425 = scalar_select %p424, %s22, 1
      %s426 = scalar_lea.vmem %s9, %s425
      %p427 = scmp.lt.s32.totalorder %s22, 1
      %s428 = scalar_select %p427, %s22, 1
      %s429 = scalar_lea.vmem %s10, %s428
      %v430 = vlaneseq
      %vm431 = vcmp.ge.s32.totalorder %v430, 0
      %vm432 = vcmp.lt.s32.totalorder %v430, 256
      %vm433 = vmand %vm431, %vm432
      %434 = vst.msk [vmem:[#allocation2] sm:$0x3] %vm433, 0.0
      %v435 = vld [vmem:[%s398] sm:$0xff]
      %436 = vst [vmem:[#allocation2 + $0x2] sm:$0xff] %v435
      %437 = vst.msk [vmem:[#allocation2 + $0xa] sm:$0x3] %vm433, 0.0
      %v438 = vld [vmem:[#allocation2] sm:$0xff]
      %v439 = vld [vmem:[#allocation2 + $0x8] sm:$0xf]
      %v440 = vlaneseq
      %v441 = vand.u32 %v440, 127
      %v442 = vadd.s32 %v441, 128
      %v443 = vadd.s32 %v441, 256
      %v444 = vadd.s32 %v441, 384
      %v445 = vadd.s32 %v441, 512
      %v446 = vadd.s32 %v441, 640
      %v447 = vadd.s32 %v441, 768
      %v448 = vadd.s32 %v441, 896
      %v449 = vand.u32 %v441, 63
      %v450 = vand.u32 %v442, 63
      %v451 = vand.u32 %v443, 63
      %v452 = vand.u32 %v444, 63
      %v453 = vand.u32 %v445, 63
      %v454 = vand.u32 %v446, 63
      %v455 = vand.u32 %v447, 63
      %v456 = vand.u32 %v448, 63
      %vm457 = vcmp.ge.s32.totalorder %v449, 3
      %vm458 = vcmp.ge.s32.totalorder %v450, 3
      %vm459 = vcmp.ge.s32.totalorder %v451, 3
      %vm460 = vcmp.ge.s32.totalorder %v452, 3
      %vm461 = vcmp.ge.s32.totalorder %v453, 3
      %vm462 = vcmp.ge.s32.totalorder %v454, 3
      %vm463 = vcmp.ge.s32.totalorder %v455, 3
      %vm464 = vcmp.ge.s32.totalorder %v456, 3
      %v467 = vperm.slane %v438, 0
      %v468 = vperm.slane %v438, 1
      %v469 = vperm.slane %v438, 2
      %v470 = vperm.slane %v438, 3
      %v471 = vperm.slane %v438, 4
      %v472 = vperm.slane %v438, 5
      %v473 = vperm.slane %v438, 6
      %v474 = vperm.slane %v438, 7
      %v475 = vperm.slane %v439, 0
      %476 = vrot.lane.b32.xlu0 %v467, 67
      %v477 = vpop.permute.xlu0 %476
      %478 = vrot.lane.b32.xlu0 %v468, 67
      %v479 = vpop.permute.xlu0 %478
      %480 = vrot.lane.b32.xlu0 %v469, 67
      %v481 = vpop.permute.xlu0 %480
      %482 = vrot.lane.b32.xlu0 %v470, 67
      %v483 = vpop.permute.xlu0 %482
      %484 = vrot.lane.b32.xlu0 %v471, 67
      %v485 = vpop.permute.xlu0 %484
      %486 = vrot.lane.b32.xlu0 %v472, 67
      %v487 = vpop.permute.xlu0 %486
      %488 = vrot.lane.b32.xlu0 %v473, 67
      %v489 = vpop.permute.xlu0 %488
      %490 = vrot.lane.b32.xlu0 %v474, 67
      %v491 = vpop.permute.xlu0 %490
      %492 = vrot.lane.b32.xlu0 %v475, 67
      %v493 = vpop.permute.xlu0 %492
      %vm494 = vcmask 547840
      %v495 = vsel %vm494, %v477, %v479
      %v496 = vsel %vm494, %v479, %v481
      %v497 = vsel %vm494, %v481, %v483
      %v498 = vsel %vm494, %v483, %v485
      %v499 = vsel %vm494, %v485, %v487
      %v500 = vsel %vm494, %v487, %v489
      %v501 = vsel %vm494, %v489, %v491
      %v502 = vsel %vm494, %v491, %v493
      %v511 = vsel %vm457, %v495, 0.0
      %v512 = vsel %vm458, %v496, 0.0
      %v513 = vsel %vm459, %v497, 0.0
      %v514 = vsel %vm460, %v498, 0.0
      %v515 = vsel %vm461, %v499, 0.0
      %v516 = vsel %vm462, %v500, 0.0
      %v517 = vsel %vm463, %v501, 0.0
      %v518 = vsel %vm464, %v502, 0.0
      %v527 = vrot.slane %v512, 7
      %v528 = vrot.slane %v513, 6
      %v529 = vrot.slane %v514, 5
      %v530 = vrot.slane %v515, 4
      %v531 = vrot.slane %v516, 3
      %v532 = vrot.slane %v517, 2
      %v533 = vrot.slane %v518, 1
      %vm534 = vcmask 1040384
      %v535 = vsel %vm534, %v511, %v527
      %vm536 = vcmask 1042434
      %v537 = vsel %vm536, %v528, %v529
      %vm538 = vcmask 1041408
      %v539 = vsel %vm538, %v535, %v537
      %vm540 = vcmask 1044484
      %v541 = vsel %vm540, %v530, %v531
      %vm542 = vcmask 1046534
      %v543 = vsel %vm542, %v532, %v533
      %vm544 = vcmask 1045508
      %v545 = vsel %vm544, %v541, %v543
      %vm546 = vcmask 1043456
      %v547 = vsel %vm546, %v539, %v545
      %549 = vst [vmem:[#allocation3] ss:$8 sm:$0xf] %v547
      %550 = vst [vmem:[#allocation3] ss:$8 sm:$0xf0] %v547
      %vm551 = vcmp.ge.s32.totalorder %v449, 2
      %vm552 = vcmp.ge.s32.totalorder %v450, 2
      %vm553 = vcmp.ge.s32.totalorder %v451, 2
      %vm554 = vcmp.ge.s32.totalorder %v452, 2
      %vm555 = vcmp.ge.s32.totalorder %v453, 2
      %vm556 = vcmp.ge.s32.totalorder %v454, 2
      %vm557 = vcmp.ge.s32.totalorder %v455, 2
      %vm558 = vcmp.ge.s32.totalorder %v456, 2
      %559 = vrot.lane.b32.xlu0 %v467, 66
      %v560 = vpop.permute.xlu0 %559
      %561 = vrot.lane.b32.xlu0 %v468, 66
      %v562 = vpop.permute.xlu0 %561
      %563 = vrot.lane.b32.xlu0 %v469, 66
      %v564 = vpop.permute.xlu0 %563
      %565 = vrot.lane.b32.xlu0 %v470, 66
      %v566 = vpop.permute.xlu0 %565
      %567 = vrot.lane.b32.xlu0 %v471, 66
      %v568 = vpop.permute.xlu0 %567
      %569 = vrot.lane.b32.xlu0 %v472, 66
      %v570 = vpop.permute.xlu0 %569
      %571 = vrot.lane.b32.xlu0 %v473, 66
      %v572 = vpop.permute.xlu0 %571
      %573 = vrot.lane.b32.xlu0 %v474, 66
      %v574 = vpop.permute.xlu0 %573
      %575 = vrot.lane.b32.xlu0 %v475, 66
      %v576 = vpop.permute.xlu0 %575
      %vm577 = vcmask 539648
      %v578 = vsel %vm577, %v560, %v562
      %v579 = vsel %vm577, %v562, %v564
      %v580 = vsel %vm577, %v564, %v566
      %v581 = vsel %vm577, %v566, %v568
      %v582 = vsel %vm577, %v568, %v570
      %v583 = vsel %vm577, %v570, %v572
      %v584 = vsel %vm577, %v572, %v574
      %v585 = vsel %vm577, %v574, %v576
      %v594 = vsel %vm551, %v578, 0.0
      %v595 = vsel %vm552, %v579, 0.0
      %v596 = vsel %vm553, %v580, 0.0
      %v597 = vsel %vm554, %v581, 0.0
      %v598 = vsel %vm555, %v582, 0.0
      %v599 = vsel %vm556, %v583, 0.0
      %v600 = vsel %vm557, %v584, 0.0
      %v601 = vsel %vm558, %v585, 0.0
      %v610 = vrot.slane %v595, 7
      %v611 = vrot.slane %v596, 6
      %v612 = vrot.slane %v597, 5
      %v613 = vrot.slane %v598, 4
      %v614 = vrot.slane %v599, 3
      %v615 = vrot.slane %v600, 2
      %v616 = vrot.slane %v601, 1
      %v617 = vsel %vm534, %v594, %v610
      %v618 = vsel %vm536, %v611, %v612
      %v619 = vsel %vm538, %v617, %v618
      %v620 = vsel %vm540, %v613, %v614
      %v621 = vsel %vm542, %v615, %v616
      %v622 = vsel %vm544, %v620, %v621
      %v623 = vsel %vm546, %v619, %v622
      %s625 = scalar_lea.vmem [#allocation3], 1
      %626 = vst [vmem:[%s625] ss:$8 sm:$0xf] %v623
      %627 = vst [vmem:[%s625] ss:$8 sm:$0xf0] %v623
      %vm628 = vcmp.ge.s32.totalorder %v449, 1
      %vm629 = vcmp.ge.s32.totalorder %v450, 1
      %vm630 = vcmp.ge.s32.totalorder %v451, 1
      %vm631 = vcmp.ge.s32.totalorder %v452, 1
      %vm632 = vcmp.ge.s32.totalorder %v453, 1
      %vm633 = vcmp.ge.s32.totalorder %v454, 1
      %vm634 = vcmp.ge.s32.totalorder %v455, 1
      %vm635 = vcmp.ge.s32.totalorder %v456, 1
      %636 = vrot.lane.b32.xlu0 %v467, 65
      %v637 = vpop.permute.xlu0 %636
      %638 = vrot.lane.b32.xlu0 %v468, 65
      %v639 = vpop.permute.xlu0 %638
      %640 = vrot.lane.b32.xlu0 %v469, 65
      %v641 = vpop.permute.xlu0 %640
      %642 = vrot.lane.b32.xlu0 %v470, 65
      %v643 = vpop.permute.xlu0 %642
      %644 = vrot.lane.b32.xlu0 %v471, 65
      %v645 = vpop.permute.xlu0 %644
      %646 = vrot.lane.b32.xlu0 %v472, 65
      %v647 = vpop.permute.xlu0 %646
      %648 = vrot.lane.b32.xlu0 %v473, 65
      %v649 = vpop.permute.xlu0 %648
      %650 = vrot.lane.b32.xlu0 %v474, 65
      %v651 = vpop.permute.xlu0 %650
      %652 = vrot.lane.b32.xlu0 %v475, 65
      %v653 = vpop.permute.xlu0 %652
      %vm654 = vcmask 531456
      %v655 = vsel %vm654, %v637, %v639
      %v656 = vsel %vm654, %v639, %v641
      %v657 = vsel %vm654, %v641, %v643
      %v658 = vsel %vm654, %v643, %v645
      %v659 = vsel %vm654, %v645, %v647
      %v660 = vsel %vm654, %v647, %v649
      %v661 = vsel %vm654, %v649, %v651
      %v662 = vsel %vm654, %v651, %v653
      %v671 = vsel %vm628, %v655, 0.0
      %v672 = vsel %vm629, %v656, 0.0
      %v673 = vsel %vm630, %v657, 0.0
      %v674 = vsel %vm631, %v658, 0.0
      %v675 = vsel %vm632, %v659, 0.0
      %v676 = vsel %vm633, %v660, 0.0
      %v677 = vsel %vm634, %v661, 0.0
      %v678 = vsel %vm635, %v662, 0.0
      %v687 = vrot.slane %v672, 7
      %v688 = vrot.slane %v673, 6
      %v689 = vrot.slane %v674, 5
      %v690 = vrot.slane %v675, 4
      %v691 = vrot.slane %v676, 3
      %v692 = vrot.slane %v677, 2
      %v693 = vrot.slane %v678, 1
      %v694 = vsel %vm534, %v671, %v687
      %v695 = vsel %vm536, %v688, %v689
      %v696 = vsel %vm538, %v694, %v695
      %v697 = vsel %vm540, %v690, %v691
      %v698 = vsel %vm542, %v692, %v693
      %v699 = vsel %vm544, %v697, %v698
      %v700 = vsel %vm546, %v696, %v699
      %s702 = scalar_lea.vmem [#allocation3], 2
      %703 = vst [vmem:[%s702] ss:$8 sm:$0xf] %v700
      %704 = vst [vmem:[%s702] ss:$8 sm:$0xf0] %v700
      %705 = vrot.lane.b32.xlu0 %v438, 64
      %v706 = vpop.permute.xlu0 %705
      %707 = vrot.lane.b32.xlu0 %v439, 64
      %v708 = vpop.permute.xlu0 %707
      %v709 = vrot.slane %v706, 1
      %v710 = vrot.slane %v708, 1
      %vm711 = vcmask 1046528
      %v712 = vsel %vm711, %v709, %v710
      %vm713 = vcmask 523264
      %v714 = vsel %vm713, %v706, %v712
      %s716 = scalar_lea.vmem [#allocation3], 3
      %717 = vst [vmem:[%s716] ss:$8 sm:$0xf] %v714
      %718 = vst [vmem:[%s716] ss:$8 sm:$0xf0] %v714
      %vm719 = vcmp.lt.s32.totalorder %v449, 63
      %vm720 = vcmp.lt.s32.totalorder %v450, 63
      %vm721 = vcmp.lt.s32.totalorder %v451, 63
      %vm722 = vcmp.lt.s32.totalorder %v452, 63
      %vm723 = vcmp.lt.s32.totalorder %v453, 63
      %vm724 = vcmp.lt.s32.totalorder %v454, 63
      %vm725 = vcmp.lt.s32.totalorder %v455, 63
      %vm726 = vcmp.lt.s32.totalorder %v456, 63
      %727 = vrot.lane.b32.xlu0 %v467, 63
      %v728 = vpop.permute.xlu0 %727
      %729 = vrot.lane.b32.xlu0 %v468, 63
      %v730 = vpop.permute.xlu0 %729
      %731 = vrot.lane.b32.xlu0 %v469, 63
      %v732 = vpop.permute.xlu0 %731
      %733 = vrot.lane.b32.xlu0 %v470, 63
      %v734 = vpop.permute.xlu0 %733
      %735 = vrot.lane.b32.xlu0 %v471, 63
      %v736 = vpop.permute.xlu0 %735
      %737 = vrot.lane.b32.xlu0 %v472, 63
      %v738 = vpop.permute.xlu0 %737
      %739 = vrot.lane.b32.xlu0 %v473, 63
      %v740 = vpop.permute.xlu0 %739
      %741 = vrot.lane.b32.xlu0 %v474, 63
      %v742 = vpop.permute.xlu0 %741
      %743 = vrot.lane.b32.xlu0 %v475, 63
      %v744 = vpop.permute.xlu0 %743
      %vm745 = vcmask 515072
      %v746 = vsel %vm745, %v728, %v730
      %v747 = vsel %vm745, %v730, %v732
      %v748 = vsel %vm745, %v732, %v734
      %v749 = vsel %vm745, %v734, %v736
      %v750 = vsel %vm745, %v736, %v738
      %v751 = vsel %vm745, %v738, %v740
      %v752 = vsel %vm745, %v740, %v742
      %v753 = vsel %vm745, %v742, %v744
      %v762 = vsel %vm719, %v746, 0.0
      %v763 = vsel %vm720, %v747, 0.0
      %v764 = vsel %vm721, %v748, 0.0
      %v765 = vsel %vm722, %v749, 0.0
      %v766 = vsel %vm723, %v750, 0.0
      %v767 = vsel %vm724, %v751, 0.0
      %v768 = vsel %vm725, %v752, 0.0
      %v769 = vsel %vm726, %v753, 0.0
      %v778 = vrot.slane %v763, 7
      %v779 = vrot.slane %v764, 6
      %v780 = vrot.slane %v765, 5
      %v781 = vrot.slane %v766, 4
      %v782 = vrot.slane %v767, 3
      %v783 = vrot.slane %v768, 2
      %v784 = vrot.slane %v769, 1
      %v785 = vsel %vm534, %v762, %v778
      %v786 = vsel %vm536, %v779, %v780
      %v787 = vsel %vm538, %v785, %v786
      %v788 = vsel %vm540, %v781, %v782
      %v789 = vsel %vm542, %v783, %v784
      %v790 = vsel %vm544, %v788, %v789
      %v791 = vsel %vm546, %v787, %v790
      %s793 = scalar_lea.vmem [#allocation3], 4
      %794 = vst [vmem:[%s793] ss:$8 sm:$0xf] %v791
      %795 = vst [vmem:[%s793] ss:$8 sm:$0xf0] %v791
      %vm796 = vcmp.lt.s32.totalorder %v449, 62
      %vm797 = vcmp.lt.s32.totalorder %v450, 62
      %vm798 = vcmp.lt.s32.totalorder %v451, 62
      %vm799 = vcmp.lt.s32.totalorder %v452, 62
      %vm800 = vcmp.lt.s32.totalorder %v453, 62
      %vm801 = vcmp.lt.s32.totalorder %v454, 62
      %vm802 = vcmp.lt.s32.totalorder %v455, 62
      %vm803 = vcmp.lt.s32.totalorder %v456, 62
      %804 = vrot.lane.b32.xlu0 %v467, 62
      %v805 = vpop.permute.xlu0 %804
      %806 = vrot.lane.b32.xlu0 %v468, 62
      %v807 = vpop.permute.xlu0 %806
      %808 = vrot.lane.b32.xlu0 %v469, 62
      %v809 = vpop.permute.xlu0 %808
      %810 = vrot.lane.b32.xlu0 %v470, 62
      %v811 = vpop.permute.xlu0 %810
      %812 = vrot.lane.b32.xlu0 %v471, 62
      %v813 = vpop.permute.xlu0 %812
      %814 = vrot.lane.b32.xlu0 %v472, 62
      %v815 = vpop.permute.xlu0 %814
      %816 = vrot.lane.b32.xlu0 %v473, 62
      %v817 = vpop.permute.xlu0 %816
      %818 = vrot.lane.b32.xlu0 %v474, 62
      %v819 = vpop.permute.xlu0 %818
      %820 = vrot.lane.b32.xlu0 %v475, 62
      %v821 = vpop.permute.xlu0 %820
      %vm822 = vcmask 506880
      %v823 = vsel %vm822, %v805, %v807
      %v824 = vsel %vm822, %v807, %v809
      %v825 = vsel %vm822, %v809, %v811
      %v826 = vsel %vm822, %v811, %v813
      %v827 = vsel %vm822, %v813, %v815
      %v828 = vsel %vm822, %v815, %v817
      %v829 = vsel %vm822, %v817, %v819
      %v830 = vsel %vm822, %v819, %v821
      %v839 = vsel %vm796, %v823, 0.0
      %v840 = vsel %vm797, %v824, 0.0
      %v841 = vsel %vm798, %v825, 0.0
      %v842 = vsel %vm799, %v826, 0.0
      %v843 = vsel %vm800, %v827, 0.0
      %v844 = vsel %vm801, %v828, 0.0
      %v845 = vsel %vm802, %v829, 0.0
      %v846 = vsel %vm803, %v830, 0.0
      %v855 = vrot.slane %v840, 7
      %v856 = vrot.slane %v841, 6
      %v857 = vrot.slane %v842, 5
      %v858 = vrot.slane %v843, 4
      %v859 = vrot.slane %v844, 3
      %v860 = vrot.slane %v845, 2
      %v861 = vrot.slane %v846, 1
      %v862 = vsel %vm534, %v839, %v855
      %v863 = vsel %vm536, %v856, %v857
      %v864 = vsel %vm538, %v862, %v863
      %v865 = vsel %vm540, %v858, %v859
      %v866 = vsel %vm542, %v860, %v861
      %v867 = vsel %vm544, %v865, %v866
      %v868 = vsel %vm546, %v864, %v867
      %s870 = scalar_lea.vmem [#allocation3], 5
      %871 = vst [vmem:[%s870] ss:$8 sm:$0xf] %v868
      %872 = vst [vmem:[%s870] ss:$8 sm:$0xf0] %v868
      %vm873 = vcmp.lt.s32.totalorder %v449, 61
      %vm874 = vcmp.lt.s32.totalorder %v450, 61
      %vm875 = vcmp.lt.s32.totalorder %v451, 61
      %vm876 = vcmp.lt.s32.totalorder %v452, 61
      %vm877 = vcmp.lt.s32.totalorder %v453, 61
      %vm878 = vcmp.lt.s32.totalorder %v454, 61
      %vm879 = vcmp.lt.s32.totalorder %v455, 61
      %vm880 = vcmp.lt.s32.totalorder %v456, 61
      %881 = vrot.lane.b32.xlu0 %v467, 61
      %v882 = vpop.permute.xlu0 %881
      %883 = vrot.lane.b32.xlu0 %v468, 61
      %v884 = vpop.permute.xlu0 %883
      %885 = vrot.lane.b32.xlu0 %v469, 61
      %v886 = vpop.permute.xlu0 %885
      %887 = vrot.lane.b32.xlu0 %v470, 61
      %v888 = vpop.permute.xlu0 %887
      %889 = vrot.lane.b32.xlu0 %v471, 61
      %v890 = vpop.permute.xlu0 %889
      %891 = vrot.lane.b32.xlu0 %v472, 61
      %v892 = vpop.permute.xlu0 %891
      %893 = vrot.lane.b32.xlu0 %v473, 61
      %v894 = vpop.permute.xlu0 %893
      %895 = vrot.lane.b32.xlu0 %v474, 61
      %v896 = vpop.permute.xlu0 %895
      %897 = vrot.lane.b32.xlu0 %v475, 61
      %v898 = vpop.permute.xlu0 %897
      %vm899 = vcmask 498688
      %v900 = vsel %vm899, %v882, %v884
      %v901 = vsel %vm899, %v884, %v886
      %v902 = vsel %vm899, %v886, %v888
      %v903 = vsel %vm899, %v888, %v890
      %v904 = vsel %vm899, %v890, %v892
      %v905 = vsel %vm899, %v892, %v894
      %v906 = vsel %vm899, %v894, %v896
      %v907 = vsel %vm899, %v896, %v898
      %v916 = vsel %vm873, %v900, 0.0
      %v917 = vsel %vm874, %v901, 0.0
      %v918 = vsel %vm875, %v902, 0.0
      %v919 = vsel %vm876, %v903, 0.0
      %v920 = vsel %vm877, %v904, 0.0
      %v921 = vsel %vm878, %v905, 0.0
      %v922 = vsel %vm879, %v906, 0.0
      %v923 = vsel %vm880, %v907, 0.0
      %v932 = vrot.slane %v917, 7
      %v933 = vrot.slane %v918, 6
      %v934 = vrot.slane %v919, 5
      %v935 = vrot.slane %v920, 4
      %v936 = vrot.slane %v921, 3
      %v937 = vrot.slane %v922, 2
      %v938 = vrot.slane %v923, 1
      %v939 = vsel %vm534, %v916, %v932
      %v940 = vsel %vm536, %v933, %v934
      %v941 = vsel %vm538, %v939, %v940
      %v942 = vsel %vm540, %v935, %v936
      %v943 = vsel %vm542, %v937, %v938
      %v944 = vsel %vm544, %v942, %v943
      %v945 = vsel %vm546, %v941, %v944
      %s947 = scalar_lea.vmem [#allocation3], 6
      %948 = vst [vmem:[%s947] ss:$8 sm:$0xf] %v945
      %949 = vst [vmem:[%s947] ss:$8 sm:$0xf0] %v945
      %950 = vrot.lane.b32.xlu0 %v467, 3
      %v951 = vpop.permute.xlu0 %950
      %952 = vrot.lane.b32.xlu0 %v468, 3
      %v953 = vpop.permute.xlu0 %952
      %954 = vrot.lane.b32.xlu0 %v469, 3
      %v955 = vpop.permute.xlu0 %954
      %956 = vrot.lane.b32.xlu0 %v470, 3
      %v957 = vpop.permute.xlu0 %956
      %958 = vrot.lane.b32.xlu0 %v471, 3
      %v959 = vpop.permute.xlu0 %958
      %960 = vrot.lane.b32.xlu0 %v472, 3
      %v961 = vpop.permute.xlu0 %960
      %962 = vrot.lane.b32.xlu0 %v473, 3
      %v963 = vpop.permute.xlu0 %962
      %964 = vrot.lane.b32.xlu0 %v474, 3
      %v965 = vpop.permute.xlu0 %964
      %966 = vrot.lane.b32.xlu0 %v475, 3
      %v967 = vpop.permute.xlu0 %966
      %vm968 = vcmask 23552
      %v969 = vsel %vm968, %v951, %v953
      %v970 = vsel %vm968, %v953, %v955
      %v971 = vsel %vm968, %v955, %v957
      %v972 = vsel %vm968, %v957, %v959
      %v973 = vsel %vm968, %v959, %v961
      %v974 = vsel %vm968, %v961, %v963
      %v975 = vsel %vm968, %v963, %v965
      %v976 = vsel %vm968, %v965, %v967
      %v985 = vsel %vm457, %v969, 0.0
      %v986 = vsel %vm458, %v970, 0.0
      %v987 = vsel %vm459, %v971, 0.0
      %v988 = vsel %vm460, %v972, 0.0
      %v989 = vsel %vm461, %v973, 0.0
      %v990 = vsel %vm462, %v974, 0.0
      %v991 = vsel %vm463, %v975, 0.0
      %v992 = vsel %vm464, %v976, 0.0
      %v1001 = vrot.slane %v986, 7
      %v1002 = vrot.slane %v987, 6
      %v1003 = vrot.slane %v988, 5
      %v1004 = vrot.slane %v989, 4
      %v1005 = vrot.slane %v990, 3
      %v1006 = vrot.slane %v991, 2
      %v1007 = vrot.slane %v992, 1
      %v1008 = vsel %vm534, %v985, %v1001
      %v1009 = vsel %vm536, %v1002, %v1003
      %v1010 = vsel %vm538, %v1008, %v1009
      %v1011 = vsel %vm540, %v1004, %v1005
      %v1012 = vsel %vm542, %v1006, %v1007
      %v1013 = vsel %vm544, %v1011, %v1012
      %v1014 = vsel %vm546, %v1010, %v1013
      %s1016 = scalar_lea.vmem [#allocation3], 7
      %1017 = vst [vmem:[%s1016] ss:$8 sm:$0xf] %v1014
      %1018 = vst [vmem:[%s1016] ss:$8 sm:$0xf0] %v1014
      %1019 = vrot.lane.b32.xlu0 %v467, 2
      %v1020 = vpop.permute.xlu0 %1019
      %1021 = vrot.lane.b32.xlu0 %v468, 2
      %v1022 = vpop.permute.xlu0 %1021
      %1023 = vrot.lane.b32.xlu0 %v469, 2
      %v1024 = vpop.permute.xlu0 %1023
      %1025 = vrot.lane.b32.xlu0 %v470, 2
      %v1026 = vpop.permute.xlu0 %1025
      %1027 = vrot.lane.b32.xlu0 %v471, 2
      %v1028 = vpop.permute.xlu0 %1027
      %1029 = vrot.lane.b32.xlu0 %v472, 2
      %v1030 = vpop.permute.xlu0 %1029
      %1031 = vrot.lane.b32.xlu0 %v473, 2
      %v1032 = vpop.permute.xlu0 %1031
      %1033 = vrot.lane.b32.xlu0 %v474, 2
      %v1034 = vpop.permute.xlu0 %1033
      %1035 = vrot.lane.b32.xlu0 %v475, 2
      %v1036 = vpop.permute.xlu0 %1035
      %vm1037 = vcmask 15360
      %v1038 = vsel %vm1037, %v1020, %v1022
      %v1039 = vsel %vm1037, %v1022, %v1024
      %v1040 = vsel %vm1037, %v1024, %v1026
      %v1041 = vsel %vm1037, %v1026, %v1028
      %v1042 = vsel %vm1037, %v1028, %v1030
      %v1043 = vsel %vm1037, %v1030, %v1032
      %v1044 = vsel %vm1037, %v1032, %v1034
      %v1045 = vsel %vm1037, %v1034, %v1036
      %v1054 = vsel %vm551, %v1038, 0.0
      %v1055 = vsel %vm552, %v1039, 0.0
      %v1056 = vsel %vm553, %v1040, 0.0
      %v1057 = vsel %vm554, %v1041, 0.0
      %v1058 = vsel %vm555, %v1042, 0.0
      %v1059 = vsel %vm556, %v1043, 0.0
      %v1060 = vsel %vm557, %v1044, 0.0
      %v1061 = vsel %vm558, %v1045, 0.0
      %v1070 = vrot.slane %v1055, 7
      %v1071 = vrot.slane %v1056, 6
      %v1072 = vrot.slane %v1057, 5
      %v1073 = vrot.slane %v1058, 4
      %v1074 = vrot.slane %v1059, 3
      %v1075 = vrot.slane %v1060, 2
      %v1076 = vrot.slane %v1061, 1
      %v1077 = vsel %vm534, %v1054, %v1070
      %v1078 = vsel %vm536, %v1071, %v1072
      %v1079 = vsel %vm538, %v1077, %v1078
      %v1080 = vsel %vm540, %v1073, %v1074
      %v1081 = vsel %vm542, %v1075, %v1076
      %v1082 = vsel %vm544, %v1080, %v1081
      %v1083 = vsel %vm546, %v1079, %v1082
      %s1085 = scalar_lea.vmem [#allocation3], 64
      %1086 = vst [vmem:[%s1085] ss:$8 sm:$0xf] %v1083
      %1087 = vst [vmem:[%s1085] ss:$8 sm:$0xf0] %v1083
      %1088 = vrot.lane.b32.xlu0 %v467, 1
      %v1089 = vpop.permute.xlu0 %1088
      %1090 = vrot.lane.b32.xlu0 %v468, 1
      %v1091 = vpop.permute.xlu0 %1090
      %1092 = vrot.lane.b32.xlu0 %v469, 1
      %v1093 = vpop.permute.xlu0 %1092
      %1094 = vrot.lane.b32.xlu0 %v470, 1
      %v1095 = vpop.permute.xlu0 %1094
      %1096 = vrot.lane.b32.xlu0 %v471, 1
      %v1097 = vpop.permute.xlu0 %1096
      %1098 = vrot.lane.b32.xlu0 %v472, 1
      %v1099 = vpop.permute.xlu0 %1098
      %1100 = vrot.lane.b32.xlu0 %v473, 1
      %v1101 = vpop.permute.xlu0 %1100
      %1102 = vrot.lane.b32.xlu0 %v474, 1
      %v1103 = vpop.permute.xlu0 %1102
      %1104 = vrot.lane.b32.xlu0 %v475, 1
      %v1105 = vpop.permute.xlu0 %1104
      %vm1106 = vcmask 7168
      %v1107 = vsel %vm1106, %v1089, %v1091
      %v1108 = vsel %vm1106, %v1091, %v1093
      %v1109 = vsel %vm1106, %v1093, %v1095
      %v1110 = vsel %vm1106, %v1095, %v1097
      %v1111 = vsel %vm1106, %v1097, %v1099
      %v1112 = vsel %vm1106, %v1099, %v1101
      %v1113 = vsel %vm1106, %v1101, %v1103
      %v1114 = vsel %vm1106, %v1103, %v1105
      %v1123 = vsel %vm628, %v1107, 0.0
      %v1124 = vsel %vm629, %v1108, 0.0
      %v1125 = vsel %vm630, %v1109, 0.0
      %v1126 = vsel %vm631, %v1110, 0.0
      %v1127 = vsel %vm632, %v1111, 0.0
      %v1128 = vsel %vm633, %v1112, 0.0
      %v1129 = vsel %vm634, %v1113, 0.0
      %v1130 = vsel %vm635, %v1114, 0.0
      %v1139 = vrot.slane %v1124, 7
      %v1140 = vrot.slane %v1125, 6
      %v1141 = vrot.slane %v1126, 5
      %v1142 = vrot.slane %v1127, 4
      %v1143 = vrot.slane %v1128, 3
      %v1144 = vrot.slane %v1129, 2
      %v1145 = vrot.slane %v1130, 1
      %v1146 = vsel %vm534, %v1123, %v1139
      %v1147 = vsel %vm536, %v1140, %v1141
      %v1148 = vsel %vm538, %v1146, %v1147
      %v1149 = vsel %vm540, %v1142, %v1143
      %v1150 = vsel %vm542, %v1144, %v1145
      %v1151 = vsel %vm544, %v1149, %v1150
      %v1152 = vsel %vm546, %v1148, %v1151
      %s1154 = scalar_lea.vmem [#allocation3], 65
      %1155 = vst [vmem:[%s1154] ss:$8 sm:$0xf] %v1152
      %1156 = vst [vmem:[%s1154] ss:$8 sm:$0xf0] %v1152
      %v1157 = vrot.slane %v438, 1
      %v1158 = vrot.slane %v439, 1
      %v1159 = vsel %vm711, %v1157, %v1158
      %s1161 = scalar_lea.vmem [#allocation3], 66
      %1162 = vst [vmem:[%s1161] ss:$8 sm:$0xf] %v1159
      %1163 = vst [vmem:[%s1161] ss:$8 sm:$0xf0] %v1159
      %v1164 = vperm.slane %v439, 1
      %1165 = vrot.lane.b32.xlu0 %v468, 127
      %v1166 = vpop.permute.xlu0 %1165
      %1167 = vrot.lane.b32.xlu0 %v469, 127
      %v1168 = vpop.permute.xlu0 %1167
      %1169 = vrot.lane.b32.xlu0 %v470, 127
      %v1170 = vpop.permute.xlu0 %1169
      %1171 = vrot.lane.b32.xlu0 %v471, 127
      %v1172 = vpop.permute.xlu0 %1171
      %1173 = vrot.lane.b32.xlu0 %v472, 127
      %v1174 = vpop.permute.xlu0 %1173
      %1175 = vrot.lane.b32.xlu0 %v473, 127
      %v1176 = vpop.permute.xlu0 %1175
      %1177 = vrot.lane.b32.xlu0 %v474, 127
      %v1178 = vpop.permute.xlu0 %1177
      %1179 = vrot.lane.b32.xlu0 %v475, 127
      %v1180 = vpop.permute.xlu0 %1179
      %1181 = vrot.lane.b32.xlu0 %v1164, 127
      %v1182 = vpop.permute.xlu0 %1181
      %vm1183 = vcmask 1039360
      %v1184 = vsel %vm1183, %v1166, %v1168
      %v1185 = vsel %vm1183, %v1168, %v1170
      %v1186 = vsel %vm1183, %v1170, %v1172
      %v1187 = vsel %vm1183, %v1172, %v1174
      %v1188 = vsel %vm1183, %v1174, %v1176
      %v1189 = vsel %vm1183, %v1176, %v1178
      %v1190 = vsel %vm1183, %v1178, %v1180
      %v1191 = vsel %vm1183, %v1180, %v1182
      %v1200 = vsel %vm719, %v1184, 0.0
      %v1201 = vsel %vm720, %v1185, 0.0
      %v1202 = vsel %vm721, %v1186, 0.0
      %v1203 = vsel %vm722, %v1187, 0.0
      %v1204 = vsel %vm723, %v1188, 0.0
      %v1205 = vsel %vm724, %v1189, 0.0
      %v1206 = vsel %vm725, %v1190, 0.0
      %v1207 = vsel %vm726, %v1191, 0.0
      %v1216 = vrot.slane %v1201, 7
      %v1217 = vrot.slane %v1202, 6
      %v1218 = vrot.slane %v1203, 5
      %v1219 = vrot.slane %v1204, 4
      %v1220 = vrot.slane %v1205, 3
      %v1221 = vrot.slane %v1206, 2
      %v1222 = vrot.slane %v1207, 1
      %v1223 = vsel %vm534, %v1200, %v1216
      %v1224 = vsel %vm536, %v1217, %v1218
      %v1225 = vsel %vm538, %v1223, %v1224
      %v1226 = vsel %vm540, %v1219, %v1220
      %v1227 = vsel %vm542, %v1221, %v1222
      %v1228 = vsel %vm544, %v1226, %v1227
      %v1229 = vsel %vm546, %v1225, %v1228
      %s1231 = scalar_lea.vmem [#allocation3], 67
      %1232 = vst [vmem:[%s1231] ss:$8 sm:$0xf] %v1229
      %1233 = vst [vmem:[%s1231] ss:$8 sm:$0xf0] %v1229
      %1234 = vrot.lane.b32.xlu0 %v468, 126
      %v1235 = vpop.permute.xlu0 %1234
      %1236 = vrot.lane.b32.xlu0 %v469, 126
      %v1237 = vpop.permute.xlu0 %1236
      %1238 = vrot.lane.b32.xlu0 %v470, 126
      %v1239 = vpop.permute.xlu0 %1238
      %1240 = vrot.lane.b32.xlu0 %v471, 126
      %v1241 = vpop.permute.xlu0 %1240
      %1242 = vrot.lane.b32.xlu0 %v472, 126
      %v1243 = vpop.permute.xlu0 %1242
      %1244 = vrot.lane.b32.xlu0 %v473, 126
      %v1245 = vpop.permute.xlu0 %1244
      %1246 = vrot.lane.b32.xlu0 %v474, 126
      %v1247 = vpop.permute.xlu0 %1246
      %1248 = vrot.lane.b32.xlu0 %v475, 126
      %v1249 = vpop.permute.xlu0 %1248
      %1250 = vrot.lane.b32.xlu0 %v1164, 126
      %v1251 = vpop.permute.xlu0 %1250
      %vm1252 = vcmask 1031168
      %v1253 = vsel %vm1252, %v1235, %v1237
      %v1254 = vsel %vm1252, %v1237, %v1239
      %v1255 = vsel %vm1252, %v1239, %v1241
      %v1256 = vsel %vm1252, %v1241, %v1243
      %v1257 = vsel %vm1252, %v1243, %v1245
      %v1258 = vsel %vm1252, %v1245, %v1247
      %v1259 = vsel %vm1252, %v1247, %v1249
      %v1260 = vsel %vm1252, %v1249, %v1251
      %v1269 = vsel %vm796, %v1253, 0.0
      %v1270 = vsel %vm797, %v1254, 0.0
      %v1271 = vsel %vm798, %v1255, 0.0
      %v1272 = vsel %vm799, %v1256, 0.0
      %v1273 = vsel %vm800, %v1257, 0.0
      %v1274 = vsel %vm801, %v1258, 0.0
      %v1275 = vsel %vm802, %v1259, 0.0
      %v1276 = vsel %vm803, %v1260, 0.0
      %v1285 = vrot.slane %v1270, 7
      %v1286 = vrot.slane %v1271, 6
      %v1287 = vrot.slane %v1272, 5
      %v1288 = vrot.slane %v1273, 4
      %v1289 = vrot.slane %v1274, 3
      %v1290 = vrot.slane %v1275, 2
      %v1291 = vrot.slane %v1276, 1
      %v1292 = vsel %vm534, %v1269, %v1285
      %v1293 = vsel %vm536, %v1286, %v1287
      %v1294 = vsel %vm538, %v1292, %v1293
      %v1295 = vsel %vm540, %v1288, %v1289
      %v1296 = vsel %vm542, %v1290, %v1291
      %v1297 = vsel %vm544, %v1295, %v1296
      %v1298 = vsel %vm546, %v1294, %v1297
      %s1300 = scalar_lea.vmem [#allocation3], 68
      %1301 = vst [vmem:[%s1300] ss:$8 sm:$0xf] %v1298
      %1302 = vst [vmem:[%s1300] ss:$8 sm:$0xf0] %v1298
      %1303 = vrot.lane.b32.xlu0 %v468, 125
      %v1304 = vpop.permute.xlu0 %1303
      %1305 = vrot.lane.b32.xlu0 %v469, 125
      %v1306 = vpop.permute.xlu0 %1305
      %1307 = vrot.lane.b32.xlu0 %v470, 125
      %v1308 = vpop.permute.xlu0 %1307
      %1309 = vrot.lane.b32.xlu0 %v471, 125
      %v1310 = vpop.permute.xlu0 %1309
      %1311 = vrot.lane.b32.xlu0 %v472, 125
      %v1312 = vpop.permute.xlu0 %1311
      %1313 = vrot.lane.b32.xlu0 %v473, 125
      %v1314 = vpop.permute.xlu0 %1313
      %1315 = vrot.lane.b32.xlu0 %v474, 125
      %v1316 = vpop.permute.xlu0 %1315
      %1317 = vrot.lane.b32.xlu0 %v475, 125
      %v1318 = vpop.permute.xlu0 %1317
      %1319 = vrot.lane.b32.xlu0 %v1164, 125
      %v1320 = vpop.permute.xlu0 %1319
      %vm1321 = vcmask 1022976
      %v1322 = vsel %vm1321, %v1304, %v1306
      %v1323 = vsel %vm1321, %v1306, %v1308
      %v1324 = vsel %vm1321, %v1308, %v1310
      %v1325 = vsel %vm1321, %v1310, %v1312
      %v1326 = vsel %vm1321, %v1312, %v1314
      %v1327 = vsel %vm1321, %v1314, %v1316
      %v1328 = vsel %vm1321, %v1316, %v1318
      %v1329 = vsel %vm1321, %v1318, %v1320
      %v1338 = vsel %vm873, %v1322, 0.0
      %v1339 = vsel %vm874, %v1323, 0.0
      %v1340 = vsel %vm875, %v1324, 0.0
      %v1341 = vsel %vm876, %v1325, 0.0
      %v1342 = vsel %vm877, %v1326, 0.0
      %v1343 = vsel %vm878, %v1327, 0.0
      %v1344 = vsel %vm879, %v1328, 0.0
      %v1345 = vsel %vm880, %v1329, 0.0
      %v1354 = vrot.slane %v1339, 7
      %v1355 = vrot.slane %v1340, 6
      %v1356 = vrot.slane %v1341, 5
      %v1357 = vrot.slane %v1342, 4
      %v1358 = vrot.slane %v1343, 3
      %v1359 = vrot.slane %v1344, 2
      %v1360 = vrot.slane %v1345, 1
      %v1361 = vsel %vm534, %v1338, %v1354
      %v1362 = vsel %vm536, %v1355, %v1356
      %v1363 = vsel %vm538, %v1361, %v1362
      %v1364 = vsel %vm540, %v1357, %v1358
      %v1365 = vsel %vm542, %v1359, %v1360
      %v1366 = vsel %vm544, %v1364, %v1365
      %v1367 = vsel %vm546, %v1363, %v1366
      %s1369 = scalar_lea.vmem [#allocation3], 69
      %1370 = vst [vmem:[%s1369] ss:$8 sm:$0xf] %v1367
      %1371 = vst [vmem:[%s1369] ss:$8 sm:$0xf0] %v1367
      %1372 = vrot.lane.b32.xlu0 %v1164, 67
      %v1373 = vpop.permute.xlu0 %1372
      %v1374 = vsel %vm494, %v493, %v1373
      %v1376 = vsel %vm457, %v496, 0.0
      %v1377 = vsel %vm458, %v497, 0.0
      %v1378 = vsel %vm459, %v498, 0.0
      %v1379 = vsel %vm460, %v499, 0.0
      %v1380 = vsel %vm461, %v500, 0.0
      %v1381 = vsel %vm462, %v501, 0.0
      %v1382 = vsel %vm463, %v502, 0.0
      %v1383 = vsel %vm464, %v1374, 0.0
      %v1392 = vrot.slane %v1377, 7
      %v1393 = vrot.slane %v1378, 6
      %v1394 = vrot.slane %v1379, 5
      %v1395 = vrot.slane %v1380, 4
      %v1396 = vrot.slane %v1381, 3
      %v1397 = vrot.slane %v1382, 2
      %v1398 = vrot.slane %v1383, 1
      %v1399 = vsel %vm534, %v1376, %v1392
      %v1400 = vsel %vm536, %v1393, %v1394
      %v1401 = vsel %vm538, %v1399, %v1400
      %v1402 = vsel %vm540, %v1395, %v1396
      %v1403 = vsel %vm542, %v1397, %v1398
      %v1404 = vsel %vm544, %v1402, %v1403
      %v1405 = vsel %vm546, %v1401, %v1404
      %s1407 = scalar_lea.vmem [#allocation3], 70
      %1408 = vst [vmem:[%s1407] ss:$8 sm:$0xf] %v1405
      %1409 = vst [vmem:[%s1407] ss:$8 sm:$0xf0] %v1405
      %1410 = vrot.lane.b32.xlu0 %v1164, 66
      %v1411 = vpop.permute.xlu0 %1410
      %v1412 = vsel %vm577, %v576, %v1411
      %v1414 = vsel %vm551, %v579, 0.0
      %v1415 = vsel %vm552, %v580, 0.0
      %v1416 = vsel %vm553, %v581, 0.0
      %v1417 = vsel %vm554, %v582, 0.0
      %v1418 = vsel %vm555, %v583, 0.0
      %v1419 = vsel %vm556, %v584, 0.0
      %v1420 = vsel %vm557, %v585, 0.0
      %v1421 = vsel %vm558, %v1412, 0.0
      %v1430 = vrot.slane %v1415, 7
      %v1431 = vrot.slane %v1416, 6
      %v1432 = vrot.slane %v1417, 5
      %v1433 = vrot.slane %v1418, 4
      %v1434 = vrot.slane %v1419, 3
      %v1435 = vrot.slane %v1420, 2
      %v1436 = vrot.slane %v1421, 1
      %v1437 = vsel %vm534, %v1414, %v1430
      %v1438 = vsel %vm536, %v1431, %v1432
      %v1439 = vsel %vm538, %v1437, %v1438
      %v1440 = vsel %vm540, %v1433, %v1434
      %v1441 = vsel %vm542, %v1435, %v1436
      %v1442 = vsel %vm544, %v1440, %v1441
      %v1443 = vsel %vm546, %v1439, %v1442
      %s1445 = scalar_lea.vmem [#allocation3], 71
      %1446 = vst [vmem:[%s1445] ss:$8 sm:$0xf] %v1443
      %1447 = vst [vmem:[%s1445] ss:$8 sm:$0xf0] %v1443
      %1448 = vrot.lane.b32.xlu0 %v1164, 65
      %v1449 = vpop.permute.xlu0 %1448
      %v1450 = vsel %vm654, %v653, %v1449
      %v1452 = vsel %vm628, %v656, 0.0
      %v1453 = vsel %vm629, %v657, 0.0
      %v1454 = vsel %vm630, %v658, 0.0
      %v1455 = vsel %vm631, %v659, 0.0
      %v1456 = vsel %vm632, %v660, 0.0
      %v1457 = vsel %vm633, %v661, 0.0
      %v1458 = vsel %vm634, %v662, 0.0
      %v1459 = vsel %vm635, %v1450, 0.0
      %v1468 = vrot.slane %v1453, 7
      %v1469 = vrot.slane %v1454, 6
      %v1470 = vrot.slane %v1455, 5
      %v1471 = vrot.slane %v1456, 4
      %v1472 = vrot.slane %v1457, 3
      %v1473 = vrot.slane %v1458, 2
      %v1474 = vrot.slane %v1459, 1
      %v1475 = vsel %vm534, %v1452, %v1468
      %v1476 = vsel %vm536, %v1469, %v1470
      %v1477 = vsel %vm538, %v1475, %v1476
      %v1478 = vsel %vm540, %v1471, %v1472
      %v1479 = vsel %vm542, %v1473, %v1474
      %v1480 = vsel %vm544, %v1478, %v1479
      %v1481 = vsel %vm546, %v1477, %v1480
      %s1483 = scalar_lea.vmem [#allocation3], 128
      %1484 = vst [vmem:[%s1483] ss:$8 sm:$0xf] %v1481
      %1485 = vst [vmem:[%s1483] ss:$8 sm:$0xf0] %v1481
      %v1486 = vrot.slane %v706, 2
      %v1487 = vrot.slane %v708, 2
      %vm1488 = vcmask 1045504
      %v1489 = vsel %vm1488, %v1486, %v1487
      %v1490 = vsel %vm713, %v712, %v1489
      %s1492 = scalar_lea.vmem [#allocation3], 129
      %1493 = vst [vmem:[%s1492] ss:$8 sm:$0xf] %v1490
      %1494 = vst [vmem:[%s1492] ss:$8 sm:$0xf0] %v1490
      %1495 = vrot.lane.b32.xlu0 %v1164, 63
      %v1496 = vpop.permute.xlu0 %1495
      %v1497 = vsel %vm745, %v744, %v1496
      %v1499 = vsel %vm719, %v747, 0.0
      %v1500 = vsel %vm720, %v748, 0.0
      %v1501 = vsel %vm721, %v749, 0.0
      %v1502 = vsel %vm722, %v750, 0.0
      %v1503 = vsel %vm723, %v751, 0.0
      %v1504 = vsel %vm724, %v752, 0.0
      %v1505 = vsel %vm725, %v753, 0.0
      %v1506 = vsel %vm726, %v1497, 0.0
      %v1515 = vrot.slane %v1500, 7
      %v1516 = vrot.slane %v1501, 6
      %v1517 = vrot.slane %v1502, 5
      %v1518 = vrot.slane %v1503, 4
      %v1519 = vrot.slane %v1504, 3
      %v1520 = vrot.slane %v1505, 2
      %v1521 = vrot.slane %v1506, 1
      %v1522 = vsel %vm534, %v1499, %v1515
      %v1523 = vsel %vm536, %v1516, %v1517
      %v1524 = vsel %vm538, %v1522, %v1523
      %v1525 = vsel %vm540, %v1518, %v1519
      %v1526 = vsel %vm542, %v1520, %v1521
      %v1527 = vsel %vm544, %v1525, %v1526
      %v1528 = vsel %vm546, %v1524, %v1527
      %s1530 = scalar_lea.vmem [#allocation3], 130
      %1531 = vst [vmem:[%s1530] ss:$8 sm:$0xf] %v1528
      %1532 = vst [vmem:[%s1530] ss:$8 sm:$0xf0] %v1528
      %1533 = vrot.lane.b32.xlu0 %v1164, 62
      %v1534 = vpop.permute.xlu0 %1533
      %v1535 = vsel %vm822, %v821, %v1534
      %v1537 = vsel %vm796, %v824, 0.0
      %v1538 = vsel %vm797, %v825, 0.0
      %v1539 = vsel %vm798, %v826, 0.0
      %v1540 = vsel %vm799, %v827, 0.0
      %v1541 = vsel %vm800, %v828, 0.0
      %v1542 = vsel %vm801, %v829, 0.0
      %v1543 = vsel %vm802, %v830, 0.0
      %v1544 = vsel %vm803, %v1535, 0.0
      %v1553 = vrot.slane %v1538, 7
      %v1554 = vrot.slane %v1539, 6
      %v1555 = vrot.slane %v1540, 5
      %v1556 = vrot.slane %v1541, 4
      %v1557 = vrot.slane %v1542, 3
      %v1558 = vrot.slane %v1543, 2
      %v1559 = vrot.slane %v1544, 1
      %v1560 = vsel %vm534, %v1537, %v1553
      %v1561 = vsel %vm536, %v1554, %v1555
      %v1562 = vsel %vm538, %v1560, %v1561
      %v1563 = vsel %vm540, %v1556, %v1557
      %v1564 = vsel %vm542, %v1558, %v1559
      %v1565 = vsel %vm544, %v1563, %v1564
      %v1566 = vsel %vm546, %v1562, %v1565
      %s1568 = scalar_lea.vmem [#allocation3], 131
      %1569 = vst [vmem:[%s1568] ss:$8 sm:$0xf] %v1566
      %1570 = vst [vmem:[%s1568] ss:$8 sm:$0xf0] %v1566
      %1571 = vrot.lane.b32.xlu0 %v1164, 61
      %v1572 = vpop.permute.xlu0 %1571
      %v1573 = vsel %vm899, %v898, %v1572
      %v1575 = vsel %vm873, %v901, 0.0
      %v1576 = vsel %vm874, %v902, 0.0
      %v1577 = vsel %vm875, %v903, 0.0
      %v1578 = vsel %vm876, %v904, 0.0
      %v1579 = vsel %vm877, %v905, 0.0
      %v1580 = vsel %vm878, %v906, 0.0
      %v1581 = vsel %vm879, %v907, 0.0
      %v1582 = vsel %vm880, %v1573, 0.0
      %v1591 = vrot.slane %v1576, 7
      %v1592 = vrot.slane %v1577, 6
      %v1593 = vrot.slane %v1578, 5
      %v1594 = vrot.slane %v1579, 4
      %v1595 = vrot.slane %v1580, 3
      %v1596 = vrot.slane %v1581, 2
      %v1597 = vrot.slane %v1582, 1
      %v1598 = vsel %vm534, %v1575, %v1591
      %v1599 = vsel %vm536, %v1592, %v1593
      %v1600 = vsel %vm538, %v1598, %v1599
      %v1601 = vsel %vm540, %v1594, %v1595
      %v1602 = vsel %vm542, %v1596, %v1597
      %v1603 = vsel %vm544, %v1601, %v1602
      %v1604 = vsel %vm546, %v1600, %v1603
      %s1606 = scalar_lea.vmem [#allocation3], 132
      %1607 = vst [vmem:[%s1606] ss:$8 sm:$0xf] %v1604
      %1608 = vst [vmem:[%s1606] ss:$8 sm:$0xf0] %v1604
      %1609 = vrot.lane.b32.xlu0 %v1164, 3
      %v1610 = vpop.permute.xlu0 %1609
      %v1611 = vsel %vm968, %v967, %v1610
      %v1613 = vsel %vm457, %v970, 0.0
      %v1614 = vsel %vm458, %v971, 0.0
      %v1615 = vsel %vm459, %v972, 0.0
      %v1616 = vsel %vm460, %v973, 0.0
      %v1617 = vsel %vm461, %v974, 0.0
      %v1618 = vsel %vm462, %v975, 0.0
      %v1619 = vsel %vm463, %v976, 0.0
      %v1620 = vsel %vm464, %v1611, 0.0
      %v1629 = vrot.slane %v1614, 7
      %v1630 = vrot.slane %v1615, 6
      %v1631 = vrot.slane %v1616, 5
      %v1632 = vrot.slane %v1617, 4
      %v1633 = vrot.slane %v1618, 3
      %v1634 = vrot.slane %v1619, 2
      %v1635 = vrot.slane %v1620, 1
      %v1636 = vsel %vm534, %v1613, %v1629
      %v1637 = vsel %vm536, %v1630, %v1631
      %v1638 = vsel %vm538, %v1636, %v1637
      %v1639 = vsel %vm540, %v1632, %v1633
      %v1640 = vsel %vm542, %v1634, %v1635
      %v1641 = vsel %vm544, %v1639, %v1640
      %v1642 = vsel %vm546, %v1638, %v1641
      %s1644 = scalar_lea.vmem [#allocation3], 133
      %1645 = vst [vmem:[%s1644] ss:$8 sm:$0xf] %v1642
      %1646 = vst [vmem:[%s1644] ss:$8 sm:$0xf0] %v1642
      %1647 = vrot.lane.b32.xlu0 %v1164, 2
      %v1648 = vpop.permute.xlu0 %1647
      %v1649 = vsel %vm1037, %v1036, %v1648
      %v1651 = vsel %vm551, %v1039, 0.0
      %v1652 = vsel %vm552, %v1040, 0.0
      %v1653 = vsel %vm553, %v1041, 0.0
      %v1654 = vsel %vm554, %v1042, 0.0
      %v1655 = vsel %vm555, %v1043, 0.0
      %v1656 = vsel %vm556, %v1044, 0.0
      %v1657 = vsel %vm557, %v1045, 0.0
      %v1658 = vsel %vm558, %v1649, 0.0
      %v1667 = vrot.slane %v1652, 7
      %v1668 = vrot.slane %v1653, 6
      %v1669 = vrot.slane %v1654, 5
      %v1670 = vrot.slane %v1655, 4
      %v1671 = vrot.slane %v1656, 3
      %v1672 = vrot.slane %v1657, 2
      %v1673 = vrot.slane %v1658, 1
      %v1674 = vsel %vm534, %v1651, %v1667
      %v1675 = vsel %vm536, %v1668, %v1669
      %v1676 = vsel %vm538, %v1674, %v1675
      %v1677 = vsel %vm540, %v1670, %v1671
      %v1678 = vsel %vm542, %v1672, %v1673
      %v1679 = vsel %vm544, %v1677, %v1678
      %v1680 = vsel %vm546, %v1676, %v1679
      %s1682 = scalar_lea.vmem [#allocation3], 134
      %1683 = vst [vmem:[%s1682] ss:$8 sm:$0xf] %v1680
      %1684 = vst [vmem:[%s1682] ss:$8 sm:$0xf0] %v1680
      %1685 = vrot.lane.b32.xlu0 %v1164, 1
      %v1686 = vpop.permute.xlu0 %1685
      %v1687 = vsel %vm1106, %v1105, %v1686
      %v1689 = vsel %vm628, %v1108, 0.0
      %v1690 = vsel %vm629, %v1109, 0.0
      %v1691 = vsel %vm630, %v1110, 0.0
      %v1692 = vsel %vm631, %v1111, 0.0
      %v1693 = vsel %vm632, %v1112, 0.0
      %v1694 = vsel %vm633, %v1113, 0.0
      %v1695 = vsel %vm634, %v1114, 0.0
      %v1696 = vsel %vm635, %v1687, 0.0
      %v1705 = vrot.slane %v1690, 7
      %v1706 = vrot.slane %v1691, 6
      %v1707 = vrot.slane %v1692, 5
      %v1708 = vrot.slane %v1693, 4
      %v1709 = vrot.slane %v1694, 3
      %v1710 = vrot.slane %v1695, 2
      %v1711 = vrot.slane %v1696, 1
      %v1712 = vsel %vm534, %v1689, %v1705
      %v1713 = vsel %vm536, %v1706, %v1707
      %v1714 = vsel %vm538, %v1712, %v1713
      %v1715 = vsel %vm540, %v1708, %v1709
      %v1716 = vsel %vm542, %v1710, %v1711
      %v1717 = vsel %vm544, %v1715, %v1716
      %v1718 = vsel %vm546, %v1714, %v1717
      %s1720 = scalar_lea.vmem [#allocation3], 135
      %1721 = vst [vmem:[%s1720] ss:$8 sm:$0xf] %v1718
      %1722 = vst [vmem:[%s1720] ss:$8 sm:$0xf0] %v1718
      %v1723 = vrot.slane %v438, 2
      %v1724 = vrot.slane %v439, 2
      %v1725 = vsel %vm1488, %v1723, %v1724
      %s1727 = scalar_lea.vmem [#allocation3], 192
      %1728 = vst [vmem:[%s1727] ss:$8 sm:$0xf] %v1725
      %1729 = vst [vmem:[%s1727] ss:$8 sm:$0xf0] %v1725
      %v1730 = vperm.slane %v439, 2
      %1731 = vrot.lane.b32.xlu0 %v1730, 127
      %v1732 = vpop.permute.xlu0 %1731
      %v1733 = vsel %vm1183, %v1182, %v1732
      %v1735 = vsel %vm719, %v1185, 0.0
      %v1736 = vsel %vm720, %v1186, 0.0
      %v1737 = vsel %vm721, %v1187, 0.0
      %v1738 = vsel %vm722, %v1188, 0.0
      %v1739 = vsel %vm723, %v1189, 0.0
      %v1740 = vsel %vm724, %v1190, 0.0
      %v1741 = vsel %vm725, %v1191, 0.0
      %v1742 = vsel %vm726, %v1733, 0.0
      %v1751 = vrot.slane %v1736, 7
      %v1752 = vrot.slane %v1737, 6
      %v1753 = vrot.slane %v1738, 5
      %v1754 = vrot.slane %v1739, 4
      %v1755 = vrot.slane %v1740, 3
      %v1756 = vrot.slane %v1741, 2
      %v1757 = vrot.slane %v1742, 1
      %v1758 = vsel %vm534, %v1735, %v1751
      %v1759 = vsel %vm536, %v1752, %v1753
      %v1760 = vsel %vm538, %v1758, %v1759
      %v1761 = vsel %vm540, %v1754, %v1755
      %v1762 = vsel %vm542, %v1756, %v1757
      %v1763 = vsel %vm544, %v1761, %v1762
      %v1764 = vsel %vm546, %v1760, %v1763
      %s1766 = scalar_lea.vmem [#allocation3], 193
      %1767 = vst [vmem:[%s1766] ss:$8 sm:$0xf] %v1764
      %1768 = vst [vmem:[%s1766] ss:$8 sm:$0xf0] %v1764
      %1769 = vrot.lane.b32.xlu0 %v1730, 126
      %v1770 = vpop.permute.xlu0 %1769
      %v1771 = vsel %vm1252, %v1251, %v1770
      %v1773 = vsel %vm796, %v1254, 0.0
      %v1774 = vsel %vm797, %v1255, 0.0
      %v1775 = vsel %vm798, %v1256, 0.0
      %v1776 = vsel %vm799, %v1257, 0.0
      %v1777 = vsel %vm800, %v1258, 0.0
      %v1778 = vsel %vm801, %v1259, 0.0
      %v1779 = vsel %vm802, %v1260, 0.0
      %v1780 = vsel %vm803, %v1771, 0.0
      %v1789 = vrot.slane %v1774, 7
      %v1790 = vrot.slane %v1775, 6
      %v1791 = vrot.slane %v1776, 5
      %v1792 = vrot.slane %v1777, 4
      %v1793 = vrot.slane %v1778, 3
      %v1794 = vrot.slane %v1779, 2
      %v1795 = vrot.slane %v1780, 1
      %v1796 = vsel %vm534, %v1773, %v1789
      %v1797 = vsel %vm536, %v1790, %v1791
      %v1798 = vsel %vm538, %v1796, %v1797
      %v1799 = vsel %vm540, %v1792, %v1793
      %v1800 = vsel %vm542, %v1794, %v1795
      %v1801 = vsel %vm544, %v1799, %v1800
      %v1802 = vsel %vm546, %v1798, %v1801
      %s1804 = scalar_lea.vmem [#allocation3], 194
      %1805 = vst [vmem:[%s1804] ss:$8 sm:$0xf] %v1802
      %1806 = vst [vmem:[%s1804] ss:$8 sm:$0xf0] %v1802
      %1807 = vrot.lane.b32.xlu0 %v1730, 125
      %v1808 = vpop.permute.xlu0 %1807
      %v1809 = vsel %vm1321, %v1320, %v1808
      %v1811 = vsel %vm873, %v1323, 0.0
      %v1812 = vsel %vm874, %v1324, 0.0
      %v1813 = vsel %vm875, %v1325, 0.0
      %v1814 = vsel %vm876, %v1326, 0.0
      %v1815 = vsel %vm877, %v1327, 0.0
      %v1816 = vsel %vm878, %v1328, 0.0
      %v1817 = vsel %vm879, %v1329, 0.0
      %v1818 = vsel %vm880, %v1809, 0.0
      %v1827 = vrot.slane %v1812, 7
      %v1828 = vrot.slane %v1813, 6
      %v1829 = vrot.slane %v1814, 5
      %v1830 = vrot.slane %v1815, 4
      %v1831 = vrot.slane %v1816, 3
      %v1832 = vrot.slane %v1817, 2
      %v1833 = vrot.slane %v1818, 1
      %v1834 = vsel %vm534, %v1811, %v1827
      %v1835 = vsel %vm536, %v1828, %v1829
      %v1836 = vsel %vm538, %v1834, %v1835
      %v1837 = vsel %vm540, %v1830, %v1831
      %v1838 = vsel %vm542, %v1832, %v1833
      %v1839 = vsel %vm544, %v1837, %v1838
      %v1840 = vsel %vm546, %v1836, %v1839
      %s1842 = scalar_lea.vmem [#allocation3], 195
      %1843 = vst [vmem:[%s1842] ss:$8 sm:$0xf] %v1840
      %1844 = vst [vmem:[%s1842] ss:$8 sm:$0xf0] %v1840
      %1845 = vrot.lane.b32.xlu0 %v1730, 67
      %v1846 = vpop.permute.xlu0 %1845
      %v1847 = vsel %vm494, %v1373, %v1846
      %v1849 = vsel %vm457, %v497, 0.0
      %v1850 = vsel %vm458, %v498, 0.0
      %v1851 = vsel %vm459, %v499, 0.0
      %v1852 = vsel %vm460, %v500, 0.0
      %v1853 = vsel %vm461, %v501, 0.0
      %v1854 = vsel %vm462, %v502, 0.0
      %v1855 = vsel %vm463, %v1374, 0.0
      %v1856 = vsel %vm464, %v1847, 0.0
      %v1865 = vrot.slane %v1850, 7
      %v1866 = vrot.slane %v1851, 6
      %v1867 = vrot.slane %v1852, 5
      %v1868 = vrot.slane %v1853, 4
      %v1869 = vrot.slane %v1854, 3
      %v1870 = vrot.slane %v1855, 2
      %v1871 = vrot.slane %v1856, 1
      %v1872 = vsel %vm534, %v1849, %v1865
      %v1873 = vsel %vm536, %v1866, %v1867
      %v1874 = vsel %vm538, %v1872, %v1873
      %v1875 = vsel %vm540, %v1868, %v1869
      %v1876 = vsel %vm542, %v1870, %v1871
      %v1877 = vsel %vm544, %v1875, %v1876
      %v1878 = vsel %vm546, %v1874, %v1877
      %s1880 = scalar_lea.vmem [#allocation3], 196
      %1881 = vst [vmem:[%s1880] ss:$8 sm:$0xf] %v1878
      %1882 = vst [vmem:[%s1880] ss:$8 sm:$0xf0] %v1878
      %1883 = vrot.lane.b32.xlu0 %v1730, 66
      %v1884 = vpop.permute.xlu0 %1883
      %v1885 = vsel %vm577, %v1411, %v1884
      %v1887 = vsel %vm551, %v580, 0.0
      %v1888 = vsel %vm552, %v581, 0.0
      %v1889 = vsel %vm553, %v582, 0.0
      %v1890 = vsel %vm554, %v583, 0.0
      %v1891 = vsel %vm555, %v584, 0.0
      %v1892 = vsel %vm556, %v585, 0.0
      %v1893 = vsel %vm557, %v1412, 0.0
      %v1894 = vsel %vm558, %v1885, 0.0
      %v1903 = vrot.slane %v1888, 7
      %v1904 = vrot.slane %v1889, 6
      %v1905 = vrot.slane %v1890, 5
      %v1906 = vrot.slane %v1891, 4
      %v1907 = vrot.slane %v1892, 3
      %v1908 = vrot.slane %v1893, 2
      %v1909 = vrot.slane %v1894, 1
      %v1910 = vsel %vm534, %v1887, %v1903
      %v1911 = vsel %vm536, %v1904, %v1905
      %v1912 = vsel %vm538, %v1910, %v1911
      %v1913 = vsel %vm540, %v1906, %v1907
      %v1914 = vsel %vm542, %v1908, %v1909
      %v1915 = vsel %vm544, %v1913, %v1914
      %v1916 = vsel %vm546, %v1912, %v1915
      %s1918 = scalar_lea.vmem [#allocation3], 197
      %1919 = vst [vmem:[%s1918] ss:$8 sm:$0xf] %v1916
      %1920 = vst [vmem:[%s1918] ss:$8 sm:$0xf0] %v1916
      %1921 = vrot.lane.b32.xlu0 %v1730, 65
      %v1922 = vpop.permute.xlu0 %1921
      %v1923 = vsel %vm654, %v1449, %v1922
      %v1925 = vsel %vm628, %v657, 0.0
      %v1926 = vsel %vm629, %v658, 0.0
      %v1927 = vsel %vm630, %v659, 0.0
      %v1928 = vsel %vm631, %v660, 0.0
      %v1929 = vsel %vm632, %v661, 0.0
      %v1930 = vsel %vm633, %v662, 0.0
      %v1931 = vsel %vm634, %v1450, 0.0
      %v1932 = vsel %vm635, %v1923, 0.0
      %v1941 = vrot.slane %v1926, 7
      %v1942 = vrot.slane %v1927, 6
      %v1943 = vrot.slane %v1928, 5
      %v1944 = vrot.slane %v1929, 4
      %v1945 = vrot.slane %v1930, 3
      %v1946 = vrot.slane %v1931, 2
      %v1947 = vrot.slane %v1932, 1
      %v1948 = vsel %vm534, %v1925, %v1941
      %v1949 = vsel %vm536, %v1942, %v1943
      %v1950 = vsel %vm538, %v1948, %v1949
      %v1951 = vsel %vm540, %v1944, %v1945
      %v1952 = vsel %vm542, %v1946, %v1947
      %v1953 = vsel %vm544, %v1951, %v1952
      %v1954 = vsel %vm546, %v1950, %v1953
      %s1956 = scalar_lea.vmem [#allocation3], 198
      %1957 = vst [vmem:[%s1956] ss:$8 sm:$0xf] %v1954
      %1958 = vst [vmem:[%s1956] ss:$8 sm:$0xf0] %v1954
      %v1959 = vrot.slane %v706, 3
      %v1960 = vrot.slane %v708, 3
      %vm1961 = vcmask 1044480
      %v1962 = vsel %vm1961, %v1959, %v1960
      %v1963 = vsel %vm713, %v1489, %v1962
      %s1965 = scalar_lea.vmem [#allocation3], 199
      %1966 = vst [vmem:[%s1965] ss:$8 sm:$0xf] %v1963
      %1967 = vst [vmem:[%s1965] ss:$8 sm:$0xf0] %v1963
      %1968 = vrot.lane.b32.xlu0 %v1730, 63
      %v1969 = vpop.permute.xlu0 %1968
      %v1970 = vsel %vm745, %v1496, %v1969
      %v1972 = vsel %vm719, %v748, 0.0
      %v1973 = vsel %vm720, %v749, 0.0
      %v1974 = vsel %vm721, %v750, 0.0
      %v1975 = vsel %vm722, %v751, 0.0
      %v1976 = vsel %vm723, %v752, 0.0
      %v1977 = vsel %vm724, %v753, 0.0
      %v1978 = vsel %vm725, %v1497, 0.0
      %v1979 = vsel %vm726, %v1970, 0.0
      %v1988 = vrot.slane %v1973, 7
      %v1989 = vrot.slane %v1974, 6
      %v1990 = vrot.slane %v1975, 5
      %v1991 = vrot.slane %v1976, 4
      %v1992 = vrot.slane %v1977, 3
      %v1993 = vrot.slane %v1978, 2
      %v1994 = vrot.slane %v1979, 1
      %v1995 = vsel %vm534, %v1972, %v1988
      %v1996 = vsel %vm536, %v1989, %v1990
      %v1997 = vsel %vm538, %v1995, %v1996
      %v1998 = vsel %vm540, %v1991, %v1992
      %v1999 = vsel %vm542, %v1993, %v1994
      %v2000 = vsel %vm544, %v1998, %v1999
      %v2001 = vsel %vm546, %v1997, %v2000
      %s2003 = scalar_lea.vmem [#allocation3], 256
      %2004 = vst [vmem:[%s2003] ss:$8 sm:$0xf] %v2001
      %2005 = vst [vmem:[%s2003] ss:$8 sm:$0xf0] %v2001
      %2006 = vrot.lane.b32.xlu0 %v1730, 62
      %v2007 = vpop.permute.xlu0 %2006
      %v2008 = vsel %vm822, %v1534, %v2007
      %v2010 = vsel %vm796, %v825, 0.0
      %v2011 = vsel %vm797, %v826, 0.0
      %v2012 = vsel %vm798, %v827, 0.0
      %v2013 = vsel %vm799, %v828, 0.0
      %v2014 = vsel %vm800, %v829, 0.0
      %v2015 = vsel %vm801, %v830, 0.0
      %v2016 = vsel %vm802, %v1535, 0.0
      %v2017 = vsel %vm803, %v2008, 0.0
      %v2026 = vrot.slane %v2011, 7
      %v2027 = vrot.slane %v2012, 6
      %v2028 = vrot.slane %v2013, 5
      %v2029 = vrot.slane %v2014, 4
      %v2030 = vrot.slane %v2015, 3
      %v2031 = vrot.slane %v2016, 2
      %v2032 = vrot.slane %v2017, 1
      %v2033 = vsel %vm534, %v2010, %v2026
      %v2034 = vsel %vm536, %v2027, %v2028
      %v2035 = vsel %vm538, %v2033, %v2034
      %v2036 = vsel %vm540, %v2029, %v2030
      %v2037 = vsel %vm542, %v2031, %v2032
      %v2038 = vsel %vm544, %v2036, %v2037
      %v2039 = vsel %vm546, %v2035, %v2038
      %s2041 = scalar_lea.vmem [#allocation3], 257
      %2042 = vst [vmem:[%s2041] ss:$8 sm:$0xf] %v2039
      %2043 = vst [vmem:[%s2041] ss:$8 sm:$0xf0] %v2039
      %2044 = vrot.lane.b32.xlu0 %v1730, 61
      %v2045 = vpop.permute.xlu0 %2044
      %v2046 = vsel %vm899, %v1572, %v2045
      %v2048 = vsel %vm873, %v902, 0.0
      %v2049 = vsel %vm874, %v903, 0.0
      %v2050 = vsel %vm875, %v904, 0.0
      %v2051 = vsel %vm876, %v905, 0.0
      %v2052 = vsel %vm877, %v906, 0.0
      %v2053 = vsel %vm878, %v907, 0.0
      %v2054 = vsel %vm879, %v1573, 0.0
      %v2055 = vsel %vm880, %v2046, 0.0
      %v2064 = vrot.slane %v2049, 7
      %v2065 = vrot.slane %v2050, 6
      %v2066 = vrot.slane %v2051, 5
      %v2067 = vrot.slane %v2052, 4
      %v2068 = vrot.slane %v2053, 3
      %v2069 = vrot.slane %v2054, 2
      %v2070 = vrot.slane %v2055, 1
      %v2071 = vsel %vm534, %v2048, %v2064
      %v2072 = vsel %vm536, %v2065, %v2066
      %v2073 = vsel %vm538, %v2071, %v2072
      %v2074 = vsel %vm540, %v2067, %v2068
      %v2075 = vsel %vm542, %v2069, %v2070
      %v2076 = vsel %vm544, %v2074, %v2075
      %v2077 = vsel %vm546, %v2073, %v2076
      %s2079 = scalar_lea.vmem [#allocation3], 258
      %2080 = vst [vmem:[%s2079] ss:$8 sm:$0xf] %v2077
      %2081 = vst [vmem:[%s2079] ss:$8 sm:$0xf0] %v2077
      %2082 = vrot.lane.b32.xlu0 %v1730, 3
      %v2083 = vpop.permute.xlu0 %2082
      %v2084 = vsel %vm968, %v1610, %v2083
      %v2086 = vsel %vm457, %v971, 0.0
      %v2087 = vsel %vm458, %v972, 0.0
      %v2088 = vsel %vm459, %v973, 0.0
      %v2089 = vsel %vm460, %v974, 0.0
      %v2090 = vsel %vm461, %v975, 0.0
      %v2091 = vsel %vm462, %v976, 0.0
      %v2092 = vsel %vm463, %v1611, 0.0
      %v2093 = vsel %vm464, %v2084, 0.0
      %v2102 = vrot.slane %v2087, 7
      %v2103 = vrot.slane %v2088, 6
      %v2104 = vrot.slane %v2089, 5
      %v2105 = vrot.slane %v2090, 4
      %v2106 = vrot.slane %v2091, 3
      %v2107 = vrot.slane %v2092, 2
      %v2108 = vrot.slane %v2093, 1
      %v2109 = vsel %vm534, %v2086, %v2102
      %v2110 = vsel %vm536, %v2103, %v2104
      %v2111 = vsel %vm538, %v2109, %v2110
      %v2112 = vsel %vm540, %v2105, %v2106
      %v2113 = vsel %vm542, %v2107, %v2108
      %v2114 = vsel %vm544, %v2112, %v2113
      %v2115 = vsel %vm546, %v2111, %v2114
      %s2117 = scalar_lea.vmem [#allocation3], 259
      %2118 = vst [vmem:[%s2117] ss:$8 sm:$0xf] %v2115
      %2119 = vst [vmem:[%s2117] ss:$8 sm:$0xf0] %v2115
      %2120 = vrot.lane.b32.xlu0 %v1730, 2
      %v2121 = vpop.permute.xlu0 %2120
      %v2122 = vsel %vm1037, %v1648, %v2121
      %v2124 = vsel %vm551, %v1040, 0.0
      %v2125 = vsel %vm552, %v1041, 0.0
      %v2126 = vsel %vm553, %v1042, 0.0
      %v2127 = vsel %vm554, %v1043, 0.0
      %v2128 = vsel %vm555, %v1044, 0.0
      %v2129 = vsel %vm556, %v1045, 0.0
      %v2130 = vsel %vm557, %v1649, 0.0
      %v2131 = vsel %vm558, %v2122, 0.0
      %v2140 = vrot.slane %v2125, 7
      %v2141 = vrot.slane %v2126, 6
      %v2142 = vrot.slane %v2127, 5
      %v2143 = vrot.slane %v2128, 4
      %v2144 = vrot.slane %v2129, 3
      %v2145 = vrot.slane %v2130, 2
      %v2146 = vrot.slane %v2131, 1
      %v2147 = vsel %vm534, %v2124, %v2140
      %v2148 = vsel %vm536, %v2141, %v2142
      %v2149 = vsel %vm538, %v2147, %v2148
      %v2150 = vsel %vm540, %v2143, %v2144
      %v2151 = vsel %vm542, %v2145, %v2146
      %v2152 = vsel %vm544, %v2150, %v2151
      %v2153 = vsel %vm546, %v2149, %v2152
      %s2155 = scalar_lea.vmem [#allocation3], 260
      %2156 = vst [vmem:[%s2155] ss:$8 sm:$0xf] %v2153
      %2157 = vst [vmem:[%s2155] ss:$8 sm:$0xf0] %v2153
      %2158 = vrot.lane.b32.xlu0 %v1730, 1
      %v2159 = vpop.permute.xlu0 %2158
      %v2160 = vsel %vm1106, %v1686, %v2159
      %v2162 = vsel %vm628, %v1109, 0.0
      %v2163 = vsel %vm629, %v1110, 0.0
      %v2164 = vsel %vm630, %v1111, 0.0
      %v2165 = vsel %vm631, %v1112, 0.0
      %v2166 = vsel %vm632, %v1113, 0.0
      %v2167 = vsel %vm633, %v1114, 0.0
      %v2168 = vsel %vm634, %v1687, 0.0
      %v2169 = vsel %vm635, %v2160, 0.0
      %v2178 = vrot.slane %v2163, 7
      %v2179 = vrot.slane %v2164, 6
      %v2180 = vrot.slane %v2165, 5
      %v2181 = vrot.slane %v2166, 4
      %v2182 = vrot.slane %v2167, 3
      %v2183 = vrot.slane %v2168, 2
      %v2184 = vrot.slane %v2169, 1
      %v2185 = vsel %vm534, %v2162, %v2178
      %v2186 = vsel %vm536, %v2179, %v2180
      %v2187 = vsel %vm538, %v2185, %v2186
      %v2188 = vsel %vm540, %v2181, %v2182
      %v2189 = vsel %vm542, %v2183, %v2184
      %v2190 = vsel %vm544, %v2188, %v2189
      %v2191 = vsel %vm546, %v2187, %v2190
      %s2193 = scalar_lea.vmem [#allocation3], 261
      %2194 = vst [vmem:[%s2193] ss:$8 sm:$0xf] %v2191
      %2195 = vst [vmem:[%s2193] ss:$8 sm:$0xf0] %v2191
      %v2196 = vrot.slane %v438, 3
      %v2197 = vrot.slane %v439, 3
      %v2198 = vsel %vm1961, %v2196, %v2197
      %s2200 = scalar_lea.vmem [#allocation3], 262
      %2201 = vst [vmem:[%s2200] ss:$8 sm:$0xf] %v2198
      %2202 = vst [vmem:[%s2200] ss:$8 sm:$0xf0] %v2198
      %v2203 = vperm.slane %v439, 3
      %2204 = vrot.lane.b32.xlu0 %v2203, 127
      %v2205 = vpop.permute.xlu0 %2204
      %v2206 = vsel %vm1183, %v1732, %v2205
      %v2208 = vsel %vm719, %v1186, 0.0
      %v2209 = vsel %vm720, %v1187, 0.0
      %v2210 = vsel %vm721, %v1188, 0.0
      %v2211 = vsel %vm722, %v1189, 0.0
      %v2212 = vsel %vm723, %v1190, 0.0
      %v2213 = vsel %vm724, %v1191, 0.0
      %v2214 = vsel %vm725, %v1733, 0.0
      %v2215 = vsel %vm726, %v2206, 0.0
      %v2224 = vrot.slane %v2209, 7
      %v2225 = vrot.slane %v2210, 6
      %v2226 = vrot.slane %v2211, 5
      %v2227 = vrot.slane %v2212, 4
      %v2228 = vrot.slane %v2213, 3
      %v2229 = vrot.slane %v2214, 2
      %v2230 = vrot.slane %v2215, 1
      %v2231 = vsel %vm534, %v2208, %v2224
      %v2232 = vsel %vm536, %v2225, %v2226
      %v2233 = vsel %vm538, %v2231, %v2232
      %v2234 = vsel %vm540, %v2227, %v2228
      %v2235 = vsel %vm542, %v2229, %v2230
      %v2236 = vsel %vm544, %v2234, %v2235
      %v2237 = vsel %vm546, %v2233, %v2236
      %s2239 = scalar_lea.vmem [#allocation3], 263
      %2240 = vst [vmem:[%s2239] ss:$8 sm:$0xf] %v2237
      %2241 = vst [vmem:[%s2239] ss:$8 sm:$0xf0] %v2237
      %2242 = vrot.lane.b32.xlu0 %v2203, 126
      %v2243 = vpop.permute.xlu0 %2242
      %v2244 = vsel %vm1252, %v1770, %v2243
      %v2246 = vsel %vm796, %v1255, 0.0
      %v2247 = vsel %vm797, %v1256, 0.0
      %v2248 = vsel %vm798, %v1257, 0.0
      %v2249 = vsel %vm799, %v1258, 0.0
      %v2250 = vsel %vm800, %v1259, 0.0
      %v2251 = vsel %vm801, %v1260, 0.0
      %v2252 = vsel %vm802, %v1771, 0.0
      %v2253 = vsel %vm803, %v2244, 0.0
      %v2262 = vrot.slane %v2247, 7
      %v2263 = vrot.slane %v2248, 6
      %v2264 = vrot.slane %v2249, 5
      %v2265 = vrot.slane %v2250, 4
      %v2266 = vrot.slane %v2251, 3
      %v2267 = vrot.slane %v2252, 2
      %v2268 = vrot.slane %v2253, 1
      %v2269 = vsel %vm534, %v2246, %v2262
      %v2270 = vsel %vm536, %v2263, %v2264
      %v2271 = vsel %vm538, %v2269, %v2270
      %v2272 = vsel %vm540, %v2265, %v2266
      %v2273 = vsel %vm542, %v2267, %v2268
      %v2274 = vsel %vm544, %v2272, %v2273
      %v2275 = vsel %vm546, %v2271, %v2274
      %s2277 = scalar_lea.vmem [#allocation3], 320
      %2278 = vst [vmem:[%s2277] ss:$8 sm:$0xf] %v2275
      %2279 = vst [vmem:[%s2277] ss:$8 sm:$0xf0] %v2275
      %2280 = vrot.lane.b32.xlu0 %v2203, 125
      %v2281 = vpop.permute.xlu0 %2280
      %v2282 = vsel %vm1321, %v1808, %v2281
      %v2284 = vsel %vm873, %v1324, 0.0
      %v2285 = vsel %vm874, %v1325, 0.0
      %v2286 = vsel %vm875, %v1326, 0.0
      %v2287 = vsel %vm876, %v1327, 0.0
      %v2288 = vsel %vm877, %v1328, 0.0
      %v2289 = vsel %vm878, %v1329, 0.0
      %v2290 = vsel %vm879, %v1809, 0.0
      %v2291 = vsel %vm880, %v2282, 0.0
      %v2300 = vrot.slane %v2285, 7
      %v2301 = vrot.slane %v2286, 6
      %v2302 = vrot.slane %v2287, 5
      %v2303 = vrot.slane %v2288, 4
      %v2304 = vrot.slane %v2289, 3
      %v2305 = vrot.slane %v2290, 2
      %v2306 = vrot.slane %v2291, 1
      %v2307 = vsel %vm534, %v2284, %v2300
      %v2308 = vsel %vm536, %v2301, %v2302
      %v2309 = vsel %vm538, %v2307, %v2308
      %v2310 = vsel %vm540, %v2303, %v2304
      %v2311 = vsel %vm542, %v2305, %v2306
      %v2312 = vsel %vm544, %v2310, %v2311
      %v2313 = vsel %vm546, %v2309, %v2312
      %s2315 = scalar_lea.vmem [#allocation3], 321
      %2316 = vst [vmem:[%s2315] ss:$8 sm:$0xf] %v2313
      %2317 = vst [vmem:[%s2315] ss:$8 sm:$0xf0] %v2313
      %2318 = vrot.lane.b32.xlu0 %v2203, 67
      %v2319 = vpop.permute.xlu0 %2318
      %v2320 = vsel %vm494, %v1846, %v2319
      %v2322 = vsel %vm457, %v498, 0.0
      %v2323 = vsel %vm458, %v499, 0.0
      %v2324 = vsel %vm459, %v500, 0.0
      %v2325 = vsel %vm460, %v501, 0.0
      %v2326 = vsel %vm461, %v502, 0.0
      %v2327 = vsel %vm462, %v1374, 0.0
      %v2328 = vsel %vm463, %v1847, 0.0
      %v2329 = vsel %vm464, %v2320, 0.0
      %v2338 = vrot.slane %v2323, 7
      %v2339 = vrot.slane %v2324, 6
      %v2340 = vrot.slane %v2325, 5
      %v2341 = vrot.slane %v2326, 4
      %v2342 = vrot.slane %v2327, 3
      %v2343 = vrot.slane %v2328, 2
      %v2344 = vrot.slane %v2329, 1
      %v2345 = vsel %vm534, %v2322, %v2338
      %v2346 = vsel %vm536, %v2339, %v2340
      %v2347 = vsel %vm538, %v2345, %v2346
      %v2348 = vsel %vm540, %v2341, %v2342
      %v2349 = vsel %vm542, %v2343, %v2344
      %v2350 = vsel %vm544, %v2348, %v2349
      %v2351 = vsel %vm546, %v2347, %v2350
      %s2353 = scalar_lea.vmem [#allocation3], 322
      %2354 = vst [vmem:[%s2353] ss:$8 sm:$0xf] %v2351
      %2355 = vst [vmem:[%s2353] ss:$8 sm:$0xf0] %v2351
      %2356 = vrot.lane.b32.xlu0 %v2203, 66
      %v2357 = vpop.permute.xlu0 %2356
      %v2358 = vsel %vm577, %v1884, %v2357
      %v2360 = vsel %vm551, %v581, 0.0
      %v2361 = vsel %vm552, %v582, 0.0
      %v2362 = vsel %vm553, %v583, 0.0
      %v2363 = vsel %vm554, %v584, 0.0
      %v2364 = vsel %vm555, %v585, 0.0
      %v2365 = vsel %vm556, %v1412, 0.0
      %v2366 = vsel %vm557, %v1885, 0.0
      %v2367 = vsel %vm558, %v2358, 0.0
      %v2376 = vrot.slane %v2361, 7
      %v2377 = vrot.slane %v2362, 6
      %v2378 = vrot.slane %v2363, 5
      %v2379 = vrot.slane %v2364, 4
      %v2380 = vrot.slane %v2365, 3
      %v2381 = vrot.slane %v2366, 2
      %v2382 = vrot.slane %v2367, 1
      %v2383 = vsel %vm534, %v2360, %v2376
      %v2384 = vsel %vm536, %v2377, %v2378
      %v2385 = vsel %vm538, %v2383, %v2384
      %v2386 = vsel %vm540, %v2379, %v2380
      %v2387 = vsel %vm542, %v2381, %v2382
      %v2388 = vsel %vm544, %v2386, %v2387
      %v2389 = vsel %vm546, %v2385, %v2388
      %s2391 = scalar_lea.vmem [#allocation3], 323
      %2392 = vst [vmem:[%s2391] ss:$8 sm:$0xf] %v2389
      %2393 = vst [vmem:[%s2391] ss:$8 sm:$0xf0] %v2389
      %2394 = vrot.lane.b32.xlu0 %v2203, 65
      %v2395 = vpop.permute.xlu0 %2394
      %v2396 = vsel %vm654, %v1922, %v2395
      %v2398 = vsel %vm628, %v658, 0.0
      %v2399 = vsel %vm629, %v659, 0.0
      %v2400 = vsel %vm630, %v660, 0.0
      %v2401 = vsel %vm631, %v661, 0.0
      %v2402 = vsel %vm632, %v662, 0.0
      %v2403 = vsel %vm633, %v1450, 0.0
      %v2404 = vsel %vm634, %v1923, 0.0
      %v2405 = vsel %vm635, %v2396, 0.0
      %v2414 = vrot.slane %v2399, 7
      %v2415 = vrot.slane %v2400, 6
      %v2416 = vrot.slane %v2401, 5
      %v2417 = vrot.slane %v2402, 4
      %v2418 = vrot.slane %v2403, 3
      %v2419 = vrot.slane %v2404, 2
      %v2420 = vrot.slane %v2405, 1
      %v2421 = vsel %vm534, %v2398, %v2414
      %v2422 = vsel %vm536, %v2415, %v2416
      %v2423 = vsel %vm538, %v2421, %v2422
      %v2424 = vsel %vm540, %v2417, %v2418
      %v2425 = vsel %vm542, %v2419, %v2420
      %v2426 = vsel %vm544, %v2424, %v2425
      %v2427 = vsel %vm546, %v2423, %v2426
      %s2429 = scalar_lea.vmem [#allocation3], 324
      %2430 = vst [vmem:[%s2429] ss:$8 sm:$0xf] %v2427
      %2431 = vst [vmem:[%s2429] ss:$8 sm:$0xf0] %v2427
      %v2432 = vrot.slane %v706, 4
      %v2433 = vrot.slane %v708, 4
      %v2434 = vsel %vm546, %v2432, %v2433
      %v2435 = vsel %vm713, %v1962, %v2434
      %s2437 = scalar_lea.vmem [#allocation3], 325
      %2438 = vst [vmem:[%s2437] ss:$8 sm:$0xf] %v2435
      %2439 = vst [vmem:[%s2437] ss:$8 sm:$0xf0] %v2435
      %2440 = vrot.lane.b32.xlu0 %v2203, 63
      %v2441 = vpop.permute.xlu0 %2440
      %v2442 = vsel %vm745, %v1969, %v2441
      %v2444 = vsel %vm719, %v749, 0.0
      %v2445 = vsel %vm720, %v750, 0.0
      %v2446 = vsel %vm721, %v751, 0.0
      %v2447 = vsel %vm722, %v752, 0.0
      %v2448 = vsel %vm723, %v753, 0.0
      %v2449 = vsel %vm724, %v1497, 0.0
      %v2450 = vsel %vm725, %v1970, 0.0
      %v2451 = vsel %vm726, %v2442, 0.0
      %v2460 = vrot.slane %v2445, 7
      %v2461 = vrot.slane %v2446, 6
      %v2462 = vrot.slane %v2447, 5
      %v2463 = vrot.slane %v2448, 4
      %v2464 = vrot.slane %v2449, 3
      %v2465 = vrot.slane %v2450, 2
      %v2466 = vrot.slane %v2451, 1
      %v2467 = vsel %vm534, %v2444, %v2460
      %v2468 = vsel %vm536, %v2461, %v2462
      %v2469 = vsel %vm538, %v2467, %v2468
      %v2470 = vsel %vm540, %v2463, %v2464
      %v2471 = vsel %vm542, %v2465, %v2466
      %v2472 = vsel %vm544, %v2470, %v2471
      %v2473 = vsel %vm546, %v2469, %v2472
      %s2475 = scalar_lea.vmem [#allocation3], 326
      %2476 = vst [vmem:[%s2475] ss:$8 sm:$0xf] %v2473
      %2477 = vst [vmem:[%s2475] ss:$8 sm:$0xf0] %v2473
      %2478 = vrot.lane.b32.xlu0 %v2203, 62
      %v2479 = vpop.permute.xlu0 %2478
      %v2480 = vsel %vm822, %v2007, %v2479
      %v2482 = vsel %vm796, %v826, 0.0
      %v2483 = vsel %vm797, %v827, 0.0
      %v2484 = vsel %vm798, %v828, 0.0
      %v2485 = vsel %vm799, %v829, 0.0
      %v2486 = vsel %vm800, %v830, 0.0
      %v2487 = vsel %vm801, %v1535, 0.0
      %v2488 = vsel %vm802, %v2008, 0.0
      %v2489 = vsel %vm803, %v2480, 0.0
      %v2498 = vrot.slane %v2483, 7
      %v2499 = vrot.slane %v2484, 6
      %v2500 = vrot.slane %v2485, 5
      %v2501 = vrot.slane %v2486, 4
      %v2502 = vrot.slane %v2487, 3
      %v2503 = vrot.slane %v2488, 2
      %v2504 = vrot.slane %v2489, 1
      %v2505 = vsel %vm534, %v2482, %v2498
      %v2506 = vsel %vm536, %v2499, %v2500
      %v2507 = vsel %vm538, %v2505, %v2506
      %v2508 = vsel %vm540, %v2501, %v2502
      %v2509 = vsel %vm542, %v2503, %v2504
      %v2510 = vsel %vm544, %v2508, %v2509
      %v2511 = vsel %vm546, %v2507, %v2510
      %s2513 = scalar_lea.vmem [#allocation3], 327
      %2514 = vst [vmem:[%s2513] ss:$8 sm:$0xf] %v2511
      %2515 = vst [vmem:[%s2513] ss:$8 sm:$0xf0] %v2511
      %2516 = vrot.lane.b32.xlu0 %v2203, 61
      %v2517 = vpop.permute.xlu0 %2516
      %v2518 = vsel %vm899, %v2045, %v2517
      %v2520 = vsel %vm873, %v903, 0.0
      %v2521 = vsel %vm874, %v904, 0.0
      %v2522 = vsel %vm875, %v905, 0.0
      %v2523 = vsel %vm876, %v906, 0.0
      %v2524 = vsel %vm877, %v907, 0.0
      %v2525 = vsel %vm878, %v1573, 0.0
      %v2526 = vsel %vm879, %v2046, 0.0
      %v2527 = vsel %vm880, %v2518, 0.0
      %v2536 = vrot.slane %v2521, 7
      %v2537 = vrot.slane %v2522, 6
      %v2538 = vrot.slane %v2523, 5
      %v2539 = vrot.slane %v2524, 4
      %v2540 = vrot.slane %v2525, 3
      %v2541 = vrot.slane %v2526, 2
      %v2542 = vrot.slane %v2527, 1
      %v2543 = vsel %vm534, %v2520, %v2536
      %v2544 = vsel %vm536, %v2537, %v2538
      %v2545 = vsel %vm538, %v2543, %v2544
      %v2546 = vsel %vm540, %v2539, %v2540
      %v2547 = vsel %vm542, %v2541, %v2542
      %v2548 = vsel %vm544, %v2546, %v2547
      %v2549 = vsel %vm546, %v2545, %v2548
      %s2551 = scalar_lea.vmem [#allocation3], 384
      %2552 = vst [vmem:[%s2551] ss:$8 sm:$0xf] %v2549
      %2553 = vst [vmem:[%s2551] ss:$8 sm:$0xf0] %v2549
      %2554 = vst [vmem:[#allocation3 + $0x180] sm:$0xfe] 0.0
      %2555 = vst [vmem:[#allocation3 + $0x188] sm:$0xfe] 0.0
      %2556 = vst [vmem:[#allocation3 + $0x190] sm:$0xfe] 0.0
      %2557 = vst [vmem:[#allocation3 + $0x198] sm:$0xfe] 0.0
      %2558 = vst [vmem:[#allocation3 + $0x1a0] sm:$0xfe] 0.0
      %2559 = vst [vmem:[#allocation3 + $0x1a8] sm:$0xfe] 0.0
      %2560 = vst [vmem:[#allocation3 + $0x1b0] sm:$0xfe] 0.0
      %2561 = vst [vmem:[#allocation3 + $0x1b8] sm:$0xfe] 0.0
      %v2562 = vld [vmem:[%s2] sm:$0xff]
      %v2563 = vld [vmem:[%s2 + $0x8] sm:$0xff]
      %v2564 = vld [vmem:[#allocation3] sm:$0xff]
      %v2565 = vld [vmem:[#allocation3 + $0x8] sm:$0xff]
      %v2566 = vld [vmem:[#allocation3 + $0x10] sm:$0xff]
      %v2567 = vld [vmem:[#allocation3 + $0x18] sm:$0xff]
      %v2568 = vld [vmem:[#allocation3 + $0x20] sm:$0xff]
      %v2569 = vld [vmem:[#allocation3 + $0x28] sm:$0xff]
      %v2570 = vld [vmem:[#allocation3 + $0x30] sm:$0xff]
      %v2571 = vld [vmem:[#allocation3 + $0x38] sm:$0xff]
      %v2572 = vld [vmem:[#allocation3 + $0x40] sm:$0xff]
      %v2573 = vld [vmem:[#allocation3 + $0x48] sm:$0xff]
      %v2574 = vld [vmem:[#allocation3 + $0x50] sm:$0xff]
      %v2575 = vld [vmem:[#allocation3 + $0x58] sm:$0xff]
      %v2576 = vld [vmem:[#allocation3 + $0x60] sm:$0xff]
      %v2577 = vld [vmem:[#allocation3 + $0x68] sm:$0xff]
      %v2578 = vld [vmem:[#allocation3 + $0x70] sm:$0xff]
      %v2579 = vld [vmem:[#allocation3 + $0x78] sm:$0xff]
      %v2580 = vld [vmem:[#allocation3 + $0x80] sm:$0xff]
      %v2581 = vld [vmem:[#allocation3 + $0x88] sm:$0xff]
      %v2582 = vld [vmem:[#allocation3 + $0x90] sm:$0xff]
      %v2583 = vld [vmem:[#allocation3 + $0x98] sm:$0xff]
      %v2584 = vld [vmem:[#allocation3 + $0xa0] sm:$0xff]
      %v2585 = vld [vmem:[#allocation3 + $0xa8] sm:$0xff]
      %v2586 = vld [vmem:[#allocation3 + $0xb0] sm:$0xff]
      %v2587 = vld [vmem:[#allocation3 + $0xb8] sm:$0xff]
      %v2588 = vld [vmem:[#allocation3 + $0xc0] sm:$0xff]
      %v2589 = vld [vmem:[#allocation3 + $0xc8] sm:$0xff]
      %v2590 = vld [vmem:[#allocation3 + $0xd0] sm:$0xff]
      %v2591 = vld [vmem:[#allocation3 + $0xd8] sm:$0xff]
      %v2592 = vld [vmem:[#allocation3 + $0xe0] sm:$0xff]
      %v2593 = vld [vmem:[#allocation3 + $0xe8] sm:$0xff]
      %v2594 = vld [vmem:[#allocation3 + $0xf0] sm:$0xff]
      %v2595 = vld [vmem:[#allocation3 + $0xf8] sm:$0xff]
      %v2596 = vld [vmem:[#allocation3 + $0x100] sm:$0xff]
      %v2597 = vld [vmem:[#allocation3 + $0x108] sm:$0xff]
      %v2598 = vld [vmem:[#allocation3 + $0x110] sm:$0xff]
      %v2599 = vld [vmem:[#allocation3 + $0x118] sm:$0xff]
      %v2600 = vld [vmem:[#allocation3 + $0x120] sm:$0xff]
      %v2601 = vld [vmem:[#allocation3 + $0x128] sm:$0xff]
      %v2602 = vld [vmem:[#allocation3 + $0x130] sm:$0xff]
      %v2603 = vld [vmem:[#allocation3 + $0x138] sm:$0xff]
      %v2604 = vld [vmem:[#allocation3 + $0x140] sm:$0xff]
      %v2605 = vld [vmem:[#allocation3 + $0x148] sm:$0xff]
      %v2606 = vld [vmem:[#allocation3 + $0x150] sm:$0xff]
      %v2607 = vld [vmem:[#allocation3 + $0x158] sm:$0xff]
      %v2608 = vld [vmem:[#allocation3 + $0x160] sm:$0xff]
      %v2609 = vld [vmem:[#allocation3 + $0x168] sm:$0xff]
      %v2610 = vld [vmem:[#allocation3 + $0x170] sm:$0xff]
      %v2611 = vld [vmem:[#allocation3 + $0x178] sm:$0xff]
      %v2612 = vld [vmem:[#allocation3 + $0x180] sm:$0xff]
      %v2613 = vld [vmem:[#allocation3 + $0x188] sm:$0xff]
      %v2614 = vld [vmem:[#allocation3 + $0x190] sm:$0xff]
      %v2615 = vld [vmem:[#allocation3 + $0x198] sm:$0xff]
      %v2616 = vld [vmem:[#allocation3 + $0x1a0] sm:$0xff]
      %v2617 = vld [vmem:[#allocation3 + $0x1a8] sm:$0xff]
      %v2618 = vld [vmem:[#allocation3 + $0x1b0] sm:$0xff]
      %v2619 = vld [vmem:[#allocation3 + $0x1b8] sm:$0xff]
      %vm2620 = vcmask 457728
      %v2622 = vsel %vm2620, %v2562, 0
      %v2625 = vsel %vm2620, %v2563, 0
      %2627 = vmatpush.msra.mxu0 0.0
      %2628 = vmatpush.msra.mxu0 0.0
      %2629 = vmatpush.msra.mxu0 0.0
      %2630 = vmatpush.msra.mxu0 0.0
      %2631 = vmatpush.msra.mxu0 0.0
      %2632 = vmatpush.msra.mxu0 0.0
      %2633 = vmatpush.msra.mxu0 0.0
      %2634 = vmatpush.msra.mxu0 0.0
      %2635 = vmatpush.msra.mxu0 0.0
      %v2636 = vand.u32 %v2612, 4294901760
      %2637 = vmatpush.msra.mxu0 %v2636
      %v2638 = vand.u32 %v2604, 4294901760
      %2639 = vmatpush.msra.mxu0 %v2638
      %v2640 = vand.u32 %v2596, 4294901760
      %2641 = vmatpush.msra.mxu0 %v2640
      %v2642 = vand.u32 %v2588, 4294901760
      %2643 = vmatpush.msra.mxu0 %v2642
      %v2644 = vand.u32 %v2580, 4294901760
      %2645 = vmatpush.msra.mxu0 %v2644
      %v2646 = vand.u32 %v2572, 4294901760
      %2647 = vmatpush.msra.mxu0 %v2646
      %v2648 = vand.u32 %v2564, 4294901760
      %2649 = vmatpush.msra.mxu0 %v2648
      %v2650 = vand.u32 %v2622, 4294901760
      %v2651 = vsub.f32 %v2622, %v2650
      %v2652 = vand.u32 %v2651, 4294901760
      %v2653 = vsub.f32 %v2651, %v2652
      %v2654 = vand.u32 %v2653, 4294901760
      %2655 = vmatmul.f32.gmra.mxu0 %v2654
      %v2656 = vpop.f32.mrf.mxu0
      %v2657 = vadd.f32 0.0, %v2656
      %v2658 = vand.u32 %v2625, 4294901760
      %v2659 = vsub.f32 %v2625, %v2658
      %v2660 = vand.u32 %v2659, 4294901760
      %v2661 = vsub.f32 %v2659, %v2660
      %v2662 = vand.u32 %v2661, 4294901760
      %2663 = vmatmul.f32.gmra.mxu0 %v2662
      %v2664 = vpop.f32.mrf.mxu0
      %v2665 = vadd.f32 0.0, %v2664
      %2666 = vdwg.mxu0
      %2667 = vmatpush.msra.mxu0 0.0
      %2668 = vmatpush.msra.mxu0 0.0
      %2669 = vmatpush.msra.mxu0 0.0
      %2670 = vmatpush.msra.mxu0 0.0
      %2671 = vmatpush.msra.mxu0 0.0
      %2672 = vmatpush.msra.mxu0 0.0
      %2673 = vmatpush.msra.mxu0 0.0
      %2674 = vmatpush.msra.mxu0 0.0
      %2675 = vmatpush.msra.mxu0 0.0
      %v2676 = vand.u32 %v2612, 4294901760
      %v2677 = vsub.f32 %v2612, %v2676
      %v2678 = vand.u32 %v2677, 4294901760
      %v2679 = vsub.f32 %v2677, %v2678
      %v2680 = vand.u32 %v2679, 4294901760
      %2681 = vmatpush.msra.mxu0 %v2680
      %v2682 = vand.u32 %v2604, 4294901760
      %v2683 = vsub.f32 %v2604, %v2682
      %v2684 = vand.u32 %v2683, 4294901760
      %v2685 = vsub.f32 %v2683, %v2684
      %v2686 = vand.u32 %v2685, 4294901760
      %2687 = vmatpush.msra.mxu0 %v2686
      %v2688 = vand.u32 %v2596, 4294901760
      %v2689 = vsub.f32 %v2596, %v2688
      %v2690 = vand.u32 %v2689, 4294901760
      %v2691 = vsub.f32 %v2689, %v2690
      %v2692 = vand.u32 %v2691, 4294901760
      %2693 = vmatpush.msra.mxu0 %v2692
      %v2694 = vand.u32 %v2588, 4294901760
      %v2695 = vsub.f32 %v2588, %v2694
      %v2696 = vand.u32 %v2695, 4294901760
      %v2697 = vsub.f32 %v2695, %v2696
      %v2698 = vand.u32 %v2697, 4294901760
      %2699 = vmatpush.msra.mxu0 %v2698
      %v2700 = vand.u32 %v2580, 4294901760
      %v2701 = vsub.f32 %v2580, %v2700
      %v2702 = vand.u32 %v2701, 4294901760
      %v2703 = vsub.f32 %v2701, %v2702
      %v2704 = vand.u32 %v2703, 4294901760
      %2705 = vmatpush.msra.mxu0 %v2704
      %v2706 = vand.u32 %v2572, 4294901760
      %v2707 = vsub.f32 %v2572, %v2706
      %v2708 = vand.u32 %v2707, 4294901760
      %v2709 = vsub.f32 %v2707, %v2708
      %v2710 = vand.u32 %v2709, 4294901760
      %2711 = vmatpush.msra.mxu0 %v2710
      %v2712 = vand.u32 %v2564, 4294901760
      %v2713 = vsub.f32 %v2564, %v2712
      %v2714 = vand.u32 %v2713, 4294901760
      %v2715 = vsub.f32 %v2713, %v2714
      %v2716 = vand.u32 %v2715, 4294901760
      %2717 = vmatpush.msra.mxu0 %v2716
      %v2718 = vand.u32 %v2622, 4294901760
      %2719 = vmatmul.f32.gmra.mxu0 %v2718
      %v2720 = vpop.f32.mrf.mxu0
      %v2721 = vadd.f32 %v2657, %v2720
      %v2722 = vand.u32 %v2625, 4294901760
      %2723 = vmatmul.f32.gmra.mxu0 %v2722
      %v2724 = vpop.f32.mrf.mxu0
      %v2725 = vadd.f32 %v2665, %v2724
      %2726 = vdwg.mxu0
      %2727 = vmatpush.msra.mxu0 0.0
      %2728 = vmatpush.msra.mxu0 0.0
      %2729 = vmatpush.msra.mxu0 0.0
      %2730 = vmatpush.msra.mxu0 0.0
      %2731 = vmatpush.msra.mxu0 0.0
      %2732 = vmatpush.msra.mxu0 0.0
      %2733 = vmatpush.msra.mxu0 0.0
      %2734 = vmatpush.msra.mxu0 0.0
      %2735 = vmatpush.msra.mxu0 0.0
      %v2736 = vand.u32 %v2612, 4294901760
      %v2737 = vsub.f32 %v2612, %v2736
      %2738 = vmatpush.msra.mxu0 %v2737
      %v2739 = vand.u32 %v2604, 4294901760
      %v2740 = vsub.f32 %v2604, %v2739
      %2741 = vmatpush.msra.mxu0 %v2740
      %v2742 = vand.u32 %v2596, 4294901760
      %v2743 = vsub.f32 %v2596, %v2742
      %2744 = vmatpush.msra.mxu0 %v2743
      %v2745 = vand.u32 %v2588, 4294901760
      %v2746 = vsub.f32 %v2588, %v2745
      %2747 = vmatpush.msra.mxu0 %v2746
      %v2748 = vand.u32 %v2580, 4294901760
      %v2749 = vsub.f32 %v2580, %v2748
      %2750 = vmatpush.msra.mxu0 %v2749
      %v2751 = vand.u32 %v2572, 4294901760
      %v2752 = vsub.f32 %v2572, %v2751
      %2753 = vmatpush.msra.mxu0 %v2752
      %v2754 = vand.u32 %v2564, 4294901760
      %v2755 = vsub.f32 %v2564, %v2754
      %2756 = vmatpush.msra.mxu0 %v2755
      %v2757 = vand.u32 %v2622, 4294901760
      %v2758 = vsub.f32 %v2622, %v2757
      %2759 = vmatmul.f32.gmra.mxu0 %v2758
      %v2760 = vpop.f32.mrf.mxu0
      %v2761 = vadd.f32 %v2721, %v2760
      %v2762 = vand.u32 %v2625, 4294901760
      %v2763 = vsub.f32 %v2625, %v2762
      %2764 = vmatmul.f32.gmra.mxu0 %v2763
      %v2765 = vpop.f32.mrf.mxu0
      %v2766 = vadd.f32 %v2725, %v2765
      %2767 = vdwg.mxu0
      %2768 = vmatpush.msra.mxu0 0.0
      %2769 = vmatpush.msra.mxu0 0.0
      %2770 = vmatpush.msra.mxu0 0.0
      %2771 = vmatpush.msra.mxu0 0.0
      %2772 = vmatpush.msra.mxu0 0.0
      %2773 = vmatpush.msra.mxu0 0.0
      %2774 = vmatpush.msra.mxu0 0.0
      %2775 = vmatpush.msra.mxu0 0.0
      %2776 = vmatpush.msra.mxu0 0.0
      %v2777 = vand.u32 %v2612, 4294901760
      %2778 = vmatpush.msra.mxu0 %v2777
      %v2779 = vand.u32 %v2604, 4294901760
      %2780 = vmatpush.msra.mxu0 %v2779
      %v2781 = vand.u32 %v2596, 4294901760
      %2782 = vmatpush.msra.mxu0 %v2781
      %v2783 = vand.u32 %v2588, 4294901760
      %2784 = vmatpush.msra.mxu0 %v2783
      %v2785 = vand.u32 %v2580, 4294901760
      %2786 = vmatpush.msra.mxu0 %v2785
      %v2787 = vand.u32 %v2572, 4294901760
      %2788 = vmatpush.msra.mxu0 %v2787
      %v2789 = vand.u32 %v2564, 4294901760
      %2790 = vmatpush.msra.mxu0 %v2789
      %v2791 = vand.u32 %v2622, 4294901760
      %v2792 = vsub.f32 %v2622, %v2791
      %v2793 = vand.u32 %v2792, 4294901760
      %2794 = vmatmul.f32.gmra.mxu0 %v2793
      %v2795 = vpop.f32.mrf.mxu0
      %v2796 = vadd.f32 %v2761, %v2795
      %v2797 = vand.u32 %v2625, 4294901760
      %v2798 = vsub.f32 %v2625, %v2797
      %v2799 = vand.u32 %v2798, 4294901760
      %2800 = vmatmul.f32.gmra.mxu0 %v2799
      %v2801 = vpop.f32.mrf.mxu0
      %v2802 = vadd.f32 %v2766, %v2801
      %2803 = vdwg.mxu0
      %2804 = vmatpush.msra.mxu0 0.0
      %2805 = vmatpush.msra.mxu0 0.0
      %2806 = vmatpush.msra.mxu0 0.0
      %2807 = vmatpush.msra.mxu0 0.0
      %2808 = vmatpush.msra.mxu0 0.0
      %2809 = vmatpush.msra.mxu0 0.0
      %2810 = vmatpush.msra.mxu0 0.0
      %2811 = vmatpush.msra.mxu0 0.0
      %2812 = vmatpush.msra.mxu0 0.0
      %v2813 = vand.u32 %v2612, 4294901760
      %v2814 = vsub.f32 %v2612, %v2813
      %v2815 = vand.u32 %v2814, 4294901760
      %2816 = vmatpush.msra.mxu0 %v2815
      %v2817 = vand.u32 %v2604, 4294901760
      %v2818 = vsub.f32 %v2604, %v2817
      %v2819 = vand.u32 %v2818, 4294901760
      %2820 = vmatpush.msra.mxu0 %v2819
      %v2821 = vand.u32 %v2596, 4294901760
      %v2822 = vsub.f32 %v2596, %v2821
      %v2823 = vand.u32 %v2822, 4294901760
      %2824 = vmatpush.msra.mxu0 %v2823
      %v2825 = vand.u32 %v2588, 4294901760
      %v2826 = vsub.f32 %v2588, %v2825
      %v2827 = vand.u32 %v2826, 4294901760
      %2828 = vmatpush.msra.mxu0 %v2827
      %v2829 = vand.u32 %v2580, 4294901760
      %v2830 = vsub.f32 %v2580, %v2829
      %v2831 = vand.u32 %v2830, 4294901760
      %2832 = vmatpush.msra.mxu0 %v2831
      %v2833 = vand.u32 %v2572, 4294901760
      %v2834 = vsub.f32 %v2572, %v2833
      %v2835 = vand.u32 %v2834, 4294901760
      %2836 = vmatpush.msra.mxu0 %v2835
      %v2837 = vand.u32 %v2564, 4294901760
      %v2838 = vsub.f32 %v2564, %v2837
      %v2839 = vand.u32 %v2838, 4294901760
      %2840 = vmatpush.msra.mxu0 %v2839
      %v2841 = vand.u32 %v2622, 4294901760
      %2842 = vmatmul.f32.gmra.mxu0 %v2841
      %v2843 = vpop.f32.mrf.mxu0
      %v2844 = vadd.f32 %v2796, %v2843
      %v2845 = vand.u32 %v2625, 4294901760
      %2846 = vmatmul.f32.gmra.mxu0 %v2845
      %v2847 = vpop.f32.mrf.mxu0
      %v2848 = vadd.f32 %v2802, %v2847
      %2849 = vdwg.mxu0
      %2850 = vmatpush.msra.mxu0 0.0
      %2851 = vmatpush.msra.mxu0 0.0
      %2852 = vmatpush.msra.mxu0 0.0
      %2853 = vmatpush.msra.mxu0 0.0
      %2854 = vmatpush.msra.mxu0 0.0
      %2855 = vmatpush.msra.mxu0 0.0
      %2856 = vmatpush.msra.mxu0 0.0
      %2857 = vmatpush.msra.mxu0 0.0
      %2858 = vmatpush.msra.mxu0 0.0
      %v2859 = vand.u32 %v2612, 4294901760
      %2860 = vmatpush.msra.mxu0 %v2859
      %v2861 = vand.u32 %v2604, 4294901760
      %2862 = vmatpush.msra.mxu0 %v2861
      %v2863 = vand.u32 %v2596, 4294901760
      %2864 = vmatpush.msra.mxu0 %v2863
      %v2865 = vand.u32 %v2588, 4294901760
      %2866 = vmatpush.msra.mxu0 %v2865
      %v2867 = vand.u32 %v2580, 4294901760
      %2868 = vmatpush.msra.mxu0 %v2867
      %v2869 = vand.u32 %v2572, 4294901760
      %2870 = vmatpush.msra.mxu0 %v2869
      %v2871 = vand.u32 %v2564, 4294901760
      %2872 = vmatpush.msra.mxu0 %v2871
      %v2873 = vand.u32 %v2622, 4294901760
      %2874 = vmatmul.f32.gmra.mxu0 %v2873
      %v2875 = vpop.f32.mrf.mxu0
      %v2876 = vadd.f32 %v2844, %v2875
      %v2877 = vand.u32 %v2625, 4294901760
      %2878 = vmatmul.f32.gmra.mxu0 %v2877
      %v2879 = vpop.f32.mrf.mxu0
      %v2880 = vadd.f32 %v2848, %v2879
      %2881 = vdwg.mxu0
      %2882 = vmatpush.msra.mxu0 0.0
      %2883 = vmatpush.msra.mxu0 0.0
      %2884 = vmatpush.msra.mxu0 0.0
      %2885 = vmatpush.msra.mxu0 0.0
      %2886 = vmatpush.msra.mxu0 0.0
      %2887 = vmatpush.msra.mxu0 0.0
      %2888 = vmatpush.msra.mxu0 0.0
      %2889 = vmatpush.msra.mxu0 0.0
      %2890 = vmatpush.msra.mxu0 0.0
      %v2891 = vand.u32 %v2613, 4294901760
      %2892 = vmatpush.msra.mxu0 %v2891
      %v2893 = vand.u32 %v2605, 4294901760
      %2894 = vmatpush.msra.mxu0 %v2893
      %v2895 = vand.u32 %v2597, 4294901760
      %2896 = vmatpush.msra.mxu0 %v2895
      %v2897 = vand.u32 %v2589, 4294901760
      %2898 = vmatpush.msra.mxu0 %v2897
      %v2899 = vand.u32 %v2581, 4294901760
      %2900 = vmatpush.msra.mxu0 %v2899
      %v2901 = vand.u32 %v2573, 4294901760
      %2902 = vmatpush.msra.mxu0 %v2901
      %v2903 = vand.u32 %v2565, 4294901760
      %2904 = vmatpush.msra.mxu0 %v2903
      %v2905 = vand.u32 %v2622, 4294901760
      %v2906 = vsub.f32 %v2622, %v2905
      %v2907 = vand.u32 %v2906, 4294901760
      %v2908 = vsub.f32 %v2906, %v2907
      %v2909 = vand.u32 %v2908, 4294901760
      %2910 = vmatmul.f32.gmra.mxu0 %v2909
      %v2911 = vpop.f32.mrf.mxu0
      %v2912 = vadd.f32 0.0, %v2911
      %v2913 = vand.u32 %v2625, 4294901760
      %v2914 = vsub.f32 %v2625, %v2913
      %v2915 = vand.u32 %v2914, 4294901760
      %v2916 = vsub.f32 %v2914, %v2915
      %v2917 = vand.u32 %v2916, 4294901760
      %2918 = vmatmul.f32.gmra.mxu0 %v2917
      %v2919 = vpop.f32.mrf.mxu0
      %v2920 = vadd.f32 0.0, %v2919
      %2921 = vdwg.mxu0
      %2922 = vmatpush.msra.mxu0 0.0
      %2923 = vmatpush.msra.mxu0 0.0
      %2924 = vmatpush.msra.mxu0 0.0
      %2925 = vmatpush.msra.mxu0 0.0
      %2926 = vmatpush.msra.mxu0 0.0
      %2927 = vmatpush.msra.mxu0 0.0
      %2928 = vmatpush.msra.mxu0 0.0
      %2929 = vmatpush.msra.mxu0 0.0
      %2930 = vmatpush.msra.mxu0 0.0
      %v2931 = vand.u32 %v2613, 4294901760
      %v2932 = vsub.f32 %v2613, %v2931
      %v2933 = vand.u32 %v2932, 4294901760
      %v2934 = vsub.f32 %v2932, %v2933
      %v2935 = vand.u32 %v2934, 4294901760
      %2936 = vmatpush.msra.mxu0 %v2935
      %v2937 = vand.u32 %v2605, 4294901760
      %v2938 = vsub.f32 %v2605, %v2937
      %v2939 = vand.u32 %v2938, 4294901760
      %v2940 = vsub.f32 %v2938, %v2939
      %v2941 = vand.u32 %v2940, 4294901760
      %2942 = vmatpush.msra.mxu0 %v2941
      %v2943 = vand.u32 %v2597, 4294901760
      %v2944 = vsub.f32 %v2597, %v2943
      %v2945 = vand.u32 %v2944, 4294901760
      %v2946 = vsub.f32 %v2944, %v2945
      %v2947 = vand.u32 %v2946, 4294901760
      %2948 = vmatpush.msra.mxu0 %v2947
      %v2949 = vand.u32 %v2589, 4294901760
      %v2950 = vsub.f32 %v2589, %v2949
      %v2951 = vand.u32 %v2950, 4294901760
      %v2952 = vsub.f32 %v2950, %v2951
      %v2953 = vand.u32 %v2952, 4294901760
      %2954 = vmatpush.msra.mxu0 %v2953
      %v2955 = vand.u32 %v2581, 4294901760
      %v2956 = vsub.f32 %v2581, %v2955
      %v2957 = vand.u32 %v2956, 4294901760
      %v2958 = vsub.f32 %v2956, %v2957
      %v2959 = vand.u32 %v2958, 4294901760
      %2960 = vmatpush.msra.mxu0 %v2959
      %v2961 = vand.u32 %v2573, 4294901760
      %v2962 = vsub.f32 %v2573, %v2961
      %v2963 = vand.u32 %v2962, 4294901760
      %v2964 = vsub.f32 %v2962, %v2963
      %v2965 = vand.u32 %v2964, 4294901760
      %2966 = vmatpush.msra.mxu0 %v2965
      %v2967 = vand.u32 %v2565, 4294901760
      %v2968 = vsub.f32 %v2565, %v2967
      %v2969 = vand.u32 %v2968, 4294901760
      %v2970 = vsub.f32 %v2968, %v2969
      %v2971 = vand.u32 %v2970, 4294901760
      %2972 = vmatpush.msra.mxu0 %v2971
      %v2973 = vand.u32 %v2622, 4294901760
      %2974 = vmatmul.f32.gmra.mxu0 %v2973
      %v2975 = vpop.f32.mrf.mxu0
      %v2976 = vadd.f32 %v2912, %v2975
      %v2977 = vand.u32 %v2625, 4294901760
      %2978 = vmatmul.f32.gmra.mxu0 %v2977
      %v2979 = vpop.f32.mrf.mxu0
      %v2980 = vadd.f32 %v2920, %v2979
      %2981 = vdwg.mxu0
      %2982 = vmatpush.msra.mxu0 0.0
      %2983 = vmatpush.msra.mxu0 0.0
      %2984 = vmatpush.msra.mxu0 0.0
      %2985 = vmatpush.msra.mxu0 0.0
      %2986 = vmatpush.msra.mxu0 0.0
      %2987 = vmatpush.msra.mxu0 0.0
      %2988 = vmatpush.msra.mxu0 0.0
      %2989 = vmatpush.msra.mxu0 0.0
      %2990 = vmatpush.msra.mxu0 0.0
      %v2991 = vand.u32 %v2613, 4294901760
      %v2992 = vsub.f32 %v2613, %v2991
      %2993 = vmatpush.msra.mxu0 %v2992
      %v2994 = vand.u32 %v2605, 4294901760
      %v2995 = vsub.f32 %v2605, %v2994
      %2996 = vmatpush.msra.mxu0 %v2995
      %v2997 = vand.u32 %v2597, 4294901760
      %v2998 = vsub.f32 %v2597, %v2997
      %2999 = vmatpush.msra.mxu0 %v2998
      %v3000 = vand.u32 %v2589, 4294901760
      %v3001 = vsub.f32 %v2589, %v3000
      %3002 = vmatpush.msra.mxu0 %v3001
      %v3003 = vand.u32 %v2581, 4294901760
      %v3004 = vsub.f32 %v2581, %v3003
      %3005 = vmatpush.msra.mxu0 %v3004
      %v3006 = vand.u32 %v2573, 4294901760
      %v3007 = vsub.f32 %v2573, %v3006
      %3008 = vmatpush.msra.mxu0 %v3007
      %v3009 = vand.u32 %v2565, 4294901760
      %v3010 = vsub.f32 %v2565, %v3009
      %3011 = vmatpush.msra.mxu0 %v3010
      %v3012 = vand.u32 %v2622, 4294901760
      %v3013 = vsub.f32 %v2622, %v3012
      %3014 = vmatmul.f32.gmra.mxu0 %v3013
      %v3015 = vpop.f32.mrf.mxu0
      %v3016 = vadd.f32 %v2976, %v3015
      %v3017 = vand.u32 %v2625, 4294901760
      %v3018 = vsub.f32 %v2625, %v3017
      %3019 = vmatmul.f32.gmra.mxu0 %v3018
      %v3020 = vpop.f32.mrf.mxu0
      %v3021 = vadd.f32 %v2980, %v3020
      %3022 = vdwg.mxu0
      %3023 = vmatpush.msra.mxu0 0.0
      %3024 = vmatpush.msra.mxu0 0.0
      %3025 = vmatpush.msra.mxu0 0.0
      %3026 = vmatpush.msra.mxu0 0.0
      %3027 = vmatpush.msra.mxu0 0.0
      %3028 = vmatpush.msra.mxu0 0.0
      %3029 = vmatpush.msra.mxu0 0.0
      %3030 = vmatpush.msra.mxu0 0.0
      %3031 = vmatpush.msra.mxu0 0.0
      %v3032 = vand.u32 %v2613, 4294901760
      %3033 = vmatpush.msra.mxu0 %v3032
      %v3034 = vand.u32 %v2605, 4294901760
      %3035 = vmatpush.msra.mxu0 %v3034
      %v3036 = vand.u32 %v2597, 4294901760
      %3037 = vmatpush.msra.mxu0 %v3036
      %v3038 = vand.u32 %v2589, 4294901760
      %3039 = vmatpush.msra.mxu0 %v3038
      %v3040 = vand.u32 %v2581, 4294901760
      %3041 = vmatpush.msra.mxu0 %v3040
      %v3042 = vand.u32 %v2573, 4294901760
      %3043 = vmatpush.msra.mxu0 %v3042
      %v3044 = vand.u32 %v2565, 4294901760
      %3045 = vmatpush.msra.mxu0 %v3044
      %v3046 = vand.u32 %v2622, 4294901760
      %v3047 = vsub.f32 %v2622, %v3046
      %v3048 = vand.u32 %v3047, 4294901760
      %3049 = vmatmul.f32.gmra.mxu0 %v3048
      %v3050 = vpop.f32.mrf.mxu0
      %v3051 = vadd.f32 %v3016, %v3050
      %v3052 = vand.u32 %v2625, 4294901760
      %v3053 = vsub.f32 %v2625, %v3052
      %v3054 = vand.u32 %v3053, 4294901760
      %3055 = vmatmul.f32.gmra.mxu0 %v3054
      %v3056 = vpop.f32.mrf.mxu0
      %v3057 = vadd.f32 %v3021, %v3056
      %3058 = vdwg.mxu0
      %3059 = vmatpush.msra.mxu0 0.0
      %3060 = vmatpush.msra.mxu0 0.0
      %3061 = vmatpush.msra.mxu0 0.0
      %3062 = vmatpush.msra.mxu0 0.0
      %3063 = vmatpush.msra.mxu0 0.0
      %3064 = vmatpush.msra.mxu0 0.0
      %3065 = vmatpush.msra.mxu0 0.0
      %3066 = vmatpush.msra.mxu0 0.0
      %3067 = vmatpush.msra.mxu0 0.0
      %v3068 = vand.u32 %v2613, 4294901760
      %v3069 = vsub.f32 %v2613, %v3068
      %v3070 = vand.u32 %v3069, 4294901760
      %3071 = vmatpush.msra.mxu0 %v3070
      %v3072 = vand.u32 %v2605, 4294901760
      %v3073 = vsub.f32 %v2605, %v3072
      %v3074 = vand.u32 %v3073, 4294901760
      %3075 = vmatpush.msra.mxu0 %v3074
      %v3076 = vand.u32 %v2597, 4294901760
      %v3077 = vsub.f32 %v2597, %v3076
      %v3078 = vand.u32 %v3077, 4294901760
      %3079 = vmatpush.msra.mxu0 %v3078
      %v3080 = vand.u32 %v2589, 4294901760
      %v3081 = vsub.f32 %v2589, %v3080
      %v3082 = vand.u32 %v3081, 4294901760
      %3083 = vmatpush.msra.mxu0 %v3082
      %v3084 = vand.u32 %v2581, 4294901760
      %v3085 = vsub.f32 %v2581, %v3084
      %v3086 = vand.u32 %v3085, 4294901760
      %3087 = vmatpush.msra.mxu0 %v3086
      %v3088 = vand.u32 %v2573, 4294901760
      %v3089 = vsub.f32 %v2573, %v3088
      %v3090 = vand.u32 %v3089, 4294901760
      %3091 = vmatpush.msra.mxu0 %v3090
      %v3092 = vand.u32 %v2565, 4294901760
      %v3093 = vsub.f32 %v2565, %v3092
      %v3094 = vand.u32 %v3093, 4294901760
      %3095 = vmatpush.msra.mxu0 %v3094
      %v3096 = vand.u32 %v2622, 4294901760
      %3097 = vmatmul.f32.gmra.mxu0 %v3096
      %v3098 = vpop.f32.mrf.mxu0
      %v3099 = vadd.f32 %v3051, %v3098
      %v3100 = vand.u32 %v2625, 4294901760
      %3101 = vmatmul.f32.gmra.mxu0 %v3100
      %v3102 = vpop.f32.mrf.mxu0
      %v3103 = vadd.f32 %v3057, %v3102
      %3104 = vdwg.mxu0
      %3105 = vmatpush.msra.mxu0 0.0
      %3106 = vmatpush.msra.mxu0 0.0
      %3107 = vmatpush.msra.mxu0 0.0
      %3108 = vmatpush.msra.mxu0 0.0
      %3109 = vmatpush.msra.mxu0 0.0
      %3110 = vmatpush.msra.mxu0 0.0
      %3111 = vmatpush.msra.mxu0 0.0
      %3112 = vmatpush.msra.mxu0 0.0
      %3113 = vmatpush.msra.mxu0 0.0
      %v3114 = vand.u32 %v2613, 4294901760
      %3115 = vmatpush.msra.mxu0 %v3114
      %v3116 = vand.u32 %v2605, 4294901760
      %3117 = vmatpush.msra.mxu0 %v3116
      %v3118 = vand.u32 %v2597, 4294901760
      %3119 = vmatpush.msra.mxu0 %v3118
      %v3120 = vand.u32 %v2589, 4294901760
      %3121 = vmatpush.msra.mxu0 %v3120
      %v3122 = vand.u32 %v2581, 4294901760
      %3123 = vmatpush.msra.mxu0 %v3122
      %v3124 = vand.u32 %v2573, 4294901760
      %3125 = vmatpush.msra.mxu0 %v3124
      %v3126 = vand.u32 %v2565, 4294901760
      %3127 = vmatpush.msra.mxu0 %v3126
      %v3128 = vand.u32 %v2622, 4294901760
      %3129 = vmatmul.f32.gmra.mxu0 %v3128
      %v3130 = vpop.f32.mrf.mxu0
      %v3131 = vadd.f32 %v3099, %v3130
      %v3132 = vand.u32 %v2625, 4294901760
      %3133 = vmatmul.f32.gmra.mxu0 %v3132
      %v3134 = vpop.f32.mrf.mxu0
      %v3135 = vadd.f32 %v3103, %v3134
      %3136 = vdwg.mxu0
      %3137 = vmatpush.msra.mxu0 0.0
      %3138 = vmatpush.msra.mxu0 0.0
      %3139 = vmatpush.msra.mxu0 0.0
      %3140 = vmatpush.msra.mxu0 0.0
      %3141 = vmatpush.msra.mxu0 0.0
      %3142 = vmatpush.msra.mxu0 0.0
      %3143 = vmatpush.msra.mxu0 0.0
      %3144 = vmatpush.msra.mxu0 0.0
      %3145 = vmatpush.msra.mxu0 0.0
      %v3146 = vand.u32 %v2614, 4294901760
      %3147 = vmatpush.msra.mxu0 %v3146
      %v3148 = vand.u32 %v2606, 4294901760
      %3149 = vmatpush.msra.mxu0 %v3148
      %v3150 = vand.u32 %v2598, 4294901760
      %3151 = vmatpush.msra.mxu0 %v3150
      %v3152 = vand.u32 %v2590, 4294901760
      %3153 = vmatpush.msra.mxu0 %v3152
      %v3154 = vand.u32 %v2582, 4294901760
      %3155 = vmatpush.msra.mxu0 %v3154
      %v3156 = vand.u32 %v2574, 4294901760
      %3157 = vmatpush.msra.mxu0 %v3156
      %v3158 = vand.u32 %v2566, 4294901760
      %3159 = vmatpush.msra.mxu0 %v3158
      %v3160 = vand.u32 %v2622, 4294901760
      %v3161 = vsub.f32 %v2622, %v3160
      %v3162 = vand.u32 %v3161, 4294901760
      %v3163 = vsub.f32 %v3161, %v3162
      %v3164 = vand.u32 %v3163, 4294901760
      %3165 = vmatmul.f32.gmra.mxu0 %v3164
      %v3166 = vpop.f32.mrf.mxu0
      %v3167 = vadd.f32 0.0, %v3166
      %v3168 = vand.u32 %v2625, 4294901760
      %v3169 = vsub.f32 %v2625, %v3168
      %v3170 = vand.u32 %v3169, 4294901760
      %v3171 = vsub.f32 %v3169, %v3170
      %v3172 = vand.u32 %v3171, 4294901760
      %3173 = vmatmul.f32.gmra.mxu0 %v3172
      %v3174 = vpop.f32.mrf.mxu0
      %v3175 = vadd.f32 0.0, %v3174
      %3176 = vdwg.mxu0
      %3177 = vmatpush.msra.mxu0 0.0
      %3178 = vmatpush.msra.mxu0 0.0
      %3179 = vmatpush.msra.mxu0 0.0
      %3180 = vmatpush.msra.mxu0 0.0
      %3181 = vmatpush.msra.mxu0 0.0
      %3182 = vmatpush.msra.mxu0 0.0
      %3183 = vmatpush.msra.mxu0 0.0
      %3184 = vmatpush.msra.mxu0 0.0
      %3185 = vmatpush.msra.mxu0 0.0
      %v3186 = vand.u32 %v2614, 4294901760
      %v3187 = vsub.f32 %v2614, %v3186
      %v3188 = vand.u32 %v3187, 4294901760
      %v3189 = vsub.f32 %v3187, %v3188
      %v3190 = vand.u32 %v3189, 4294901760
      %3191 = vmatpush.msra.mxu0 %v3190
      %v3192 = vand.u32 %v2606, 4294901760
      %v3193 = vsub.f32 %v2606, %v3192
      %v3194 = vand.u32 %v3193, 4294901760
      %v3195 = vsub.f32 %v3193, %v3194
      %v3196 = vand.u32 %v3195, 4294901760
      %3197 = vmatpush.msra.mxu0 %v3196
      %v3198 = vand.u32 %v2598, 4294901760
      %v3199 = vsub.f32 %v2598, %v3198
      %v3200 = vand.u32 %v3199, 4294901760
      %v3201 = vsub.f32 %v3199, %v3200
      %v3202 = vand.u32 %v3201, 4294901760
      %3203 = vmatpush.msra.mxu0 %v3202
      %v3204 = vand.u32 %v2590, 4294901760
      %v3205 = vsub.f32 %v2590, %v3204
      %v3206 = vand.u32 %v3205, 4294901760
      %v3207 = vsub.f32 %v3205, %v3206
      %v3208 = vand.u32 %v3207, 4294901760
      %3209 = vmatpush.msra.mxu0 %v3208
      %v3210 = vand.u32 %v2582, 4294901760
      %v3211 = vsub.f32 %v2582, %v3210
      %v3212 = vand.u32 %v3211, 4294901760
      %v3213 = vsub.f32 %v3211, %v3212
      %v3214 = vand.u32 %v3213, 4294901760
      %3215 = vmatpush.msra.mxu0 %v3214
      %v3216 = vand.u32 %v2574, 4294901760
      %v3217 = vsub.f32 %v2574, %v3216
      %v3218 = vand.u32 %v3217, 4294901760
      %v3219 = vsub.f32 %v3217, %v3218
      %v3220 = vand.u32 %v3219, 4294901760
      %3221 = vmatpush.msra.mxu0 %v3220
      %v3222 = vand.u32 %v2566, 4294901760
      %v3223 = vsub.f32 %v2566, %v3222
      %v3224 = vand.u32 %v3223, 4294901760
      %v3225 = vsub.f32 %v3223, %v3224
      %v3226 = vand.u32 %v3225, 4294901760
      %3227 = vmatpush.msra.mxu0 %v3226
      %v3228 = vand.u32 %v2622, 4294901760
      %3229 = vmatmul.f32.gmra.mxu0 %v3228
      %v3230 = vpop.f32.mrf.mxu0
      %v3231 = vadd.f32 %v3167, %v3230
      %v3232 = vand.u32 %v2625, 4294901760
      %3233 = vmatmul.f32.gmra.mxu0 %v3232
      %v3234 = vpop.f32.mrf.mxu0
      %v3235 = vadd.f32 %v3175, %v3234
      %3236 = vdwg.mxu0
      %3237 = vmatpush.msra.mxu0 0.0
      %3238 = vmatpush.msra.mxu0 0.0
      %3239 = vmatpush.msra.mxu0 0.0
      %3240 = vmatpush.msra.mxu0 0.0
      %3241 = vmatpush.msra.mxu0 0.0
      %3242 = vmatpush.msra.mxu0 0.0
      %3243 = vmatpush.msra.mxu0 0.0
      %3244 = vmatpush.msra.mxu0 0.0
      %3245 = vmatpush.msra.mxu0 0.0
      %v3246 = vand.u32 %v2614, 4294901760
      %v3247 = vsub.f32 %v2614, %v3246
      %3248 = vmatpush.msra.mxu0 %v3247
      %v3249 = vand.u32 %v2606, 4294901760
      %v3250 = vsub.f32 %v2606, %v3249
      %3251 = vmatpush.msra.mxu0 %v3250
      %v3252 = vand.u32 %v2598, 4294901760
      %v3253 = vsub.f32 %v2598, %v3252
      %3254 = vmatpush.msra.mxu0 %v3253
      %v3255 = vand.u32 %v2590, 4294901760
      %v3256 = vsub.f32 %v2590, %v3255
      %3257 = vmatpush.msra.mxu0 %v3256
      %v3258 = vand.u32 %v2582, 4294901760
      %v3259 = vsub.f32 %v2582, %v3258
      %3260 = vmatpush.msra.mxu0 %v3259
      %v3261 = vand.u32 %v2574, 4294901760
      %v3262 = vsub.f32 %v2574, %v3261
      %3263 = vmatpush.msra.mxu0 %v3262
      %v3264 = vand.u32 %v2566, 4294901760
      %v3265 = vsub.f32 %v2566, %v3264
      %3266 = vmatpush.msra.mxu0 %v3265
      %v3267 = vand.u32 %v2622, 4294901760
      %v3268 = vsub.f32 %v2622, %v3267
      %3269 = vmatmul.f32.gmra.mxu0 %v3268
      %v3270 = vpop.f32.mrf.mxu0
      %v3271 = vadd.f32 %v3231, %v3270
      %v3272 = vand.u32 %v2625, 4294901760
      %v3273 = vsub.f32 %v2625, %v3272
      %3274 = vmatmul.f32.gmra.mxu0 %v3273
      %v3275 = vpop.f32.mrf.mxu0
      %v3276 = vadd.f32 %v3235, %v3275
      %3277 = vdwg.mxu0
      %3278 = vmatpush.msra.mxu0 0.0
      %3279 = vmatpush.msra.mxu0 0.0
      %3280 = vmatpush.msra.mxu0 0.0
      %3281 = vmatpush.msra.mxu0 0.0
      %3282 = vmatpush.msra.mxu0 0.0
      %3283 = vmatpush.msra.mxu0 0.0
      %3284 = vmatpush.msra.mxu0 0.0
      %3285 = vmatpush.msra.mxu0 0.0
      %3286 = vmatpush.msra.mxu0 0.0
      %v3287 = vand.u32 %v2614, 4294901760
      %3288 = vmatpush.msra.mxu0 %v3287
      %v3289 = vand.u32 %v2606, 4294901760
      %3290 = vmatpush.msra.mxu0 %v3289
      %v3291 = vand.u32 %v2598, 4294901760
      %3292 = vmatpush.msra.mxu0 %v3291
      %v3293 = vand.u32 %v2590, 4294901760
      %3294 = vmatpush.msra.mxu0 %v3293
      %v3295 = vand.u32 %v2582, 4294901760
      %3296 = vmatpush.msra.mxu0 %v3295
      %v3297 = vand.u32 %v2574, 4294901760
      %3298 = vmatpush.msra.mxu0 %v3297
      %v3299 = vand.u32 %v2566, 4294901760
      %3300 = vmatpush.msra.mxu0 %v3299
      %v3301 = vand.u32 %v2622, 4294901760
      %v3302 = vsub.f32 %v2622, %v3301
      %v3303 = vand.u32 %v3302, 4294901760
      %3304 = vmatmul.f32.gmra.mxu0 %v3303
      %v3305 = vpop.f32.mrf.mxu0
      %v3306 = vadd.f32 %v3271, %v3305
      %v3307 = vand.u32 %v2625, 4294901760
      %v3308 = vsub.f32 %v2625, %v3307
      %v3309 = vand.u32 %v3308, 4294901760
      %3310 = vmatmul.f32.gmra.mxu0 %v3309
      %v3311 = vpop.f32.mrf.mxu0
      %v3312 = vadd.f32 %v3276, %v3311
      %3313 = vdwg.mxu0
      %3314 = vmatpush.msra.mxu0 0.0
      %3315 = vmatpush.msra.mxu0 0.0
      %3316 = vmatpush.msra.mxu0 0.0
      %3317 = vmatpush.msra.mxu0 0.0
      %3318 = vmatpush.msra.mxu0 0.0
      %3319 = vmatpush.msra.mxu0 0.0
      %3320 = vmatpush.msra.mxu0 0.0
      %3321 = vmatpush.msra.mxu0 0.0
      %3322 = vmatpush.msra.mxu0 0.0
      %v3323 = vand.u32 %v2614, 4294901760
      %v3324 = vsub.f32 %v2614, %v3323
      %v3325 = vand.u32 %v3324, 4294901760
      %3326 = vmatpush.msra.mxu0 %v3325
      %v3327 = vand.u32 %v2606, 4294901760
      %v3328 = vsub.f32 %v2606, %v3327
      %v3329 = vand.u32 %v3328, 4294901760
      %3330 = vmatpush.msra.mxu0 %v3329
      %v3331 = vand.u32 %v2598, 4294901760
      %v3332 = vsub.f32 %v2598, %v3331
      %v3333 = vand.u32 %v3332, 4294901760
      %3334 = vmatpush.msra.mxu0 %v3333
      %v3335 = vand.u32 %v2590, 4294901760
      %v3336 = vsub.f32 %v2590, %v3335
      %v3337 = vand.u32 %v3336, 4294901760
      %3338 = vmatpush.msra.mxu0 %v3337
      %v3339 = vand.u32 %v2582, 4294901760
      %v3340 = vsub.f32 %v2582, %v3339
      %v3341 = vand.u32 %v3340, 4294901760
      %3342 = vmatpush.msra.mxu0 %v3341
      %v3343 = vand.u32 %v2574, 4294901760
      %v3344 = vsub.f32 %v2574, %v3343
      %v3345 = vand.u32 %v3344, 4294901760
      %3346 = vmatpush.msra.mxu0 %v3345
      %v3347 = vand.u32 %v2566, 4294901760
      %v3348 = vsub.f32 %v2566, %v3347
      %v3349 = vand.u32 %v3348, 4294901760
      %3350 = vmatpush.msra.mxu0 %v3349
      %v3351 = vand.u32 %v2622, 4294901760
      %3352 = vmatmul.f32.gmra.mxu0 %v3351
      %v3353 = vpop.f32.mrf.mxu0
      %v3354 = vadd.f32 %v3306, %v3353
      %v3355 = vand.u32 %v2625, 4294901760
      %3356 = vmatmul.f32.gmra.mxu0 %v3355
      %v3357 = vpop.f32.mrf.mxu0
      %v3358 = vadd.f32 %v3312, %v3357
      %3359 = vdwg.mxu0
      %3360 = vmatpush.msra.mxu0 0.0
      %3361 = vmatpush.msra.mxu0 0.0
      %3362 = vmatpush.msra.mxu0 0.0
      %3363 = vmatpush.msra.mxu0 0.0
      %3364 = vmatpush.msra.mxu0 0.0
      %3365 = vmatpush.msra.mxu0 0.0
      %3366 = vmatpush.msra.mxu0 0.0
      %3367 = vmatpush.msra.mxu0 0.0
      %3368 = vmatpush.msra.mxu0 0.0
      %v3369 = vand.u32 %v2614, 4294901760
      %3370 = vmatpush.msra.mxu0 %v3369
      %v3371 = vand.u32 %v2606, 4294901760
      %3372 = vmatpush.msra.mxu0 %v3371
      %v3373 = vand.u32 %v2598, 4294901760
      %3374 = vmatpush.msra.mxu0 %v3373
      %v3375 = vand.u32 %v2590, 4294901760
      %3376 = vmatpush.msra.mxu0 %v3375
      %v3377 = vand.u32 %v2582, 4294901760
      %3378 = vmatpush.msra.mxu0 %v3377
      %v3379 = vand.u32 %v2574, 4294901760
      %3380 = vmatpush.msra.mxu0 %v3379
      %v3381 = vand.u32 %v2566, 4294901760
      %3382 = vmatpush.msra.mxu0 %v3381
      %v3383 = vand.u32 %v2622, 4294901760
      %3384 = vmatmul.f32.gmra.mxu0 %v3383
      %v3385 = vpop.f32.mrf.mxu0
      %v3386 = vadd.f32 %v3354, %v3385
      %v3387 = vand.u32 %v2625, 4294901760
      %3388 = vmatmul.f32.gmra.mxu0 %v3387
      %v3389 = vpop.f32.mrf.mxu0
      %v3390 = vadd.f32 %v3358, %v3389
      %3391 = vdwg.mxu0
      %3392 = vmatpush.msra.mxu0 0.0
      %3393 = vmatpush.msra.mxu0 0.0
      %3394 = vmatpush.msra.mxu0 0.0
      %3395 = vmatpush.msra.mxu0 0.0
      %3396 = vmatpush.msra.mxu0 0.0
      %3397 = vmatpush.msra.mxu0 0.0
      %3398 = vmatpush.msra.mxu0 0.0
      %3399 = vmatpush.msra.mxu0 0.0
      %3400 = vmatpush.msra.mxu0 0.0
      %v3401 = vand.u32 %v2615, 4294901760
      %3402 = vmatpush.msra.mxu0 %v3401
      %v3403 = vand.u32 %v2607, 4294901760
      %3404 = vmatpush.msra.mxu0 %v3403
      %v3405 = vand.u32 %v2599, 4294901760
      %3406 = vmatpush.msra.mxu0 %v3405
      %v3407 = vand.u32 %v2591, 4294901760
      %3408 = vmatpush.msra.mxu0 %v3407
      %v3409 = vand.u32 %v2583, 4294901760
      %3410 = vmatpush.msra.mxu0 %v3409
      %v3411 = vand.u32 %v2575, 4294901760
      %3412 = vmatpush.msra.mxu0 %v3411
      %v3413 = vand.u32 %v2567, 4294901760
      %3414 = vmatpush.msra.mxu0 %v3413
      %v3415 = vand.u32 %v2622, 4294901760
      %v3416 = vsub.f32 %v2622, %v3415
      %v3417 = vand.u32 %v3416, 4294901760
      %v3418 = vsub.f32 %v3416, %v3417
      %v3419 = vand.u32 %v3418, 4294901760
      %3420 = vmatmul.f32.gmra.mxu0 %v3419
      %v3421 = vpop.f32.mrf.mxu0
      %v3422 = vadd.f32 0.0, %v3421
      %v3423 = vand.u32 %v2625, 4294901760
      %v3424 = vsub.f32 %v2625, %v3423
      %v3425 = vand.u32 %v3424, 4294901760
      %v3426 = vsub.f32 %v3424, %v3425
      %v3427 = vand.u32 %v3426, 4294901760
      %3428 = vmatmul.f32.gmra.mxu0 %v3427
      %v3429 = vpop.f32.mrf.mxu0
      %v3430 = vadd.f32 0.0, %v3429
      %3431 = vdwg.mxu0
      %3432 = vmatpush.msra.mxu0 0.0
      %3433 = vmatpush.msra.mxu0 0.0
      %3434 = vmatpush.msra.mxu0 0.0
      %3435 = vmatpush.msra.mxu0 0.0
      %3436 = vmatpush.msra.mxu0 0.0
      %3437 = vmatpush.msra.mxu0 0.0
      %3438 = vmatpush.msra.mxu0 0.0
      %3439 = vmatpush.msra.mxu0 0.0
      %3440 = vmatpush.msra.mxu0 0.0
      %v3441 = vand.u32 %v2615, 4294901760
      %v3442 = vsub.f32 %v2615, %v3441
      %v3443 = vand.u32 %v3442, 4294901760
      %v3444 = vsub.f32 %v3442, %v3443
      %v3445 = vand.u32 %v3444, 4294901760
      %3446 = vmatpush.msra.mxu0 %v3445
      %v3447 = vand.u32 %v2607, 4294901760
      %v3448 = vsub.f32 %v2607, %v3447
      %v3449 = vand.u32 %v3448, 4294901760
      %v3450 = vsub.f32 %v3448, %v3449
      %v3451 = vand.u32 %v3450, 4294901760
      %3452 = vmatpush.msra.mxu0 %v3451
      %v3453 = vand.u32 %v2599, 4294901760
      %v3454 = vsub.f32 %v2599, %v3453
      %v3455 = vand.u32 %v3454, 4294901760
      %v3456 = vsub.f32 %v3454, %v3455
      %v3457 = vand.u32 %v3456, 4294901760
      %3458 = vmatpush.msra.mxu0 %v3457
      %v3459 = vand.u32 %v2591, 4294901760
      %v3460 = vsub.f32 %v2591, %v3459
      %v3461 = vand.u32 %v3460, 4294901760
      %v3462 = vsub.f32 %v3460, %v3461
      %v3463 = vand.u32 %v3462, 4294901760
      %3464 = vmatpush.msra.mxu0 %v3463
      %v3465 = vand.u32 %v2583, 4294901760
      %v3466 = vsub.f32 %v2583, %v3465
      %v3467 = vand.u32 %v3466, 4294901760
      %v3468 = vsub.f32 %v3466, %v3467
      %v3469 = vand.u32 %v3468, 4294901760
      %3470 = vmatpush.msra.mxu0 %v3469
      %v3471 = vand.u32 %v2575, 4294901760
      %v3472 = vsub.f32 %v2575, %v3471
      %v3473 = vand.u32 %v3472, 4294901760
      %v3474 = vsub.f32 %v3472, %v3473
      %v3475 = vand.u32 %v3474, 4294901760
      %3476 = vmatpush.msra.mxu0 %v3475
      %v3477 = vand.u32 %v2567, 4294901760
      %v3478 = vsub.f32 %v2567, %v3477
      %v3479 = vand.u32 %v3478, 4294901760
      %v3480 = vsub.f32 %v3478, %v3479
      %v3481 = vand.u32 %v3480, 4294901760
      %3482 = vmatpush.msra.mxu0 %v3481
      %v3483 = vand.u32 %v2622, 4294901760
      %3484 = vmatmul.f32.gmra.mxu0 %v3483
      %v3485 = vpop.f32.mrf.mxu0
      %v3486 = vadd.f32 %v3422, %v3485
      %v3487 = vand.u32 %v2625, 4294901760
      %3488 = vmatmul.f32.gmra.mxu0 %v3487
      %v3489 = vpop.f32.mrf.mxu0
      %v3490 = vadd.f32 %v3430, %v3489
      %3491 = vdwg.mxu0
      %3492 = vmatpush.msra.mxu0 0.0
      %3493 = vmatpush.msra.mxu0 0.0
      %3494 = vmatpush.msra.mxu0 0.0
      %3495 = vmatpush.msra.mxu0 0.0
      %3496 = vmatpush.msra.mxu0 0.0
      %3497 = vmatpush.msra.mxu0 0.0
      %3498 = vmatpush.msra.mxu0 0.0
      %3499 = vmatpush.msra.mxu0 0.0
      %3500 = vmatpush.msra.mxu0 0.0
      %v3501 = vand.u32 %v2615, 4294901760
      %v3502 = vsub.f32 %v2615, %v3501
      %3503 = vmatpush.msra.mxu0 %v3502
      %v3504 = vand.u32 %v2607, 4294901760
      %v3505 = vsub.f32 %v2607, %v3504
      %3506 = vmatpush.msra.mxu0 %v3505
      %v3507 = vand.u32 %v2599, 4294901760
      %v3508 = vsub.f32 %v2599, %v3507
      %3509 = vmatpush.msra.mxu0 %v3508
      %v3510 = vand.u32 %v2591, 4294901760
      %v3511 = vsub.f32 %v2591, %v3510
      %3512 = vmatpush.msra.mxu0 %v3511
      %v3513 = vand.u32 %v2583, 4294901760
      %v3514 = vsub.f32 %v2583, %v3513
      %3515 = vmatpush.msra.mxu0 %v3514
      %v3516 = vand.u32 %v2575, 4294901760
      %v3517 = vsub.f32 %v2575, %v3516
      %3518 = vmatpush.msra.mxu0 %v3517
      %v3519 = vand.u32 %v2567, 4294901760
      %v3520 = vsub.f32 %v2567, %v3519
      %3521 = vmatpush.msra.mxu0 %v3520
      %v3522 = vand.u32 %v2622, 4294901760
      %v3523 = vsub.f32 %v2622, %v3522
      %3524 = vmatmul.f32.gmra.mxu0 %v3523
      %v3525 = vpop.f32.mrf.mxu0
      %v3526 = vadd.f32 %v3486, %v3525
      %v3527 = vand.u32 %v2625, 4294901760
      %v3528 = vsub.f32 %v2625, %v3527
      %3529 = vmatmul.f32.gmra.mxu0 %v3528
      %v3530 = vpop.f32.mrf.mxu0
      %v3531 = vadd.f32 %v3490, %v3530
      %3532 = vdwg.mxu0
      %3533 = vmatpush.msra.mxu0 0.0
      %3534 = vmatpush.msra.mxu0 0.0
      %3535 = vmatpush.msra.mxu0 0.0
      %3536 = vmatpush.msra.mxu0 0.0
      %3537 = vmatpush.msra.mxu0 0.0
      %3538 = vmatpush.msra.mxu0 0.0
      %3539 = vmatpush.msra.mxu0 0.0
      %3540 = vmatpush.msra.mxu0 0.0
      %3541 = vmatpush.msra.mxu0 0.0
      %v3542 = vand.u32 %v2615, 4294901760
      %3543 = vmatpush.msra.mxu0 %v3542
      %v3544 = vand.u32 %v2607, 4294901760
      %3545 = vmatpush.msra.mxu0 %v3544
      %v3546 = vand.u32 %v2599, 4294901760
      %3547 = vmatpush.msra.mxu0 %v3546
      %v3548 = vand.u32 %v2591, 4294901760
      %3549 = vmatpush.msra.mxu0 %v3548
      %v3550 = vand.u32 %v2583, 4294901760
      %3551 = vmatpush.msra.mxu0 %v3550
      %v3552 = vand.u32 %v2575, 4294901760
      %3553 = vmatpush.msra.mxu0 %v3552
      %v3554 = vand.u32 %v2567, 4294901760
      %3555 = vmatpush.msra.mxu0 %v3554
      %v3556 = vand.u32 %v2622, 4294901760
      %v3557 = vsub.f32 %v2622, %v3556
      %v3558 = vand.u32 %v3557, 4294901760
      %3559 = vmatmul.f32.gmra.mxu0 %v3558
      %v3560 = vpop.f32.mrf.mxu0
      %v3561 = vadd.f32 %v3526, %v3560
      %v3562 = vand.u32 %v2625, 4294901760
      %v3563 = vsub.f32 %v2625, %v3562
      %v3564 = vand.u32 %v3563, 4294901760
      %3565 = vmatmul.f32.gmra.mxu0 %v3564
      %v3566 = vpop.f32.mrf.mxu0
      %v3567 = vadd.f32 %v3531, %v3566
      %3568 = vdwg.mxu0
      %3569 = vmatpush.msra.mxu0 0.0
      %3570 = vmatpush.msra.mxu0 0.0
      %3571 = vmatpush.msra.mxu0 0.0
      %3572 = vmatpush.msra.mxu0 0.0
      %3573 = vmatpush.msra.mxu0 0.0
      %3574 = vmatpush.msra.mxu0 0.0
      %3575 = vmatpush.msra.mxu0 0.0
      %3576 = vmatpush.msra.mxu0 0.0
      %3577 = vmatpush.msra.mxu0 0.0
      %v3578 = vand.u32 %v2615, 4294901760
      %v3579 = vsub.f32 %v2615, %v3578
      %v3580 = vand.u32 %v3579, 4294901760
      %3581 = vmatpush.msra.mxu0 %v3580
      %v3582 = vand.u32 %v2607, 4294901760
      %v3583 = vsub.f32 %v2607, %v3582
      %v3584 = vand.u32 %v3583, 4294901760
      %3585 = vmatpush.msra.mxu0 %v3584
      %v3586 = vand.u32 %v2599, 4294901760
      %v3587 = vsub.f32 %v2599, %v3586
      %v3588 = vand.u32 %v3587, 4294901760
      %3589 = vmatpush.msra.mxu0 %v3588
      %v3590 = vand.u32 %v2591, 4294901760
      %v3591 = vsub.f32 %v2591, %v3590
      %v3592 = vand.u32 %v3591, 4294901760
      %3593 = vmatpush.msra.mxu0 %v3592
      %v3594 = vand.u32 %v2583, 4294901760
      %v3595 = vsub.f32 %v2583, %v3594
      %v3596 = vand.u32 %v3595, 4294901760
      %3597 = vmatpush.msra.mxu0 %v3596
      %v3598 = vand.u32 %v2575, 4294901760
      %v3599 = vsub.f32 %v2575, %v3598
      %v3600 = vand.u32 %v3599, 4294901760
      %3601 = vmatpush.msra.mxu0 %v3600
      %v3602 = vand.u32 %v2567, 4294901760
      %v3603 = vsub.f32 %v2567, %v3602
      %v3604 = vand.u32 %v3603, 4294901760
      %3605 = vmatpush.msra.mxu0 %v3604
      %v3606 = vand.u32 %v2622, 4294901760
      %3607 = vmatmul.f32.gmra.mxu0 %v3606
      %v3608 = vpop.f32.mrf.mxu0
      %v3609 = vadd.f32 %v3561, %v3608
      %v3610 = vand.u32 %v2625, 4294901760
      %3611 = vmatmul.f32.gmra.mxu0 %v3610
      %v3612 = vpop.f32.mrf.mxu0
      %v3613 = vadd.f32 %v3567, %v3612
      %3614 = vdwg.mxu0
      %3615 = vmatpush.msra.mxu0 0.0
      %3616 = vmatpush.msra.mxu0 0.0
      %3617 = vmatpush.msra.mxu0 0.0
      %3618 = vmatpush.msra.mxu0 0.0
      %3619 = vmatpush.msra.mxu0 0.0
      %3620 = vmatpush.msra.mxu0 0.0
      %3621 = vmatpush.msra.mxu0 0.0
      %3622 = vmatpush.msra.mxu0 0.0
      %3623 = vmatpush.msra.mxu0 0.0
      %v3624 = vand.u32 %v2615, 4294901760
      %3625 = vmatpush.msra.mxu0 %v3624
      %v3626 = vand.u32 %v2607, 4294901760
      %3627 = vmatpush.msra.mxu0 %v3626
      %v3628 = vand.u32 %v2599, 4294901760
      %3629 = vmatpush.msra.mxu0 %v3628
      %v3630 = vand.u32 %v2591, 4294901760
      %3631 = vmatpush.msra.mxu0 %v3630
      %v3632 = vand.u32 %v2583, 4294901760
      %3633 = vmatpush.msra.mxu0 %v3632
      %v3634 = vand.u32 %v2575, 4294901760
      %3635 = vmatpush.msra.mxu0 %v3634
      %v3636 = vand.u32 %v2567, 4294901760
      %3637 = vmatpush.msra.mxu0 %v3636
      %v3638 = vand.u32 %v2622, 4294901760
      %3639 = vmatmul.f32.gmra.mxu0 %v3638
      %v3640 = vpop.f32.mrf.mxu0
      %v3641 = vadd.f32 %v3609, %v3640
      %v3642 = vand.u32 %v2625, 4294901760
      %3643 = vmatmul.f32.gmra.mxu0 %v3642
      %v3644 = vpop.f32.mrf.mxu0
      %v3645 = vadd.f32 %v3613, %v3644
      %3646 = vdwg.mxu0
      %3647 = vmatpush.msra.mxu0 0.0
      %3648 = vmatpush.msra.mxu0 0.0
      %3649 = vmatpush.msra.mxu0 0.0
      %3650 = vmatpush.msra.mxu0 0.0
      %3651 = vmatpush.msra.mxu0 0.0
      %3652 = vmatpush.msra.mxu0 0.0
      %3653 = vmatpush.msra.mxu0 0.0
      %3654 = vmatpush.msra.mxu0 0.0
      %3655 = vmatpush.msra.mxu0 0.0
      %v3656 = vand.u32 %v2616, 4294901760
      %3657 = vmatpush.msra.mxu0 %v3656
      %v3658 = vand.u32 %v2608, 4294901760
      %3659 = vmatpush.msra.mxu0 %v3658
      %v3660 = vand.u32 %v2600, 4294901760
      %3661 = vmatpush.msra.mxu0 %v3660
      %v3662 = vand.u32 %v2592, 4294901760
      %3663 = vmatpush.msra.mxu0 %v3662
      %v3664 = vand.u32 %v2584, 4294901760
      %3665 = vmatpush.msra.mxu0 %v3664
      %v3666 = vand.u32 %v2576, 4294901760
      %3667 = vmatpush.msra.mxu0 %v3666
      %v3668 = vand.u32 %v2568, 4294901760
      %3669 = vmatpush.msra.mxu0 %v3668
      %v3670 = vand.u32 %v2622, 4294901760
      %v3671 = vsub.f32 %v2622, %v3670
      %v3672 = vand.u32 %v3671, 4294901760
      %v3673 = vsub.f32 %v3671, %v3672
      %v3674 = vand.u32 %v3673, 4294901760
      %3675 = vmatmul.f32.gmra.mxu0 %v3674
      %v3676 = vpop.f32.mrf.mxu0
      %v3677 = vadd.f32 0.0, %v3676
      %v3678 = vand.u32 %v2625, 4294901760
      %v3679 = vsub.f32 %v2625, %v3678
      %v3680 = vand.u32 %v3679, 4294901760
      %v3681 = vsub.f32 %v3679, %v3680
      %v3682 = vand.u32 %v3681, 4294901760
      %3683 = vmatmul.f32.gmra.mxu0 %v3682
      %v3684 = vpop.f32.mrf.mxu0
      %v3685 = vadd.f32 0.0, %v3684
      %3686 = vdwg.mxu0
      %3687 = vmatpush.msra.mxu0 0.0
      %3688 = vmatpush.msra.mxu0 0.0
      %3689 = vmatpush.msra.mxu0 0.0
      %3690 = vmatpush.msra.mxu0 0.0
      %3691 = vmatpush.msra.mxu0 0.0
      %3692 = vmatpush.msra.mxu0 0.0
      %3693 = vmatpush.msra.mxu0 0.0
      %3694 = vmatpush.msra.mxu0 0.0
      %3695 = vmatpush.msra.mxu0 0.0
      %v3696 = vand.u32 %v2616, 4294901760
      %v3697 = vsub.f32 %v2616, %v3696
      %v3698 = vand.u32 %v3697, 4294901760
      %v3699 = vsub.f32 %v3697, %v3698
      %v3700 = vand.u32 %v3699, 4294901760
      %3701 = vmatpush.msra.mxu0 %v3700
      %v3702 = vand.u32 %v2608, 4294901760
      %v3703 = vsub.f32 %v2608, %v3702
      %v3704 = vand.u32 %v3703, 4294901760
      %v3705 = vsub.f32 %v3703, %v3704
      %v3706 = vand.u32 %v3705, 4294901760
      %3707 = vmatpush.msra.mxu0 %v3706
      %v3708 = vand.u32 %v2600, 4294901760
      %v3709 = vsub.f32 %v2600, %v3708
      %v3710 = vand.u32 %v3709, 4294901760
      %v3711 = vsub.f32 %v3709, %v3710
      %v3712 = vand.u32 %v3711, 4294901760
      %3713 = vmatpush.msra.mxu0 %v3712
      %v3714 = vand.u32 %v2592, 4294901760
      %v3715 = vsub.f32 %v2592, %v3714
      %v3716 = vand.u32 %v3715, 4294901760
      %v3717 = vsub.f32 %v3715, %v3716
      %v3718 = vand.u32 %v3717, 4294901760
      %3719 = vmatpush.msra.mxu0 %v3718
      %v3720 = vand.u32 %v2584, 4294901760
      %v3721 = vsub.f32 %v2584, %v3720
      %v3722 = vand.u32 %v3721, 4294901760
      %v3723 = vsub.f32 %v3721, %v3722
      %v3724 = vand.u32 %v3723, 4294901760
      %3725 = vmatpush.msra.mxu0 %v3724
      %v3726 = vand.u32 %v2576, 4294901760
      %v3727 = vsub.f32 %v2576, %v3726
      %v3728 = vand.u32 %v3727, 4294901760
      %v3729 = vsub.f32 %v3727, %v3728
      %v3730 = vand.u32 %v3729, 4294901760
      %3731 = vmatpush.msra.mxu0 %v3730
      %v3732 = vand.u32 %v2568, 4294901760
      %v3733 = vsub.f32 %v2568, %v3732
      %v3734 = vand.u32 %v3733, 4294901760
      %v3735 = vsub.f32 %v3733, %v3734
      %v3736 = vand.u32 %v3735, 4294901760
      %3737 = vmatpush.msra.mxu0 %v3736
      %v3738 = vand.u32 %v2622, 4294901760
      %3739 = vmatmul.f32.gmra.mxu0 %v3738
      %v3740 = vpop.f32.mrf.mxu0
      %v3741 = vadd.f32 %v3677, %v3740
      %v3742 = vand.u32 %v2625, 4294901760
      %3743 = vmatmul.f32.gmra.mxu0 %v3742
      %v3744 = vpop.f32.mrf.mxu0
      %v3745 = vadd.f32 %v3685, %v3744
      %3746 = vdwg.mxu0
      %3747 = vmatpush.msra.mxu0 0.0
      %3748 = vmatpush.msra.mxu0 0.0
      %3749 = vmatpush.msra.mxu0 0.0
      %3750 = vmatpush.msra.mxu0 0.0
      %3751 = vmatpush.msra.mxu0 0.0
      %3752 = vmatpush.msra.mxu0 0.0
      %3753 = vmatpush.msra.mxu0 0.0
      %3754 = vmatpush.msra.mxu0 0.0
      %3755 = vmatpush.msra.mxu0 0.0
      %v3756 = vand.u32 %v2616, 4294901760
      %v3757 = vsub.f32 %v2616, %v3756
      %3758 = vmatpush.msra.mxu0 %v3757
      %v3759 = vand.u32 %v2608, 4294901760
      %v3760 = vsub.f32 %v2608, %v3759
      %3761 = vmatpush.msra.mxu0 %v3760
      %v3762 = vand.u32 %v2600, 4294901760
      %v3763 = vsub.f32 %v2600, %v3762
      %3764 = vmatpush.msra.mxu0 %v3763
      %v3765 = vand.u32 %v2592, 4294901760
      %v3766 = vsub.f32 %v2592, %v3765
      %3767 = vmatpush.msra.mxu0 %v3766
      %v3768 = vand.u32 %v2584, 4294901760
      %v3769 = vsub.f32 %v2584, %v3768
      %3770 = vmatpush.msra.mxu0 %v3769
      %v3771 = vand.u32 %v2576, 4294901760
      %v3772 = vsub.f32 %v2576, %v3771
      %3773 = vmatpush.msra.mxu0 %v3772
      %v3774 = vand.u32 %v2568, 4294901760
      %v3775 = vsub.f32 %v2568, %v3774
      %3776 = vmatpush.msra.mxu0 %v3775
      %v3777 = vand.u32 %v2622, 4294901760
      %v3778 = vsub.f32 %v2622, %v3777
      %3779 = vmatmul.f32.gmra.mxu0 %v3778
      %v3780 = vpop.f32.mrf.mxu0
      %v3781 = vadd.f32 %v3741, %v3780
      %v3782 = vand.u32 %v2625, 4294901760
      %v3783 = vsub.f32 %v2625, %v3782
      %3784 = vmatmul.f32.gmra.mxu0 %v3783
      %v3785 = vpop.f32.mrf.mxu0
      %v3786 = vadd.f32 %v3745, %v3785
      %3787 = vdwg.mxu0
      %3788 = vmatpush.msra.mxu0 0.0
      %3789 = vmatpush.msra.mxu0 0.0
      %3790 = vmatpush.msra.mxu0 0.0
      %3791 = vmatpush.msra.mxu0 0.0
      %3792 = vmatpush.msra.mxu0 0.0
      %3793 = vmatpush.msra.mxu0 0.0
      %3794 = vmatpush.msra.mxu0 0.0
      %3795 = vmatpush.msra.mxu0 0.0
      %3796 = vmatpush.msra.mxu0 0.0
      %v3797 = vand.u32 %v2616, 4294901760
      %3798 = vmatpush.msra.mxu0 %v3797
      %v3799 = vand.u32 %v2608, 4294901760
      %3800 = vmatpush.msra.mxu0 %v3799
      %v3801 = vand.u32 %v2600, 4294901760
      %3802 = vmatpush.msra.mxu0 %v3801
      %v3803 = vand.u32 %v2592, 4294901760
      %3804 = vmatpush.msra.mxu0 %v3803
      %v3805 = vand.u32 %v2584, 4294901760
      %3806 = vmatpush.msra.mxu0 %v3805
      %v3807 = vand.u32 %v2576, 4294901760
      %3808 = vmatpush.msra.mxu0 %v3807
      %v3809 = vand.u32 %v2568, 4294901760
      %3810 = vmatpush.msra.mxu0 %v3809
      %v3811 = vand.u32 %v2622, 4294901760
      %v3812 = vsub.f32 %v2622, %v3811
      %v3813 = vand.u32 %v3812, 4294901760
      %3814 = vmatmul.f32.gmra.mxu0 %v3813
      %v3815 = vpop.f32.mrf.mxu0
      %v3816 = vadd.f32 %v3781, %v3815
      %v3817 = vand.u32 %v2625, 4294901760
      %v3818 = vsub.f32 %v2625, %v3817
      %v3819 = vand.u32 %v3818, 4294901760
      %3820 = vmatmul.f32.gmra.mxu0 %v3819
      %v3821 = vpop.f32.mrf.mxu0
      %v3822 = vadd.f32 %v3786, %v3821
      %3823 = vdwg.mxu0
      %3824 = vmatpush.msra.mxu0 0.0
      %3825 = vmatpush.msra.mxu0 0.0
      %3826 = vmatpush.msra.mxu0 0.0
      %3827 = vmatpush.msra.mxu0 0.0
      %3828 = vmatpush.msra.mxu0 0.0
      %3829 = vmatpush.msra.mxu0 0.0
      %3830 = vmatpush.msra.mxu0 0.0
      %3831 = vmatpush.msra.mxu0 0.0
      %3832 = vmatpush.msra.mxu0 0.0
      %v3833 = vand.u32 %v2616, 4294901760
      %v3834 = vsub.f32 %v2616, %v3833
      %v3835 = vand.u32 %v3834, 4294901760
      %3836 = vmatpush.msra.mxu0 %v3835
      %v3837 = vand.u32 %v2608, 4294901760
      %v3838 = vsub.f32 %v2608, %v3837
      %v3839 = vand.u32 %v3838, 4294901760
      %3840 = vmatpush.msra.mxu0 %v3839
      %v3841 = vand.u32 %v2600, 4294901760
      %v3842 = vsub.f32 %v2600, %v3841
      %v3843 = vand.u32 %v3842, 4294901760
      %3844 = vmatpush.msra.mxu0 %v3843
      %v3845 = vand.u32 %v2592, 4294901760
      %v3846 = vsub.f32 %v2592, %v3845
      %v3847 = vand.u32 %v3846, 4294901760
      %3848 = vmatpush.msra.mxu0 %v3847
      %v3849 = vand.u32 %v2584, 4294901760
      %v3850 = vsub.f32 %v2584, %v3849
      %v3851 = vand.u32 %v3850, 4294901760
      %3852 = vmatpush.msra.mxu0 %v3851
      %v3853 = vand.u32 %v2576, 4294901760
      %v3854 = vsub.f32 %v2576, %v3853
      %v3855 = vand.u32 %v3854, 4294901760
      %3856 = vmatpush.msra.mxu0 %v3855
      %v3857 = vand.u32 %v2568, 4294901760
      %v3858 = vsub.f32 %v2568, %v3857
      %v3859 = vand.u32 %v3858, 4294901760
      %3860 = vmatpush.msra.mxu0 %v3859
      %v3861 = vand.u32 %v2622, 4294901760
      %3862 = vmatmul.f32.gmra.mxu0 %v3861
      %v3863 = vpop.f32.mrf.mxu0
      %v3864 = vadd.f32 %v3816, %v3863
      %v3865 = vand.u32 %v2625, 4294901760
      %3866 = vmatmul.f32.gmra.mxu0 %v3865
      %v3867 = vpop.f32.mrf.mxu0
      %v3868 = vadd.f32 %v3822, %v3867
      %3869 = vdwg.mxu0
      %3870 = vmatpush.msra.mxu0 0.0
      %3871 = vmatpush.msra.mxu0 0.0
      %3872 = vmatpush.msra.mxu0 0.0
      %3873 = vmatpush.msra.mxu0 0.0
      %3874 = vmatpush.msra.mxu0 0.0
      %3875 = vmatpush.msra.mxu0 0.0
      %3876 = vmatpush.msra.mxu0 0.0
      %3877 = vmatpush.msra.mxu0 0.0
      %3878 = vmatpush.msra.mxu0 0.0
      %v3879 = vand.u32 %v2616, 4294901760
      %3880 = vmatpush.msra.mxu0 %v3879
      %v3881 = vand.u32 %v2608, 4294901760
      %3882 = vmatpush.msra.mxu0 %v3881
      %v3883 = vand.u32 %v2600, 4294901760
      %3884 = vmatpush.msra.mxu0 %v3883
      %v3885 = vand.u32 %v2592, 4294901760
      %3886 = vmatpush.msra.mxu0 %v3885
      %v3887 = vand.u32 %v2584, 4294901760
      %3888 = vmatpush.msra.mxu0 %v3887
      %v3889 = vand.u32 %v2576, 4294901760
      %3890 = vmatpush.msra.mxu0 %v3889
      %v3891 = vand.u32 %v2568, 4294901760
      %3892 = vmatpush.msra.mxu0 %v3891
      %v3893 = vand.u32 %v2622, 4294901760
      %3894 = vmatmul.f32.gmra.mxu0 %v3893
      %v3895 = vpop.f32.mrf.mxu0
      %v3896 = vadd.f32 %v3864, %v3895
      %v3897 = vand.u32 %v2625, 4294901760
      %3898 = vmatmul.f32.gmra.mxu0 %v3897
      %v3899 = vpop.f32.mrf.mxu0
      %v3900 = vadd.f32 %v3868, %v3899
      %3901 = vdwg.mxu0
      %3902 = vmatpush.msra.mxu0 0.0
      %3903 = vmatpush.msra.mxu0 0.0
      %3904 = vmatpush.msra.mxu0 0.0
      %3905 = vmatpush.msra.mxu0 0.0
      %3906 = vmatpush.msra.mxu0 0.0
      %3907 = vmatpush.msra.mxu0 0.0
      %3908 = vmatpush.msra.mxu0 0.0
      %3909 = vmatpush.msra.mxu0 0.0
      %3910 = vmatpush.msra.mxu0 0.0
      %v3911 = vand.u32 %v2617, 4294901760
      %3912 = vmatpush.msra.mxu0 %v3911
      %v3913 = vand.u32 %v2609, 4294901760
      %3914 = vmatpush.msra.mxu0 %v3913
      %v3915 = vand.u32 %v2601, 4294901760
      %3916 = vmatpush.msra.mxu0 %v3915
      %v3917 = vand.u32 %v2593, 4294901760
      %3918 = vmatpush.msra.mxu0 %v3917
      %v3919 = vand.u32 %v2585, 4294901760
      %3920 = vmatpush.msra.mxu0 %v3919
      %v3921 = vand.u32 %v2577, 4294901760
      %3922 = vmatpush.msra.mxu0 %v3921
      %v3923 = vand.u32 %v2569, 4294901760
      %3924 = vmatpush.msra.mxu0 %v3923
      %v3925 = vand.u32 %v2622, 4294901760
      %v3926 = vsub.f32 %v2622, %v3925
      %v3927 = vand.u32 %v3926, 4294901760
      %v3928 = vsub.f32 %v3926, %v3927
      %v3929 = vand.u32 %v3928, 4294901760
      %3930 = vmatmul.f32.gmra.mxu0 %v3929
      %v3931 = vpop.f32.mrf.mxu0
      %v3932 = vadd.f32 0.0, %v3931
      %v3933 = vand.u32 %v2625, 4294901760
      %v3934 = vsub.f32 %v2625, %v3933
      %v3935 = vand.u32 %v3934, 4294901760
      %v3936 = vsub.f32 %v3934, %v3935
      %v3937 = vand.u32 %v3936, 4294901760
      %3938 = vmatmul.f32.gmra.mxu0 %v3937
      %v3939 = vpop.f32.mrf.mxu0
      %v3940 = vadd.f32 0.0, %v3939
      %3941 = vdwg.mxu0
      %3942 = vmatpush.msra.mxu0 0.0
      %3943 = vmatpush.msra.mxu0 0.0
      %3944 = vmatpush.msra.mxu0 0.0
      %3945 = vmatpush.msra.mxu0 0.0
      %3946 = vmatpush.msra.mxu0 0.0
      %3947 = vmatpush.msra.mxu0 0.0
      %3948 = vmatpush.msra.mxu0 0.0
      %3949 = vmatpush.msra.mxu0 0.0
      %3950 = vmatpush.msra.mxu0 0.0
      %v3951 = vand.u32 %v2617, 4294901760
      %v3952 = vsub.f32 %v2617, %v3951
      %v3953 = vand.u32 %v3952, 4294901760
      %v3954 = vsub.f32 %v3952, %v3953
      %v3955 = vand.u32 %v3954, 4294901760
      %3956 = vmatpush.msra.mxu0 %v3955
      %v3957 = vand.u32 %v2609, 4294901760
      %v3958 = vsub.f32 %v2609, %v3957
      %v3959 = vand.u32 %v3958, 4294901760
      %v3960 = vsub.f32 %v3958, %v3959
      %v3961 = vand.u32 %v3960, 4294901760
      %3962 = vmatpush.msra.mxu0 %v3961
      %v3963 = vand.u32 %v2601, 4294901760
      %v3964 = vsub.f32 %v2601, %v3963
      %v3965 = vand.u32 %v3964, 4294901760
      %v3966 = vsub.f32 %v3964, %v3965
      %v3967 = vand.u32 %v3966, 4294901760
      %3968 = vmatpush.msra.mxu0 %v3967
      %v3969 = vand.u32 %v2593, 4294901760
      %v3970 = vsub.f32 %v2593, %v3969
      %v3971 = vand.u32 %v3970, 4294901760
      %v3972 = vsub.f32 %v3970, %v3971
      %v3973 = vand.u32 %v3972, 4294901760
      %3974 = vmatpush.msra.mxu0 %v3973
      %v3975 = vand.u32 %v2585, 4294901760
      %v3976 = vsub.f32 %v2585, %v3975
      %v3977 = vand.u32 %v3976, 4294901760
      %v3978 = vsub.f32 %v3976, %v3977
      %v3979 = vand.u32 %v3978, 4294901760
      %3980 = vmatpush.msra.mxu0 %v3979
      %v3981 = vand.u32 %v2577, 4294901760
      %v3982 = vsub.f32 %v2577, %v3981
      %v3983 = vand.u32 %v3982, 4294901760
      %v3984 = vsub.f32 %v3982, %v3983
      %v3985 = vand.u32 %v3984, 4294901760
      %3986 = vmatpush.msra.mxu0 %v3985
      %v3987 = vand.u32 %v2569, 4294901760
      %v3988 = vsub.f32 %v2569, %v3987
      %v3989 = vand.u32 %v3988, 4294901760
      %v3990 = vsub.f32 %v3988, %v3989
      %v3991 = vand.u32 %v3990, 4294901760
      %3992 = vmatpush.msra.mxu0 %v3991
      %v3993 = vand.u32 %v2622, 4294901760
      %3994 = vmatmul.f32.gmra.mxu0 %v3993
      %v3995 = vpop.f32.mrf.mxu0
      %v3996 = vadd.f32 %v3932, %v3995
      %v3997 = vand.u32 %v2625, 4294901760
      %3998 = vmatmul.f32.gmra.mxu0 %v3997
      %v3999 = vpop.f32.mrf.mxu0
      %v4000 = vadd.f32 %v3940, %v3999
      %4001 = vdwg.mxu0
      %4002 = vmatpush.msra.mxu0 0.0
      %4003 = vmatpush.msra.mxu0 0.0
      %4004 = vmatpush.msra.mxu0 0.0
      %4005 = vmatpush.msra.mxu0 0.0
      %4006 = vmatpush.msra.mxu0 0.0
      %4007 = vmatpush.msra.mxu0 0.0
      %4008 = vmatpush.msra.mxu0 0.0
      %4009 = vmatpush.msra.mxu0 0.0
      %4010 = vmatpush.msra.mxu0 0.0
      %v4011 = vand.u32 %v2617, 4294901760
      %v4012 = vsub.f32 %v2617, %v4011
      %4013 = vmatpush.msra.mxu0 %v4012
      %v4014 = vand.u32 %v2609, 4294901760
      %v4015 = vsub.f32 %v2609, %v4014
      %4016 = vmatpush.msra.mxu0 %v4015
      %v4017 = vand.u32 %v2601, 4294901760
      %v4018 = vsub.f32 %v2601, %v4017
      %4019 = vmatpush.msra.mxu0 %v4018
      %v4020 = vand.u32 %v2593, 4294901760
      %v4021 = vsub.f32 %v2593, %v4020
      %4022 = vmatpush.msra.mxu0 %v4021
      %v4023 = vand.u32 %v2585, 4294901760
      %v4024 = vsub.f32 %v2585, %v4023
      %4025 = vmatpush.msra.mxu0 %v4024
      %v4026 = vand.u32 %v2577, 4294901760
      %v4027 = vsub.f32 %v2577, %v4026
      %4028 = vmatpush.msra.mxu0 %v4027
      %v4029 = vand.u32 %v2569, 4294901760
      %v4030 = vsub.f32 %v2569, %v4029
      %4031 = vmatpush.msra.mxu0 %v4030
      %v4032 = vand.u32 %v2622, 4294901760
      %v4033 = vsub.f32 %v2622, %v4032
      %4034 = vmatmul.f32.gmra.mxu0 %v4033
      %v4035 = vpop.f32.mrf.mxu0
      %v4036 = vadd.f32 %v3996, %v4035
      %v4037 = vand.u32 %v2625, 4294901760
      %v4038 = vsub.f32 %v2625, %v4037
      %4039 = vmatmul.f32.gmra.mxu0 %v4038
      %v4040 = vpop.f32.mrf.mxu0
      %v4041 = vadd.f32 %v4000, %v4040
      %4042 = vdwg.mxu0
      %4043 = vmatpush.msra.mxu0 0.0
      %4044 = vmatpush.msra.mxu0 0.0
      %4045 = vmatpush.msra.mxu0 0.0
      %4046 = vmatpush.msra.mxu0 0.0
      %4047 = vmatpush.msra.mxu0 0.0
      %4048 = vmatpush.msra.mxu0 0.0
      %4049 = vmatpush.msra.mxu0 0.0
      %4050 = vmatpush.msra.mxu0 0.0
      %4051 = vmatpush.msra.mxu0 0.0
      %v4052 = vand.u32 %v2617, 4294901760
      %4053 = vmatpush.msra.mxu0 %v4052
      %v4054 = vand.u32 %v2609, 4294901760
      %4055 = vmatpush.msra.mxu0 %v4054
      %v4056 = vand.u32 %v2601, 4294901760
      %4057 = vmatpush.msra.mxu0 %v4056
      %v4058 = vand.u32 %v2593, 4294901760
      %4059 = vmatpush.msra.mxu0 %v4058
      %v4060 = vand.u32 %v2585, 4294901760
      %4061 = vmatpush.msra.mxu0 %v4060
      %v4062 = vand.u32 %v2577, 4294901760
      %4063 = vmatpush.msra.mxu0 %v4062
      %v4064 = vand.u32 %v2569, 4294901760
      %4065 = vmatpush.msra.mxu0 %v4064
      %v4066 = vand.u32 %v2622, 4294901760
      %v4067 = vsub.f32 %v2622, %v4066
      %v4068 = vand.u32 %v4067, 4294901760
      %4069 = vmatmul.f32.gmra.mxu0 %v4068
      %v4070 = vpop.f32.mrf.mxu0
      %v4071 = vadd.f32 %v4036, %v4070
      %v4072 = vand.u32 %v2625, 4294901760
      %v4073 = vsub.f32 %v2625, %v4072
      %v4074 = vand.u32 %v4073, 4294901760
      %4075 = vmatmul.f32.gmra.mxu0 %v4074
      %v4076 = vpop.f32.mrf.mxu0
      %v4077 = vadd.f32 %v4041, %v4076
      %4078 = vdwg.mxu0
      %4079 = vmatpush.msra.mxu0 0.0
      %4080 = vmatpush.msra.mxu0 0.0
      %4081 = vmatpush.msra.mxu0 0.0
      %4082 = vmatpush.msra.mxu0 0.0
      %4083 = vmatpush.msra.mxu0 0.0
      %4084 = vmatpush.msra.mxu0 0.0
      %4085 = vmatpush.msra.mxu0 0.0
      %4086 = vmatpush.msra.mxu0 0.0
      %4087 = vmatpush.msra.mxu0 0.0
      %v4088 = vand.u32 %v2617, 4294901760
      %v4089 = vsub.f32 %v2617, %v4088
      %v4090 = vand.u32 %v4089, 4294901760
      %4091 = vmatpush.msra.mxu0 %v4090
      %v4092 = vand.u32 %v2609, 4294901760
      %v4093 = vsub.f32 %v2609, %v4092
      %v4094 = vand.u32 %v4093, 4294901760
      %4095 = vmatpush.msra.mxu0 %v4094
      %v4096 = vand.u32 %v2601, 4294901760
      %v4097 = vsub.f32 %v2601, %v4096
      %v4098 = vand.u32 %v4097, 4294901760
      %4099 = vmatpush.msra.mxu0 %v4098
      %v4100 = vand.u32 %v2593, 4294901760
      %v4101 = vsub.f32 %v2593, %v4100
      %v4102 = vand.u32 %v4101, 4294901760
      %4103 = vmatpush.msra.mxu0 %v4102
      %v4104 = vand.u32 %v2585, 4294901760
      %v4105 = vsub.f32 %v2585, %v4104
      %v4106 = vand.u32 %v4105, 4294901760
      %4107 = vmatpush.msra.mxu0 %v4106
      %v4108 = vand.u32 %v2577, 4294901760
      %v4109 = vsub.f32 %v2577, %v4108
      %v4110 = vand.u32 %v4109, 4294901760
      %4111 = vmatpush.msra.mxu0 %v4110
      %v4112 = vand.u32 %v2569, 4294901760
      %v4113 = vsub.f32 %v2569, %v4112
      %v4114 = vand.u32 %v4113, 4294901760
      %4115 = vmatpush.msra.mxu0 %v4114
      %v4116 = vand.u32 %v2622, 4294901760
      %4117 = vmatmul.f32.gmra.mxu0 %v4116
      %v4118 = vpop.f32.mrf.mxu0
      %v4119 = vadd.f32 %v4071, %v4118
      %v4120 = vand.u32 %v2625, 4294901760
      %4121 = vmatmul.f32.gmra.mxu0 %v4120
      %v4122 = vpop.f32.mrf.mxu0
      %v4123 = vadd.f32 %v4077, %v4122
      %4124 = vdwg.mxu0
      %4125 = vmatpush.msra.mxu0 0.0
      %4126 = vmatpush.msra.mxu0 0.0
      %4127 = vmatpush.msra.mxu0 0.0
      %4128 = vmatpush.msra.mxu0 0.0
      %4129 = vmatpush.msra.mxu0 0.0
      %4130 = vmatpush.msra.mxu0 0.0
      %4131 = vmatpush.msra.mxu0 0.0
      %4132 = vmatpush.msra.mxu0 0.0
      %4133 = vmatpush.msra.mxu0 0.0
      %v4134 = vand.u32 %v2617, 4294901760
      %4135 = vmatpush.msra.mxu0 %v4134
      %v4136 = vand.u32 %v2609, 4294901760
      %4137 = vmatpush.msra.mxu0 %v4136
      %v4138 = vand.u32 %v2601, 4294901760
      %4139 = vmatpush.msra.mxu0 %v4138
      %v4140 = vand.u32 %v2593, 4294901760
      %4141 = vmatpush.msra.mxu0 %v4140
      %v4142 = vand.u32 %v2585, 4294901760
      %4143 = vmatpush.msra.mxu0 %v4142
      %v4144 = vand.u32 %v2577, 4294901760
      %4145 = vmatpush.msra.mxu0 %v4144
      %v4146 = vand.u32 %v2569, 4294901760
      %4147 = vmatpush.msra.mxu0 %v4146
      %v4148 = vand.u32 %v2622, 4294901760
      %4149 = vmatmul.f32.gmra.mxu0 %v4148
      %v4150 = vpop.f32.mrf.mxu0
      %v4151 = vadd.f32 %v4119, %v4150
      %v4152 = vand.u32 %v2625, 4294901760
      %4153 = vmatmul.f32.gmra.mxu0 %v4152
      %v4154 = vpop.f32.mrf.mxu0
      %v4155 = vadd.f32 %v4123, %v4154
      %4156 = vdwg.mxu0
      %4157 = vmatpush.msra.mxu0 0.0
      %4158 = vmatpush.msra.mxu0 0.0
      %4159 = vmatpush.msra.mxu0 0.0
      %4160 = vmatpush.msra.mxu0 0.0
      %4161 = vmatpush.msra.mxu0 0.0
      %4162 = vmatpush.msra.mxu0 0.0
      %4163 = vmatpush.msra.mxu0 0.0
      %4164 = vmatpush.msra.mxu0 0.0
      %4165 = vmatpush.msra.mxu0 0.0
      %v4166 = vand.u32 %v2618, 4294901760
      %4167 = vmatpush.msra.mxu0 %v4166
      %v4168 = vand.u32 %v2610, 4294901760
      %4169 = vmatpush.msra.mxu0 %v4168
      %v4170 = vand.u32 %v2602, 4294901760
      %4171 = vmatpush.msra.mxu0 %v4170
      %v4172 = vand.u32 %v2594, 4294901760
      %4173 = vmatpush.msra.mxu0 %v4172
      %v4174 = vand.u32 %v2586, 4294901760
      %4175 = vmatpush.msra.mxu0 %v4174
      %v4176 = vand.u32 %v2578, 4294901760
      %4177 = vmatpush.msra.mxu0 %v4176
      %v4178 = vand.u32 %v2570, 4294901760
      %4179 = vmatpush.msra.mxu0 %v4178
      %v4180 = vand.u32 %v2622, 4294901760
      %v4181 = vsub.f32 %v2622, %v4180
      %v4182 = vand.u32 %v4181, 4294901760
      %v4183 = vsub.f32 %v4181, %v4182
      %v4184 = vand.u32 %v4183, 4294901760
      %4185 = vmatmul.f32.gmra.mxu0 %v4184
      %v4186 = vpop.f32.mrf.mxu0
      %v4187 = vadd.f32 0.0, %v4186
      %v4188 = vand.u32 %v2625, 4294901760
      %v4189 = vsub.f32 %v2625, %v4188
      %v4190 = vand.u32 %v4189, 4294901760
      %v4191 = vsub.f32 %v4189, %v4190
      %v4192 = vand.u32 %v4191, 4294901760
      %4193 = vmatmul.f32.gmra.mxu0 %v4192
      %v4194 = vpop.f32.mrf.mxu0
      %v4195 = vadd.f32 0.0, %v4194
      %4196 = vdwg.mxu0
      %4197 = vmatpush.msra.mxu0 0.0
      %4198 = vmatpush.msra.mxu0 0.0
      %4199 = vmatpush.msra.mxu0 0.0
      %4200 = vmatpush.msra.mxu0 0.0
      %4201 = vmatpush.msra.mxu0 0.0
      %4202 = vmatpush.msra.mxu0 0.0
      %4203 = vmatpush.msra.mxu0 0.0
      %4204 = vmatpush.msra.mxu0 0.0
      %4205 = vmatpush.msra.mxu0 0.0
      %v4206 = vand.u32 %v2618, 4294901760
      %v4207 = vsub.f32 %v2618, %v4206
      %v4208 = vand.u32 %v4207, 4294901760
      %v4209 = vsub.f32 %v4207, %v4208
      %v4210 = vand.u32 %v4209, 4294901760
      %4211 = vmatpush.msra.mxu0 %v4210
      %v4212 = vand.u32 %v2610, 4294901760
      %v4213 = vsub.f32 %v2610, %v4212
      %v4214 = vand.u32 %v4213, 4294901760
      %v4215 = vsub.f32 %v4213, %v4214
      %v4216 = vand.u32 %v4215, 4294901760
      %4217 = vmatpush.msra.mxu0 %v4216
      %v4218 = vand.u32 %v2602, 4294901760
      %v4219 = vsub.f32 %v2602, %v4218
      %v4220 = vand.u32 %v4219, 4294901760
      %v4221 = vsub.f32 %v4219, %v4220
      %v4222 = vand.u32 %v4221, 4294901760
      %4223 = vmatpush.msra.mxu0 %v4222
      %v4224 = vand.u32 %v2594, 4294901760
      %v4225 = vsub.f32 %v2594, %v4224
      %v4226 = vand.u32 %v4225, 4294901760
      %v4227 = vsub.f32 %v4225, %v4226
      %v4228 = vand.u32 %v4227, 4294901760
      %4229 = vmatpush.msra.mxu0 %v4228
      %v4230 = vand.u32 %v2586, 4294901760
      %v4231 = vsub.f32 %v2586, %v4230
      %v4232 = vand.u32 %v4231, 4294901760
      %v4233 = vsub.f32 %v4231, %v4232
      %v4234 = vand.u32 %v4233, 4294901760
      %4235 = vmatpush.msra.mxu0 %v4234
      %v4236 = vand.u32 %v2578, 4294901760
      %v4237 = vsub.f32 %v2578, %v4236
      %v4238 = vand.u32 %v4237, 4294901760
      %v4239 = vsub.f32 %v4237, %v4238
      %v4240 = vand.u32 %v4239, 4294901760
      %4241 = vmatpush.msra.mxu0 %v4240
      %v4242 = vand.u32 %v2570, 4294901760
      %v4243 = vsub.f32 %v2570, %v4242
      %v4244 = vand.u32 %v4243, 4294901760
      %v4245 = vsub.f32 %v4243, %v4244
      %v4246 = vand.u32 %v4245, 4294901760
      %4247 = vmatpush.msra.mxu0 %v4246
      %v4248 = vand.u32 %v2622, 4294901760
      %4249 = vmatmul.f32.gmra.mxu0 %v4248
      %v4250 = vpop.f32.mrf.mxu0
      %v4251 = vadd.f32 %v4187, %v4250
      %v4252 = vand.u32 %v2625, 4294901760
      %4253 = vmatmul.f32.gmra.mxu0 %v4252
      %v4254 = vpop.f32.mrf.mxu0
      %v4255 = vadd.f32 %v4195, %v4254
      %4256 = vdwg.mxu0
      %4257 = vmatpush.msra.mxu0 0.0
      %4258 = vmatpush.msra.mxu0 0.0
      %4259 = vmatpush.msra.mxu0 0.0
      %4260 = vmatpush.msra.mxu0 0.0
      %4261 = vmatpush.msra.mxu0 0.0
      %4262 = vmatpush.msra.mxu0 0.0
      %4263 = vmatpush.msra.mxu0 0.0
      %4264 = vmatpush.msra.mxu0 0.0
      %4265 = vmatpush.msra.mxu0 0.0
      %v4266 = vand.u32 %v2618, 4294901760
      %v4267 = vsub.f32 %v2618, %v4266
      %4268 = vmatpush.msra.mxu0 %v4267
      %v4269 = vand.u32 %v2610, 4294901760
      %v4270 = vsub.f32 %v2610, %v4269
      %4271 = vmatpush.msra.mxu0 %v4270
      %v4272 = vand.u32 %v2602, 4294901760
      %v4273 = vsub.f32 %v2602, %v4272
      %4274 = vmatpush.msra.mxu0 %v4273
      %v4275 = vand.u32 %v2594, 4294901760
      %v4276 = vsub.f32 %v2594, %v4275
      %4277 = vmatpush.msra.mxu0 %v4276
      %v4278 = vand.u32 %v2586, 4294901760
      %v4279 = vsub.f32 %v2586, %v4278
      %4280 = vmatpush.msra.mxu0 %v4279
      %v4281 = vand.u32 %v2578, 4294901760
      %v4282 = vsub.f32 %v2578, %v4281
      %4283 = vmatpush.msra.mxu0 %v4282
      %v4284 = vand.u32 %v2570, 4294901760
      %v4285 = vsub.f32 %v2570, %v4284
      %4286 = vmatpush.msra.mxu0 %v4285
      %v4287 = vand.u32 %v2622, 4294901760
      %v4288 = vsub.f32 %v2622, %v4287
      %4289 = vmatmul.f32.gmra.mxu0 %v4288
      %v4290 = vpop.f32.mrf.mxu0
      %v4291 = vadd.f32 %v4251, %v4290
      %v4292 = vand.u32 %v2625, 4294901760
      %v4293 = vsub.f32 %v2625, %v4292
      %4294 = vmatmul.f32.gmra.mxu0 %v4293
      %v4295 = vpop.f32.mrf.mxu0
      %v4296 = vadd.f32 %v4255, %v4295
      %4297 = vdwg.mxu0
      %4298 = vmatpush.msra.mxu0 0.0
      %4299 = vmatpush.msra.mxu0 0.0
      %4300 = vmatpush.msra.mxu0 0.0
      %4301 = vmatpush.msra.mxu0 0.0
      %4302 = vmatpush.msra.mxu0 0.0
      %4303 = vmatpush.msra.mxu0 0.0
      %4304 = vmatpush.msra.mxu0 0.0
      %4305 = vmatpush.msra.mxu0 0.0
      %4306 = vmatpush.msra.mxu0 0.0
      %v4307 = vand.u32 %v2618, 4294901760
      %4308 = vmatpush.msra.mxu0 %v4307
      %v4309 = vand.u32 %v2610, 4294901760
      %4310 = vmatpush.msra.mxu0 %v4309
      %v4311 = vand.u32 %v2602, 4294901760
      %4312 = vmatpush.msra.mxu0 %v4311
      %v4313 = vand.u32 %v2594, 4294901760
      %4314 = vmatpush.msra.mxu0 %v4313
      %v4315 = vand.u32 %v2586, 4294901760
      %4316 = vmatpush.msra.mxu0 %v4315
      %v4317 = vand.u32 %v2578, 4294901760
      %4318 = vmatpush.msra.mxu0 %v4317
      %v4319 = vand.u32 %v2570, 4294901760
      %4320 = vmatpush.msra.mxu0 %v4319
      %v4321 = vand.u32 %v2622, 4294901760
      %v4322 = vsub.f32 %v2622, %v4321
      %v4323 = vand.u32 %v4322, 4294901760
      %4324 = vmatmul.f32.gmra.mxu0 %v4323
      %v4325 = vpop.f32.mrf.mxu0
      %v4326 = vadd.f32 %v4291, %v4325
      %v4327 = vand.u32 %v2625, 4294901760
      %v4328 = vsub.f32 %v2625, %v4327
      %v4329 = vand.u32 %v4328, 4294901760
      %4330 = vmatmul.f32.gmra.mxu0 %v4329
      %v4331 = vpop.f32.mrf.mxu0
      %v4332 = vadd.f32 %v4296, %v4331
      %4333 = vdwg.mxu0
      %4334 = vmatpush.msra.mxu0 0.0
      %4335 = vmatpush.msra.mxu0 0.0
      %4336 = vmatpush.msra.mxu0 0.0
      %4337 = vmatpush.msra.mxu0 0.0
      %4338 = vmatpush.msra.mxu0 0.0
      %4339 = vmatpush.msra.mxu0 0.0
      %4340 = vmatpush.msra.mxu0 0.0
      %4341 = vmatpush.msra.mxu0 0.0
      %4342 = vmatpush.msra.mxu0 0.0
      %v4343 = vand.u32 %v2618, 4294901760
      %v4344 = vsub.f32 %v2618, %v4343
      %v4345 = vand.u32 %v4344, 4294901760
      %4346 = vmatpush.msra.mxu0 %v4345
      %v4347 = vand.u32 %v2610, 4294901760
      %v4348 = vsub.f32 %v2610, %v4347
      %v4349 = vand.u32 %v4348, 4294901760
      %4350 = vmatpush.msra.mxu0 %v4349
      %v4351 = vand.u32 %v2602, 4294901760
      %v4352 = vsub.f32 %v2602, %v4351
      %v4353 = vand.u32 %v4352, 4294901760
      %4354 = vmatpush.msra.mxu0 %v4353
      %v4355 = vand.u32 %v2594, 4294901760
      %v4356 = vsub.f32 %v2594, %v4355
      %v4357 = vand.u32 %v4356, 4294901760
      %4358 = vmatpush.msra.mxu0 %v4357
      %v4359 = vand.u32 %v2586, 4294901760
      %v4360 = vsub.f32 %v2586, %v4359
      %v4361 = vand.u32 %v4360, 4294901760
      %4362 = vmatpush.msra.mxu0 %v4361
      %v4363 = vand.u32 %v2578, 4294901760
      %v4364 = vsub.f32 %v2578, %v4363
      %v4365 = vand.u32 %v4364, 4294901760
      %4366 = vmatpush.msra.mxu0 %v4365
      %v4367 = vand.u32 %v2570, 4294901760
      %v4368 = vsub.f32 %v2570, %v4367
      %v4369 = vand.u32 %v4368, 4294901760
      %4370 = vmatpush.msra.mxu0 %v4369
      %v4371 = vand.u32 %v2622, 4294901760
      %4372 = vmatmul.f32.gmra.mxu0 %v4371
      %v4373 = vpop.f32.mrf.mxu0
      %v4374 = vadd.f32 %v4326, %v4373
      %v4375 = vand.u32 %v2625, 4294901760
      %4376 = vmatmul.f32.gmra.mxu0 %v4375
      %v4377 = vpop.f32.mrf.mxu0
      %v4378 = vadd.f32 %v4332, %v4377
      %4379 = vdwg.mxu0
      %4380 = vmatpush.msra.mxu0 0.0
      %4381 = vmatpush.msra.mxu0 0.0
      %4382 = vmatpush.msra.mxu0 0.0
      %4383 = vmatpush.msra.mxu0 0.0
      %4384 = vmatpush.msra.mxu0 0.0
      %4385 = vmatpush.msra.mxu0 0.0
      %4386 = vmatpush.msra.mxu0 0.0
      %4387 = vmatpush.msra.mxu0 0.0
      %4388 = vmatpush.msra.mxu0 0.0
      %v4389 = vand.u32 %v2618, 4294901760
      %4390 = vmatpush.msra.mxu0 %v4389
      %v4391 = vand.u32 %v2610, 4294901760
      %4392 = vmatpush.msra.mxu0 %v4391
      %v4393 = vand.u32 %v2602, 4294901760
      %4394 = vmatpush.msra.mxu0 %v4393
      %v4395 = vand.u32 %v2594, 4294901760
      %4396 = vmatpush.msra.mxu0 %v4395
      %v4397 = vand.u32 %v2586, 4294901760
      %4398 = vmatpush.msra.mxu0 %v4397
      %v4399 = vand.u32 %v2578, 4294901760
      %4400 = vmatpush.msra.mxu0 %v4399
      %v4401 = vand.u32 %v2570, 4294901760
      %4402 = vmatpush.msra.mxu0 %v4401
      %v4403 = vand.u32 %v2622, 4294901760
      %4404 = vmatmul.f32.gmra.mxu0 %v4403
      %v4405 = vpop.f32.mrf.mxu0
      %v4406 = vadd.f32 %v4374, %v4405
      %v4407 = vand.u32 %v2625, 4294901760
      %4408 = vmatmul.f32.gmra.mxu0 %v4407
      %v4409 = vpop.f32.mrf.mxu0
      %v4410 = vadd.f32 %v4378, %v4409
      %4411 = vdwg.mxu0
      %4412 = vmatpush.msra.mxu0 0.0
      %4413 = vmatpush.msra.mxu0 0.0
      %4414 = vmatpush.msra.mxu0 0.0
      %4415 = vmatpush.msra.mxu0 0.0
      %4416 = vmatpush.msra.mxu0 0.0
      %4417 = vmatpush.msra.mxu0 0.0
      %4418 = vmatpush.msra.mxu0 0.0
      %4419 = vmatpush.msra.mxu0 0.0
      %4420 = vmatpush.msra.mxu0 0.0
      %v4421 = vand.u32 %v2619, 4294901760
      %4422 = vmatpush.msra.mxu0 %v4421
      %v4423 = vand.u32 %v2611, 4294901760
      %4424 = vmatpush.msra.mxu0 %v4423
      %v4425 = vand.u32 %v2603, 4294901760
      %4426 = vmatpush.msra.mxu0 %v4425
      %v4427 = vand.u32 %v2595, 4294901760
      %4428 = vmatpush.msra.mxu0 %v4427
      %v4429 = vand.u32 %v2587, 4294901760
      %4430 = vmatpush.msra.mxu0 %v4429
      %v4431 = vand.u32 %v2579, 4294901760
      %4432 = vmatpush.msra.mxu0 %v4431
      %v4433 = vand.u32 %v2571, 4294901760
      %4434 = vmatpush.msra.mxu0 %v4433
      %v4435 = vand.u32 %v2622, 4294901760
      %v4436 = vsub.f32 %v2622, %v4435
      %v4437 = vand.u32 %v4436, 4294901760
      %v4438 = vsub.f32 %v4436, %v4437
      %v4439 = vand.u32 %v4438, 4294901760
      %4440 = vmatmul.f32.gmra.mxu0 %v4439
      %v4441 = vpop.f32.mrf.mxu0
      %v4442 = vadd.f32 0.0, %v4441
      %v4443 = vand.u32 %v2625, 4294901760
      %v4444 = vsub.f32 %v2625, %v4443
      %v4445 = vand.u32 %v4444, 4294901760
      %v4446 = vsub.f32 %v4444, %v4445
      %v4447 = vand.u32 %v4446, 4294901760
      %4448 = vmatmul.f32.gmra.mxu0 %v4447
      %v4449 = vpop.f32.mrf.mxu0
      %v4450 = vadd.f32 0.0, %v4449
      %4451 = vdwg.mxu0
      %4452 = vmatpush.msra.mxu0 0.0
      %4453 = vmatpush.msra.mxu0 0.0
      %4454 = vmatpush.msra.mxu0 0.0
      %4455 = vmatpush.msra.mxu0 0.0
      %4456 = vmatpush.msra.mxu0 0.0
      %4457 = vmatpush.msra.mxu0 0.0
      %4458 = vmatpush.msra.mxu0 0.0
      %4459 = vmatpush.msra.mxu0 0.0
      %4460 = vmatpush.msra.mxu0 0.0
      %v4461 = vand.u32 %v2619, 4294901760
      %v4462 = vsub.f32 %v2619, %v4461
      %v4463 = vand.u32 %v4462, 4294901760
      %v4464 = vsub.f32 %v4462, %v4463
      %v4465 = vand.u32 %v4464, 4294901760
      %4466 = vmatpush.msra.mxu0 %v4465
      %v4467 = vand.u32 %v2611, 4294901760
      %v4468 = vsub.f32 %v2611, %v4467
      %v4469 = vand.u32 %v4468, 4294901760
      %v4470 = vsub.f32 %v4468, %v4469
      %v4471 = vand.u32 %v4470, 4294901760
      %4472 = vmatpush.msra.mxu0 %v4471
      %v4473 = vand.u32 %v2603, 4294901760
      %v4474 = vsub.f32 %v2603, %v4473
      %v4475 = vand.u32 %v4474, 4294901760
      %v4476 = vsub.f32 %v4474, %v4475
      %v4477 = vand.u32 %v4476, 4294901760
      %4478 = vmatpush.msra.mxu0 %v4477
      %v4479 = vand.u32 %v2595, 4294901760
      %v4480 = vsub.f32 %v2595, %v4479
      %v4481 = vand.u32 %v4480, 4294901760
      %v4482 = vsub.f32 %v4480, %v4481
      %v4483 = vand.u32 %v4482, 4294901760
      %4484 = vmatpush.msra.mxu0 %v4483
      %v4485 = vand.u32 %v2587, 4294901760
      %v4486 = vsub.f32 %v2587, %v4485
      %v4487 = vand.u32 %v4486, 4294901760
      %v4488 = vsub.f32 %v4486, %v4487
      %v4489 = vand.u32 %v4488, 4294901760
      %4490 = vmatpush.msra.mxu0 %v4489
      %v4491 = vand.u32 %v2579, 4294901760
      %v4492 = vsub.f32 %v2579, %v4491
      %v4493 = vand.u32 %v4492, 4294901760
      %v4494 = vsub.f32 %v4492, %v4493
      %v4495 = vand.u32 %v4494, 4294901760
      %4496 = vmatpush.msra.mxu0 %v4495
      %v4497 = vand.u32 %v2571, 4294901760
      %v4498 = vsub.f32 %v2571, %v4497
      %v4499 = vand.u32 %v4498, 4294901760
      %v4500 = vsub.f32 %v4498, %v4499
      %v4501 = vand.u32 %v4500, 4294901760
      %4502 = vmatpush.msra.mxu0 %v4501
      %v4503 = vand.u32 %v2622, 4294901760
      %4504 = vmatmul.f32.gmra.mxu0 %v4503
      %v4505 = vpop.f32.mrf.mxu0
      %v4506 = vadd.f32 %v4442, %v4505
      %v4507 = vand.u32 %v2625, 4294901760
      %4508 = vmatmul.f32.gmra.mxu0 %v4507
      %v4509 = vpop.f32.mrf.mxu0
      %v4510 = vadd.f32 %v4450, %v4509
      %4511 = vdwg.mxu0
      %4512 = vmatpush.msra.mxu0 0.0
      %4513 = vmatpush.msra.mxu0 0.0
      %4514 = vmatpush.msra.mxu0 0.0
      %4515 = vmatpush.msra.mxu0 0.0
      %4516 = vmatpush.msra.mxu0 0.0
      %4517 = vmatpush.msra.mxu0 0.0
      %4518 = vmatpush.msra.mxu0 0.0
      %4519 = vmatpush.msra.mxu0 0.0
      %4520 = vmatpush.msra.mxu0 0.0
      %v4521 = vand.u32 %v2619, 4294901760
      %v4522 = vsub.f32 %v2619, %v4521
      %4523 = vmatpush.msra.mxu0 %v4522
      %v4524 = vand.u32 %v2611, 4294901760
      %v4525 = vsub.f32 %v2611, %v4524
      %4526 = vmatpush.msra.mxu0 %v4525
      %v4527 = vand.u32 %v2603, 4294901760
      %v4528 = vsub.f32 %v2603, %v4527
      %4529 = vmatpush.msra.mxu0 %v4528
      %v4530 = vand.u32 %v2595, 4294901760
      %v4531 = vsub.f32 %v2595, %v4530
      %4532 = vmatpush.msra.mxu0 %v4531
      %v4533 = vand.u32 %v2587, 4294901760
      %v4534 = vsub.f32 %v2587, %v4533
      %4535 = vmatpush.msra.mxu0 %v4534
      %v4536 = vand.u32 %v2579, 4294901760
      %v4537 = vsub.f32 %v2579, %v4536
      %4538 = vmatpush.msra.mxu0 %v4537
      %v4539 = vand.u32 %v2571, 4294901760
      %v4540 = vsub.f32 %v2571, %v4539
      %4541 = vmatpush.msra.mxu0 %v4540
      %v4542 = vand.u32 %v2622, 4294901760
      %v4543 = vsub.f32 %v2622, %v4542
      %4544 = vmatmul.f32.gmra.mxu0 %v4543
      %v4545 = vpop.f32.mrf.mxu0
      %v4546 = vadd.f32 %v4506, %v4545
      %v4547 = vand.u32 %v2625, 4294901760
      %v4548 = vsub.f32 %v2625, %v4547
      %4549 = vmatmul.f32.gmra.mxu0 %v4548
      %v4550 = vpop.f32.mrf.mxu0
      %v4551 = vadd.f32 %v4510, %v4550
      %4552 = vdwg.mxu0
      %4553 = vmatpush.msra.mxu0 0.0
      %4554 = vmatpush.msra.mxu0 0.0
      %4555 = vmatpush.msra.mxu0 0.0
      %4556 = vmatpush.msra.mxu0 0.0
      %4557 = vmatpush.msra.mxu0 0.0
      %4558 = vmatpush.msra.mxu0 0.0
      %4559 = vmatpush.msra.mxu0 0.0
      %4560 = vmatpush.msra.mxu0 0.0
      %4561 = vmatpush.msra.mxu0 0.0
      %v4562 = vand.u32 %v2619, 4294901760
      %4563 = vmatpush.msra.mxu0 %v4562
      %v4564 = vand.u32 %v2611, 4294901760
      %4565 = vmatpush.msra.mxu0 %v4564
      %v4566 = vand.u32 %v2603, 4294901760
      %4567 = vmatpush.msra.mxu0 %v4566
      %v4568 = vand.u32 %v2595, 4294901760
      %4569 = vmatpush.msra.mxu0 %v4568
      %v4570 = vand.u32 %v2587, 4294901760
      %4571 = vmatpush.msra.mxu0 %v4570
      %v4572 = vand.u32 %v2579, 4294901760
      %4573 = vmatpush.msra.mxu0 %v4572
      %v4574 = vand.u32 %v2571, 4294901760
      %4575 = vmatpush.msra.mxu0 %v4574
      %v4576 = vand.u32 %v2622, 4294901760
      %v4577 = vsub.f32 %v2622, %v4576
      %v4578 = vand.u32 %v4577, 4294901760
      %4579 = vmatmul.f32.gmra.mxu0 %v4578
      %v4580 = vpop.f32.mrf.mxu0
      %v4581 = vadd.f32 %v4546, %v4580
      %v4582 = vand.u32 %v2625, 4294901760
      %v4583 = vsub.f32 %v2625, %v4582
      %v4584 = vand.u32 %v4583, 4294901760
      %4585 = vmatmul.f32.gmra.mxu0 %v4584
      %v4586 = vpop.f32.mrf.mxu0
      %v4587 = vadd.f32 %v4551, %v4586
      %4588 = vdwg.mxu0
      %4589 = vmatpush.msra.mxu0 0.0
      %4590 = vmatpush.msra.mxu0 0.0
      %4591 = vmatpush.msra.mxu0 0.0
      %4592 = vmatpush.msra.mxu0 0.0
      %4593 = vmatpush.msra.mxu0 0.0
      %4594 = vmatpush.msra.mxu0 0.0
      %4595 = vmatpush.msra.mxu0 0.0
      %4596 = vmatpush.msra.mxu0 0.0
      %4597 = vmatpush.msra.mxu0 0.0
      %v4598 = vand.u32 %v2619, 4294901760
      %v4599 = vsub.f32 %v2619, %v4598
      %v4600 = vand.u32 %v4599, 4294901760
      %4601 = vmatpush.msra.mxu0 %v4600
      %v4602 = vand.u32 %v2611, 4294901760
      %v4603 = vsub.f32 %v2611, %v4602
      %v4604 = vand.u32 %v4603, 4294901760
      %4605 = vmatpush.msra.mxu0 %v4604
      %v4606 = vand.u32 %v2603, 4294901760
      %v4607 = vsub.f32 %v2603, %v4606
      %v4608 = vand.u32 %v4607, 4294901760
      %4609 = vmatpush.msra.mxu0 %v4608
      %v4610 = vand.u32 %v2595, 4294901760
      %v4611 = vsub.f32 %v2595, %v4610
      %v4612 = vand.u32 %v4611, 4294901760
      %4613 = vmatpush.msra.mxu0 %v4612
      %v4614 = vand.u32 %v2587, 4294901760
      %v4615 = vsub.f32 %v2587, %v4614
      %v4616 = vand.u32 %v4615, 4294901760
      %4617 = vmatpush.msra.mxu0 %v4616
      %v4618 = vand.u32 %v2579, 4294901760
      %v4619 = vsub.f32 %v2579, %v4618
      %v4620 = vand.u32 %v4619, 4294901760
      %4621 = vmatpush.msra.mxu0 %v4620
      %v4622 = vand.u32 %v2571, 4294901760
      %v4623 = vsub.f32 %v2571, %v4622
      %v4624 = vand.u32 %v4623, 4294901760
      %4625 = vmatpush.msra.mxu0 %v4624
      %v4626 = vand.u32 %v2622, 4294901760
      %4627 = vmatmul.f32.gmra.mxu0 %v4626
      %v4628 = vpop.f32.mrf.mxu0
      %v4629 = vadd.f32 %v4581, %v4628
      %v4630 = vand.u32 %v2625, 4294901760
      %4631 = vmatmul.f32.gmra.mxu0 %v4630
      %v4632 = vpop.f32.mrf.mxu0
      %v4633 = vadd.f32 %v4587, %v4632
      %4634 = vdwg.mxu0
      %4635 = vmatpush.msra.mxu0 0.0
      %4636 = vmatpush.msra.mxu0 0.0
      %4637 = vmatpush.msra.mxu0 0.0
      %4638 = vmatpush.msra.mxu0 0.0
      %4639 = vmatpush.msra.mxu0 0.0
      %4640 = vmatpush.msra.mxu0 0.0
      %4641 = vmatpush.msra.mxu0 0.0
      %4642 = vmatpush.msra.mxu0 0.0
      %4643 = vmatpush.msra.mxu0 0.0
      %v4644 = vand.u32 %v2619, 4294901760
      %4645 = vmatpush.msra.mxu0 %v4644
      %v4646 = vand.u32 %v2611, 4294901760
      %4647 = vmatpush.msra.mxu0 %v4646
      %v4648 = vand.u32 %v2603, 4294901760
      %4649 = vmatpush.msra.mxu0 %v4648
      %v4650 = vand.u32 %v2595, 4294901760
      %4651 = vmatpush.msra.mxu0 %v4650
      %v4652 = vand.u32 %v2587, 4294901760
      %4653 = vmatpush.msra.mxu0 %v4652
      %v4654 = vand.u32 %v2579, 4294901760
      %4655 = vmatpush.msra.mxu0 %v4654
      %v4656 = vand.u32 %v2571, 4294901760
      %4657 = vmatpush.msra.mxu0 %v4656
      %v4658 = vand.u32 %v2622, 4294901760
      %4659 = vmatmul.f32.gmra.mxu0 %v4658
      %v4660 = vpop.f32.mrf.mxu0
      %v4661 = vadd.f32 %v4629, %v4660
      %v4662 = vand.u32 %v2625, 4294901760
      %4663 = vmatmul.f32.gmra.mxu0 %v4662
      %v4664 = vpop.f32.mrf.mxu0
      %v4665 = vadd.f32 %v4633, %v4664
      %4666 = vdwg.mxu0
      %4667 = vst [vmem:[%s408] sm:$0xff] %v2876
      %4668 = vst [vmem:[%s408 + $0x8] sm:$0xff] %v3131
      %4669 = vst [vmem:[%s408 + $0x10] sm:$0xff] %v3386
      %4670 = vst [vmem:[%s408 + $0x18] sm:$0xff] %v3641
      %4671 = vst [vmem:[%s408 + $0x20] sm:$0xff] %v3896
      %4672 = vst [vmem:[%s408 + $0x28] sm:$0xff] %v4151
      %4673 = vst [vmem:[%s408 + $0x30] sm:$0xff] %v4406
      %4674 = vst [vmem:[%s408 + $0x38] sm:$0xff] %v4661
      %4675 = vst [vmem:[%s408 + $0x40] sm:$0xff] %v2880
      %4676 = vst [vmem:[%s408 + $0x48] sm:$0xff] %v3135
      %4677 = vst [vmem:[%s408 + $0x50] sm:$0xff] %v3390
      %4678 = vst [vmem:[%s408 + $0x58] sm:$0xff] %v3645
      %4679 = vst [vmem:[%s408 + $0x60] sm:$0xff] %v3900
      %4680 = vst [vmem:[%s408 + $0x68] sm:$0xff] %v4155
      %4681 = vst [vmem:[%s408 + $0x70] sm:$0xff] %v4410
      %4682 = vst [vmem:[%s408 + $0x78] sm:$0xff] %v4665
      %v4683 = vadd.f32 %v2876, %v3131
      %v4684 = vadd.f32 %v4683, %v3386
      %v4685 = vadd.f32 %v4684, %v3641
      %v4686 = vadd.f32 %v4685, %v3896
      %v4687 = vadd.f32 %v4686, %v4151
      %v4688 = vadd.f32 %v4687, %v4406
      %v4689 = vadd.f32 %v4688, %v4661
      %4690 = vadd.xlane.f32.xlu0 %v4689
      %v4691 = vpop.xlane.xlu0 %4690
      %v4692 = vadd.f32 %v2880, %v3135
      %v4693 = vadd.f32 %v4692, %v3390
      %v4694 = vadd.f32 %v4693, %v3645
      %v4695 = vadd.f32 %v4694, %v3900
      %v4696 = vadd.f32 %v4695, %v4155
      %v4697 = vadd.f32 %v4696, %v4410
      %v4698 = vadd.f32 %v4697, %v4665
      %4699 = vadd.xlane.f32.xlu0 %v4698
      %v4700 = vpop.xlane.xlu0 %4699
      %4701 = vst.msk [vmem:[%s418] sm:$0xff] %vm1106, %v4691
      %4702 = vst.msk [vmem:[%s418 + $0x8] sm:$0xff] %vm1106, %v4700
      %v4703 = vmul.f32 %v2876, %v2876
      %v4704 = vmul.f32 %v3131, %v3131
      %v4705 = vmul.f32 %v3386, %v3386
      %v4706 = vmul.f32 %v3641, %v3641
      %v4707 = vmul.f32 %v3896, %v3896
      %v4708 = vmul.f32 %v4151, %v4151
      %v4709 = vmul.f32 %v4406, %v4406
      %v4710 = vmul.f32 %v4661, %v4661
      %v4711 = vmul.f32 %v2880, %v2880
      %v4712 = vmul.f32 %v3135, %v3135
      %v4713 = vmul.f32 %v3390, %v3390
      %v4714 = vmul.f32 %v3645, %v3645
      %v4715 = vmul.f32 %v3900, %v3900
      %v4716 = vmul.f32 %v4155, %v4155
      %v4717 = vmul.f32 %v4410, %v4410
      %v4718 = vmul.f32 %v4665, %v4665
      %v4719 = vadd.f32 %v4703, %v4704
      %v4720 = vadd.f32 %v4719, %v4705
      %v4721 = vadd.f32 %v4720, %v4706
      %v4722 = vadd.f32 %v4721, %v4707
      %v4723 = vadd.f32 %v4722, %v4708
      %v4724 = vadd.f32 %v4723, %v4709
      %v4725 = vadd.f32 %v4724, %v4710
      %4726 = vadd.xlane.f32.xlu0 %v4725
      %v4727 = vpop.xlane.xlu0 %4726
      %v4728 = vadd.f32 %v4711, %v4712
      %v4729 = vadd.f32 %v4728, %v4713
      %v4730 = vadd.f32 %v4729, %v4714
      %v4731 = vadd.f32 %v4730, %v4715
      %v4732 = vadd.f32 %v4731, %v4716
      %v4733 = vadd.f32 %v4732, %v4717
      %v4734 = vadd.f32 %v4733, %v4718
      %4735 = vadd.xlane.f32.xlu0 %v4734
      %v4736 = vpop.xlane.xlu0 %4735
      %4737 = vst.msk [vmem:[%s423] sm:$0xff] %vm1106, %v4727
      %4738 = vst.msk [vmem:[%s423 + $0x8] sm:$0xff] %vm1106, %v4736
      %v4739 = vld [vmem:[%s403] sm:$0xff]
      %v4740 = vld [vmem:[%s403 + $0x8] sm:$0xff]
      %v4741 = vld [vmem:[%s3] sm:$0xff]
      %v4742 = vld [vmem:[%s3 + $0x8] sm:$0xff]
      %v4743 = vld [vmem:[%s3 + $0x10] sm:$0xff]
      %v4744 = vld [vmem:[%s3 + $0x18] sm:$0xff]
      %v4745 = vld [vmem:[%s3 + $0x20] sm:$0xff]
      %v4746 = vld [vmem:[%s3 + $0x28] sm:$0xff]
      %v4747 = vld [vmem:[%s3 + $0x30] sm:$0xff]
      %v4748 = vld [vmem:[%s3 + $0x38] sm:$0xff]
      %v4749 = vld [vmem:[%s4] sm:$0x1]
      %v4751 = vperm.slane %v4749, 0
      %v4754 = vsel %vm713, %v4739, 0
      %v4757 = vsel %vm713, %v4740, 0
      %4759 = vmatpush.msra.mxu0 0.0
      %4760 = vmatpush.msra.mxu0 0.0
      %4761 = vmatpush.msra.mxu0 0.0
      %4762 = vmatpush.msra.mxu0 0.0
      %4763 = vmatpush.msra.mxu0 0.0
      %4764 = vmatpush.msra.mxu0 0.0
      %4765 = vmatpush.msra.mxu0 0.0
      %4766 = vmatpush.msra.mxu0 0.0
      %v4767 = vand.u32 %v4748, 4294901760
      %4768 = vmatpush.msra.mxu0 %v4767
      %v4769 = vand.u32 %v4747, 4294901760
      %4770 = vmatpush.msra.mxu0 %v4769
      %v4771 = vand.u32 %v4746, 4294901760
      %4772 = vmatpush.msra.mxu0 %v4771
      %v4773 = vand.u32 %v4745, 4294901760
      %4774 = vmatpush.msra.mxu0 %v4773
      %v4775 = vand.u32 %v4744, 4294901760
      %4776 = vmatpush.msra.mxu0 %v4775
      %v4777 = vand.u32 %v4743, 4294901760
      %4778 = vmatpush.msra.mxu0 %v4777
      %v4779 = vand.u32 %v4742, 4294901760
      %4780 = vmatpush.msra.mxu0 %v4779
      %v4781 = vand.u32 %v4741, 4294901760
      %4782 = vmatpush.msra.mxu0 %v4781
      %v4783 = vand.u32 %v4754, 4294901760
      %v4784 = vsub.f32 %v4754, %v4783
      %v4785 = vand.u32 %v4784, 4294901760
      %v4786 = vsub.f32 %v4784, %v4785
      %v4787 = vand.u32 %v4786, 4294901760
      %4788 = vmatmul.f32.gmra.mxu0 %v4787
      %v4789 = vpop.f32.mrf.mxu0
      %v4790 = vadd.f32 %v4751, %v4789
      %v4791 = vand.u32 %v4757, 4294901760
      %v4792 = vsub.f32 %v4757, %v4791
      %v4793 = vand.u32 %v4792, 4294901760
      %v4794 = vsub.f32 %v4792, %v4793
      %v4795 = vand.u32 %v4794, 4294901760
      %4796 = vmatmul.f32.gmra.mxu0 %v4795
      %v4797 = vpop.f32.mrf.mxu0
      %v4798 = vadd.f32 %v4751, %v4797
      %4799 = vdwg.mxu0
      %4800 = vmatpush.msra.mxu0 0.0
      %4801 = vmatpush.msra.mxu0 0.0
      %4802 = vmatpush.msra.mxu0 0.0
      %4803 = vmatpush.msra.mxu0 0.0
      %4804 = vmatpush.msra.mxu0 0.0
      %4805 = vmatpush.msra.mxu0 0.0
      %4806 = vmatpush.msra.mxu0 0.0
      %4807 = vmatpush.msra.mxu0 0.0
      %v4808 = vand.u32 %v4748, 4294901760
      %v4809 = vsub.f32 %v4748, %v4808
      %v4810 = vand.u32 %v4809, 4294901760
      %v4811 = vsub.f32 %v4809, %v4810
      %v4812 = vand.u32 %v4811, 4294901760
      %4813 = vmatpush.msra.mxu0 %v4812
      %v4814 = vand.u32 %v4747, 4294901760
      %v4815 = vsub.f32 %v4747, %v4814
      %v4816 = vand.u32 %v4815, 4294901760
      %v4817 = vsub.f32 %v4815, %v4816
      %v4818 = vand.u32 %v4817, 4294901760
      %4819 = vmatpush.msra.mxu0 %v4818
      %v4820 = vand.u32 %v4746, 4294901760
      %v4821 = vsub.f32 %v4746, %v4820
      %v4822 = vand.u32 %v4821, 4294901760
      %v4823 = vsub.f32 %v4821, %v4822
      %v4824 = vand.u32 %v4823, 4294901760
      %4825 = vmatpush.msra.mxu0 %v4824
      %v4826 = vand.u32 %v4745, 4294901760
      %v4827 = vsub.f32 %v4745, %v4826
      %v4828 = vand.u32 %v4827, 4294901760
      %v4829 = vsub.f32 %v4827, %v4828
      %v4830 = vand.u32 %v4829, 4294901760
      %4831 = vmatpush.msra.mxu0 %v4830
      %v4832 = vand.u32 %v4744, 4294901760
      %v4833 = vsub.f32 %v4744, %v4832
      %v4834 = vand.u32 %v4833, 4294901760
      %v4835 = vsub.f32 %v4833, %v4834
      %v4836 = vand.u32 %v4835, 4294901760
      %4837 = vmatpush.msra.mxu0 %v4836
      %v4838 = vand.u32 %v4743, 4294901760
      %v4839 = vsub.f32 %v4743, %v4838
      %v4840 = vand.u32 %v4839, 4294901760
      %v4841 = vsub.f32 %v4839, %v4840
      %v4842 = vand.u32 %v4841, 4294901760
      %4843 = vmatpush.msra.mxu0 %v4842
      %v4844 = vand.u32 %v4742, 4294901760
      %v4845 = vsub.f32 %v4742, %v4844
      %v4846 = vand.u32 %v4845, 4294901760
      %v4847 = vsub.f32 %v4845, %v4846
      %v4848 = vand.u32 %v4847, 4294901760
      %4849 = vmatpush.msra.mxu0 %v4848
      %v4850 = vand.u32 %v4741, 4294901760
      %v4851 = vsub.f32 %v4741, %v4850
      %v4852 = vand.u32 %v4851, 4294901760
      %v4853 = vsub.f32 %v4851, %v4852
      %v4854 = vand.u32 %v4853, 4294901760
      %4855 = vmatpush.msra.mxu0 %v4854
      %v4856 = vand.u32 %v4754, 4294901760
      %4857 = vmatmul.f32.gmra.mxu0 %v4856
      %v4858 = vpop.f32.mrf.mxu0
      %v4859 = vadd.f32 %v4790, %v4858
      %v4860 = vand.u32 %v4757, 4294901760
      %4861 = vmatmul.f32.gmra.mxu0 %v4860
      %v4862 = vpop.f32.mrf.mxu0
      %v4863 = vadd.f32 %v4798, %v4862
      %4864 = vdwg.mxu0
      %4865 = vmatpush.msra.mxu0 0.0
      %4866 = vmatpush.msra.mxu0 0.0
      %4867 = vmatpush.msra.mxu0 0.0
      %4868 = vmatpush.msra.mxu0 0.0
      %4869 = vmatpush.msra.mxu0 0.0
      %4870 = vmatpush.msra.mxu0 0.0
      %4871 = vmatpush.msra.mxu0 0.0
      %4872 = vmatpush.msra.mxu0 0.0
      %v4873 = vand.u32 %v4748, 4294901760
      %v4874 = vsub.f32 %v4748, %v4873
      %4875 = vmatpush.msra.mxu0 %v4874
      %v4876 = vand.u32 %v4747, 4294901760
      %v4877 = vsub.f32 %v4747, %v4876
      %4878 = vmatpush.msra.mxu0 %v4877
      %v4879 = vand.u32 %v4746, 4294901760
      %v4880 = vsub.f32 %v4746, %v4879
      %4881 = vmatpush.msra.mxu0 %v4880
      %v4882 = vand.u32 %v4745, 4294901760
      %v4883 = vsub.f32 %v4745, %v4882
      %4884 = vmatpush.msra.mxu0 %v4883
      %v4885 = vand.u32 %v4744, 4294901760
      %v4886 = vsub.f32 %v4744, %v4885
      %4887 = vmatpush.msra.mxu0 %v4886
      %v4888 = vand.u32 %v4743, 4294901760
      %v4889 = vsub.f32 %v4743, %v4888
      %4890 = vmatpush.msra.mxu0 %v4889
      %v4891 = vand.u32 %v4742, 4294901760
      %v4892 = vsub.f32 %v4742, %v4891
      %4893 = vmatpush.msra.mxu0 %v4892
      %v4894 = vand.u32 %v4741, 4294901760
      %v4895 = vsub.f32 %v4741, %v4894
      %4896 = vmatpush.msra.mxu0 %v4895
      %v4897 = vand.u32 %v4754, 4294901760
      %v4898 = vsub.f32 %v4754, %v4897
      %4899 = vmatmul.f32.gmra.mxu0 %v4898
      %v4900 = vpop.f32.mrf.mxu0
      %v4901 = vadd.f32 %v4859, %v4900
      %v4902 = vand.u32 %v4757, 4294901760
      %v4903 = vsub.f32 %v4757, %v4902
      %4904 = vmatmul.f32.gmra.mxu0 %v4903
      %v4905 = vpop.f32.mrf.mxu0
      %v4906 = vadd.f32 %v4863, %v4905
      %4907 = vdwg.mxu0
      %4908 = vmatpush.msra.mxu0 0.0
      %4909 = vmatpush.msra.mxu0 0.0
      %4910 = vmatpush.msra.mxu0 0.0
      %4911 = vmatpush.msra.mxu0 0.0
      %4912 = vmatpush.msra.mxu0 0.0
      %4913 = vmatpush.msra.mxu0 0.0
      %4914 = vmatpush.msra.mxu0 0.0
      %4915 = vmatpush.msra.mxu0 0.0
      %v4916 = vand.u32 %v4748, 4294901760
      %4917 = vmatpush.msra.mxu0 %v4916
      %v4918 = vand.u32 %v4747, 4294901760
      %4919 = vmatpush.msra.mxu0 %v4918
      %v4920 = vand.u32 %v4746, 4294901760
      %4921 = vmatpush.msra.mxu0 %v4920
      %v4922 = vand.u32 %v4745, 4294901760
      %4923 = vmatpush.msra.mxu0 %v4922
      %v4924 = vand.u32 %v4744, 4294901760
      %4925 = vmatpush.msra.mxu0 %v4924
      %v4926 = vand.u32 %v4743, 4294901760
      %4927 = vmatpush.msra.mxu0 %v4926
      %v4928 = vand.u32 %v4742, 4294901760
      %4929 = vmatpush.msra.mxu0 %v4928
      %v4930 = vand.u32 %v4741, 4294901760
      %4931 = vmatpush.msra.mxu0 %v4930
      %v4932 = vand.u32 %v4754, 4294901760
      %v4933 = vsub.f32 %v4754, %v4932
      %v4934 = vand.u32 %v4933, 4294901760
      %4935 = vmatmul.f32.gmra.mxu0 %v4934
      %v4936 = vpop.f32.mrf.mxu0
      %v4937 = vadd.f32 %v4901, %v4936
      %v4938 = vand.u32 %v4757, 4294901760
      %v4939 = vsub.f32 %v4757, %v4938
      %v4940 = vand.u32 %v4939, 4294901760
      %4941 = vmatmul.f32.gmra.mxu0 %v4940
      %v4942 = vpop.f32.mrf.mxu0
      %v4943 = vadd.f32 %v4906, %v4942
      %4944 = vdwg.mxu0
      %4945 = vmatpush.msra.mxu0 0.0
      %4946 = vmatpush.msra.mxu0 0.0
      %4947 = vmatpush.msra.mxu0 0.0
      %4948 = vmatpush.msra.mxu0 0.0
      %4949 = vmatpush.msra.mxu0 0.0
      %4950 = vmatpush.msra.mxu0 0.0
      %4951 = vmatpush.msra.mxu0 0.0
      %4952 = vmatpush.msra.mxu0 0.0
      %v4953 = vand.u32 %v4748, 4294901760
      %v4954 = vsub.f32 %v4748, %v4953
      %v4955 = vand.u32 %v4954, 4294901760
      %4956 = vmatpush.msra.mxu0 %v4955
      %v4957 = vand.u32 %v4747, 4294901760
      %v4958 = vsub.f32 %v4747, %v4957
      %v4959 = vand.u32 %v4958, 4294901760
      %4960 = vmatpush.msra.mxu0 %v4959
      %v4961 = vand.u32 %v4746, 4294901760
      %v4962 = vsub.f32 %v4746, %v4961
      %v4963 = vand.u32 %v4962, 4294901760
      %4964 = vmatpush.msra.mxu0 %v4963
      %v4965 = vand.u32 %v4745, 4294901760
      %v4966 = vsub.f32 %v4745, %v4965
      %v4967 = vand.u32 %v4966, 4294901760
      %4968 = vmatpush.msra.mxu0 %v4967
      %v4969 = vand.u32 %v4744, 4294901760
      %v4970 = vsub.f32 %v4744, %v4969
      %v4971 = vand.u32 %v4970, 4294901760
      %4972 = vmatpush.msra.mxu0 %v4971
      %v4973 = vand.u32 %v4743, 4294901760
      %v4974 = vsub.f32 %v4743, %v4973
      %v4975 = vand.u32 %v4974, 4294901760
      %4976 = vmatpush.msra.mxu0 %v4975
      %v4977 = vand.u32 %v4742, 4294901760
      %v4978 = vsub.f32 %v4742, %v4977
      %v4979 = vand.u32 %v4978, 4294901760
      %4980 = vmatpush.msra.mxu0 %v4979
      %v4981 = vand.u32 %v4741, 4294901760
      %v4982 = vsub.f32 %v4741, %v4981
      %v4983 = vand.u32 %v4982, 4294901760
      %4984 = vmatpush.msra.mxu0 %v4983
      %v4985 = vand.u32 %v4754, 4294901760
      %4986 = vmatmul.f32.gmra.mxu0 %v4985
      %v4987 = vpop.f32.mrf.mxu0
      %v4988 = vadd.f32 %v4937, %v4987
      %v4989 = vand.u32 %v4757, 4294901760
      %4990 = vmatmul.f32.gmra.mxu0 %v4989
      %v4991 = vpop.f32.mrf.mxu0
      %v4992 = vadd.f32 %v4943, %v4991
      %4993 = vdwg.mxu0
      %4994 = vmatpush.msra.mxu0 0.0
      %4995 = vmatpush.msra.mxu0 0.0
      %4996 = vmatpush.msra.mxu0 0.0
      %4997 = vmatpush.msra.mxu0 0.0
      %4998 = vmatpush.msra.mxu0 0.0
      %4999 = vmatpush.msra.mxu0 0.0
      %5000 = vmatpush.msra.mxu0 0.0
      %5001 = vmatpush.msra.mxu0 0.0
      %v5002 = vand.u32 %v4748, 4294901760
      %5003 = vmatpush.msra.mxu0 %v5002
      %v5004 = vand.u32 %v4747, 4294901760
      %5005 = vmatpush.msra.mxu0 %v5004
      %v5006 = vand.u32 %v4746, 4294901760
      %5007 = vmatpush.msra.mxu0 %v5006
      %v5008 = vand.u32 %v4745, 4294901760
      %5009 = vmatpush.msra.mxu0 %v5008
      %v5010 = vand.u32 %v4744, 4294901760
      %5011 = vmatpush.msra.mxu0 %v5010
      %v5012 = vand.u32 %v4743, 4294901760
      %5013 = vmatpush.msra.mxu0 %v5012
      %v5014 = vand.u32 %v4742, 4294901760
      %5015 = vmatpush.msra.mxu0 %v5014
      %v5016 = vand.u32 %v4741, 4294901760
      %5017 = vmatpush.msra.mxu0 %v5016
      %v5018 = vand.u32 %v4754, 4294901760
      %5019 = vmatmul.f32.gmra.mxu0 %v5018
      %v5020 = vpop.f32.mrf.mxu0
      %v5021 = vadd.f32 %v4988, %v5020
      %v5022 = vand.u32 %v4757, 4294901760
      %5023 = vmatmul.f32.gmra.mxu0 %v5022
      %v5024 = vpop.f32.mrf.mxu0
      %v5025 = vadd.f32 %v4992, %v5024
      %5026 = vdwg.mxu0
      %5027 = vst.msk [vmem:[%s413] sm:$0xff] %vm713, %v5021
      %5028 = vst.msk [vmem:[%s413 + $0x8] sm:$0xff] %vm713, %v5025
      %v5029 = vsel %vm713, %v5021, 0.0
      %5030 = vadd.xlane.f32.xlu0 %v5029
      %v5031 = vpop.xlane.xlu0 %5030
      %v5032 = vsel %vm713, %v5025, 0.0
      %5033 = vadd.xlane.f32.xlu0 %v5032
      %v5034 = vpop.xlane.xlu0 %5033
      %v5035 = vadd.f32 %v5031, %v5034
      %v5036 = vrot.slane %v5035, 4
      %v5037 = vadd.f32 %v5035, %v5036
      %v5038 = vrot.slane %v5037, 2
      %v5039 = vadd.f32 %v5037, %v5038
      %v5040 = vrot.slane %v5039, 1
      %v5041 = vadd.f32 %v5039, %v5040
      %vm5042 = vcmask 0
      %5043 = vst.msk [vmem:[%s426] sm:$0x1] %vm5042, %v5041
      %v5044 = vmul.f32 %v5021, %v5021
      %v5045 = vmul.f32 %v5025, %v5025
      %v5046 = vsel %vm713, %v5044, 0.0
      %5047 = vadd.xlane.f32.xlu0 %v5046
      %v5048 = vpop.xlane.xlu0 %5047
      %v5049 = vsel %vm713, %v5045, 0.0
      %5050 = vadd.xlane.f32.xlu0 %v5049
      %v5051 = vpop.xlane.xlu0 %5050
      %v5052 = vadd.f32 %v5048, %v5051
      %v5053 = vrot.slane %v5052, 4
      %v5054 = vadd.f32 %v5052, %v5053
      %v5055 = vrot.slane %v5054, 2
      %v5056 = vadd.f32 %v5054, %v5055
      %v5057 = vrot.slane %v5056, 1
      %v5058 = vadd.f32 %v5056, %v5057
      %5059 = vst.msk [vmem:[%s429] sm:$0x1] %vm5042, %v5058
      %p5060 = scmp.lt.s32.totalorder %s22, 1
      %s5061 = scalar_select %p5060, %s22, 1
      %s5062 = smul.addr %s5061, 16
      %s5063 = smul.addr %s5062, 8
      %s5064 = scalar_lea.vmem %s5, %s5063
      %p5065 = scmp.lt.s32.totalorder %s22, 1
      %s5066 = scalar_select %p5065, %s22, 1
      %s5067 = smul.addr %s5066, 2
      %s5068 = smul.addr %s5067, 8
      %s5069 = scalar_lea.vmem %s6, %s5068
      %p5070 = scmp.lt.s32.totalorder %s22, 1
      %s5071 = scalar_select %p5070, %s22, 1
      %s5072 = smul.addr %s5071, 2
      %s5073 = smul.addr %s5072, 8
      %s5074 = scalar_lea.vmem %s7, %s5073
      %p5075 = scmp.lt.s32.totalorder %s22, 1
      %s5076 = scalar_select %p5075, %s22, 1
      %s5077 = smul.addr %s5076, 2
      %s5078 = smul.addr %s5077, 8
      %s5079 = scalar_lea.vmem %s8, %s5078
      %p5080 = scmp.lt.s32.totalorder %s22, 1
      %s5081 = scalar_select %p5080, %s22, 1
      %s5082 = scalar_lea.vmem %s9, %s5081
      %p5083 = scmp.lt.s32.totalorder %s22, 1
      %s5084 = scalar_select %p5083, %s22, 1
      %s5085 = scalar_lea.vmem %s10, %s5084
      // Predicated region
      $region41: #{input_preprocess_forward.3} parent=39 // pred_check
        %p5086 = pneg %p155
      $region42: #{input_preprocess_forward.3} parent=39 // pred_check_branch
        %5088 = sbr.rel (%p5086) target = $region44
      $region43: #{input_preprocess_forward.3} parent=39 // pred_region
        _
      $region44: #{input_preprocess_forward.3} parent=39 // pred_fallthru
        _
      // Predicated region
      $region45: #{input_preprocess_forward.3} parent=39 // pred_check
        %p5089 = pneg %p181
      $region46: #{input_preprocess_forward.3} parent=39 // pred_check_branch
        %5091 = sbr.rel (%p5089) target = $region48
      $region47: #{input_preprocess_forward.3} parent=39 // pred_region
        _
      $region48: #{input_preprocess_forward.3} parent=39 // pred_fallthru
        _
      // Predicated region
      $region49: #{input_preprocess_forward.3} parent=39 // pred_check
        %p5092 = pneg %p207
      $region50: #{input_preprocess_forward.3} parent=39 // pred_check_branch
        %5094 = sbr.rel (%p5092) target = $region52
      $region51: #{input_preprocess_forward.3} parent=39 // pred_region
        _
      $region52: #{input_preprocess_forward.3} parent=39 // pred_fallthru
        _
      // Predicated region
      $region53: #{input_preprocess_forward.3} parent=39 // pred_check
        %p5095 = pneg %p233
      $region54: #{input_preprocess_forward.3} parent=39 // pred_check_branch
        %5097 = sbr.rel (%p5095) target = $region56
      $region55: #{input_preprocess_forward.3} parent=39 // pred_region
        _
      $region56: #{input_preprocess_forward.3} parent=39 // pred_fallthru
        _
      // Predicated region
      $region57: #{input_preprocess_forward.3} parent=39 // pred_check
        %p5098 = pneg %p259
      $region58: #{input_preprocess_forward.3} parent=39 // pred_check_branch
        %5100 = sbr.rel (%p5098) target = $region60
      $region59: #{input_preprocess_forward.3} parent=39 // pred_region
        _
      $region60: #{input_preprocess_forward.3} parent=39 // pred_fallthru
        _
      // Predicated region
      $region61: #{input_preprocess_forward.3} parent=39 // pred_check
        %p5101 = pneg %p285
      $region62: #{input_preprocess_forward.3} parent=39 // pred_check_branch
        %5103 = sbr.rel (%p5101) target = $region64
      $region63: #{input_preprocess_forward.3} parent=39 // pred_region
        _
      $region64: #{input_preprocess_forward.3} parent=39 // pred_fallthru
        _
    $region40: #{input_preprocess_forward.3} parent=5 // pred_fallthru
      _
    %p5104 = scmp.le.s32.totalorder 2, %s17
    // Predicated region
    $region65: #{input_preprocess_forward.3} parent=5 // pred_check
      %p5105 = pneg %p5104
    $region66: #{input_preprocess_forward.3} parent=5 // pred_check_branch
      %5107 = sbr.rel (%p5105) target = $region68
    $region67: #{input_preprocess_forward.3} parent=5 // pred_region
      %s5108 = ssub.s32 %s17, 2
      // Predicated region
      $region69: #{input_preprocess_forward.3} parent=67 // pred_check
        %p5109 = pneg %p161
      $region70: #{input_preprocess_forward.3} parent=67 // pred_check_branch
        %5111 = sbr.rel (%p5109) target = $region72
      $region71: #{input_preprocess_forward.3} parent=67 // pred_region
        %p5112 = scmp.lt.s32.totalorder %s23, 1
        %s5113 = scalar_select %p5112, %s23, 1
        %s5114 = smul.addr %s5113, 16
        %s5115 = smul.addr %s5114, 8
        %s5116 = scalar_lea.vmem %s5, %s5115
      $region72: #{input_preprocess_forward.3} parent=67 // pred_fallthru
        _
      // Predicated region
      $region73: #{input_preprocess_forward.3} parent=67 // pred_check
        %p5117 = pneg %p187
      $region74: #{input_preprocess_forward.3} parent=67 // pred_check_branch
        %5119 = sbr.rel (%p5117) target = $region76
      $region75: #{input_preprocess_forward.3} parent=67 // pred_region
        %p5120 = scmp.lt.s32.totalorder %s23, 1
        %s5121 = scalar_select %p5120, %s23, 1
        %s5122 = smul.addr %s5121, 2
        %s5123 = smul.addr %s5122, 8
        %s5124 = scalar_lea.vmem %s6, %s5123
      $region76: #{input_preprocess_forward.3} parent=67 // pred_fallthru
        _
      // Predicated region
      $region77: #{input_preprocess_forward.3} parent=67 // pred_check
        %p5125 = pneg %p213
      $region78: #{input_preprocess_forward.3} parent=67 // pred_check_branch
        %5127 = sbr.rel (%p5125) target = $region80
      $region79: #{input_preprocess_forward.3} parent=67 // pred_region
        %p5128 = scmp.lt.s32.totalorder %s23, 1
        %s5129 = scalar_select %p5128, %s23, 1
        %s5130 = smul.addr %s5129, 2
        %s5131 = smul.addr %s5130, 8
        %s5132 = scalar_lea.vmem %s7, %s5131
      $region80: #{input_preprocess_forward.3} parent=67 // pred_fallthru
        _
      // Predicated region
      $region81: #{input_preprocess_forward.3} parent=67 // pred_check
        %p5133 = pneg %p239
      $region82: #{input_preprocess_forward.3} parent=67 // pred_check_branch
        %5135 = sbr.rel (%p5133) target = $region84
      $region83: #{input_preprocess_forward.3} parent=67 // pred_region
        %p5136 = scmp.lt.s32.totalorder %s23, 1
        %s5137 = scalar_select %p5136, %s23, 1
        %s5138 = smul.addr %s5137, 2
        %s5139 = smul.addr %s5138, 8
        %s5140 = scalar_lea.vmem %s8, %s5139
      $region84: #{input_preprocess_forward.3} parent=67 // pred_fallthru
        _
      // Predicated region
      $region85: #{input_preprocess_forward.3} parent=67 // pred_check
        %p5141 = pneg %p265
      $region86: #{input_preprocess_forward.3} parent=67 // pred_check_branch
        %5143 = sbr.rel (%p5141) target = $region88
      $region87: #{input_preprocess_forward.3} parent=67 // pred_region
        %p5144 = scmp.lt.s32.totalorder %s23, 1
        %s5145 = scalar_select %p5144, %s23, 1
        %s5146 = scalar_lea.vmem %s9, %s5145
      $region88: #{input_preprocess_forward.3} parent=67 // pred_fallthru
        _
      // Predicated region
      $region89: #{input_preprocess_forward.3} parent=67 // pred_check
        %p5147 = pneg %p291
      $region90: #{input_preprocess_forward.3} parent=67 // pred_check_branch
        %5149 = sbr.rel (%p5147) target = $region92
      $region91: #{input_preprocess_forward.3} parent=67 // pred_region
        %p5150 = scmp.lt.s32.totalorder %s23, 1
        %s5151 = scalar_select %p5150, %s23, 1
        %s5152 = scalar_lea.vmem %s10, %s5151
      $region92: #{input_preprocess_forward.3} parent=67 // pred_fallthru
        _
    $region68: #{input_preprocess_forward.3} parent=5 // pred_fallthru
      _
  $region6: #{input_preprocess_forward.3} parent=0 // loop_footer
    %s21 = sadd.s32 1, %s17
  $region7: #{input_preprocess_forward.3} parent=0 // loop_footer_branch
    %16 = sbr.rel target = $region3
  $region8: #{input_preprocess_forward.3} parent=0 // loop_exit
    _

</llo_original>
